<compile_context>
chip_gen: v7x
topology: tpu7x:2x2x1
jax: 0.10.0
libtpu: 0.0.40
codegen_flags: <defaults>
</compile_context>

<pallas_src>
import numpy as np
import jax
import jax.numpy as jnp
from jax import lax
from jax.experimental import pallas as pl
from jax.experimental.pallas import tpu as pltpu


_PAD = 16  # extra scratch rows so every kernel-row shift is an in-bounds slice


def _round_up(v, m):
    return (v + m - 1) // m * m


def _pool_selector(num_ch, width, parity):
    # sel[c*width + 2a + parity, c*(width//2) + a] = 1 : picks the even/odd
    # column of each 2x2 pooling pair inside every channel's lane block.
    half = width // 2
    sel = np.zeros((num_ch * width, num_ch * half), np.float32)
    for c in range(num_ch):
        for a in range(half):
            sel[c * width + 2 * a + parity, c * half + a] = 1.0
    return jnp.asarray(sel)


def _banded_taps(win, wout):
    # t[kw, i, x] = 1 iff i == x + kw ; used to scatter conv taps into the
    # banded per-kernel-row weight matrices.
    t = np.zeros((5, win, wout), np.float32)
    for kw in range(5):
        for x in range(wout):
            t[kw, x + kw, x] = 1.0
    return jnp.asarray(t)


def _make_kernel(B):
    R = B * 32
    f32 = jnp.float32

    def kernel(x_ref, a1_ref, b1_ref, ce1_ref, co1_ref,
               a2_ref, b2_ref, ce2_ref, co2_ref,
               w1p_ref, fb1_ref, w2t_ref, fb2_ref, w3t_ref, fb3_ref,
               sel0_ref, out_ref, xbuf, p1buf, p2buf):
        def mm(a, b):
            return jnp.dot(a, b, preferred_element_type=f32)

        # Stage the input block into a row-padded slab; keep all padding rows
        # zero (finite) so selector matmuls never touch NaN/inf garbage.
        xbuf[0:R, :] = x_ref[...]
        xbuf[R:R + _PAD, :] = jnp.zeros((_PAD, 32), f32)
        p1buf[R:R + _PAD, :] = jnp.zeros((_PAD, 6 * 14), f32)
        p2buf[R:R + _PAD, :] = jnp.zeros((_PAD, 16 * 5), f32)

        # ---- conv1 (1->6, 5x5) + relu: 5 banded matmuls over the batch -----
        acc1 = mm(xbuf[0:R, :], a1_ref[0])
        for kh in range(1, 5):
            acc1 = acc1 + mm(xbuf[kh:kh + R, :], a1_ref[kh])
        c1 = jnp.maximum(acc1 + b1_ref[...], 0.0)                  # (R, 168)

        # ---- maxpool 2x2: cols via even/odd selectors, rows via shift-max --
        px1 = jnp.maximum(mm(c1, ce1_ref[...]), mm(c1, co1_ref[...]))
        p1buf[0:R, :] = px1
        p1buf[0:R, :] = jnp.maximum(p1buf[0:R, :], p1buf[1:1 + R, :])

        # ---- conv2 (6->16, 5x5) + relu: valid rows now live at stride 2 ----
        acc2 = mm(p1buf[0:R, :], a2_ref[0])
        for kh in range(1, 5):
            acc2 = acc2 + mm(p1buf[2 * kh:2 * kh + R, :], a2_ref[kh])
        c2 = jnp.maximum(acc2 + b2_ref[...], 0.0)                  # (R, 160)

        px2 = jnp.maximum(mm(c2, ce2_ref[...]), mm(c2, co2_ref[...]))
        p2buf[0:R, :] = px2
        p2buf[0:R, :] = jnp.maximum(p2buf[0:R, :], p2buf[2:2 + R, :])

        # ---- flatten (C,H,W order) + fc1/relu + fc2/relu + fc3 -------------
        h1 = fb1_ref[...]                                           # (1, 120)
        for y in range(5):
            g = mm(sel0_ref[...], p2buf[4 * y:4 * y + R, :])        # (B, 80)
            h1 = h1 + mm(g, w1p_ref[y])
        h1 = jnp.maximum(h1, 0.0)                                   # (B, 120)
        h2 = jnp.maximum(mm(h1, w2t_ref[...]) + fb2_ref[...], 0.0)  # (B, 60)
        out_ref[...] = mm(h2, w3t_ref[...]) + fb3_ref[...]          # (B, 128)

    return kernel


def qnet_forward(x_nchw, params, block_b=32):
    (w1, b1, w2, b2, W1, bb1, W2, bb2, W3, bb3) = params
    N = x_nchw.shape[0]
    B = int(min(block_b, _round_up(N, 8)))
    n_pad = _round_up(N, B)
    R = B * 32

    x = x_nchw.reshape(N, 32, 32).astype(jnp.float32)
    if n_pad != N:
        x = jnp.pad(x, ((0, n_pad - N), (0, 0), (0, 0)))
    x2d = x.reshape(n_pad * 32, 32)

    # conv1 -> 5 banded (32, 6*28) matrices (one per kernel row); output lane
    # packing is c*28 + x.
    a1 = jnp.einsum('wix,chw->hicx', _banded_taps(32, 28),
                    w1[:, 0].astype(jnp.float32)).reshape(5, 32, 6 * 28)
    b1l = jnp.repeat(b1.astype(jnp.float32), 28).reshape(1, 6 * 28)

    # conv2 -> 5 banded (6*14, 16*10) matrices; output lane packing d*10 + x.
    a2 = jnp.einsum('wix,dchw->hcidx', _banded_taps(14, 10),
                    w2.astype(jnp.float32)).reshape(5, 6 * 14, 16 * 10)
    b2l = jnp.repeat(b2.astype(jnp.float32), 10).reshape(1, 16 * 10)

    ce1, co1 = _pool_selector(6, 28, 0), _pool_selector(6, 28, 1)
    ce2, co2 = _pool_selector(16, 10, 0), _pool_selector(16, 10, 1)

    # fc1 weight split per pooled row y: w1p[y, d*5+x, j] = W1[j, d*25+y*5+x].
    w1p = (W1.astype(jnp.float32).reshape(120, 16, 5, 5)
           .transpose(2, 1, 3, 0).reshape(5, 80, 120))
    fb1 = bb1.astype(jnp.float32).reshape(1, 120)
    w2t = W2.astype(jnp.float32).T                               # (120, 60)
    fb2 = bb2.astype(jnp.float32).reshape(1, 60)
    # fc3 padded to 128 output lanes -> unmasked full-width output stores.
    w3t = jnp.zeros((60, 128), jnp.float32).at[:, :4].set(
        W3.astype(jnp.float32).T)
    fb3 = jnp.zeros((1, 128), jnp.float32).at[:, :4].set(
        bb3.astype(jnp.float32).reshape(1, 4))

    # Row selector picking slab row b*32 for each sample b of the block.
    sel0_np = np.zeros((B, R), np.float32)
    sel0_np[np.arange(B), np.arange(B) * 32] = 1.0
    sel0 = jnp.asarray(sel0_np)

    consts = (a1, b1l, ce1, co1, a2, b2l, ce2, co2,
              w1p, fb1, w2t, fb2, w3t, fb3, sel0)

    def const_spec(arr):
        nd = arr.ndim
        return pl.BlockSpec(arr.shape, lambda n, _nd=nd: (0,) * _nd)

    out = pl.pallas_call(
        _make_kernel(B),
        out_shape=jax.ShapeDtypeStruct((n_pad, 128), jnp.float32),
        grid=(n_pad // B,),
        in_specs=[pl.BlockSpec((R, 32), lambda n: (n, 0))]
                 + [const_spec(c) for c in consts],
        out_specs=pl.BlockSpec((B, 128), lambda n: (n, 0)),
        scratch_shapes=[pltpu.VMEM((R + _PAD, 32), jnp.float32),
                        pltpu.VMEM((R + _PAD, 6 * 14), jnp.float32),
                        pltpu.VMEM((R + _PAD, 16 * 5), jnp.float32)],
        compiler_params=pltpu.CompilerParams(
            dimension_semantics=("parallel",),
            vmem_limit_bytes=48 * 1024 * 1024),
    )(x2d, *consts)
    return out[:N, :4]


def qnet_reference(x, params):
    # Pure-JAX reference matching the (intended) PyTorch forward semantics.
    (w1, b1, w2, b2, W1, bb1, W2, bb2, W3, bb3) = params
    dn = ('NCHW', 'OIHW', 'NCHW')
    a = lax.conv_general_dilated(x, w1, (1, 1), 'VALID', dimension_numbers=dn)
    a = jnp.maximum(a + b1[None, :, None, None], 0.0)
    a = lax.reduce_window(a, -jnp.inf, lax.max, (1, 1, 2, 2), (1, 1, 2, 2), 'VALID')
    a = lax.conv_general_dilated(a, w2, (1, 1), 'VALID', dimension_numbers=dn)
    a = jnp.maximum(a + b2[None, :, None, None], 0.0)
    a = lax.reduce_window(a, -jnp.inf, lax.max, (1, 1, 2, 2), (1, 1, 2, 2), 'VALID')
    a = a.reshape(a.shape[0], -1)                 # intended state.view(-1, 400)
    a = jnp.maximum(a @ W1.T + bb1, 0.0)
    a = jnp.maximum(a @ W2.T + bb2, 0.0)
    return a @ W3.T + bb3


if __name__ == "__main__":
    key = jax.random.PRNGKey(0)
    ks = jax.random.split(key, 11)

    def init(k, shape, fan_in):
        return jax.random.normal(k, shape, jnp.float32) / np.sqrt(fan_in)

    params = (
        init(ks[0], (6, 1, 5, 5), 25),   init(ks[1], (6,), 25),     # conv1
        init(ks[2], (16, 6, 5, 5), 150), init(ks[3], (16,), 150),   # conv2
        init(ks[4], (120, 400), 400),    init(ks[5], (120,), 400),  # fc1
        init(ks[6], (60, 120), 120),     init(ks[7], (60,), 120),   # fc2
        init(ks[8], (4, 60), 60),        init(ks[9], (4,), 60),     # fc3
    )
    x = jax.random.normal(ks[10], (2, 1, 32, 32), jnp.float32)      # NCHW input

    out = qnet_forward(x, params)
    out = jax.block_until_ready(out)

    ref = qnet_reference(x, params)
    assert out.shape == (2, 4)
    np.testing.assert_allclose(np.asarray(out), np.asarray(ref),
                               rtol=2e-2, atol=2e-2)
    print("KERNEL_OK")
</pallas_src>

<mosaic_0001>
module attributes {stable_mosaic.version = 11 : i64} {
  func.func @kernel(%arg0: i32, %arg1: memref<256x32xf32, #tpu.memory_space<vmem>>, %arg2: memref<5x32x168xf32, #tpu.memory_space<vmem>>, %arg3: memref<1x168xf32, #tpu.memory_space<vmem>>, %arg4: memref<168x84xf32, #tpu.memory_space<vmem>>, %arg5: memref<168x84xf32, #tpu.memory_space<vmem>>, %arg6: memref<5x84x160xf32, #tpu.memory_space<vmem>>, %arg7: memref<1x160xf32, #tpu.memory_space<vmem>>, %arg8: memref<160x80xf32, #tpu.memory_space<vmem>>, %arg9: memref<160x80xf32, #tpu.memory_space<vmem>>, %arg10: memref<5x80x120xf32, #tpu.memory_space<vmem>>, %arg11: memref<1x120xf32, #tpu.memory_space<vmem>>, %arg12: memref<120x60xf32, #tpu.memory_space<vmem>>, %arg13: memref<1x60xf32, #tpu.memory_space<vmem>>, %arg14: memref<60x128xf32, #tpu.memory_space<vmem>>, %arg15: memref<1x128xf32, #tpu.memory_space<vmem>>, %arg16: memref<8x256xf32, #tpu.memory_space<vmem>>, %arg17: memref<8x128xf32, #tpu.memory_space<vmem>>, %arg18: memref<272x32xf32, #tpu.memory_space<vmem>>, %arg19: memref<272x84xf32, #tpu.memory_space<vmem>>, %arg20: memref<272x80xf32, #tpu.memory_space<vmem>>) attributes {dimension_semantics = [#tpu.dimension_semantics<parallel>], iteration_bounds = array<i64: 1>, scalar_prefetch = 0 : i64, scratch_operands = 3 : i64, tpu.core_type = #tpu.core_type<tc>, window_params = [{transform_indices = @transform_0, window_bounds = array<i64: 256, 32>}, {pipeline_mode = #tpu.pipeline_mode<synchronous>, transform_indices = @transform_1, window_bounds = array<i64: 5, 32, 168>}, {pipeline_mode = #tpu.pipeline_mode<synchronous>, transform_indices = @transform_2, window_bounds = array<i64: 1, 168>}, {pipeline_mode = #tpu.pipeline_mode<synchronous>, transform_indices = @transform_3, window_bounds = array<i64: 168, 84>}, {pipeline_mode = #tpu.pipeline_mode<synchronous>, transform_indices = @transform_4, window_bounds = array<i64: 168, 84>}, {pipeline_mode = #tpu.pipeline_mode<synchronous>, transform_indices = @transform_5, window_bounds = array<i64: 5, 84, 160>}, {pipeline_mode = #tpu.pipeline_mode<synchronous>, transform_indices = @transform_6, window_bounds = array<i64: 1, 160>}, {pipeline_mode = #tpu.pipeline_mode<synchronous>, transform_indices = @transform_7, window_bounds = array<i64: 160, 80>}, {pipeline_mode = #tpu.pipeline_mode<synchronous>, transform_indices = @transform_8, window_bounds = array<i64: 160, 80>}, {pipeline_mode = #tpu.pipeline_mode<synchronous>, transform_indices = @transform_9, window_bounds = array<i64: 5, 80, 120>}, {pipeline_mode = #tpu.pipeline_mode<synchronous>, transform_indices = @transform_10, window_bounds = array<i64: 1, 120>}, {pipeline_mode = #tpu.pipeline_mode<synchronous>, transform_indices = @transform_11, window_bounds = array<i64: 120, 60>}, {pipeline_mode = #tpu.pipeline_mode<synchronous>, transform_indices = @transform_12, window_bounds = array<i64: 1, 60>}, {pipeline_mode = #tpu.pipeline_mode<synchronous>, transform_indices = @transform_13, window_bounds = array<i64: 60, 128>}, {pipeline_mode = #tpu.pipeline_mode<synchronous>, transform_indices = @transform_14, window_bounds = array<i64: 1, 128>}, {pipeline_mode = #tpu.pipeline_mode<synchronous>, transform_indices = @transform_15, window_bounds = array<i64: 8, 256>}, {transform_indices = @transform_16, window_bounds = array<i64: 8, 128>}]} {
    %c0 = arith.constant 0 : index
    %c0_0 = arith.constant 0 : index
    %0 = vector.load %arg1[%c0, %c0_0] : memref<256x32xf32, #tpu.memory_space<vmem>>, vector<256x32xf32>
    %c0_1 = arith.constant 0 : index
    %c0_2 = arith.constant 0 : index
    %1 = vector.load %arg18[%c0_1, %c0_2] : memref<272x32xf32, #tpu.memory_space<vmem>>, vector<256x32xf32>
    tpu.vector_store %arg18[%c0_1, %c0_2], %0 {strides = array<i32>} : memref<272x32xf32, #tpu.memory_space<vmem>>, vector<256x32xf32>,
    %cst = arith.constant 0.000000e+00 : f32
    %2 = vector.broadcast %cst : f32 to vector<16x32xf32>
    %c256 = arith.constant 256 : index
    %c0_3 = arith.constant 0 : index
    %3 = vector.load %arg18[%c256, %c0_3] : memref<272x32xf32, #tpu.memory_space<vmem>>, vector<16x32xf32>
    tpu.vector_store %arg18[%c256, %c0_3], %2 {strides = array<i32>} : memref<272x32xf32, #tpu.memory_space<vmem>>, vector<16x32xf32>,
    %cst_4 = arith.constant 0.000000e+00 : f32
    %4 = vector.broadcast %cst_4 : f32 to vector<16x84xf32>
    %c256_5 = arith.constant 256 : index
    %c0_6 = arith.constant 0 : index
    %5 = vector.load %arg19[%c256_5, %c0_6] : memref<272x84xf32, #tpu.memory_space<vmem>>, vector<16x84xf32>
    tpu.vector_store %arg19[%c256_5, %c0_6], %4 {strides = array<i32>} : memref<272x84xf32, #tpu.memory_space<vmem>>, vector<16x84xf32>,
    %cst_7 = arith.constant 0.000000e+00 : f32
    %6 = vector.broadcast %cst_7 : f32 to vector<16x80xf32>
    %c256_8 = arith.constant 256 : index
    %c0_9 = arith.constant 0 : index
    %7 = vector.load %arg20[%c256_8, %c0_9] : memref<272x80xf32, #tpu.memory_space<vmem>>, vector<16x80xf32>
    tpu.vector_store %arg20[%c256_8, %c0_9], %6 {strides = array<i32>} : memref<272x80xf32, #tpu.memory_space<vmem>>, vector<16x80xf32>,
    %c0_10 = arith.constant 0 : index
    %c0_11 = arith.constant 0 : index
    %8 = vector.load %arg18[%c0_10, %c0_11] : memref<272x32xf32, #tpu.memory_space<vmem>>, vector<256x32xf32>
    %c0_12 = arith.constant 0 : index
    %c0_13 = arith.constant 0 : index
    %c0_14 = arith.constant 0 : index
    %9 = vector.load %arg2[%c0_12, %c0_13, %c0_14] : memref<5x32x168xf32, #tpu.memory_space<vmem>>, vector<1x32x168xf32>
    %10 = vector.shape_cast %9 : vector<1x32x168xf32> to vector<32x168xf32>
    %cst_15 = arith.constant dense<0.000000e+00> : vector<256x168xf32>
    %11 = tpu.matmul %8, %10, %cst_15 {dimension_numbers = #tpu.dot_dimension_numbers<[1], [0], [0], [1], [0, 0, 1, 1], [], []>} : vector<256x32xf32>, vector<32x168xf32>, vector<256x168xf32> -> vector<256x168xf32>
    %c1 = arith.constant 1 : index
    %c0_16 = arith.constant 0 : index
    %12 = vector.load %arg18[%c1, %c0_16] : memref<272x32xf32, #tpu.memory_space<vmem>>, vector<256x32xf32>
    %c1_17 = arith.constant 1 : index
    %c0_18 = arith.constant 0 : index
    %c0_19 = arith.constant 0 : index
    %13 = vector.load %arg2[%c1_17, %c0_18, %c0_19] : memref<5x32x168xf32, #tpu.memory_space<vmem>>, vector<1x32x168xf32>
    %14 = vector.shape_cast %13 : vector<1x32x168xf32> to vector<32x168xf32>
    %cst_20 = arith.constant dense<0.000000e+00> : vector<256x168xf32>
    %15 = tpu.matmul %12, %14, %cst_20 {dimension_numbers = #tpu.dot_dimension_numbers<[1], [0], [0], [1], [0, 0, 1, 1], [], []>} : vector<256x32xf32>, vector<32x168xf32>, vector<256x168xf32> -> vector<256x168xf32>
    %16 = arith.addf %11, %15 : vector<256x168xf32>
    %c2 = arith.constant 2 : index
    %c0_21 = arith.constant 0 : index
    %17 = vector.load %arg18[%c2, %c0_21] : memref<272x32xf32, #tpu.memory_space<vmem>>, vector<256x32xf32>
    %c2_22 = arith.constant 2 : index
    %c0_23 = arith.constant 0 : index
    %c0_24 = arith.constant 0 : index
    %18 = vector.load %arg2[%c2_22, %c0_23, %c0_24] : memref<5x32x168xf32, #tpu.memory_space<vmem>>, vector<1x32x168xf32>
    %19 = vector.shape_cast %18 : vector<1x32x168xf32> to vector<32x168xf32>
    %cst_25 = arith.constant dense<0.000000e+00> : vector<256x168xf32>
    %20 = tpu.matmul %17, %19, %cst_25 {dimension_numbers = #tpu.dot_dimension_numbers<[1], [0], [0], [1], [0, 0, 1, 1], [], []>} : vector<256x32xf32>, vector<32x168xf32>, vector<256x168xf32> -> vector<256x168xf32>
    %21 = arith.addf %16, %20 : vector<256x168xf32>
    %c3 = arith.constant 3 : index
    %c0_26 = arith.constant 0 : index
    %22 = vector.load %arg18[%c3, %c0_26] : memref<272x32xf32, #tpu.memory_space<vmem>>, vector<256x32xf32>
    %c3_27 = arith.constant 3 : index
    %c0_28 = arith.constant 0 : index
    %c0_29 = arith.constant 0 : index
    %23 = vector.load %arg2[%c3_27, %c0_28, %c0_29] : memref<5x32x168xf32, #tpu.memory_space<vmem>>, vector<1x32x168xf32>
    %24 = vector.shape_cast %23 : vector<1x32x168xf32> to vector<32x168xf32>
    %cst_30 = arith.constant dense<0.000000e+00> : vector<256x168xf32>
    %25 = tpu.matmul %22, %24, %cst_30 {dimension_numbers = #tpu.dot_dimension_numbers<[1], [0], [0], [1], [0, 0, 1, 1], [], []>} : vector<256x32xf32>, vector<32x168xf32>, vector<256x168xf32> -> vector<256x168xf32>
    %26 = arith.addf %21, %25 : vector<256x168xf32>
    %c4 = arith.constant 4 : index
    %c0_31 = arith.constant 0 : index
    %27 = vector.load %arg18[%c4, %c0_31] : memref<272x32xf32, #tpu.memory_space<vmem>>, vector<256x32xf32>
    %c4_32 = arith.constant 4 : index
    %c0_33 = arith.constant 0 : index
    %c0_34 = arith.constant 0 : index
    %28 = vector.load %arg2[%c4_32, %c0_33, %c0_34] : memref<5x32x168xf32, #tpu.memory_space<vmem>>, vector<1x32x168xf32>
    %29 = vector.shape_cast %28 : vector<1x32x168xf32> to vector<32x168xf32>
    %cst_35 = arith.constant dense<0.000000e+00> : vector<256x168xf32>
    %30 = tpu.matmul %27, %29, %cst_35 {dimension_numbers = #tpu.dot_dimension_numbers<[1], [0], [0], [1], [0, 0, 1, 1], [], []>} : vector<256x32xf32>, vector<32x168xf32>, vector<256x168xf32> -> vector<256x168xf32>
    %31 = arith.addf %26, %30 : vector<256x168xf32>
    %c0_36 = arith.constant 0 : index
    %c0_37 = arith.constant 0 : index
    %32 = vector.load %arg3[%c0_36, %c0_37] : memref<1x168xf32, #tpu.memory_space<vmem>>, vector<1x168xf32>
    %33 = vector.broadcast %32 : vector<1x168xf32> to vector<256x168xf32>
    %34 = arith.addf %31, %33 : vector<256x168xf32>
    %cst_38 = arith.constant 0.000000e+00 : f32
    %35 = vector.broadcast %cst_38 : f32 to vector<256x168xf32>
    %36 = arith.maximumf %34, %35 : vector<256x168xf32>
    %c0_39 = arith.constant 0 : index
    %c0_40 = arith.constant 0 : index
    %37 = vector.load %arg4[%c0_39, %c0_40] : memref<168x84xf32, #tpu.memory_space<vmem>>, vector<168x84xf32>
    %cst_41 = arith.constant dense<0.000000e+00> : vector<256x84xf32>
    %38 = tpu.matmul %36, %37, %cst_41 {dimension_numbers = #tpu.dot_dimension_numbers<[1], [0], [0], [1], [0, 0, 1, 1], [], []>} : vector<256x168xf32>, vector<168x84xf32>, vector<256x84xf32> -> vector<256x84xf32>
    %c0_42 = arith.constant 0 : index
    %c0_43 = arith.constant 0 : index
    %39 = vector.load %arg5[%c0_42, %c0_43] : memref<168x84xf32, #tpu.memory_space<vmem>>, vector<168x84xf32>
    %cst_44 = arith.constant dense<0.000000e+00> : vector<256x84xf32>
    %40 = tpu.matmul %36, %39, %cst_44 {dimension_numbers = #tpu.dot_dimension_numbers<[1], [0], [0], [1], [0, 0, 1, 1], [], []>} : vector<256x168xf32>, vector<168x84xf32>, vector<256x84xf32> -> vector<256x84xf32>
    %41 = arith.maximumf %38, %40 : vector<256x84xf32>
    %c0_45 = arith.constant 0 : index
    %c0_46 = arith.constant 0 : index
    %42 = vector.load %arg19[%c0_45, %c0_46] : memref<272x84xf32, #tpu.memory_space<vmem>>, vector<256x84xf32>
    tpu.vector_store %arg19[%c0_45, %c0_46], %41 {strides = array<i32>} : memref<272x84xf32, #tpu.memory_space<vmem>>, vector<256x84xf32>,
    %c0_47 = arith.constant 0 : index
    %c0_48 = arith.constant 0 : index
    %43 = vector.load %arg19[%c0_47, %c0_48] : memref<272x84xf32, #tpu.memory_space<vmem>>, vector<256x84xf32>
    %c1_49 = arith.constant 1 : index
    %c0_50 = arith.constant 0 : index
    %44 = vector.load %arg19[%c1_49, %c0_50] : memref<272x84xf32, #tpu.memory_space<vmem>>, vector<256x84xf32>
    %45 = arith.maximumf %43, %44 : vector<256x84xf32>
    %c0_51 = arith.constant 0 : index
    %c0_52 = arith.constant 0 : index
    %46 = vector.load %arg19[%c0_51, %c0_52] : memref<272x84xf32, #tpu.memory_space<vmem>>, vector<256x84xf32>
    tpu.vector_store %arg19[%c0_51, %c0_52], %45 {strides = array<i32>} : memref<272x84xf32, #tpu.memory_space<vmem>>, vector<256x84xf32>,
    %c0_53 = arith.constant 0 : index
    %c0_54 = arith.constant 0 : index
    %47 = vector.load %arg19[%c0_53, %c0_54] : memref<272x84xf32, #tpu.memory_space<vmem>>, vector<256x84xf32>
    %c0_55 = arith.constant 0 : index
    %c0_56 = arith.constant 0 : index
    %c0_57 = arith.constant 0 : index
    %48 = vector.load %arg6[%c0_55, %c0_56, %c0_57] : memref<5x84x160xf32, #tpu.memory_space<vmem>>, vector<1x84x160xf32>
    %49 = vector.shape_cast %48 : vector<1x84x160xf32> to vector<84x160xf32>
    %cst_58 = arith.constant dense<0.000000e+00> : vector<256x160xf32>
    %50 = tpu.matmul %47, %49, %cst_58 {dimension_numbers = #tpu.dot_dimension_numbers<[1], [0], [0], [1], [0, 0, 1, 1], [], []>} : vector<256x84xf32>, vector<84x160xf32>, vector<256x160xf32> -> vector<256x160xf32>
    %c2_59 = arith.constant 2 : index
    %c0_60 = arith.constant 0 : index
    %51 = vector.load %arg19[%c2_59, %c0_60] : memref<272x84xf32, #tpu.memory_space<vmem>>, vector<256x84xf32>
    %c1_61 = arith.constant 1 : index
    %c0_62 = arith.constant 0 : index
    %c0_63 = arith.constant 0 : index
    %52 = vector.load %arg6[%c1_61, %c0_62, %c0_63] : memref<5x84x160xf32, #tpu.memory_space<vmem>>, vector<1x84x160xf32>
    %53 = vector.shape_cast %52 : vector<1x84x160xf32> to vector<84x160xf32>
    %cst_64 = arith.constant dense<0.000000e+00> : vector<256x160xf32>
    %54 = tpu.matmul %51, %53, %cst_64 {dimension_numbers = #tpu.dot_dimension_numbers<[1], [0], [0], [1], [0, 0, 1, 1], [], []>} : vector<256x84xf32>, vector<84x160xf32>, vector<256x160xf32> -> vector<256x160xf32>
    %55 = arith.addf %50, %54 : vector<256x160xf32>
    %c4_65 = arith.constant 4 : index
    %c0_66 = arith.constant 0 : index
    %56 = vector.load %arg19[%c4_65, %c0_66] : memref<272x84xf32, #tpu.memory_space<vmem>>, vector<256x84xf32>
    %c2_67 = arith.constant 2 : index
    %c0_68 = arith.constant 0 : index
    %c0_69 = arith.constant 0 : index
    %57 = vector.load %arg6[%c2_67, %c0_68, %c0_69] : memref<5x84x160xf32, #tpu.memory_space<vmem>>, vector<1x84x160xf32>
    %58 = vector.shape_cast %57 : vector<1x84x160xf32> to vector<84x160xf32>
    %cst_70 = arith.constant dense<0.000000e+00> : vector<256x160xf32>
    %59 = tpu.matmul %56, %58, %cst_70 {dimension_numbers = #tpu.dot_dimension_numbers<[1], [0], [0], [1], [0, 0, 1, 1], [], []>} : vector<256x84xf32>, vector<84x160xf32>, vector<256x160xf32> -> vector<256x160xf32>
    %60 = arith.addf %55, %59 : vector<256x160xf32>
    %c6 = arith.constant 6 : index
    %c0_71 = arith.constant 0 : index
    %61 = vector.load %arg19[%c6, %c0_71] : memref<272x84xf32, #tpu.memory_space<vmem>>, vector<256x84xf32>
    %c3_72 = arith.constant 3 : index
    %c0_73 = arith.constant 0 : index
    %c0_74 = arith.constant 0 : index
    %62 = vector.load %arg6[%c3_72, %c0_73, %c0_74] : memref<5x84x160xf32, #tpu.memory_space<vmem>>, vector<1x84x160xf32>
    %63 = vector.shape_cast %62 : vector<1x84x160xf32> to vector<84x160xf32>
    %cst_75 = arith.constant dense<0.000000e+00> : vector<256x160xf32>
    %64 = tpu.matmul %61, %63, %cst_75 {dimension_numbers = #tpu.dot_dimension_numbers<[1], [0], [0], [1], [0, 0, 1, 1], [], []>} : vector<256x84xf32>, vector<84x160xf32>, vector<256x160xf32> -> vector<256x160xf32>
    %65 = arith.addf %60, %64 : vector<256x160xf32>
    %c8 = arith.constant 8 : index
    %c0_76 = arith.constant 0 : index
    %66 = vector.load %arg19[%c8, %c0_76] : memref<272x84xf32, #tpu.memory_space<vmem>>, vector<256x84xf32>
    %c4_77 = arith.constant 4 : index
    %c0_78 = arith.constant 0 : index
    %c0_79 = arith.constant 0 : index
    %67 = vector.load %arg6[%c4_77, %c0_78, %c0_79] : memref<5x84x160xf32, #tpu.memory_space<vmem>>, vector<1x84x160xf32>
    %68 = vector.shape_cast %67 : vector<1x84x160xf32> to vector<84x160xf32>
    %cst_80 = arith.constant dense<0.000000e+00> : vector<256x160xf32>
    %69 = tpu.matmul %66, %68, %cst_80 {dimension_numbers = #tpu.dot_dimension_numbers<[1], [0], [0], [1], [0, 0, 1, 1], [], []>} : vector<256x84xf32>, vector<84x160xf32>, vector<256x160xf32> -> vector<256x160xf32>
    %70 = arith.addf %65, %69 : vector<256x160xf32>
    %c0_81 = arith.constant 0 : index
    %c0_82 = arith.constant 0 : index
    %71 = vector.load %arg7[%c0_81, %c0_82] : memref<1x160xf32, #tpu.memory_space<vmem>>, vector<1x160xf32>
    %72 = vector.broadcast %71 : vector<1x160xf32> to vector<256x160xf32>
    %73 = arith.addf %70, %72 : vector<256x160xf32>
    %cst_83 = arith.constant 0.000000e+00 : f32
    %74 = vector.broadcast %cst_83 : f32 to vector<256x160xf32>
    %75 = arith.maximumf %73, %74 : vector<256x160xf32>
    %c0_84 = arith.constant 0 : index
    %c0_85 = arith.constant 0 : index
    %76 = vector.load %arg8[%c0_84, %c0_85] : memref<160x80xf32, #tpu.memory_space<vmem>>, vector<160x80xf32>
    %cst_86 = arith.constant dense<0.000000e+00> : vector<256x80xf32>
    %77 = tpu.matmul %75, %76, %cst_86 {dimension_numbers = #tpu.dot_dimension_numbers<[1], [0], [0], [1], [0, 0, 1, 1], [], []>} : vector<256x160xf32>, vector<160x80xf32>, vector<256x80xf32> -> vector<256x80xf32>
    %c0_87 = arith.constant 0 : index
    %c0_88 = arith.constant 0 : index
    %78 = vector.load %arg9[%c0_87, %c0_88] : memref<160x80xf32, #tpu.memory_space<vmem>>, vector<160x80xf32>
    %cst_89 = arith.constant dense<0.000000e+00> : vector<256x80xf32>
    %79 = tpu.matmul %75, %78, %cst_89 {dimension_numbers = #tpu.dot_dimension_numbers<[1], [0], [0], [1], [0, 0, 1, 1], [], []>} : vector<256x160xf32>, vector<160x80xf32>, vector<256x80xf32> -> vector<256x80xf32>
    %80 = arith.maximumf %77, %79 : vector<256x80xf32>
    %c0_90 = arith.constant 0 : index
    %c0_91 = arith.constant 0 : index
    %81 = vector.load %arg20[%c0_90, %c0_91] : memref<272x80xf32, #tpu.memory_space<vmem>>, vector<256x80xf32>
    tpu.vector_store %arg20[%c0_90, %c0_91], %80 {strides = array<i32>} : memref<272x80xf32, #tpu.memory_space<vmem>>, vector<256x80xf32>,
    %c0_92 = arith.constant 0 : index
    %c0_93 = arith.constant 0 : index
    %82 = vector.load %arg20[%c0_92, %c0_93] : memref<272x80xf32, #tpu.memory_space<vmem>>, vector<256x80xf32>
    %c2_94 = arith.constant 2 : index
    %c0_95 = arith.constant 0 : index
    %83 = vector.load %arg20[%c2_94, %c0_95] : memref<272x80xf32, #tpu.memory_space<vmem>>, vector<256x80xf32>
    %84 = arith.maximumf %82, %83 : vector<256x80xf32>
    %c0_96 = arith.constant 0 : index
    %c0_97 = arith.constant 0 : index
    %85 = vector.load %arg20[%c0_96, %c0_97] : memref<272x80xf32, #tpu.memory_space<vmem>>, vector<256x80xf32>
    tpu.vector_store %arg20[%c0_96, %c0_97], %84 {strides = array<i32>} : memref<272x80xf32, #tpu.memory_space<vmem>>, vector<256x80xf32>,
    %c0_98 = arith.constant 0 : index
    %c0_99 = arith.constant 0 : index
    %86 = vector.load %arg11[%c0_98, %c0_99] : memref<1x120xf32, #tpu.memory_space<vmem>>, vector<1x120xf32>
    %c0_100 = arith.constant 0 : index
    %c0_101 = arith.constant 0 : index
    %87 = vector.load %arg16[%c0_100, %c0_101] : memref<8x256xf32, #tpu.memory_space<vmem>>, vector<8x256xf32>
    %c0_102 = arith.constant 0 : index
    %c0_103 = arith.constant 0 : index
    %88 = vector.load %arg20[%c0_102, %c0_103] : memref<272x80xf32, #tpu.memory_space<vmem>>, vector<256x80xf32>
    %cst_104 = arith.constant dense<0.000000e+00> : vector<8x80xf32>
    %89 = tpu.matmul %87, %88, %cst_104 {dimension_numbers = #tpu.dot_dimension_numbers<[1], [0], [0], [1], [0, 0, 1, 1], [], []>} : vector<8x256xf32>, vector<256x80xf32>, vector<8x80xf32> -> vector<8x80xf32>
    %c0_105 = arith.constant 0 : index
    %c0_106 = arith.constant 0 : index
    %c0_107 = arith.constant 0 : index
    %90 = vector.load %arg10[%c0_105, %c0_106, %c0_107] : memref<5x80x120xf32, #tpu.memory_space<vmem>>, vector<1x80x120xf32>
    %91 = vector.shape_cast %90 : vector<1x80x120xf32> to vector<80x120xf32>
    %cst_108 = arith.constant dense<0.000000e+00> : vector<8x120xf32>
    %92 = tpu.matmul %89, %91, %cst_108 {dimension_numbers = #tpu.dot_dimension_numbers<[1], [0], [0], [1], [0, 0, 1, 1], [], []>} : vector<8x80xf32>, vector<80x120xf32>, vector<8x120xf32> -> vector<8x120xf32>
    %93 = vector.broadcast %86 : vector<1x120xf32> to vector<8x120xf32>
    %94 = arith.addf %93, %92 : vector<8x120xf32>
    %c0_109 = arith.constant 0 : index
    %c0_110 = arith.constant 0 : index
    %95 = vector.load %arg16[%c0_109, %c0_110] : memref<8x256xf32, #tpu.memory_space<vmem>>, vector<8x256xf32>
    %c4_111 = arith.constant 4 : index
    %c0_112 = arith.constant 0 : index
    %96 = vector.load %arg20[%c4_111, %c0_112] : memref<272x80xf32, #tpu.memory_space<vmem>>, vector<256x80xf32>
    %cst_113 = arith.constant dense<0.000000e+00> : vector<8x80xf32>
    %97 = tpu.matmul %95, %96, %cst_113 {dimension_numbers = #tpu.dot_dimension_numbers<[1], [0], [0], [1], [0, 0, 1, 1], [], []>} : vector<8x256xf32>, vector<256x80xf32>, vector<8x80xf32> -> vector<8x80xf32>
    %c1_114 = arith.constant 1 : index
    %c0_115 = arith.constant 0 : index
    %c0_116 = arith.constant 0 : index
    %98 = vector.load %arg10[%c1_114, %c0_115, %c0_116] : memref<5x80x120xf32, #tpu.memory_space<vmem>>, vector<1x80x120xf32>
    %99 = vector.shape_cast %98 : vector<1x80x120xf32> to vector<80x120xf32>
    %cst_117 = arith.constant dense<0.000000e+00> : vector<8x120xf32>
    %100 = tpu.matmul %97, %99, %cst_117 {dimension_numbers = #tpu.dot_dimension_numbers<[1], [0], [0], [1], [0, 0, 1, 1], [], []>} : vector<8x80xf32>, vector<80x120xf32>, vector<8x120xf32> -> vector<8x120xf32>
    %101 = arith.addf %94, %100 : vector<8x120xf32>
    %c0_118 = arith.constant 0 : index
    %c0_119 = arith.constant 0 : index
    %102 = vector.load %arg16[%c0_118, %c0_119] : memref<8x256xf32, #tpu.memory_space<vmem>>, vector<8x256xf32>
    %c8_120 = arith.constant 8 : index
    %c0_121 = arith.constant 0 : index
    %103 = vector.load %arg20[%c8_120, %c0_121] : memref<272x80xf32, #tpu.memory_space<vmem>>, vector<256x80xf32>
    %cst_122 = arith.constant dense<0.000000e+00> : vector<8x80xf32>
    %104 = tpu.matmul %102, %103, %cst_122 {dimension_numbers = #tpu.dot_dimension_numbers<[1], [0], [0], [1], [0, 0, 1, 1], [], []>} : vector<8x256xf32>, vector<256x80xf32>, vector<8x80xf32> -> vector<8x80xf32>
    %c2_123 = arith.constant 2 : index
    %c0_124 = arith.constant 0 : index
    %c0_125 = arith.constant 0 : index
    %105 = vector.load %arg10[%c2_123, %c0_124, %c0_125] : memref<5x80x120xf32, #tpu.memory_space<vmem>>, vector<1x80x120xf32>
    %106 = vector.shape_cast %105 : vector<1x80x120xf32> to vector<80x120xf32>
    %cst_126 = arith.constant dense<0.000000e+00> : vector<8x120xf32>
    %107 = tpu.matmul %104, %106, %cst_126 {dimension_numbers = #tpu.dot_dimension_numbers<[1], [0], [0], [1], [0, 0, 1, 1], [], []>} : vector<8x80xf32>, vector<80x120xf32>, vector<8x120xf32> -> vector<8x120xf32>
    %108 = arith.addf %101, %107 : vector<8x120xf32>
    %c0_127 = arith.constant 0 : index
    %c0_128 = arith.constant 0 : index
    %109 = vector.load %arg16[%c0_127, %c0_128] : memref<8x256xf32, #tpu.memory_space<vmem>>, vector<8x256xf32>
    %c12 = arith.constant 12 : index
    %c0_129 = arith.constant 0 : index
    %110 = vector.load %arg20[%c12, %c0_129] : memref<272x80xf32, #tpu.memory_space<vmem>>, vector<256x80xf32>
    %cst_130 = arith.constant dense<0.000000e+00> : vector<8x80xf32>
    %111 = tpu.matmul %109, %110, %cst_130 {dimension_numbers = #tpu.dot_dimension_numbers<[1], [0], [0], [1], [0, 0, 1, 1], [], []>} : vector<8x256xf32>, vector<256x80xf32>, vector<8x80xf32> -> vector<8x80xf32>
    %c3_131 = arith.constant 3 : index
    %c0_132 = arith.constant 0 : index
    %c0_133 = arith.constant 0 : index
    %112 = vector.load %arg10[%c3_131, %c0_132, %c0_133] : memref<5x80x120xf32, #tpu.memory_space<vmem>>, vector<1x80x120xf32>
    %113 = vector.shape_cast %112 : vector<1x80x120xf32> to vector<80x120xf32>
    %cst_134 = arith.constant dense<0.000000e+00> : vector<8x120xf32>
    %114 = tpu.matmul %111, %113, %cst_134 {dimension_numbers = #tpu.dot_dimension_numbers<[1], [0], [0], [1], [0, 0, 1, 1], [], []>} : vector<8x80xf32>, vector<80x120xf32>, vector<8x120xf32> -> vector<8x120xf32>
    %115 = arith.addf %108, %114 : vector<8x120xf32>
    %c0_135 = arith.constant 0 : index
    %c0_136 = arith.constant 0 : index
    %116 = vector.load %arg16[%c0_135, %c0_136] : memref<8x256xf32, #tpu.memory_space<vmem>>, vector<8x256xf32>
    %c16 = arith.constant 16 : index
    %c0_137 = arith.constant 0 : index
    %117 = vector.load %arg20[%c16, %c0_137] : memref<272x80xf32, #tpu.memory_space<vmem>>, vector<256x80xf32>
    %cst_138 = arith.constant dense<0.000000e+00> : vector<8x80xf32>
    %118 = tpu.matmul %116, %117, %cst_138 {dimension_numbers = #tpu.dot_dimension_numbers<[1], [0], [0], [1], [0, 0, 1, 1], [], []>} : vector<8x256xf32>, vector<256x80xf32>, vector<8x80xf32> -> vector<8x80xf32>
    %c4_139 = arith.constant 4 : index
    %c0_140 = arith.constant 0 : index
    %c0_141 = arith.constant 0 : index
    %119 = vector.load %arg10[%c4_139, %c0_140, %c0_141] : memref<5x80x120xf32, #tpu.memory_space<vmem>>, vector<1x80x120xf32>
    %120 = vector.shape_cast %119 : vector<1x80x120xf32> to vector<80x120xf32>
    %cst_142 = arith.constant dense<0.000000e+00> : vector<8x120xf32>
    %121 = tpu.matmul %118, %120, %cst_142 {dimension_numbers = #tpu.dot_dimension_numbers<[1], [0], [0], [1], [0, 0, 1, 1], [], []>} : vector<8x80xf32>, vector<80x120xf32>, vector<8x120xf32> -> vector<8x120xf32>
    %122 = arith.addf %115, %121 : vector<8x120xf32>
    %cst_143 = arith.constant 0.000000e+00 : f32
    %123 = vector.broadcast %cst_143 : f32 to vector<8x120xf32>
    %124 = arith.maximumf %122, %123 : vector<8x120xf32>
    %c0_144 = arith.constant 0 : index
    %c0_145 = arith.constant 0 : index
    %125 = vector.load %arg12[%c0_144, %c0_145] : memref<120x60xf32, #tpu.memory_space<vmem>>, vector<120x60xf32>
    %cst_146 = arith.constant dense<0.000000e+00> : vector<8x60xf32>
    %126 = tpu.matmul %124, %125, %cst_146 {dimension_numbers = #tpu.dot_dimension_numbers<[1], [0], [0], [1], [0, 0, 1, 1], [], []>} : vector<8x120xf32>, vector<120x60xf32>, vector<8x60xf32> -> vector<8x60xf32>
    %c0_147 = arith.constant 0 : index
    %c0_148 = arith.constant 0 : index
    %127 = vector.load %arg13[%c0_147, %c0_148] : memref<1x60xf32, #tpu.memory_space<vmem>>, vector<1x60xf32>
    %128 = vector.broadcast %127 : vector<1x60xf32> to vector<8x60xf32>
    %129 = arith.addf %126, %128 : vector<8x60xf32>
    %cst_149 = arith.constant 0.000000e+00 : f32
    %130 = vector.broadcast %cst_149 : f32 to vector<8x60xf32>
    %131 = arith.maximumf %129, %130 : vector<8x60xf32>
    %c0_150 = arith.constant 0 : index
    %c0_151 = arith.constant 0 : index
    %132 = vector.load %arg14[%c0_150, %c0_151] : memref<60x128xf32, #tpu.memory_space<vmem>>, vector<60x128xf32>
    %cst_152 = arith.constant dense<0.000000e+00> : vector<8x128xf32>
    %133 = tpu.matmul %131, %132, %cst_152 {dimension_numbers = #tpu.dot_dimension_numbers<[1], [0], [0], [1], [0, 0, 1, 1], [], []>} : vector<8x60xf32>, vector<60x128xf32>, vector<8x128xf32> -> vector<8x128xf32>
    %c0_153 = arith.constant 0 : index
    %c0_154 = arith.constant 0 : index
    %134 = vector.load %arg15[%c0_153, %c0_154] : memref<1x128xf32, #tpu.memory_space<vmem>>, vector<1x128xf32>
    %135 = vector.broadcast %134 : vector<1x128xf32> to vector<8x128xf32>
    %136 = arith.addf %133, %135 : vector<8x128xf32>
    %c0_155 = arith.constant 0 : index
    %c0_156 = arith.constant 0 : index
    %137 = vector.load %arg17[%c0_155, %c0_156] : memref<8x128xf32, #tpu.memory_space<vmem>>, vector<8x128xf32>
    tpu.vector_store %arg17[%c0_155, %c0_156], %136 {strides = array<i32>} : memref<8x128xf32, #tpu.memory_space<vmem>>, vector<8x128xf32>,
    return
  }
  func.func @transform_0(%arg0: i32) -> (i32, i32) {
    %c0_i32 = arith.constant 0 : i32
    %c0_i32_0 = arith.constant 0 : i32
    return %arg0, %c0_i32 : i32, i32
  }
  func.func @transform_1(%arg0: i32) -> (i32, i32, i32) {
    %c0_i32 = arith.constant 0 : i32
    %c0_i32_0 = arith.constant 0 : i32
    %c0_i32_1 = arith.constant 0 : i32
    %c0_i32_2 = arith.constant 0 : i32
    return %c0_i32, %c0_i32_0, %c0_i32_1 : i32, i32, i32
  }
  func.func @transform_2(%arg0: i32) -> (i32, i32) {
    %c0_i32 = arith.constant 0 : i32
    %c0_i32_0 = arith.constant 0 : i32
    %c0_i32_1 = arith.constant 0 : i32
    return %c0_i32, %c0_i32_0 : i32, i32
  }
  func.func @transform_3(%arg0: i32) -> (i32, i32) {
    %c0_i32 = arith.constant 0 : i32
    %c0_i32_0 = arith.constant 0 : i32
    %c0_i32_1 = arith.constant 0 : i32
    return %c0_i32, %c0_i32_0 : i32, i32
  }
  func.func @transform_4(%arg0: i32) -> (i32, i32) {
    %c0_i32 = arith.constant 0 : i32
    %c0_i32_0 = arith.constant 0 : i32
    %c0_i32_1 = arith.constant 0 : i32
    return %c0_i32, %c0_i32_0 : i32, i32
  }
  func.func @transform_5(%arg0: i32) -> (i32, i32, i32) {
    %c0_i32 = arith.constant 0 : i32
    %c0_i32_0 = arith.constant 0 : i32
    %c0_i32_1 = arith.constant 0 : i32
    %c0_i32_2 = arith.constant 0 : i32
    return %c0_i32, %c0_i32_0, %c0_i32_1 : i32, i32, i32
  }
  func.func @transform_6(%arg0: i32) -> (i32, i32) {
    %c0_i32 = arith.constant 0 : i32
    %c0_i32_0 = arith.constant 0 : i32
    %c0_i32_1 = arith.constant 0 : i32
    return %c0_i32, %c0_i32_0 : i32, i32
  }
  func.func @transform_7(%arg0: i32) -> (i32, i32) {
    %c0_i32 = arith.constant 0 : i32
    %c0_i32_0 = arith.constant 0 : i32
    %c0_i32_1 = arith.constant 0 : i32
    return %c0_i32, %c0_i32_0 : i32, i32
  }
  func.func @transform_8(%arg0: i32) -> (i32, i32) {
    %c0_i32 = arith.constant 0 : i32
    %c0_i32_0 = arith.constant 0 : i32
    %c0_i32_1 = arith.constant 0 : i32
    return %c0_i32, %c0_i32_0 : i32, i32
  }
  func.func @transform_9(%arg0: i32) -> (i32, i32, i32) {
    %c0_i32 = arith.constant 0 : i32
    %c0_i32_0 = arith.constant 0 : i32
    %c0_i32_1 = arith.constant 0 : i32
    %c0_i32_2 = arith.constant 0 : i32
    return %c0_i32, %c0_i32_0, %c0_i32_1 : i32, i32, i32
  }
  func.func @transform_10(%arg0: i32) -> (i32, i32) {
    %c0_i32 = arith.constant 0 : i32
    %c0_i32_0 = arith.constant 0 : i32
    %c0_i32_1 = arith.constant 0 : i32
    return %c0_i32, %c0_i32_0 : i32, i32
  }
  func.func @transform_11(%arg0: i32) -> (i32, i32) {
    %c0_i32 = arith.constant 0 : i32
    %c0_i32_0 = arith.constant 0 : i32
    %c0_i32_1 = arith.constant 0 : i32
    return %c0_i32, %c0_i32_0 : i32, i32
  }
  func.func @transform_12(%arg0: i32) -> (i32, i32) {
    %c0_i32 = arith.constant 0 : i32
    %c0_i32_0 = arith.constant 0 : i32
    %c0_i32_1 = arith.constant 0 : i32
    return %c0_i32, %c0_i32_0 : i32, i32
  }
  func.func @transform_13(%arg0: i32) -> (i32, i32) {
    %c0_i32 = arith.constant 0 : i32
    %c0_i32_0 = arith.constant 0 : i32
    %c0_i32_1 = arith.constant 0 : i32
    return %c0_i32, %c0_i32_0 : i32, i32
  }
  func.func @transform_14(%arg0: i32) -> (i32, i32) {
    %c0_i32 = arith.constant 0 : i32
    %c0_i32_0 = arith.constant 0 : i32
    %c0_i32_1 = arith.constant 0 : i32
    return %c0_i32, %c0_i32_0 : i32, i32
  }
  func.func @transform_15(%arg0: i32) -> (i32, i32) {
    %c0_i32 = arith.constant 0 : i32
    %c0_i32_0 = arith.constant 0 : i32
    %c0_i32_1 = arith.constant 0 : i32
    return %c0_i32, %c0_i32_0 : i32, i32
  }
  func.func @transform_16(%arg0: i32) -> (i32, i32) {
    %c0_i32 = arith.constant 0 : i32
    %c0_i32_0 = arith.constant 0 : i32
    return %arg0, %c0_i32 : i32, i32
  }
}

</mosaic_0001>

<llo_original>
// kernel: tpu_custom_call.1
$region0: #{tpu_custom_call.1}
  #allocation0 [shape = 'u32[]', space=smem, size = 0x4, offset = 0x4, fixed_abs, tag = 'smem constant byte address 0x4 - core index']
  #allocation1 [shape = 'u32[144,128]{1,0:T(1,128)}', space=vmem, size = 0x12000, scoped, tag = 'internal scratch']
  #allocation2 [shape = 'f32[272,32]{1,0:T(8,128)}', space=vmem, size = 0x22000, scoped, tag = 'scratch operand']
  #allocation3 [shape = 'f32[272,84]{1,0:T(8,128)}', space=vmem, size = 0x22000, scoped, tag = 'scratch operand']
  #allocation4 [shape = 'f32[272,80]{1,0:T(8,128)}', space=vmem, size = 0x22000, scoped, tag = 'scratch operand']
  %s0 = inlined_call_operand.vmem [shape: f32[256,32], index: 0, kind: input, shape index: {}]
  %s1 = inlined_call_operand.vmem [shape: f32[5,32,168], index: 1, kind: input, shape index: {}]
  %s2 = inlined_call_operand.vmem [shape: f32[1,168], index: 2, kind: input, shape index: {}]
  %s3 = inlined_call_operand.vmem [shape: f32[168,84], index: 3, kind: input, shape index: {}]
  %s4 = inlined_call_operand.vmem [shape: f32[168,84], index: 4, kind: input, shape index: {}]
  %s5 = inlined_call_operand.vmem [shape: f32[5,84,160], index: 5, kind: input, shape index: {}]
  %s6 = inlined_call_operand.vmem [shape: f32[1,160], index: 6, kind: input, shape index: {}]
  %s7 = inlined_call_operand.vmem [shape: f32[160,80], index: 7, kind: input, shape index: {}]
  %s8 = inlined_call_operand.vmem [shape: f32[160,80], index: 8, kind: input, shape index: {}]
  %s9 = inlined_call_operand.vmem [shape: f32[5,80,120], index: 9, kind: input, shape index: {}]
  %s10 = inlined_call_operand.vmem [shape: f32[1,120], index: 10, kind: input, shape index: {}]
  %s11 = inlined_call_operand.vmem [shape: f32[120,60], index: 11, kind: input, shape index: {}]
  %s12 = inlined_call_operand.vmem [shape: f32[1,60], index: 12, kind: input, shape index: {}]
  %s13 = inlined_call_operand.vmem [shape: f32[60,128], index: 13, kind: input, shape index: {}]
  %s14 = inlined_call_operand.vmem [shape: f32[1,128], index: 14, kind: input, shape index: {}]
  %s15 = inlined_call_operand.vmem [shape: f32[8,256], index: 15, kind: input, shape index: {}]
  %s16 = inlined_call_operand.hbm [shape: f32[8,128], index: 16, kind: output, shape index: {}]
  %s17 = sld [smem:[#allocation0]]
  $region74: #{tpu_custom_call.1} parent=0
    _
  %s19 = ssub.s32 1, %s17
  %s20 = scalar_select 0, %s19, %s17
  $region1: #{tpu_custom_call.1} parent=0
    #allocation5 [shape = 'u8[4096]{0}', space=vmem, size = 0x1000, scoped, tag = 'output window, operand 0, single buffered']
    #allocation6 [shape = 's32[1]{0}', space=sflag, size = 0x4, scoped, tag = 'scoped memory for tpu_custom_call.1']
    %21 = vsyncpa [#allocation6], 0
    // Predicated region
    $region2: #{tpu_custom_call.1} parent=1 // pred_check
      _
    $region3: #{tpu_custom_call.1} parent=1 // pred_check_branch
      %23 = sbr.rel (0) target = $region5
    $region4: #{tpu_custom_call.1} parent=1 // pred_region
      _
    $region5: #{tpu_custom_call.1} parent=1 // pred_fallthru
      _
    // Predicated region
    $region6: #{tpu_custom_call.1} parent=1 // pred_check
      _
    $region7: #{tpu_custom_call.1} parent=1 // pred_check_branch
      %25 = sbr.rel (0) target = $region9
    $region8: #{tpu_custom_call.1} parent=1 // pred_region
      _
    $region9: #{tpu_custom_call.1} parent=1 // pred_fallthru
      _
    // Predicated region
    $region10: #{tpu_custom_call.1} parent=1 // pred_check
      _
    $region11: #{tpu_custom_call.1} parent=1 // pred_check_branch
      %27 = sbr.rel (0) target = $region13
    $region12: #{tpu_custom_call.1} parent=1 // pred_region
      _
    $region13: #{tpu_custom_call.1} parent=1 // pred_fallthru
      _
    // Predicated region
    $region14: #{tpu_custom_call.1} parent=1 // pred_check
      _
    $region15: #{tpu_custom_call.1} parent=1 // pred_check_branch
      %29 = sbr.rel (0) target = $region17
    $region16: #{tpu_custom_call.1} parent=1 // pred_region
      _
    $region17: #{tpu_custom_call.1} parent=1 // pred_fallthru
      _
    // Predicated region
    $region18: #{tpu_custom_call.1} parent=1 // pred_check
      _
    $region19: #{tpu_custom_call.1} parent=1 // pred_check_branch
      %31 = sbr.rel (0) target = $region21
    $region20: #{tpu_custom_call.1} parent=1 // pred_region
      _
    $region21: #{tpu_custom_call.1} parent=1 // pred_fallthru
      _
    // Predicated region
    $region22: #{tpu_custom_call.1} parent=1 // pred_check
      _
    $region23: #{tpu_custom_call.1} parent=1 // pred_check_branch
      %33 = sbr.rel (0) target = $region25
    $region24: #{tpu_custom_call.1} parent=1 // pred_region
      _
    $region25: #{tpu_custom_call.1} parent=1 // pred_fallthru
      _
    // Predicated region
    $region26: #{tpu_custom_call.1} parent=1 // pred_check
      _
    $region27: #{tpu_custom_call.1} parent=1 // pred_check_branch
      %35 = sbr.rel (0) target = $region29
    $region28: #{tpu_custom_call.1} parent=1 // pred_region
      _
    $region29: #{tpu_custom_call.1} parent=1 // pred_fallthru
      _
    // Predicated region
    $region30: #{tpu_custom_call.1} parent=1 // pred_check
      _
    $region31: #{tpu_custom_call.1} parent=1 // pred_check_branch
      %37 = sbr.rel (0) target = $region33
    $region32: #{tpu_custom_call.1} parent=1 // pred_region
      _
    $region33: #{tpu_custom_call.1} parent=1 // pred_fallthru
      _
    // Predicated region
    $region34: #{tpu_custom_call.1} parent=1 // pred_check
      _
    $region35: #{tpu_custom_call.1} parent=1 // pred_check_branch
      %39 = sbr.rel (0) target = $region37
    $region36: #{tpu_custom_call.1} parent=1 // pred_region
      _
    $region37: #{tpu_custom_call.1} parent=1 // pred_fallthru
      _
    // Predicated region
    $region38: #{tpu_custom_call.1} parent=1 // pred_check
      _
    $region39: #{tpu_custom_call.1} parent=1 // pred_check_branch
      %41 = sbr.rel (0) target = $region41
    $region40: #{tpu_custom_call.1} parent=1 // pred_region
      _
    $region41: #{tpu_custom_call.1} parent=1 // pred_fallthru
      _
    // Predicated region
    $region42: #{tpu_custom_call.1} parent=1 // pred_check
      _
    $region43: #{tpu_custom_call.1} parent=1 // pred_check_branch
      %43 = sbr.rel (0) target = $region45
    $region44: #{tpu_custom_call.1} parent=1 // pred_region
      _
    $region45: #{tpu_custom_call.1} parent=1 // pred_fallthru
      _
    // Predicated region
    $region46: #{tpu_custom_call.1} parent=1 // pred_check
      _
    $region47: #{tpu_custom_call.1} parent=1 // pred_check_branch
      %45 = sbr.rel (0) target = $region49
    $region48: #{tpu_custom_call.1} parent=1 // pred_region
      _
    $region49: #{tpu_custom_call.1} parent=1 // pred_fallthru
      _
    // Predicated region
    $region50: #{tpu_custom_call.1} parent=1 // pred_check
      _
    $region51: #{tpu_custom_call.1} parent=1 // pred_check_branch
      %47 = sbr.rel (0) target = $region53
    $region52: #{tpu_custom_call.1} parent=1 // pred_region
      _
    $region53: #{tpu_custom_call.1} parent=1 // pred_fallthru
      _
    // Predicated region
    $region54: #{tpu_custom_call.1} parent=1 // pred_check
      _
    $region55: #{tpu_custom_call.1} parent=1 // pred_check_branch
      %49 = sbr.rel (0) target = $region57
    $region56: #{tpu_custom_call.1} parent=1 // pred_region
      _
    $region57: #{tpu_custom_call.1} parent=1 // pred_fallthru
      _
    // Predicated region
    $region58: #{tpu_custom_call.1} parent=1 // pred_check
      _
    $region59: #{tpu_custom_call.1} parent=1 // pred_check_branch
      %51 = sbr.rel (0) target = $region61
    $region60: #{tpu_custom_call.1} parent=1 // pred_region
      _
    $region61: #{tpu_custom_call.1} parent=1 // pred_fallthru
      _
    // Predicated region
    $region62: #{tpu_custom_call.1} parent=1 // pred_check
      _
    $region63: #{tpu_custom_call.1} parent=1 // pred_check_branch
      %53 = sbr.rel (0) target = $region65
    $region64: #{tpu_custom_call.1} parent=1 // pred_region
      _
    $region65: #{tpu_custom_call.1} parent=1 // pred_fallthru
      _
    %v54 = vld [vmem:[%s0] sm:$0xff]
    %v55 = vld [vmem:[%s0 + $0x8] sm:$0xff]
    %v56 = vld [vmem:[%s0 + $0x10] sm:$0xff]
    %v57 = vld [vmem:[%s0 + $0x18] sm:$0xff]
    %v58 = vld [vmem:[%s0 + $0x20] sm:$0xff]
    %v59 = vld [vmem:[%s0 + $0x28] sm:$0xff]
    %v60 = vld [vmem:[%s0 + $0x30] sm:$0xff]
    %v61 = vld [vmem:[%s0 + $0x38] sm:$0xff]
    %v62 = vld [vmem:[%s0 + $0x40] sm:$0xff]
    %v63 = vld [vmem:[%s0 + $0x48] sm:$0xff]
    %v64 = vld [vmem:[%s0 + $0x50] sm:$0xff]
    %v65 = vld [vmem:[%s0 + $0x58] sm:$0xff]
    %v66 = vld [vmem:[%s0 + $0x60] sm:$0xff]
    %v67 = vld [vmem:[%s0 + $0x68] sm:$0xff]
    %v68 = vld [vmem:[%s0 + $0x70] sm:$0xff]
    %v69 = vld [vmem:[%s0 + $0x78] sm:$0xff]
    %v70 = vld [vmem:[%s0 + $0x80] sm:$0xff]
    %v71 = vld [vmem:[%s0 + $0x88] sm:$0xff]
    %v72 = vld [vmem:[%s0 + $0x90] sm:$0xff]
    %v73 = vld [vmem:[%s0 + $0x98] sm:$0xff]
    %v74 = vld [vmem:[%s0 + $0xa0] sm:$0xff]
    %v75 = vld [vmem:[%s0 + $0xa8] sm:$0xff]
    %v76 = vld [vmem:[%s0 + $0xb0] sm:$0xff]
    %v77 = vld [vmem:[%s0 + $0xb8] sm:$0xff]
    %v78 = vld [vmem:[%s0 + $0xc0] sm:$0xff]
    %v79 = vld [vmem:[%s0 + $0xc8] sm:$0xff]
    %v80 = vld [vmem:[%s0 + $0xd0] sm:$0xff]
    %v81 = vld [vmem:[%s0 + $0xd8] sm:$0xff]
    %v82 = vld [vmem:[%s0 + $0xe0] sm:$0xff]
    %v83 = vld [vmem:[%s0 + $0xe8] sm:$0xff]
    %v84 = vld [vmem:[%s0 + $0xf0] sm:$0xff]
    %v85 = vld [vmem:[%s0 + $0xf8] sm:$0xff]
    %vm86 = vcmask 261120
    %87 = vst.msk [vmem:[#allocation2] sm:$0xff] %vm86, %v54
    %88 = vst.msk [vmem:[#allocation2 + $0x8] sm:$0xff] %vm86, %v55
    %89 = vst.msk [vmem:[#allocation2 + $0x10] sm:$0xff] %vm86, %v56
    %90 = vst.msk [vmem:[#allocation2 + $0x18] sm:$0xff] %vm86, %v57
    %91 = vst.msk [vmem:[#allocation2 + $0x20] sm:$0xff] %vm86, %v58
    %92 = vst.msk [vmem:[#allocation2 + $0x28] sm:$0xff] %vm86, %v59
    %93 = vst.msk [vmem:[#allocation2 + $0x30] sm:$0xff] %vm86, %v60
    %94 = vst.msk [vmem:[#allocation2 + $0x38] sm:$0xff] %vm86, %v61
    %95 = vst.msk [vmem:[#allocation2 + $0x40] sm:$0xff] %vm86, %v62
    %96 = vst.msk [vmem:[#allocation2 + $0x48] sm:$0xff] %vm86, %v63
    %97 = vst.msk [vmem:[#allocation2 + $0x50] sm:$0xff] %vm86, %v64
    %98 = vst.msk [vmem:[#allocation2 + $0x58] sm:$0xff] %vm86, %v65
    %99 = vst.msk [vmem:[#allocation2 + $0x60] sm:$0xff] %vm86, %v66
    %100 = vst.msk [vmem:[#allocation2 + $0x68] sm:$0xff] %vm86, %v67
    %101 = vst.msk [vmem:[#allocation2 + $0x70] sm:$0xff] %vm86, %v68
    %102 = vst.msk [vmem:[#allocation2 + $0x78] sm:$0xff] %vm86, %v69
    %103 = vst.msk [vmem:[#allocation2 + $0x80] sm:$0xff] %vm86, %v70
    %104 = vst.msk [vmem:[#allocation2 + $0x88] sm:$0xff] %vm86, %v71
    %105 = vst.msk [vmem:[#allocation2 + $0x90] sm:$0xff] %vm86, %v72
    %106 = vst.msk [vmem:[#allocation2 + $0x98] sm:$0xff] %vm86, %v73
    %107 = vst.msk [vmem:[#allocation2 + $0xa0] sm:$0xff] %vm86, %v74
    %108 = vst.msk [vmem:[#allocation2 + $0xa8] sm:$0xff] %vm86, %v75
    %109 = vst.msk [vmem:[#allocation2 + $0xb0] sm:$0xff] %vm86, %v76
    %110 = vst.msk [vmem:[#allocation2 + $0xb8] sm:$0xff] %vm86, %v77
    %111 = vst.msk [vmem:[#allocation2 + $0xc0] sm:$0xff] %vm86, %v78
    %112 = vst.msk [vmem:[#allocation2 + $0xc8] sm:$0xff] %vm86, %v79
    %113 = vst.msk [vmem:[#allocation2 + $0xd0] sm:$0xff] %vm86, %v80
    %114 = vst.msk [vmem:[#allocation2 + $0xd8] sm:$0xff] %vm86, %v81
    %115 = vst.msk [vmem:[#allocation2 + $0xe0] sm:$0xff] %vm86, %v82
    %116 = vst.msk [vmem:[#allocation2 + $0xe8] sm:$0xff] %vm86, %v83
    %117 = vst.msk [vmem:[#allocation2 + $0xf0] sm:$0xff] %vm86, %v84
    %118 = vst.msk [vmem:[#allocation2 + $0xf8] sm:$0xff] %vm86, %v85
    %119 = vst.msk [vmem:[#allocation2 + $0x100] sm:$0xff] %vm86, 0.0
    %120 = vst.msk [vmem:[#allocation2 + $0x108] sm:$0xff] %vm86, 0.0
    %vm121 = vcmask 687104
    %122 = vst.msk [vmem:[#allocation3 + $0x100] sm:$0xff] %vm121, 0.0
    %123 = vst.msk [vmem:[#allocation3 + $0x108] sm:$0xff] %vm121, 0.0
    %vm124 = vcmask 654336
    %125 = vst.msk [vmem:[#allocation4 + $0x100] sm:$0xff] %vm124, 0.0
    %126 = vst.msk [vmem:[#allocation4 + $0x108] sm:$0xff] %vm124, 0.0
    %v127 = vld [vmem:[#allocation2] sm:$0xff]
    %v128 = vld [vmem:[#allocation2 + $0x8] sm:$0xff]
    %v129 = vld [vmem:[#allocation2 + $0x10] sm:$0xff]
    %v130 = vld [vmem:[#allocation2 + $0x18] sm:$0xff]
    %v131 = vld [vmem:[#allocation2 + $0x20] sm:$0xff]
    %v132 = vld [vmem:[#allocation2 + $0x28] sm:$0xff]
    %v133 = vld [vmem:[#allocation2 + $0x30] sm:$0xff]
    %v134 = vld [vmem:[#allocation2 + $0x38] sm:$0xff]
    %v135 = vld [vmem:[#allocation2 + $0x40] sm:$0xff]
    %v136 = vld [vmem:[#allocation2 + $0x48] sm:$0xff]
    %v137 = vld [vmem:[#allocation2 + $0x50] sm:$0xff]
    %v138 = vld [vmem:[#allocation2 + $0x58] sm:$0xff]
    %v139 = vld [vmem:[#allocation2 + $0x60] sm:$0xff]
    %v140 = vld [vmem:[#allocation2 + $0x68] sm:$0xff]
    %v141 = vld [vmem:[#allocation2 + $0x70] sm:$0xff]
    %v142 = vld [vmem:[#allocation2 + $0x78] sm:$0xff]
    %v143 = vld [vmem:[#allocation2 + $0x80] sm:$0xff]
    %v144 = vld [vmem:[#allocation2 + $0x88] sm:$0xff]
    %v145 = vld [vmem:[#allocation2 + $0x90] sm:$0xff]
    %v146 = vld [vmem:[#allocation2 + $0x98] sm:$0xff]
    %v147 = vld [vmem:[#allocation2 + $0xa0] sm:$0xff]
    %v148 = vld [vmem:[#allocation2 + $0xa8] sm:$0xff]
    %v149 = vld [vmem:[#allocation2 + $0xb0] sm:$0xff]
    %v150 = vld [vmem:[#allocation2 + $0xb8] sm:$0xff]
    %v151 = vld [vmem:[#allocation2 + $0xc0] sm:$0xff]
    %v152 = vld [vmem:[#allocation2 + $0xc8] sm:$0xff]
    %v153 = vld [vmem:[#allocation2 + $0xd0] sm:$0xff]
    %v154 = vld [vmem:[#allocation2 + $0xd8] sm:$0xff]
    %v155 = vld [vmem:[#allocation2 + $0xe0] sm:$0xff]
    %v156 = vld [vmem:[#allocation2 + $0xe8] sm:$0xff]
    %v157 = vld [vmem:[#allocation2 + $0xf0] sm:$0xff]
    %v158 = vld [vmem:[#allocation2 + $0xf8] sm:$0xff]
    %v159 = vld [vmem:[%s1] sm:$0xff]
    %v160 = vld [vmem:[%s1 + $0x8] sm:$0xff]
    %v161 = vld [vmem:[%s1 + $0x10] sm:$0xff]
    %v162 = vld [vmem:[%s1 + $0x18] sm:$0xff]
    %v163 = vld [vmem:[%s1 + $0x20] sm:$0xff]
    %v164 = vld [vmem:[%s1 + $0x28] sm:$0xff]
    %v165 = vld [vmem:[%s1 + $0x30] sm:$0xff]
    %v166 = vld [vmem:[%s1 + $0x38] sm:$0xff]
    %v167 = vld [vmem:[#allocation2 + $0x1] sm:$0xff]
    %v168 = vld [vmem:[#allocation2 + $0x9] sm:$0xff]
    %v169 = vld [vmem:[#allocation2 + $0x11] sm:$0xff]
    %v170 = vld [vmem:[#allocation2 + $0x19] sm:$0xff]
    %v171 = vld [vmem:[#allocation2 + $0x21] sm:$0xff]
    %v172 = vld [vmem:[#allocation2 + $0x29] sm:$0xff]
    %v173 = vld [vmem:[#allocation2 + $0x31] sm:$0xff]
    %v174 = vld [vmem:[#allocation2 + $0x39] sm:$0xff]
    %v175 = vld [vmem:[#allocation2 + $0x41] sm:$0xff]
    %v176 = vld [vmem:[#allocation2 + $0x49] sm:$0xff]
    %v177 = vld [vmem:[#allocation2 + $0x51] sm:$0xff]
    %v178 = vld [vmem:[#allocation2 + $0x59] sm:$0xff]
    %v179 = vld [vmem:[#allocation2 + $0x61] sm:$0xff]
    %v180 = vld [vmem:[#allocation2 + $0x69] sm:$0xff]
    %v181 = vld [vmem:[#allocation2 + $0x71] sm:$0xff]
    %v182 = vld [vmem:[#allocation2 + $0x79] sm:$0xff]
    %v183 = vld [vmem:[#allocation2 + $0x81] sm:$0xff]
    %v184 = vld [vmem:[#allocation2 + $0x89] sm:$0xff]
    %v185 = vld [vmem:[#allocation2 + $0x91] sm:$0xff]
    %v186 = vld [vmem:[#allocation2 + $0x99] sm:$0xff]
    %v187 = vld [vmem:[#allocation2 + $0xa1] sm:$0xff]
    %v188 = vld [vmem:[#allocation2 + $0xa9] sm:$0xff]
    %v189 = vld [vmem:[#allocation2 + $0xb1] sm:$0xff]
    %v190 = vld [vmem:[#allocation2 + $0xb9] sm:$0xff]
    %v191 = vld [vmem:[#allocation2 + $0xc1] sm:$0xff]
    %v192 = vld [vmem:[#allocation2 + $0xc9] sm:$0xff]
    %v193 = vld [vmem:[#allocation2 + $0xd1] sm:$0xff]
    %v194 = vld [vmem:[#allocation2 + $0xd9] sm:$0xff]
    %v195 = vld [vmem:[#allocation2 + $0xe1] sm:$0xff]
    %v196 = vld [vmem:[#allocation2 + $0xe9] sm:$0xff]
    %v197 = vld [vmem:[#allocation2 + $0xf1] sm:$0xff]
    %v198 = vld [vmem:[#allocation2 + $0xf9] sm:$0xff]
    %s199 = scalar_lea.vmem %s1, 64
    %v200 = vld [vmem:[%s199] sm:$0xff]
    %v201 = vld [vmem:[%s199 + $0x8] sm:$0xff]
    %v202 = vld [vmem:[%s199 + $0x10] sm:$0xff]
    %v203 = vld [vmem:[%s199 + $0x18] sm:$0xff]
    %v204 = vld [vmem:[%s199 + $0x20] sm:$0xff]
    %v205 = vld [vmem:[%s199 + $0x28] sm:$0xff]
    %v206 = vld [vmem:[%s199 + $0x30] sm:$0xff]
    %v207 = vld [vmem:[%s199 + $0x38] sm:$0xff]
    %v209 = vsel %vm86, %v167, 0
    %v212 = vsel %vm86, %v168, 0
    %v215 = vsel %vm86, %v169, 0
    %v218 = vsel %vm86, %v170, 0
    %v221 = vsel %vm86, %v171, 0
    %v224 = vsel %vm86, %v172, 0
    %v227 = vsel %vm86, %v173, 0
    %v230 = vsel %vm86, %v174, 0
    %v233 = vsel %vm86, %v175, 0
    %v236 = vsel %vm86, %v176, 0
    %v239 = vsel %vm86, %v177, 0
    %v242 = vsel %vm86, %v178, 0
    %v245 = vsel %vm86, %v179, 0
    %v248 = vsel %vm86, %v180, 0
    %v251 = vsel %vm86, %v181, 0
    %v254 = vsel %vm86, %v182, 0
    %v257 = vsel %vm86, %v183, 0
    %v260 = vsel %vm86, %v184, 0
    %v263 = vsel %vm86, %v185, 0
    %v266 = vsel %vm86, %v186, 0
    %v269 = vsel %vm86, %v187, 0
    %v272 = vsel %vm86, %v188, 0
    %v275 = vsel %vm86, %v189, 0
    %v278 = vsel %vm86, %v190, 0
    %v281 = vsel %vm86, %v191, 0
    %v284 = vsel %vm86, %v192, 0
    %v287 = vsel %vm86, %v193, 0
    %v290 = vsel %vm86, %v194, 0
    %v293 = vsel %vm86, %v195, 0
    %v296 = vsel %vm86, %v196, 0
    %v299 = vsel %vm86, %v197, 0
    %v302 = vsel %vm86, %v198, 0
    %304 = vmatprep.subr.mxu0 %v201
    %305 = vmatpush1.msra.mxu0 %v200
    %306 = vmatprep.subr.mxu0 %v203
    %307 = vmatpush1.msra.mxu0 %v202
    %308 = vmatprep.subr.mxu0 %v205
    %309 = vmatpush1.msra.mxu0 %v204
    %310 = vmatprep.subr.mxu0 %v207
    %311 = vmatpush1.msra.mxu0 %v206
    %312 = vmatprep.subr.mxu0 0.0
    %313 = vmatpush1.msra.mxu0 0.0
    %314 = vmatprep.subr.mxu0 0.0
    %315 = vmatpush1.msra.mxu0 0.0
    %316 = vmatprep.subr.mxu0 0.0
    %317 = vmatpush1.msra.mxu0 0.0
    %318 = vmatprep.subr.mxu0 0.0
    %319 = vmatpush1.msra.mxu0 0.0
    %320 = vmatprep.subr.mxu0 0.0
    %321 = vmatpush1.msra.mxu0 0.0
    %322 = vmatprep.subr.mxu0 0.0
    %323 = vmatpush1.msra.mxu0 0.0
    %324 = vmatprep.subr.mxu0 0.0
    %325 = vmatpush1.msra.mxu0 0.0
    %326 = vmatprep.subr.mxu0 0.0
    %327 = vmatpush1.msra.mxu0 0.0
    %328 = vmatprep.subr.mxu0 0.0
    %329 = vmatpush1.msra.mxu0 0.0
    %330 = vmatprep.subr.mxu0 0.0
    %331 = vmatpush1.msra.mxu0 0.0
    %332 = vmatprep.subr.mxu0 0.0
    %333 = vmatpush1.msra.mxu0 0.0
    %334 = vmatprep.subr.mxu0 0.0
    %335 = vmatpush1.msra.mxu0 0.0
    %336 = vmatprep.subr.mxu0 0.0
    %337 = vmatpush1.msra.mxu0 0.0
    %338 = vmatprep.subr.mxu0 0.0
    %339 = vmatpush1.msra.mxu0 0.0
    %340 = vmatprep.subr.mxu0 0.0
    %341 = vmatpush1.msra.mxu0 0.0
    %342 = vmatprep.subr.mxu0 0.0
    %343 = vmatpush1.msra.mxu0 0.0
    %344 = vmatprep.subr.mxu0 0.0
    %345 = vmatpush1.msra.mxu0 0.0
    %346 = vmatprep.subr.mxu0 0.0
    %347 = vmatpush1.msra.mxu0 0.0
    %348 = vmatprep.subr.mxu0 0.0
    %349 = vmatpush1.msra.mxu0 0.0
    %350 = vmatprep.subr.mxu0 0.0
    %351 = vmatpush1.msra.mxu0 0.0
    %352 = vmatprep.subr.mxu0 0.0
    %353 = vmatpush1.msra.mxu0 0.0
    %354 = vmatprep.subr.mxu0 0.0
    %355 = vmatpush1.msra.mxu0 0.0
    %356 = vmatprep.subr.mxu0 0.0
    %357 = vmatpush1.msra.mxu0 0.0
    %358 = vmatprep.subr.mxu0 0.0
    %359 = vmatpush1.msra.mxu0 0.0
    %360 = vmatprep.subr.mxu0 0.0
    %361 = vmatpush1.msra.mxu0 0.0
    %362 = vmatprep.subr.mxu0 0.0
    %363 = vmatpush1.msra.mxu0 0.0
    %364 = vmatprep.subr.mxu0 0.0
    %365 = vmatpush1.msra.mxu0 0.0
    %366 = vmatprep.subr.mxu0 0.0
    %367 = vmatpush1.msra.mxu0 0.0
    %368 = vmatprep.mubr.f32.mxu0 0.0
    %369 = vmatmul.mubr.f32.gmra.mrb[0].mxu0 %v209
    %v370 = vpop.f32.mrb[0].mxu0
    %v371 = vadd.f32 0.0, %v370
    %v372 = vpop.f32.mrb[0].mxu0
    %v373 = vadd.f32 0.0, %v372
    %374 = vmatprep.mubr.f32.mxu0 0.0
    %375 = vmatmul.mubr.f32.gmra.mrb[0].mxu0 %v212
    %v376 = vpop.f32.mrb[0].mxu0
    %v377 = vadd.f32 0.0, %v376
    %v378 = vpop.f32.mrb[0].mxu0
    %v379 = vadd.f32 0.0, %v378
    %380 = vmatprep.mubr.f32.mxu0 0.0
    %381 = vmatmul.mubr.f32.gmra.mrb[0].mxu0 %v215
    %v382 = vpop.f32.mrb[0].mxu0
    %v383 = vadd.f32 0.0, %v382
    %v384 = vpop.f32.mrb[0].mxu0
    %v385 = vadd.f32 0.0, %v384
    %386 = vmatprep.mubr.f32.mxu0 0.0
    %387 = vmatmul.mubr.f32.gmra.mrb[0].mxu0 %v218
    %v388 = vpop.f32.mrb[0].mxu0
    %v389 = vadd.f32 0.0, %v388
    %v390 = vpop.f32.mrb[0].mxu0
    %v391 = vadd.f32 0.0, %v390
    %392 = vmatprep.mubr.f32.mxu0 0.0
    %393 = vmatmul.mubr.f32.gmra.mrb[0].mxu0 %v221
    %v394 = vpop.f32.mrb[0].mxu0
    %v395 = vadd.f32 0.0, %v394
    %v396 = vpop.f32.mrb[0].mxu0
    %v397 = vadd.f32 0.0, %v396
    %398 = vmatprep.mubr.f32.mxu0 0.0
    %399 = vmatmul.mubr.f32.gmra.mrb[0].mxu0 %v224
    %v400 = vpop.f32.mrb[0].mxu0
    %v401 = vadd.f32 0.0, %v400
    %v402 = vpop.f32.mrb[0].mxu0
    %v403 = vadd.f32 0.0, %v402
    %404 = vmatprep.mubr.f32.mxu0 0.0
    %405 = vmatmul.mubr.f32.gmra.mrb[0].mxu0 %v227
    %v406 = vpop.f32.mrb[0].mxu0
    %v407 = vadd.f32 0.0, %v406
    %v408 = vpop.f32.mrb[0].mxu0
    %v409 = vadd.f32 0.0, %v408
    %410 = vmatprep.mubr.f32.mxu0 0.0
    %411 = vmatmul.mubr.f32.gmra.mrb[0].mxu0 %v230
    %v412 = vpop.f32.mrb[0].mxu0
    %v413 = vadd.f32 0.0, %v412
    %v414 = vpop.f32.mrb[0].mxu0
    %v415 = vadd.f32 0.0, %v414
    %416 = vmatprep.mubr.f32.mxu0 0.0
    %417 = vmatmul.mubr.f32.gmra.mrb[0].mxu0 %v233
    %v418 = vpop.f32.mrb[0].mxu0
    %v419 = vadd.f32 0.0, %v418
    %v420 = vpop.f32.mrb[0].mxu0
    %v421 = vadd.f32 0.0, %v420
    %422 = vmatprep.mubr.f32.mxu0 0.0
    %423 = vmatmul.mubr.f32.gmra.mrb[0].mxu0 %v236
    %v424 = vpop.f32.mrb[0].mxu0
    %v425 = vadd.f32 0.0, %v424
    %v426 = vpop.f32.mrb[0].mxu0
    %v427 = vadd.f32 0.0, %v426
    %428 = vmatprep.mubr.f32.mxu0 0.0
    %429 = vmatmul.mubr.f32.gmra.mrb[0].mxu0 %v239
    %v430 = vpop.f32.mrb[0].mxu0
    %v431 = vadd.f32 0.0, %v430
    %v432 = vpop.f32.mrb[0].mxu0
    %v433 = vadd.f32 0.0, %v432
    %434 = vmatprep.mubr.f32.mxu0 0.0
    %435 = vmatmul.mubr.f32.gmra.mrb[0].mxu0 %v242
    %v436 = vpop.f32.mrb[0].mxu0
    %v437 = vadd.f32 0.0, %v436
    %v438 = vpop.f32.mrb[0].mxu0
    %v439 = vadd.f32 0.0, %v438
    %440 = vmatprep.mubr.f32.mxu0 0.0
    %441 = vmatmul.mubr.f32.gmra.mrb[0].mxu0 %v245
    %v442 = vpop.f32.mrb[0].mxu0
    %v443 = vadd.f32 0.0, %v442
    %v444 = vpop.f32.mrb[0].mxu0
    %v445 = vadd.f32 0.0, %v444
    %446 = vmatprep.mubr.f32.mxu0 0.0
    %447 = vmatmul.mubr.f32.gmra.mrb[0].mxu0 %v248
    %v448 = vpop.f32.mrb[0].mxu0
    %v449 = vadd.f32 0.0, %v448
    %v450 = vpop.f32.mrb[0].mxu0
    %v451 = vadd.f32 0.0, %v450
    %452 = vmatprep.mubr.f32.mxu0 0.0
    %453 = vmatmul.mubr.f32.gmra.mrb[0].mxu0 %v251
    %v454 = vpop.f32.mrb[0].mxu0
    %v455 = vadd.f32 0.0, %v454
    %v456 = vpop.f32.mrb[0].mxu0
    %v457 = vadd.f32 0.0, %v456
    %458 = vmatprep.mubr.f32.mxu0 0.0
    %459 = vmatmul.mubr.f32.gmra.mrb[0].mxu0 %v254
    %v460 = vpop.f32.mrb[0].mxu0
    %v461 = vadd.f32 0.0, %v460
    %v462 = vpop.f32.mrb[0].mxu0
    %v463 = vadd.f32 0.0, %v462
    %464 = vmatprep.mubr.f32.mxu0 0.0
    %465 = vmatmul.mubr.f32.gmra.mrb[0].mxu0 %v257
    %v466 = vpop.f32.mrb[0].mxu0
    %v467 = vadd.f32 0.0, %v466
    %v468 = vpop.f32.mrb[0].mxu0
    %v469 = vadd.f32 0.0, %v468
    %470 = vmatprep.mubr.f32.mxu0 0.0
    %471 = vmatmul.mubr.f32.gmra.mrb[0].mxu0 %v260
    %v472 = vpop.f32.mrb[0].mxu0
    %v473 = vadd.f32 0.0, %v472
    %v474 = vpop.f32.mrb[0].mxu0
    %v475 = vadd.f32 0.0, %v474
    %476 = vmatprep.mubr.f32.mxu0 0.0
    %477 = vmatmul.mubr.f32.gmra.mrb[0].mxu0 %v263
    %v478 = vpop.f32.mrb[0].mxu0
    %v479 = vadd.f32 0.0, %v478
    %v480 = vpop.f32.mrb[0].mxu0
    %v481 = vadd.f32 0.0, %v480
    %482 = vmatprep.mubr.f32.mxu0 0.0
    %483 = vmatmul.mubr.f32.gmra.mrb[0].mxu0 %v266
    %v484 = vpop.f32.mrb[0].mxu0
    %v485 = vadd.f32 0.0, %v484
    %v486 = vpop.f32.mrb[0].mxu0
    %v487 = vadd.f32 0.0, %v486
    %488 = vmatprep.mubr.f32.mxu0 0.0
    %489 = vmatmul.mubr.f32.gmra.mrb[0].mxu0 %v269
    %v490 = vpop.f32.mrb[0].mxu0
    %v491 = vadd.f32 0.0, %v490
    %v492 = vpop.f32.mrb[0].mxu0
    %v493 = vadd.f32 0.0, %v492
    %494 = vmatprep.mubr.f32.mxu0 0.0
    %495 = vmatmul.mubr.f32.gmra.mrb[0].mxu0 %v272
    %v496 = vpop.f32.mrb[0].mxu0
    %v497 = vadd.f32 0.0, %v496
    %v498 = vpop.f32.mrb[0].mxu0
    %v499 = vadd.f32 0.0, %v498
    %500 = vmatprep.mubr.f32.mxu0 0.0
    %501 = vmatmul.mubr.f32.gmra.mrb[0].mxu0 %v275
    %v502 = vpop.f32.mrb[0].mxu0
    %v503 = vadd.f32 0.0, %v502
    %v504 = vpop.f32.mrb[0].mxu0
    %v505 = vadd.f32 0.0, %v504
    %506 = vmatprep.mubr.f32.mxu0 0.0
    %507 = vmatmul.mubr.f32.gmra.mrb[0].mxu0 %v278
    %v508 = vpop.f32.mrb[0].mxu0
    %v509 = vadd.f32 0.0, %v508
    %v510 = vpop.f32.mrb[0].mxu0
    %v511 = vadd.f32 0.0, %v510
    %512 = vmatprep.mubr.f32.mxu0 0.0
    %513 = vmatmul.mubr.f32.gmra.mrb[0].mxu0 %v281
    %v514 = vpop.f32.mrb[0].mxu0
    %v515 = vadd.f32 0.0, %v514
    %v516 = vpop.f32.mrb[0].mxu0
    %v517 = vadd.f32 0.0, %v516
    %518 = vmatprep.mubr.f32.mxu0 0.0
    %519 = vmatmul.mubr.f32.gmra.mrb[0].mxu0 %v284
    %v520 = vpop.f32.mrb[0].mxu0
    %v521 = vadd.f32 0.0, %v520
    %v522 = vpop.f32.mrb[0].mxu0
    %v523 = vadd.f32 0.0, %v522
    %524 = vmatprep.mubr.f32.mxu0 0.0
    %525 = vmatmul.mubr.f32.gmra.mrb[0].mxu0 %v287
    %v526 = vpop.f32.mrb[0].mxu0
    %v527 = vadd.f32 0.0, %v526
    %v528 = vpop.f32.mrb[0].mxu0
    %v529 = vadd.f32 0.0, %v528
    %530 = vmatprep.mubr.f32.mxu0 0.0
    %531 = vmatmul.mubr.f32.gmra.mrb[0].mxu0 %v290
    %v532 = vpop.f32.mrb[0].mxu0
    %v533 = vadd.f32 0.0, %v532
    %v534 = vpop.f32.mrb[0].mxu0
    %v535 = vadd.f32 0.0, %v534
    %536 = vmatprep.mubr.f32.mxu0 0.0
    %537 = vmatmul.mubr.f32.gmra.mrb[0].mxu0 %v293
    %v538 = vpop.f32.mrb[0].mxu0
    %v539 = vadd.f32 0.0, %v538
    %v540 = vpop.f32.mrb[0].mxu0
    %v541 = vadd.f32 0.0, %v540
    %542 = vmatprep.mubr.f32.mxu0 0.0
    %543 = vmatmul.mubr.f32.gmra.mrb[0].mxu0 %v296
    %v544 = vpop.f32.mrb[0].mxu0
    %v545 = vadd.f32 0.0, %v544
    %v546 = vpop.f32.mrb[0].mxu0
    %v547 = vadd.f32 0.0, %v546
    %548 = vmatprep.mubr.f32.mxu0 0.0
    %549 = vmatmul.mubr.f32.gmra.mrb[0].mxu0 %v299
    %v550 = vpop.f32.mrb[0].mxu0
    %v551 = vadd.f32 0.0, %v550
    %v552 = vpop.f32.mrb[0].mxu0
    %v553 = vadd.f32 0.0, %v552
    %554 = vmatprep.mubr.f32.mxu0 0.0
    %555 = vmatmul.mubr.f32.gmra.mrb[0].mxu0 %v302
    %v556 = vpop.f32.mrb[0].mxu0
    %v557 = vadd.f32 0.0, %v556
    %v558 = vpop.f32.mrb[0].mxu0
    %v559 = vadd.f32 0.0, %v558
    %560 = vdwg.mxu0
    %v562 = vsel %vm86, %v127, 0
    %v565 = vsel %vm86, %v128, 0
    %v568 = vsel %vm86, %v129, 0
    %v571 = vsel %vm86, %v130, 0
    %v574 = vsel %vm86, %v131, 0
    %v577 = vsel %vm86, %v132, 0
    %v580 = vsel %vm86, %v133, 0
    %v583 = vsel %vm86, %v134, 0
    %v586 = vsel %vm86, %v135, 0
    %v589 = vsel %vm86, %v136, 0
    %v592 = vsel %vm86, %v137, 0
    %v595 = vsel %vm86, %v138, 0
    %v598 = vsel %vm86, %v139, 0
    %v601 = vsel %vm86, %v140, 0
    %v604 = vsel %vm86, %v141, 0
    %v607 = vsel %vm86, %v142, 0
    %v610 = vsel %vm86, %v143, 0
    %v613 = vsel %vm86, %v144, 0
    %v616 = vsel %vm86, %v145, 0
    %v619 = vsel %vm86, %v146, 0
    %v622 = vsel %vm86, %v147, 0
    %v625 = vsel %vm86, %v148, 0
    %v628 = vsel %vm86, %v149, 0
    %v631 = vsel %vm86, %v150, 0
    %v634 = vsel %vm86, %v151, 0
    %v637 = vsel %vm86, %v152, 0
    %v640 = vsel %vm86, %v153, 0
    %v643 = vsel %vm86, %v154, 0
    %v646 = vsel %vm86, %v155, 0
    %v649 = vsel %vm86, %v156, 0
    %v652 = vsel %vm86, %v157, 0
    %v655 = vsel %vm86, %v158, 0
    %657 = vmatprep.subr.mxu0 %v160
    %658 = vmatpush1.msra.mxu0 %v159
    %659 = vmatprep.subr.mxu0 %v162
    %660 = vmatpush1.msra.mxu0 %v161
    %661 = vmatprep.subr.mxu0 %v164
    %662 = vmatpush1.msra.mxu0 %v163
    %663 = vmatprep.subr.mxu0 %v166
    %664 = vmatpush1.msra.mxu0 %v165
    %665 = vmatprep.subr.mxu0 0.0
    %666 = vmatpush1.msra.mxu0 0.0
    %667 = vmatprep.subr.mxu0 0.0
    %668 = vmatpush1.msra.mxu0 0.0
    %669 = vmatprep.subr.mxu0 0.0
    %670 = vmatpush1.msra.mxu0 0.0
    %671 = vmatprep.subr.mxu0 0.0
    %672 = vmatpush1.msra.mxu0 0.0
    %673 = vmatprep.subr.mxu0 0.0
    %674 = vmatpush1.msra.mxu0 0.0
    %675 = vmatprep.subr.mxu0 0.0
    %676 = vmatpush1.msra.mxu0 0.0
    %677 = vmatprep.subr.mxu0 0.0
    %678 = vmatpush1.msra.mxu0 0.0
    %679 = vmatprep.subr.mxu0 0.0
    %680 = vmatpush1.msra.mxu0 0.0
    %681 = vmatprep.subr.mxu0 0.0
    %682 = vmatpush1.msra.mxu0 0.0
    %683 = vmatprep.subr.mxu0 0.0
    %684 = vmatpush1.msra.mxu0 0.0
    %685 = vmatprep.subr.mxu0 0.0
    %686 = vmatpush1.msra.mxu0 0.0
    %687 = vmatprep.subr.mxu0 0.0
    %688 = vmatpush1.msra.mxu0 0.0
    %689 = vmatprep.subr.mxu0 0.0
    %690 = vmatpush1.msra.mxu0 0.0
    %691 = vmatprep.subr.mxu0 0.0
    %692 = vmatpush1.msra.mxu0 0.0
    %693 = vmatprep.subr.mxu0 0.0
    %694 = vmatpush1.msra.mxu0 0.0
    %695 = vmatprep.subr.mxu0 0.0
    %696 = vmatpush1.msra.mxu0 0.0
    %697 = vmatprep.subr.mxu0 0.0
    %698 = vmatpush1.msra.mxu0 0.0
    %699 = vmatprep.subr.mxu0 0.0
    %700 = vmatpush1.msra.mxu0 0.0
    %701 = vmatprep.subr.mxu0 0.0
    %702 = vmatpush1.msra.mxu0 0.0
    %703 = vmatprep.subr.mxu0 0.0
    %704 = vmatpush1.msra.mxu0 0.0
    %705 = vmatprep.subr.mxu0 0.0
    %706 = vmatpush1.msra.mxu0 0.0
    %707 = vmatprep.subr.mxu0 0.0
    %708 = vmatpush1.msra.mxu0 0.0
    %709 = vmatprep.subr.mxu0 0.0
    %710 = vmatpush1.msra.mxu0 0.0
    %711 = vmatprep.subr.mxu0 0.0
    %712 = vmatpush1.msra.mxu0 0.0
    %713 = vmatprep.subr.mxu0 0.0
    %714 = vmatpush1.msra.mxu0 0.0
    %715 = vmatprep.subr.mxu0 0.0
    %716 = vmatpush1.msra.mxu0 0.0
    %717 = vmatprep.subr.mxu0 0.0
    %718 = vmatpush1.msra.mxu0 0.0
    %719 = vmatprep.subr.mxu0 0.0
    %720 = vmatpush1.msra.mxu0 0.0
    %721 = vmatprep.mubr.f32.mxu0 0.0
    %722 = vmatmul.mubr.f32.gmra.mrb[0].mxu0 %v562
    %v723 = vpop.f32.mrb[0].mxu0
    %v724 = vadd.f32 %v371, %v723
    %v725 = vpop.f32.mrb[0].mxu0
    %v726 = vadd.f32 %v373, %v725
    %727 = vmatprep.mubr.f32.mxu0 0.0
    %728 = vmatmul.mubr.f32.gmra.mrb[0].mxu0 %v565
    %v729 = vpop.f32.mrb[0].mxu0
    %v730 = vadd.f32 %v377, %v729
    %v731 = vpop.f32.mrb[0].mxu0
    %v732 = vadd.f32 %v379, %v731
    %733 = vmatprep.mubr.f32.mxu0 0.0
    %734 = vmatmul.mubr.f32.gmra.mrb[0].mxu0 %v568
    %v735 = vpop.f32.mrb[0].mxu0
    %v736 = vadd.f32 %v383, %v735
    %v737 = vpop.f32.mrb[0].mxu0
    %v738 = vadd.f32 %v385, %v737
    %739 = vmatprep.mubr.f32.mxu0 0.0
    %740 = vmatmul.mubr.f32.gmra.mrb[0].mxu0 %v571
    %v741 = vpop.f32.mrb[0].mxu0
    %v742 = vadd.f32 %v389, %v741
    %v743 = vpop.f32.mrb[0].mxu0
    %v744 = vadd.f32 %v391, %v743
    %745 = vmatprep.mubr.f32.mxu0 0.0
    %746 = vmatmul.mubr.f32.gmra.mrb[0].mxu0 %v574
    %v747 = vpop.f32.mrb[0].mxu0
    %v748 = vadd.f32 %v395, %v747
    %v749 = vpop.f32.mrb[0].mxu0
    %v750 = vadd.f32 %v397, %v749
    %751 = vmatprep.mubr.f32.mxu0 0.0
    %752 = vmatmul.mubr.f32.gmra.mrb[0].mxu0 %v577
    %v753 = vpop.f32.mrb[0].mxu0
    %v754 = vadd.f32 %v401, %v753
    %v755 = vpop.f32.mrb[0].mxu0
    %v756 = vadd.f32 %v403, %v755
    %757 = vmatprep.mubr.f32.mxu0 0.0
    %758 = vmatmul.mubr.f32.gmra.mrb[0].mxu0 %v580
    %v759 = vpop.f32.mrb[0].mxu0
    %v760 = vadd.f32 %v407, %v759
    %v761 = vpop.f32.mrb[0].mxu0
    %v762 = vadd.f32 %v409, %v761
    %763 = vmatprep.mubr.f32.mxu0 0.0
    %764 = vmatmul.mubr.f32.gmra.mrb[0].mxu0 %v583
    %v765 = vpop.f32.mrb[0].mxu0
    %v766 = vadd.f32 %v413, %v765
    %v767 = vpop.f32.mrb[0].mxu0
    %v768 = vadd.f32 %v415, %v767
    %769 = vmatprep.mubr.f32.mxu0 0.0
    %770 = vmatmul.mubr.f32.gmra.mrb[0].mxu0 %v586
    %v771 = vpop.f32.mrb[0].mxu0
    %v772 = vadd.f32 %v419, %v771
    %v773 = vpop.f32.mrb[0].mxu0
    %v774 = vadd.f32 %v421, %v773
    %775 = vmatprep.mubr.f32.mxu0 0.0
    %776 = vmatmul.mubr.f32.gmra.mrb[0].mxu0 %v589
    %v777 = vpop.f32.mrb[0].mxu0
    %v778 = vadd.f32 %v425, %v777
    %v779 = vpop.f32.mrb[0].mxu0
    %v780 = vadd.f32 %v427, %v779
    %781 = vmatprep.mubr.f32.mxu0 0.0
    %782 = vmatmul.mubr.f32.gmra.mrb[0].mxu0 %v592
    %v783 = vpop.f32.mrb[0].mxu0
    %v784 = vadd.f32 %v431, %v783
    %v785 = vpop.f32.mrb[0].mxu0
    %v786 = vadd.f32 %v433, %v785
    %787 = vmatprep.mubr.f32.mxu0 0.0
    %788 = vmatmul.mubr.f32.gmra.mrb[0].mxu0 %v595
    %v789 = vpop.f32.mrb[0].mxu0
    %v790 = vadd.f32 %v437, %v789
    %v791 = vpop.f32.mrb[0].mxu0
    %v792 = vadd.f32 %v439, %v791
    %793 = vmatprep.mubr.f32.mxu0 0.0
    %794 = vmatmul.mubr.f32.gmra.mrb[0].mxu0 %v598
    %v795 = vpop.f32.mrb[0].mxu0
    %v796 = vadd.f32 %v443, %v795
    %v797 = vpop.f32.mrb[0].mxu0
    %v798 = vadd.f32 %v445, %v797
    %799 = vmatprep.mubr.f32.mxu0 0.0
    %800 = vmatmul.mubr.f32.gmra.mrb[0].mxu0 %v601
    %v801 = vpop.f32.mrb[0].mxu0
    %v802 = vadd.f32 %v449, %v801
    %v803 = vpop.f32.mrb[0].mxu0
    %v804 = vadd.f32 %v451, %v803
    %805 = vmatprep.mubr.f32.mxu0 0.0
    %806 = vmatmul.mubr.f32.gmra.mrb[0].mxu0 %v604
    %v807 = vpop.f32.mrb[0].mxu0
    %v808 = vadd.f32 %v455, %v807
    %v809 = vpop.f32.mrb[0].mxu0
    %v810 = vadd.f32 %v457, %v809
    %811 = vmatprep.mubr.f32.mxu0 0.0
    %812 = vmatmul.mubr.f32.gmra.mrb[0].mxu0 %v607
    %v813 = vpop.f32.mrb[0].mxu0
    %v814 = vadd.f32 %v461, %v813
    %v815 = vpop.f32.mrb[0].mxu0
    %v816 = vadd.f32 %v463, %v815
    %817 = vmatprep.mubr.f32.mxu0 0.0
    %818 = vmatmul.mubr.f32.gmra.mrb[0].mxu0 %v610
    %v819 = vpop.f32.mrb[0].mxu0
    %v820 = vadd.f32 %v467, %v819
    %v821 = vpop.f32.mrb[0].mxu0
    %v822 = vadd.f32 %v469, %v821
    %823 = vmatprep.mubr.f32.mxu0 0.0
    %824 = vmatmul.mubr.f32.gmra.mrb[0].mxu0 %v613
    %v825 = vpop.f32.mrb[0].mxu0
    %v826 = vadd.f32 %v473, %v825
    %v827 = vpop.f32.mrb[0].mxu0
    %v828 = vadd.f32 %v475, %v827
    %829 = vmatprep.mubr.f32.mxu0 0.0
    %830 = vmatmul.mubr.f32.gmra.mrb[0].mxu0 %v616
    %v831 = vpop.f32.mrb[0].mxu0
    %v832 = vadd.f32 %v479, %v831
    %v833 = vpop.f32.mrb[0].mxu0
    %v834 = vadd.f32 %v481, %v833
    %835 = vmatprep.mubr.f32.mxu0 0.0
    %836 = vmatmul.mubr.f32.gmra.mrb[0].mxu0 %v619
    %v837 = vpop.f32.mrb[0].mxu0
    %v838 = vadd.f32 %v485, %v837
    %v839 = vpop.f32.mrb[0].mxu0
    %v840 = vadd.f32 %v487, %v839
    %841 = vmatprep.mubr.f32.mxu0 0.0
    %842 = vmatmul.mubr.f32.gmra.mrb[0].mxu0 %v622
    %v843 = vpop.f32.mrb[0].mxu0
    %v844 = vadd.f32 %v491, %v843
    %v845 = vpop.f32.mrb[0].mxu0
    %v846 = vadd.f32 %v493, %v845
    %847 = vmatprep.mubr.f32.mxu0 0.0
    %848 = vmatmul.mubr.f32.gmra.mrb[0].mxu0 %v625
    %v849 = vpop.f32.mrb[0].mxu0
    %v850 = vadd.f32 %v497, %v849
    %v851 = vpop.f32.mrb[0].mxu0
    %v852 = vadd.f32 %v499, %v851
    %853 = vmatprep.mubr.f32.mxu0 0.0
    %854 = vmatmul.mubr.f32.gmra.mrb[0].mxu0 %v628
    %v855 = vpop.f32.mrb[0].mxu0
    %v856 = vadd.f32 %v503, %v855
    %v857 = vpop.f32.mrb[0].mxu0
    %v858 = vadd.f32 %v505, %v857
    %859 = vmatprep.mubr.f32.mxu0 0.0
    %860 = vmatmul.mubr.f32.gmra.mrb[0].mxu0 %v631
    %v861 = vpop.f32.mrb[0].mxu0
    %v862 = vadd.f32 %v509, %v861
    %v863 = vpop.f32.mrb[0].mxu0
    %v864 = vadd.f32 %v511, %v863
    %865 = vmatprep.mubr.f32.mxu0 0.0
    %866 = vmatmul.mubr.f32.gmra.mrb[0].mxu0 %v634
    %v867 = vpop.f32.mrb[0].mxu0
    %v868 = vadd.f32 %v515, %v867
    %v869 = vpop.f32.mrb[0].mxu0
    %v870 = vadd.f32 %v517, %v869
    %871 = vmatprep.mubr.f32.mxu0 0.0
    %872 = vmatmul.mubr.f32.gmra.mrb[0].mxu0 %v637
    %v873 = vpop.f32.mrb[0].mxu0
    %v874 = vadd.f32 %v521, %v873
    %v875 = vpop.f32.mrb[0].mxu0
    %v876 = vadd.f32 %v523, %v875
    %877 = vmatprep.mubr.f32.mxu0 0.0
    %878 = vmatmul.mubr.f32.gmra.mrb[0].mxu0 %v640
    %v879 = vpop.f32.mrb[0].mxu0
    %v880 = vadd.f32 %v527, %v879
    %v881 = vpop.f32.mrb[0].mxu0
    %v882 = vadd.f32 %v529, %v881
    %883 = vmatprep.mubr.f32.mxu0 0.0
    %884 = vmatmul.mubr.f32.gmra.mrb[0].mxu0 %v643
    %v885 = vpop.f32.mrb[0].mxu0
    %v886 = vadd.f32 %v533, %v885
    %v887 = vpop.f32.mrb[0].mxu0
    %v888 = vadd.f32 %v535, %v887
    %889 = vmatprep.mubr.f32.mxu0 0.0
    %890 = vmatmul.mubr.f32.gmra.mrb[0].mxu0 %v646
    %v891 = vpop.f32.mrb[0].mxu0
    %v892 = vadd.f32 %v539, %v891
    %v893 = vpop.f32.mrb[0].mxu0
    %v894 = vadd.f32 %v541, %v893
    %895 = vmatprep.mubr.f32.mxu0 0.0
    %896 = vmatmul.mubr.f32.gmra.mrb[0].mxu0 %v649
    %v897 = vpop.f32.mrb[0].mxu0
    %v898 = vadd.f32 %v545, %v897
    %v899 = vpop.f32.mrb[0].mxu0
    %v900 = vadd.f32 %v547, %v899
    %901 = vmatprep.mubr.f32.mxu0 0.0
    %902 = vmatmul.mubr.f32.gmra.mrb[0].mxu0 %v652
    %v903 = vpop.f32.mrb[0].mxu0
    %v904 = vadd.f32 %v551, %v903
    %v905 = vpop.f32.mrb[0].mxu0
    %v906 = vadd.f32 %v553, %v905
    %907 = vmatprep.mubr.f32.mxu0 0.0
    %908 = vmatmul.mubr.f32.gmra.mrb[0].mxu0 %v655
    %v909 = vpop.f32.mrb[0].mxu0
    %v910 = vadd.f32 %v557, %v909
    %v911 = vpop.f32.mrb[0].mxu0
    %v912 = vadd.f32 %v559, %v911
    %913 = vdwg.mxu0
    %v914 = vld [vmem:[#allocation2 + $0x2] sm:$0xff]
    %v915 = vld [vmem:[#allocation2 + $0xa] sm:$0xff]
    %v916 = vld [vmem:[#allocation2 + $0x12] sm:$0xff]
    %v917 = vld [vmem:[#allocation2 + $0x1a] sm:$0xff]
    %v918 = vld [vmem:[#allocation2 + $0x22] sm:$0xff]
    %v919 = vld [vmem:[#allocation2 + $0x2a] sm:$0xff]
    %v920 = vld [vmem:[#allocation2 + $0x32] sm:$0xff]
    %v921 = vld [vmem:[#allocation2 + $0x3a] sm:$0xff]
    %v922 = vld [vmem:[#allocation2 + $0x42] sm:$0xff]
    %v923 = vld [vmem:[#allocation2 + $0x4a] sm:$0xff]
    %v924 = vld [vmem:[#allocation2 + $0x52] sm:$0xff]
    %v925 = vld [vmem:[#allocation2 + $0x5a] sm:$0xff]
    %v926 = vld [vmem:[#allocation2 + $0x62] sm:$0xff]
    %v927 = vld [vmem:[#allocation2 + $0x6a] sm:$0xff]
    %v928 = vld [vmem:[#allocation2 + $0x72] sm:$0xff]
    %v929 = vld [vmem:[#allocation2 + $0x7a] sm:$0xff]
    %v930 = vld [vmem:[#allocation2 + $0x82] sm:$0xff]
    %v931 = vld [vmem:[#allocation2 + $0x8a] sm:$0xff]
    %v932 = vld [vmem:[#allocation2 + $0x92] sm:$0xff]
    %v933 = vld [vmem:[#allocation2 + $0x9a] sm:$0xff]
    %v934 = vld [vmem:[#allocation2 + $0xa2] sm:$0xff]
    %v935 = vld [vmem:[#allocation2 + $0xaa] sm:$0xff]
    %v936 = vld [vmem:[#allocation2 + $0xb2] sm:$0xff]
    %v937 = vld [vmem:[#allocation2 + $0xba] sm:$0xff]
    %v938 = vld [vmem:[#allocation2 + $0xc2] sm:$0xff]
    %v939 = vld [vmem:[#allocation2 + $0xca] sm:$0xff]
    %v940 = vld [vmem:[#allocation2 + $0xd2] sm:$0xff]
    %v941 = vld [vmem:[#allocation2 + $0xda] sm:$0xff]
    %v942 = vld [vmem:[#allocation2 + $0xe2] sm:$0xff]
    %v943 = vld [vmem:[#allocation2 + $0xea] sm:$0xff]
    %v944 = vld [vmem:[#allocation2 + $0xf2] sm:$0xff]
    %v945 = vld [vmem:[#allocation2 + $0xfa] sm:$0xff]
    %s946 = scalar_lea.vmem %s1, 128
    %v947 = vld [vmem:[%s946] sm:$0xff]
    %v948 = vld [vmem:[%s946 + $0x8] sm:$0xff]
    %v949 = vld [vmem:[%s946 + $0x10] sm:$0xff]
    %v950 = vld [vmem:[%s946 + $0x18] sm:$0xff]
    %v951 = vld [vmem:[%s946 + $0x20] sm:$0xff]
    %v952 = vld [vmem:[%s946 + $0x28] sm:$0xff]
    %v953 = vld [vmem:[%s946 + $0x30] sm:$0xff]
    %v954 = vld [vmem:[%s946 + $0x38] sm:$0xff]
    %v956 = vsel %vm86, %v914, 0
    %v959 = vsel %vm86, %v915, 0
    %v962 = vsel %vm86, %v916, 0
    %v965 = vsel %vm86, %v917, 0
    %v968 = vsel %vm86, %v918, 0
    %v971 = vsel %vm86, %v919, 0
    %v974 = vsel %vm86, %v920, 0
    %v977 = vsel %vm86, %v921, 0
    %v980 = vsel %vm86, %v922, 0
    %v983 = vsel %vm86, %v923, 0
    %v986 = vsel %vm86, %v924, 0
    %v989 = vsel %vm86, %v925, 0
    %v992 = vsel %vm86, %v926, 0
    %v995 = vsel %vm86, %v927, 0
    %v998 = vsel %vm86, %v928, 0
    %v1001 = vsel %vm86, %v929, 0
    %v1004 = vsel %vm86, %v930, 0
    %v1007 = vsel %vm86, %v931, 0
    %v1010 = vsel %vm86, %v932, 0
    %v1013 = vsel %vm86, %v933, 0
    %v1016 = vsel %vm86, %v934, 0
    %v1019 = vsel %vm86, %v935, 0
    %v1022 = vsel %vm86, %v936, 0
    %v1025 = vsel %vm86, %v937, 0
    %v1028 = vsel %vm86, %v938, 0
    %v1031 = vsel %vm86, %v939, 0
    %v1034 = vsel %vm86, %v940, 0
    %v1037 = vsel %vm86, %v941, 0
    %v1040 = vsel %vm86, %v942, 0
    %v1043 = vsel %vm86, %v943, 0
    %v1046 = vsel %vm86, %v944, 0
    %v1049 = vsel %vm86, %v945, 0
    %1051 = vmatprep.subr.mxu0 %v948
    %1052 = vmatpush1.msra.mxu0 %v947
    %1053 = vmatprep.subr.mxu0 %v950
    %1054 = vmatpush1.msra.mxu0 %v949
    %1055 = vmatprep.subr.mxu0 %v952
    %1056 = vmatpush1.msra.mxu0 %v951
    %1057 = vmatprep.subr.mxu0 %v954
    %1058 = vmatpush1.msra.mxu0 %v953
    %1059 = vmatprep.subr.mxu0 0.0
    %1060 = vmatpush1.msra.mxu0 0.0
    %1061 = vmatprep.subr.mxu0 0.0
    %1062 = vmatpush1.msra.mxu0 0.0
    %1063 = vmatprep.subr.mxu0 0.0
    %1064 = vmatpush1.msra.mxu0 0.0
    %1065 = vmatprep.subr.mxu0 0.0
    %1066 = vmatpush1.msra.mxu0 0.0
    %1067 = vmatprep.subr.mxu0 0.0
    %1068 = vmatpush1.msra.mxu0 0.0
    %1069 = vmatprep.subr.mxu0 0.0
    %1070 = vmatpush1.msra.mxu0 0.0
    %1071 = vmatprep.subr.mxu0 0.0
    %1072 = vmatpush1.msra.mxu0 0.0
    %1073 = vmatprep.subr.mxu0 0.0
    %1074 = vmatpush1.msra.mxu0 0.0
    %1075 = vmatprep.subr.mxu0 0.0
    %1076 = vmatpush1.msra.mxu0 0.0
    %1077 = vmatprep.subr.mxu0 0.0
    %1078 = vmatpush1.msra.mxu0 0.0
    %1079 = vmatprep.subr.mxu0 0.0
    %1080 = vmatpush1.msra.mxu0 0.0
    %1081 = vmatprep.subr.mxu0 0.0
    %1082 = vmatpush1.msra.mxu0 0.0
    %1083 = vmatprep.subr.mxu0 0.0
    %1084 = vmatpush1.msra.mxu0 0.0
    %1085 = vmatprep.subr.mxu0 0.0
    %1086 = vmatpush1.msra.mxu0 0.0
    %1087 = vmatprep.subr.mxu0 0.0
    %1088 = vmatpush1.msra.mxu0 0.0
    %1089 = vmatprep.subr.mxu0 0.0
    %1090 = vmatpush1.msra.mxu0 0.0
    %1091 = vmatprep.subr.mxu0 0.0
    %1092 = vmatpush1.msra.mxu0 0.0
    %1093 = vmatprep.subr.mxu0 0.0
    %1094 = vmatpush1.msra.mxu0 0.0
    %1095 = vmatprep.subr.mxu0 0.0
    %1096 = vmatpush1.msra.mxu0 0.0
    %1097 = vmatprep.subr.mxu0 0.0
    %1098 = vmatpush1.msra.mxu0 0.0
    %1099 = vmatprep.subr.mxu0 0.0
    %1100 = vmatpush1.msra.mxu0 0.0
    %1101 = vmatprep.subr.mxu0 0.0
    %1102 = vmatpush1.msra.mxu0 0.0
    %1103 = vmatprep.subr.mxu0 0.0
    %1104 = vmatpush1.msra.mxu0 0.0
    %1105 = vmatprep.subr.mxu0 0.0
    %1106 = vmatpush1.msra.mxu0 0.0
    %1107 = vmatprep.subr.mxu0 0.0
    %1108 = vmatpush1.msra.mxu0 0.0
    %1109 = vmatprep.subr.mxu0 0.0
    %1110 = vmatpush1.msra.mxu0 0.0
    %1111 = vmatprep.subr.mxu0 0.0
    %1112 = vmatpush1.msra.mxu0 0.0
    %1113 = vmatprep.subr.mxu0 0.0
    %1114 = vmatpush1.msra.mxu0 0.0
    %1115 = vmatprep.mubr.f32.mxu0 0.0
    %1116 = vmatmul.mubr.f32.gmra.mrb[0].mxu0 %v956
    %v1117 = vpop.f32.mrb[0].mxu0
    %v1118 = vadd.f32 0.0, %v1117
    %v1119 = vpop.f32.mrb[0].mxu0
    %v1120 = vadd.f32 0.0, %v1119
    %1121 = vmatprep.mubr.f32.mxu0 0.0
    %1122 = vmatmul.mubr.f32.gmra.mrb[0].mxu0 %v959
    %v1123 = vpop.f32.mrb[0].mxu0
    %v1124 = vadd.f32 0.0, %v1123
    %v1125 = vpop.f32.mrb[0].mxu0
    %v1126 = vadd.f32 0.0, %v1125
    %1127 = vmatprep.mubr.f32.mxu0 0.0
    %1128 = vmatmul.mubr.f32.gmra.mrb[0].mxu0 %v962
    %v1129 = vpop.f32.mrb[0].mxu0
    %v1130 = vadd.f32 0.0, %v1129
    %v1131 = vpop.f32.mrb[0].mxu0
    %v1132 = vadd.f32 0.0, %v1131
    %1133 = vmatprep.mubr.f32.mxu0 0.0
    %1134 = vmatmul.mubr.f32.gmra.mrb[0].mxu0 %v965
    %v1135 = vpop.f32.mrb[0].mxu0
    %v1136 = vadd.f32 0.0, %v1135
    %v1137 = vpop.f32.mrb[0].mxu0
    %v1138 = vadd.f32 0.0, %v1137
    %1139 = vmatprep.mubr.f32.mxu0 0.0
    %1140 = vmatmul.mubr.f32.gmra.mrb[0].mxu0 %v968
    %v1141 = vpop.f32.mrb[0].mxu0
    %v1142 = vadd.f32 0.0, %v1141
    %v1143 = vpop.f32.mrb[0].mxu0
    %v1144 = vadd.f32 0.0, %v1143
    %1145 = vmatprep.mubr.f32.mxu0 0.0
    %1146 = vmatmul.mubr.f32.gmra.mrb[0].mxu0 %v971
    %v1147 = vpop.f32.mrb[0].mxu0
    %v1148 = vadd.f32 0.0, %v1147
    %v1149 = vpop.f32.mrb[0].mxu0
    %v1150 = vadd.f32 0.0, %v1149
    %1151 = vmatprep.mubr.f32.mxu0 0.0
    %1152 = vmatmul.mubr.f32.gmra.mrb[0].mxu0 %v974
    %v1153 = vpop.f32.mrb[0].mxu0
    %v1154 = vadd.f32 0.0, %v1153
    %v1155 = vpop.f32.mrb[0].mxu0
    %v1156 = vadd.f32 0.0, %v1155
    %1157 = vmatprep.mubr.f32.mxu0 0.0
    %1158 = vmatmul.mubr.f32.gmra.mrb[0].mxu0 %v977
    %v1159 = vpop.f32.mrb[0].mxu0
    %v1160 = vadd.f32 0.0, %v1159
    %v1161 = vpop.f32.mrb[0].mxu0
    %v1162 = vadd.f32 0.0, %v1161
    %1163 = vmatprep.mubr.f32.mxu0 0.0
    %1164 = vmatmul.mubr.f32.gmra.mrb[0].mxu0 %v980
    %v1165 = vpop.f32.mrb[0].mxu0
    %v1166 = vadd.f32 0.0, %v1165
    %v1167 = vpop.f32.mrb[0].mxu0
    %v1168 = vadd.f32 0.0, %v1167
    %1169 = vmatprep.mubr.f32.mxu0 0.0
    %1170 = vmatmul.mubr.f32.gmra.mrb[0].mxu0 %v983
    %v1171 = vpop.f32.mrb[0].mxu0
    %v1172 = vadd.f32 0.0, %v1171
    %v1173 = vpop.f32.mrb[0].mxu0
    %v1174 = vadd.f32 0.0, %v1173
    %1175 = vmatprep.mubr.f32.mxu0 0.0
    %1176 = vmatmul.mubr.f32.gmra.mrb[0].mxu0 %v986
    %v1177 = vpop.f32.mrb[0].mxu0
    %v1178 = vadd.f32 0.0, %v1177
    %v1179 = vpop.f32.mrb[0].mxu0
    %v1180 = vadd.f32 0.0, %v1179
    %1181 = vmatprep.mubr.f32.mxu0 0.0
    %1182 = vmatmul.mubr.f32.gmra.mrb[0].mxu0 %v989
    %v1183 = vpop.f32.mrb[0].mxu0
    %v1184 = vadd.f32 0.0, %v1183
    %v1185 = vpop.f32.mrb[0].mxu0
    %v1186 = vadd.f32 0.0, %v1185
    %1187 = vmatprep.mubr.f32.mxu0 0.0
    %1188 = vmatmul.mubr.f32.gmra.mrb[0].mxu0 %v992
    %v1189 = vpop.f32.mrb[0].mxu0
    %v1190 = vadd.f32 0.0, %v1189
    %v1191 = vpop.f32.mrb[0].mxu0
    %v1192 = vadd.f32 0.0, %v1191
    %1193 = vmatprep.mubr.f32.mxu0 0.0
    %1194 = vmatmul.mubr.f32.gmra.mrb[0].mxu0 %v995
    %v1195 = vpop.f32.mrb[0].mxu0
    %v1196 = vadd.f32 0.0, %v1195
    %v1197 = vpop.f32.mrb[0].mxu0
    %v1198 = vadd.f32 0.0, %v1197
    %1199 = vmatprep.mubr.f32.mxu0 0.0
    %1200 = vmatmul.mubr.f32.gmra.mrb[0].mxu0 %v998
    %v1201 = vpop.f32.mrb[0].mxu0
    %v1202 = vadd.f32 0.0, %v1201
    %v1203 = vpop.f32.mrb[0].mxu0
    %v1204 = vadd.f32 0.0, %v1203
    %1205 = vmatprep.mubr.f32.mxu0 0.0
    %1206 = vmatmul.mubr.f32.gmra.mrb[0].mxu0 %v1001
    %v1207 = vpop.f32.mrb[0].mxu0
    %v1208 = vadd.f32 0.0, %v1207
    %v1209 = vpop.f32.mrb[0].mxu0
    %v1210 = vadd.f32 0.0, %v1209
    %1211 = vmatprep.mubr.f32.mxu0 0.0
    %1212 = vmatmul.mubr.f32.gmra.mrb[0].mxu0 %v1004
    %v1213 = vpop.f32.mrb[0].mxu0
    %v1214 = vadd.f32 0.0, %v1213
    %v1215 = vpop.f32.mrb[0].mxu0
    %v1216 = vadd.f32 0.0, %v1215
    %1217 = vmatprep.mubr.f32.mxu0 0.0
    %1218 = vmatmul.mubr.f32.gmra.mrb[0].mxu0 %v1007
    %v1219 = vpop.f32.mrb[0].mxu0
    %v1220 = vadd.f32 0.0, %v1219
    %v1221 = vpop.f32.mrb[0].mxu0
    %v1222 = vadd.f32 0.0, %v1221
    %1223 = vmatprep.mubr.f32.mxu0 0.0
    %1224 = vmatmul.mubr.f32.gmra.mrb[0].mxu0 %v1010
    %v1225 = vpop.f32.mrb[0].mxu0
    %v1226 = vadd.f32 0.0, %v1225
    %v1227 = vpop.f32.mrb[0].mxu0
    %v1228 = vadd.f32 0.0, %v1227
    %1229 = vmatprep.mubr.f32.mxu0 0.0
    %1230 = vmatmul.mubr.f32.gmra.mrb[0].mxu0 %v1013
    %v1231 = vpop.f32.mrb[0].mxu0
    %v1232 = vadd.f32 0.0, %v1231
    %v1233 = vpop.f32.mrb[0].mxu0
    %v1234 = vadd.f32 0.0, %v1233
    %1235 = vmatprep.mubr.f32.mxu0 0.0
    %1236 = vmatmul.mubr.f32.gmra.mrb[0].mxu0 %v1016
    %v1237 = vpop.f32.mrb[0].mxu0
    %v1238 = vadd.f32 0.0, %v1237
    %v1239 = vpop.f32.mrb[0].mxu0
    %v1240 = vadd.f32 0.0, %v1239
    %1241 = vmatprep.mubr.f32.mxu0 0.0
    %1242 = vmatmul.mubr.f32.gmra.mrb[0].mxu0 %v1019
    %v1243 = vpop.f32.mrb[0].mxu0
    %v1244 = vadd.f32 0.0, %v1243
    %v1245 = vpop.f32.mrb[0].mxu0
    %v1246 = vadd.f32 0.0, %v1245
    %1247 = vmatprep.mubr.f32.mxu0 0.0
    %1248 = vmatmul.mubr.f32.gmra.mrb[0].mxu0 %v1022
    %v1249 = vpop.f32.mrb[0].mxu0
    %v1250 = vadd.f32 0.0, %v1249
    %v1251 = vpop.f32.mrb[0].mxu0
    %v1252 = vadd.f32 0.0, %v1251
    %1253 = vmatprep.mubr.f32.mxu0 0.0
    %1254 = vmatmul.mubr.f32.gmra.mrb[0].mxu0 %v1025
    %v1255 = vpop.f32.mrb[0].mxu0
    %v1256 = vadd.f32 0.0, %v1255
    %v1257 = vpop.f32.mrb[0].mxu0
    %v1258 = vadd.f32 0.0, %v1257
    %1259 = vmatprep.mubr.f32.mxu0 0.0
    %1260 = vmatmul.mubr.f32.gmra.mrb[0].mxu0 %v1028
    %v1261 = vpop.f32.mrb[0].mxu0
    %v1262 = vadd.f32 0.0, %v1261
    %v1263 = vpop.f32.mrb[0].mxu0
    %v1264 = vadd.f32 0.0, %v1263
    %1265 = vmatprep.mubr.f32.mxu0 0.0
    %1266 = vmatmul.mubr.f32.gmra.mrb[0].mxu0 %v1031
    %v1267 = vpop.f32.mrb[0].mxu0
    %v1268 = vadd.f32 0.0, %v1267
    %v1269 = vpop.f32.mrb[0].mxu0
    %v1270 = vadd.f32 0.0, %v1269
    %1271 = vmatprep.mubr.f32.mxu0 0.0
    %1272 = vmatmul.mubr.f32.gmra.mrb[0].mxu0 %v1034
    %v1273 = vpop.f32.mrb[0].mxu0
    %v1274 = vadd.f32 0.0, %v1273
    %v1275 = vpop.f32.mrb[0].mxu0
    %v1276 = vadd.f32 0.0, %v1275
    %1277 = vmatprep.mubr.f32.mxu0 0.0
    %1278 = vmatmul.mubr.f32.gmra.mrb[0].mxu0 %v1037
    %v1279 = vpop.f32.mrb[0].mxu0
    %v1280 = vadd.f32 0.0, %v1279
    %v1281 = vpop.f32.mrb[0].mxu0
    %v1282 = vadd.f32 0.0, %v1281
    %1283 = vmatprep.mubr.f32.mxu0 0.0
    %1284 = vmatmul.mubr.f32.gmra.mrb[0].mxu0 %v1040
    %v1285 = vpop.f32.mrb[0].mxu0
    %v1286 = vadd.f32 0.0, %v1285
    %v1287 = vpop.f32.mrb[0].mxu0
    %v1288 = vadd.f32 0.0, %v1287
    %1289 = vmatprep.mubr.f32.mxu0 0.0
    %1290 = vmatmul.mubr.f32.gmra.mrb[0].mxu0 %v1043
    %v1291 = vpop.f32.mrb[0].mxu0
    %v1292 = vadd.f32 0.0, %v1291
    %v1293 = vpop.f32.mrb[0].mxu0
    %v1294 = vadd.f32 0.0, %v1293
    %1295 = vmatprep.mubr.f32.mxu0 0.0
    %1296 = vmatmul.mubr.f32.gmra.mrb[0].mxu0 %v1046
    %v1297 = vpop.f32.mrb[0].mxu0
    %v1298 = vadd.f32 0.0, %v1297
    %v1299 = vpop.f32.mrb[0].mxu0
    %v1300 = vadd.f32 0.0, %v1299
    %1301 = vmatprep.mubr.f32.mxu0 0.0
    %1302 = vmatmul.mubr.f32.gmra.mrb[0].mxu0 %v1049
    %v1303 = vpop.f32.mrb[0].mxu0
    %v1304 = vadd.f32 0.0, %v1303
    %v1305 = vpop.f32.mrb[0].mxu0
    %v1306 = vadd.f32 0.0, %v1305
    %1307 = vdwg.mxu0
    %v1308 = vadd.f32 %v724, %v1118
    %v1309 = vadd.f32 %v726, %v1120
    %v1310 = vadd.f32 %v730, %v1124
    %v1311 = vadd.f32 %v732, %v1126
    %v1312 = vadd.f32 %v736, %v1130
    %v1313 = vadd.f32 %v738, %v1132
    %v1314 = vadd.f32 %v742, %v1136
    %v1315 = vadd.f32 %v744, %v1138
    %v1316 = vadd.f32 %v748, %v1142
    %v1317 = vadd.f32 %v750, %v1144
    %v1318 = vadd.f32 %v754, %v1148
    %v1319 = vadd.f32 %v756, %v1150
    %v1320 = vadd.f32 %v760, %v1154
    %v1321 = vadd.f32 %v762, %v1156
    %v1322 = vadd.f32 %v766, %v1160
    %v1323 = vadd.f32 %v768, %v1162
    %v1324 = vadd.f32 %v772, %v1166
    %v1325 = vadd.f32 %v774, %v1168
    %v1326 = vadd.f32 %v778, %v1172
    %v1327 = vadd.f32 %v780, %v1174
    %v1328 = vadd.f32 %v784, %v1178
    %v1329 = vadd.f32 %v786, %v1180
    %v1330 = vadd.f32 %v790, %v1184
    %v1331 = vadd.f32 %v792, %v1186
    %v1332 = vadd.f32 %v796, %v1190
    %v1333 = vadd.f32 %v798, %v1192
    %v1334 = vadd.f32 %v802, %v1196
    %v1335 = vadd.f32 %v804, %v1198
    %v1336 = vadd.f32 %v808, %v1202
    %v1337 = vadd.f32 %v810, %v1204
    %v1338 = vadd.f32 %v814, %v1208
    %v1339 = vadd.f32 %v816, %v1210
    %v1340 = vadd.f32 %v820, %v1214
    %v1341 = vadd.f32 %v822, %v1216
    %v1342 = vadd.f32 %v826, %v1220
    %v1343 = vadd.f32 %v828, %v1222
    %v1344 = vadd.f32 %v832, %v1226
    %v1345 = vadd.f32 %v834, %v1228
    %v1346 = vadd.f32 %v838, %v1232
    %v1347 = vadd.f32 %v840, %v1234
    %v1348 = vadd.f32 %v844, %v1238
    %v1349 = vadd.f32 %v846, %v1240
    %v1350 = vadd.f32 %v850, %v1244
    %v1351 = vadd.f32 %v852, %v1246
    %v1352 = vadd.f32 %v856, %v1250
    %v1353 = vadd.f32 %v858, %v1252
    %v1354 = vadd.f32 %v862, %v1256
    %v1355 = vadd.f32 %v864, %v1258
    %v1356 = vadd.f32 %v868, %v1262
    %v1357 = vadd.f32 %v870, %v1264
    %v1358 = vadd.f32 %v874, %v1268
    %v1359 = vadd.f32 %v876, %v1270
    %v1360 = vadd.f32 %v880, %v1274
    %v1361 = vadd.f32 %v882, %v1276
    %v1362 = vadd.f32 %v886, %v1280
    %v1363 = vadd.f32 %v888, %v1282
    %v1364 = vadd.f32 %v892, %v1286
    %v1365 = vadd.f32 %v894, %v1288
    %v1366 = vadd.f32 %v898, %v1292
    %v1367 = vadd.f32 %v900, %v1294
    %v1368 = vadd.f32 %v904, %v1298
    %v1369 = vadd.f32 %v906, %v1300
    %v1370 = vadd.f32 %v910, %v1304
    %v1371 = vadd.f32 %v912, %v1306
    %v1372 = vld [vmem:[#allocation2 + $0x3] sm:$0xff]
    %v1373 = vld [vmem:[#allocation2 + $0xb] sm:$0xff]
    %v1374 = vld [vmem:[#allocation2 + $0x13] sm:$0xff]
    %v1375 = vld [vmem:[#allocation2 + $0x1b] sm:$0xff]
    %v1376 = vld [vmem:[#allocation2 + $0x23] sm:$0xff]
    %v1377 = vld [vmem:[#allocation2 + $0x2b] sm:$0xff]
    %v1378 = vld [vmem:[#allocation2 + $0x33] sm:$0xff]
    %v1379 = vld [vmem:[#allocation2 + $0x3b] sm:$0xff]
    %v1380 = vld [vmem:[#allocation2 + $0x43] sm:$0xff]
    %v1381 = vld [vmem:[#allocation2 + $0x4b] sm:$0xff]
    %v1382 = vld [vmem:[#allocation2 + $0x53] sm:$0xff]
    %v1383 = vld [vmem:[#allocation2 + $0x5b] sm:$0xff]
    %v1384 = vld [vmem:[#allocation2 + $0x63] sm:$0xff]
    %v1385 = vld [vmem:[#allocation2 + $0x6b] sm:$0xff]
    %v1386 = vld [vmem:[#allocation2 + $0x73] sm:$0xff]
    %v1387 = vld [vmem:[#allocation2 + $0x7b] sm:$0xff]
    %v1388 = vld [vmem:[#allocation2 + $0x83] sm:$0xff]
    %v1389 = vld [vmem:[#allocation2 + $0x8b] sm:$0xff]
    %v1390 = vld [vmem:[#allocation2 + $0x93] sm:$0xff]
    %v1391 = vld [vmem:[#allocation2 + $0x9b] sm:$0xff]
    %v1392 = vld [vmem:[#allocation2 + $0xa3] sm:$0xff]
    %v1393 = vld [vmem:[#allocation2 + $0xab] sm:$0xff]
    %v1394 = vld [vmem:[#allocation2 + $0xb3] sm:$0xff]
    %v1395 = vld [vmem:[#allocation2 + $0xbb] sm:$0xff]
    %v1396 = vld [vmem:[#allocation2 + $0xc3] sm:$0xff]
    %v1397 = vld [vmem:[#allocation2 + $0xcb] sm:$0xff]
    %v1398 = vld [vmem:[#allocation2 + $0xd3] sm:$0xff]
    %v1399 = vld [vmem:[#allocation2 + $0xdb] sm:$0xff]
    %v1400 = vld [vmem:[#allocation2 + $0xe3] sm:$0xff]
    %v1401 = vld [vmem:[#allocation2 + $0xeb] sm:$0xff]
    %v1402 = vld [vmem:[#allocation2 + $0xf3] sm:$0xff]
    %v1403 = vld [vmem:[#allocation2 + $0xfb] sm:$0xff]
    %s1404 = scalar_lea.vmem %s1, 192
    %v1405 = vld [vmem:[%s1404] sm:$0xff]
    %v1406 = vld [vmem:[%s1404 + $0x8] sm:$0xff]
    %v1407 = vld [vmem:[%s1404 + $0x10] sm:$0xff]
    %v1408 = vld [vmem:[%s1404 + $0x18] sm:$0xff]
    %v1409 = vld [vmem:[%s1404 + $0x20] sm:$0xff]
    %v1410 = vld [vmem:[%s1404 + $0x28] sm:$0xff]
    %v1411 = vld [vmem:[%s1404 + $0x30] sm:$0xff]
    %v1412 = vld [vmem:[%s1404 + $0x38] sm:$0xff]
    %v1414 = vsel %vm86, %v1372, 0
    %v1417 = vsel %vm86, %v1373, 0
    %v1420 = vsel %vm86, %v1374, 0
    %v1423 = vsel %vm86, %v1375, 0
    %v1426 = vsel %vm86, %v1376, 0
    %v1429 = vsel %vm86, %v1377, 0
    %v1432 = vsel %vm86, %v1378, 0
    %v1435 = vsel %vm86, %v1379, 0
    %v1438 = vsel %vm86, %v1380, 0
    %v1441 = vsel %vm86, %v1381, 0
    %v1444 = vsel %vm86, %v1382, 0
    %v1447 = vsel %vm86, %v1383, 0
    %v1450 = vsel %vm86, %v1384, 0
    %v1453 = vsel %vm86, %v1385, 0
    %v1456 = vsel %vm86, %v1386, 0
    %v1459 = vsel %vm86, %v1387, 0
    %v1462 = vsel %vm86, %v1388, 0
    %v1465 = vsel %vm86, %v1389, 0
    %v1468 = vsel %vm86, %v1390, 0
    %v1471 = vsel %vm86, %v1391, 0
    %v1474 = vsel %vm86, %v1392, 0
    %v1477 = vsel %vm86, %v1393, 0
    %v1480 = vsel %vm86, %v1394, 0
    %v1483 = vsel %vm86, %v1395, 0
    %v1486 = vsel %vm86, %v1396, 0
    %v1489 = vsel %vm86, %v1397, 0
    %v1492 = vsel %vm86, %v1398, 0
    %v1495 = vsel %vm86, %v1399, 0
    %v1498 = vsel %vm86, %v1400, 0
    %v1501 = vsel %vm86, %v1401, 0
    %v1504 = vsel %vm86, %v1402, 0
    %v1507 = vsel %vm86, %v1403, 0
    %1509 = vmatprep.subr.mxu0 %v1406
    %1510 = vmatpush1.msra.mxu0 %v1405
    %1511 = vmatprep.subr.mxu0 %v1408
    %1512 = vmatpush1.msra.mxu0 %v1407
    %1513 = vmatprep.subr.mxu0 %v1410
    %1514 = vmatpush1.msra.mxu0 %v1409
    %1515 = vmatprep.subr.mxu0 %v1412
    %1516 = vmatpush1.msra.mxu0 %v1411
    %1517 = vmatprep.subr.mxu0 0.0
    %1518 = vmatpush1.msra.mxu0 0.0
    %1519 = vmatprep.subr.mxu0 0.0
    %1520 = vmatpush1.msra.mxu0 0.0
    %1521 = vmatprep.subr.mxu0 0.0
    %1522 = vmatpush1.msra.mxu0 0.0
    %1523 = vmatprep.subr.mxu0 0.0
    %1524 = vmatpush1.msra.mxu0 0.0
    %1525 = vmatprep.subr.mxu0 0.0
    %1526 = vmatpush1.msra.mxu0 0.0
    %1527 = vmatprep.subr.mxu0 0.0
    %1528 = vmatpush1.msra.mxu0 0.0
    %1529 = vmatprep.subr.mxu0 0.0
    %1530 = vmatpush1.msra.mxu0 0.0
    %1531 = vmatprep.subr.mxu0 0.0
    %1532 = vmatpush1.msra.mxu0 0.0
    %1533 = vmatprep.subr.mxu0 0.0
    %1534 = vmatpush1.msra.mxu0 0.0
    %1535 = vmatprep.subr.mxu0 0.0
    %1536 = vmatpush1.msra.mxu0 0.0
    %1537 = vmatprep.subr.mxu0 0.0
    %1538 = vmatpush1.msra.mxu0 0.0
    %1539 = vmatprep.subr.mxu0 0.0
    %1540 = vmatpush1.msra.mxu0 0.0
    %1541 = vmatprep.subr.mxu0 0.0
    %1542 = vmatpush1.msra.mxu0 0.0
    %1543 = vmatprep.subr.mxu0 0.0
    %1544 = vmatpush1.msra.mxu0 0.0
    %1545 = vmatprep.subr.mxu0 0.0
    %1546 = vmatpush1.msra.mxu0 0.0
    %1547 = vmatprep.subr.mxu0 0.0
    %1548 = vmatpush1.msra.mxu0 0.0
    %1549 = vmatprep.subr.mxu0 0.0
    %1550 = vmatpush1.msra.mxu0 0.0
    %1551 = vmatprep.subr.mxu0 0.0
    %1552 = vmatpush1.msra.mxu0 0.0
    %1553 = vmatprep.subr.mxu0 0.0
    %1554 = vmatpush1.msra.mxu0 0.0
    %1555 = vmatprep.subr.mxu0 0.0
    %1556 = vmatpush1.msra.mxu0 0.0
    %1557 = vmatprep.subr.mxu0 0.0
    %1558 = vmatpush1.msra.mxu0 0.0
    %1559 = vmatprep.subr.mxu0 0.0
    %1560 = vmatpush1.msra.mxu0 0.0
    %1561 = vmatprep.subr.mxu0 0.0
    %1562 = vmatpush1.msra.mxu0 0.0
    %1563 = vmatprep.subr.mxu0 0.0
    %1564 = vmatpush1.msra.mxu0 0.0
    %1565 = vmatprep.subr.mxu0 0.0
    %1566 = vmatpush1.msra.mxu0 0.0
    %1567 = vmatprep.subr.mxu0 0.0
    %1568 = vmatpush1.msra.mxu0 0.0
    %1569 = vmatprep.subr.mxu0 0.0
    %1570 = vmatpush1.msra.mxu0 0.0
    %1571 = vmatprep.subr.mxu0 0.0
    %1572 = vmatpush1.msra.mxu0 0.0
    %1573 = vmatprep.mubr.f32.mxu0 0.0
    %1574 = vmatmul.mubr.f32.gmra.mrb[0].mxu0 %v1414
    %v1575 = vpop.f32.mrb[0].mxu0
    %v1576 = vadd.f32 0.0, %v1575
    %v1577 = vpop.f32.mrb[0].mxu0
    %v1578 = vadd.f32 0.0, %v1577
    %1579 = vmatprep.mubr.f32.mxu0 0.0
    %1580 = vmatmul.mubr.f32.gmra.mrb[0].mxu0 %v1417
    %v1581 = vpop.f32.mrb[0].mxu0
    %v1582 = vadd.f32 0.0, %v1581
    %v1583 = vpop.f32.mrb[0].mxu0
    %v1584 = vadd.f32 0.0, %v1583
    %1585 = vmatprep.mubr.f32.mxu0 0.0
    %1586 = vmatmul.mubr.f32.gmra.mrb[0].mxu0 %v1420
    %v1587 = vpop.f32.mrb[0].mxu0
    %v1588 = vadd.f32 0.0, %v1587
    %v1589 = vpop.f32.mrb[0].mxu0
    %v1590 = vadd.f32 0.0, %v1589
    %1591 = vmatprep.mubr.f32.mxu0 0.0
    %1592 = vmatmul.mubr.f32.gmra.mrb[0].mxu0 %v1423
    %v1593 = vpop.f32.mrb[0].mxu0
    %v1594 = vadd.f32 0.0, %v1593
    %v1595 = vpop.f32.mrb[0].mxu0
    %v1596 = vadd.f32 0.0, %v1595
    %1597 = vmatprep.mubr.f32.mxu0 0.0
    %1598 = vmatmul.mubr.f32.gmra.mrb[0].mxu0 %v1426
    %v1599 = vpop.f32.mrb[0].mxu0
    %v1600 = vadd.f32 0.0, %v1599
    %v1601 = vpop.f32.mrb[0].mxu0
    %v1602 = vadd.f32 0.0, %v1601
    %1603 = vmatprep.mubr.f32.mxu0 0.0
    %1604 = vmatmul.mubr.f32.gmra.mrb[0].mxu0 %v1429
    %v1605 = vpop.f32.mrb[0].mxu0
    %v1606 = vadd.f32 0.0, %v1605
    %v1607 = vpop.f32.mrb[0].mxu0
    %v1608 = vadd.f32 0.0, %v1607
    %1609 = vmatprep.mubr.f32.mxu0 0.0
    %1610 = vmatmul.mubr.f32.gmra.mrb[0].mxu0 %v1432
    %v1611 = vpop.f32.mrb[0].mxu0
    %v1612 = vadd.f32 0.0, %v1611
    %v1613 = vpop.f32.mrb[0].mxu0
    %v1614 = vadd.f32 0.0, %v1613
    %1615 = vmatprep.mubr.f32.mxu0 0.0
    %1616 = vmatmul.mubr.f32.gmra.mrb[0].mxu0 %v1435
    %v1617 = vpop.f32.mrb[0].mxu0
    %v1618 = vadd.f32 0.0, %v1617
    %v1619 = vpop.f32.mrb[0].mxu0
    %v1620 = vadd.f32 0.0, %v1619
    %1621 = vmatprep.mubr.f32.mxu0 0.0
    %1622 = vmatmul.mubr.f32.gmra.mrb[0].mxu0 %v1438
    %v1623 = vpop.f32.mrb[0].mxu0
    %v1624 = vadd.f32 0.0, %v1623
    %v1625 = vpop.f32.mrb[0].mxu0
    %v1626 = vadd.f32 0.0, %v1625
    %1627 = vmatprep.mubr.f32.mxu0 0.0
    %1628 = vmatmul.mubr.f32.gmra.mrb[0].mxu0 %v1441
    %v1629 = vpop.f32.mrb[0].mxu0
    %v1630 = vadd.f32 0.0, %v1629
    %v1631 = vpop.f32.mrb[0].mxu0
    %v1632 = vadd.f32 0.0, %v1631
    %1633 = vmatprep.mubr.f32.mxu0 0.0
    %1634 = vmatmul.mubr.f32.gmra.mrb[0].mxu0 %v1444
    %v1635 = vpop.f32.mrb[0].mxu0
    %v1636 = vadd.f32 0.0, %v1635
    %v1637 = vpop.f32.mrb[0].mxu0
    %v1638 = vadd.f32 0.0, %v1637
    %1639 = vmatprep.mubr.f32.mxu0 0.0
    %1640 = vmatmul.mubr.f32.gmra.mrb[0].mxu0 %v1447
    %v1641 = vpop.f32.mrb[0].mxu0
    %v1642 = vadd.f32 0.0, %v1641
    %v1643 = vpop.f32.mrb[0].mxu0
    %v1644 = vadd.f32 0.0, %v1643
    %1645 = vmatprep.mubr.f32.mxu0 0.0
    %1646 = vmatmul.mubr.f32.gmra.mrb[0].mxu0 %v1450
    %v1647 = vpop.f32.mrb[0].mxu0
    %v1648 = vadd.f32 0.0, %v1647
    %v1649 = vpop.f32.mrb[0].mxu0
    %v1650 = vadd.f32 0.0, %v1649
    %1651 = vmatprep.mubr.f32.mxu0 0.0
    %1652 = vmatmul.mubr.f32.gmra.mrb[0].mxu0 %v1453
    %v1653 = vpop.f32.mrb[0].mxu0
    %v1654 = vadd.f32 0.0, %v1653
    %v1655 = vpop.f32.mrb[0].mxu0
    %v1656 = vadd.f32 0.0, %v1655
    %1657 = vmatprep.mubr.f32.mxu0 0.0
    %1658 = vmatmul.mubr.f32.gmra.mrb[0].mxu0 %v1456
    %v1659 = vpop.f32.mrb[0].mxu0
    %v1660 = vadd.f32 0.0, %v1659
    %v1661 = vpop.f32.mrb[0].mxu0
    %v1662 = vadd.f32 0.0, %v1661
    %1663 = vmatprep.mubr.f32.mxu0 0.0
    %1664 = vmatmul.mubr.f32.gmra.mrb[0].mxu0 %v1459
    %v1665 = vpop.f32.mrb[0].mxu0
    %v1666 = vadd.f32 0.0, %v1665
    %v1667 = vpop.f32.mrb[0].mxu0
    %v1668 = vadd.f32 0.0, %v1667
    %1669 = vmatprep.mubr.f32.mxu0 0.0
    %1670 = vmatmul.mubr.f32.gmra.mrb[0].mxu0 %v1462
    %v1671 = vpop.f32.mrb[0].mxu0
    %v1672 = vadd.f32 0.0, %v1671
    %v1673 = vpop.f32.mrb[0].mxu0
    %v1674 = vadd.f32 0.0, %v1673
    %1675 = vmatprep.mubr.f32.mxu0 0.0
    %1676 = vmatmul.mubr.f32.gmra.mrb[0].mxu0 %v1465
    %v1677 = vpop.f32.mrb[0].mxu0
    %v1678 = vadd.f32 0.0, %v1677
    %v1679 = vpop.f32.mrb[0].mxu0
    %v1680 = vadd.f32 0.0, %v1679
    %1681 = vmatprep.mubr.f32.mxu0 0.0
    %1682 = vmatmul.mubr.f32.gmra.mrb[0].mxu0 %v1468
    %v1683 = vpop.f32.mrb[0].mxu0
    %v1684 = vadd.f32 0.0, %v1683
    %v1685 = vpop.f32.mrb[0].mxu0
    %v1686 = vadd.f32 0.0, %v1685
    %1687 = vmatprep.mubr.f32.mxu0 0.0
    %1688 = vmatmul.mubr.f32.gmra.mrb[0].mxu0 %v1471
    %v1689 = vpop.f32.mrb[0].mxu0
    %v1690 = vadd.f32 0.0, %v1689
    %v1691 = vpop.f32.mrb[0].mxu0
    %v1692 = vadd.f32 0.0, %v1691
    %1693 = vmatprep.mubr.f32.mxu0 0.0
    %1694 = vmatmul.mubr.f32.gmra.mrb[0].mxu0 %v1474
    %v1695 = vpop.f32.mrb[0].mxu0
    %v1696 = vadd.f32 0.0, %v1695
    %v1697 = vpop.f32.mrb[0].mxu0
    %v1698 = vadd.f32 0.0, %v1697
    %1699 = vmatprep.mubr.f32.mxu0 0.0
    %1700 = vmatmul.mubr.f32.gmra.mrb[0].mxu0 %v1477
    %v1701 = vpop.f32.mrb[0].mxu0
    %v1702 = vadd.f32 0.0, %v1701
    %v1703 = vpop.f32.mrb[0].mxu0
    %v1704 = vadd.f32 0.0, %v1703
    %1705 = vmatprep.mubr.f32.mxu0 0.0
    %1706 = vmatmul.mubr.f32.gmra.mrb[0].mxu0 %v1480
    %v1707 = vpop.f32.mrb[0].mxu0
    %v1708 = vadd.f32 0.0, %v1707
    %v1709 = vpop.f32.mrb[0].mxu0
    %v1710 = vadd.f32 0.0, %v1709
    %1711 = vmatprep.mubr.f32.mxu0 0.0
    %1712 = vmatmul.mubr.f32.gmra.mrb[0].mxu0 %v1483
    %v1713 = vpop.f32.mrb[0].mxu0
    %v1714 = vadd.f32 0.0, %v1713
    %v1715 = vpop.f32.mrb[0].mxu0
    %v1716 = vadd.f32 0.0, %v1715
    %1717 = vmatprep.mubr.f32.mxu0 0.0
    %1718 = vmatmul.mubr.f32.gmra.mrb[0].mxu0 %v1486
    %v1719 = vpop.f32.mrb[0].mxu0
    %v1720 = vadd.f32 0.0, %v1719
    %v1721 = vpop.f32.mrb[0].mxu0
    %v1722 = vadd.f32 0.0, %v1721
    %1723 = vmatprep.mubr.f32.mxu0 0.0
    %1724 = vmatmul.mubr.f32.gmra.mrb[0].mxu0 %v1489
    %v1725 = vpop.f32.mrb[0].mxu0
    %v1726 = vadd.f32 0.0, %v1725
    %v1727 = vpop.f32.mrb[0].mxu0
    %v1728 = vadd.f32 0.0, %v1727
    %1729 = vmatprep.mubr.f32.mxu0 0.0
    %1730 = vmatmul.mubr.f32.gmra.mrb[0].mxu0 %v1492
    %v1731 = vpop.f32.mrb[0].mxu0
    %v1732 = vadd.f32 0.0, %v1731
    %v1733 = vpop.f32.mrb[0].mxu0
    %v1734 = vadd.f32 0.0, %v1733
    %1735 = vmatprep.mubr.f32.mxu0 0.0
    %1736 = vmatmul.mubr.f32.gmra.mrb[0].mxu0 %v1495
    %v1737 = vpop.f32.mrb[0].mxu0
    %v1738 = vadd.f32 0.0, %v1737
    %v1739 = vpop.f32.mrb[0].mxu0
    %v1740 = vadd.f32 0.0, %v1739
    %1741 = vmatprep.mubr.f32.mxu0 0.0
    %1742 = vmatmul.mubr.f32.gmra.mrb[0].mxu0 %v1498
    %v1743 = vpop.f32.mrb[0].mxu0
    %v1744 = vadd.f32 0.0, %v1743
    %v1745 = vpop.f32.mrb[0].mxu0
    %v1746 = vadd.f32 0.0, %v1745
    %1747 = vmatprep.mubr.f32.mxu0 0.0
    %1748 = vmatmul.mubr.f32.gmra.mrb[0].mxu0 %v1501
    %v1749 = vpop.f32.mrb[0].mxu0
    %v1750 = vadd.f32 0.0, %v1749
    %v1751 = vpop.f32.mrb[0].mxu0
    %v1752 = vadd.f32 0.0, %v1751
    %1753 = vmatprep.mubr.f32.mxu0 0.0
    %1754 = vmatmul.mubr.f32.gmra.mrb[0].mxu0 %v1504
    %v1755 = vpop.f32.mrb[0].mxu0
    %v1756 = vadd.f32 0.0, %v1755
    %v1757 = vpop.f32.mrb[0].mxu0
    %v1758 = vadd.f32 0.0, %v1757
    %1759 = vmatprep.mubr.f32.mxu0 0.0
    %1760 = vmatmul.mubr.f32.gmra.mrb[0].mxu0 %v1507
    %v1761 = vpop.f32.mrb[0].mxu0
    %v1762 = vadd.f32 0.0, %v1761
    %v1763 = vpop.f32.mrb[0].mxu0
    %v1764 = vadd.f32 0.0, %v1763
    %1765 = vdwg.mxu0
    %v1766 = vadd.f32 %v1308, %v1576
    %v1767 = vadd.f32 %v1309, %v1578
    %v1768 = vadd.f32 %v1310, %v1582
    %v1769 = vadd.f32 %v1311, %v1584
    %v1770 = vadd.f32 %v1312, %v1588
    %v1771 = vadd.f32 %v1313, %v1590
    %v1772 = vadd.f32 %v1314, %v1594
    %v1773 = vadd.f32 %v1315, %v1596
    %v1774 = vadd.f32 %v1316, %v1600
    %v1775 = vadd.f32 %v1317, %v1602
    %v1776 = vadd.f32 %v1318, %v1606
    %v1777 = vadd.f32 %v1319, %v1608
    %v1778 = vadd.f32 %v1320, %v1612
    %v1779 = vadd.f32 %v1321, %v1614
    %v1780 = vadd.f32 %v1322, %v1618
    %v1781 = vadd.f32 %v1323, %v1620
    %v1782 = vadd.f32 %v1324, %v1624
    %v1783 = vadd.f32 %v1325, %v1626
    %v1784 = vadd.f32 %v1326, %v1630
    %v1785 = vadd.f32 %v1327, %v1632
    %v1786 = vadd.f32 %v1328, %v1636
    %v1787 = vadd.f32 %v1329, %v1638
    %v1788 = vadd.f32 %v1330, %v1642
    %v1789 = vadd.f32 %v1331, %v1644
    %v1790 = vadd.f32 %v1332, %v1648
    %v1791 = vadd.f32 %v1333, %v1650
    %v1792 = vadd.f32 %v1334, %v1654
    %v1793 = vadd.f32 %v1335, %v1656
    %v1794 = vadd.f32 %v1336, %v1660
    %v1795 = vadd.f32 %v1337, %v1662
    %v1796 = vadd.f32 %v1338, %v1666
    %v1797 = vadd.f32 %v1339, %v1668
    %v1798 = vadd.f32 %v1340, %v1672
    %v1799 = vadd.f32 %v1341, %v1674
    %v1800 = vadd.f32 %v1342, %v1678
    %v1801 = vadd.f32 %v1343, %v1680
    %v1802 = vadd.f32 %v1344, %v1684
    %v1803 = vadd.f32 %v1345, %v1686
    %v1804 = vadd.f32 %v1346, %v1690
    %v1805 = vadd.f32 %v1347, %v1692
    %v1806 = vadd.f32 %v1348, %v1696
    %v1807 = vadd.f32 %v1349, %v1698
    %v1808 = vadd.f32 %v1350, %v1702
    %v1809 = vadd.f32 %v1351, %v1704
    %v1810 = vadd.f32 %v1352, %v1708
    %v1811 = vadd.f32 %v1353, %v1710
    %v1812 = vadd.f32 %v1354, %v1714
    %v1813 = vadd.f32 %v1355, %v1716
    %v1814 = vadd.f32 %v1356, %v1720
    %v1815 = vadd.f32 %v1357, %v1722
    %v1816 = vadd.f32 %v1358, %v1726
    %v1817 = vadd.f32 %v1359, %v1728
    %v1818 = vadd.f32 %v1360, %v1732
    %v1819 = vadd.f32 %v1361, %v1734
    %v1820 = vadd.f32 %v1362, %v1738
    %v1821 = vadd.f32 %v1363, %v1740
    %v1822 = vadd.f32 %v1364, %v1744
    %v1823 = vadd.f32 %v1365, %v1746
    %v1824 = vadd.f32 %v1366, %v1750
    %v1825 = vadd.f32 %v1367, %v1752
    %v1826 = vadd.f32 %v1368, %v1756
    %v1827 = vadd.f32 %v1369, %v1758
    %v1828 = vadd.f32 %v1370, %v1762
    %v1829 = vadd.f32 %v1371, %v1764
    %v1830 = vld [vmem:[#allocation2 + $0x4] sm:$0xff]
    %v1831 = vld [vmem:[#allocation2 + $0xc] sm:$0xff]
    %v1832 = vld [vmem:[#allocation2 + $0x14] sm:$0xff]
    %v1833 = vld [vmem:[#allocation2 + $0x1c] sm:$0xff]
    %v1834 = vld [vmem:[#allocation2 + $0x24] sm:$0xff]
    %v1835 = vld [vmem:[#allocation2 + $0x2c] sm:$0xff]
    %v1836 = vld [vmem:[#allocation2 + $0x34] sm:$0xff]
    %v1837 = vld [vmem:[#allocation2 + $0x3c] sm:$0xff]
    %v1838 = vld [vmem:[#allocation2 + $0x44] sm:$0xff]
    %v1839 = vld [vmem:[#allocation2 + $0x4c] sm:$0xff]
    %v1840 = vld [vmem:[#allocation2 + $0x54] sm:$0xff]
    %v1841 = vld [vmem:[#allocation2 + $0x5c] sm:$0xff]
    %v1842 = vld [vmem:[#allocation2 + $0x64] sm:$0xff]
    %v1843 = vld [vmem:[#allocation2 + $0x6c] sm:$0xff]
    %v1844 = vld [vmem:[#allocation2 + $0x74] sm:$0xff]
    %v1845 = vld [vmem:[#allocation2 + $0x7c] sm:$0xff]
    %v1846 = vld [vmem:[#allocation2 + $0x84] sm:$0xff]
    %v1847 = vld [vmem:[#allocation2 + $0x8c] sm:$0xff]
    %v1848 = vld [vmem:[#allocation2 + $0x94] sm:$0xff]
    %v1849 = vld [vmem:[#allocation2 + $0x9c] sm:$0xff]
    %v1850 = vld [vmem:[#allocation2 + $0xa4] sm:$0xff]
    %v1851 = vld [vmem:[#allocation2 + $0xac] sm:$0xff]
    %v1852 = vld [vmem:[#allocation2 + $0xb4] sm:$0xff]
    %v1853 = vld [vmem:[#allocation2 + $0xbc] sm:$0xff]
    %v1854 = vld [vmem:[#allocation2 + $0xc4] sm:$0xff]
    %v1855 = vld [vmem:[#allocation2 + $0xcc] sm:$0xff]
    %v1856 = vld [vmem:[#allocation2 + $0xd4] sm:$0xff]
    %v1857 = vld [vmem:[#allocation2 + $0xdc] sm:$0xff]
    %v1858 = vld [vmem:[#allocation2 + $0xe4] sm:$0xff]
    %v1859 = vld [vmem:[#allocation2 + $0xec] sm:$0xff]
    %v1860 = vld [vmem:[#allocation2 + $0xf4] sm:$0xff]
    %v1861 = vld [vmem:[#allocation2 + $0xfc] sm:$0xff]
    %s1862 = scalar_lea.vmem %s1, 256
    %v1863 = vld [vmem:[%s1862] sm:$0xff]
    %v1864 = vld [vmem:[%s1862 + $0x8] sm:$0xff]
    %v1865 = vld [vmem:[%s1862 + $0x10] sm:$0xff]
    %v1866 = vld [vmem:[%s1862 + $0x18] sm:$0xff]
    %v1867 = vld [vmem:[%s1862 + $0x20] sm:$0xff]
    %v1868 = vld [vmem:[%s1862 + $0x28] sm:$0xff]
    %v1869 = vld [vmem:[%s1862 + $0x30] sm:$0xff]
    %v1870 = vld [vmem:[%s1862 + $0x38] sm:$0xff]
    %v1872 = vsel %vm86, %v1830, 0
    %v1875 = vsel %vm86, %v1831, 0
    %v1878 = vsel %vm86, %v1832, 0
    %v1881 = vsel %vm86, %v1833, 0
    %v1884 = vsel %vm86, %v1834, 0
    %v1887 = vsel %vm86, %v1835, 0
    %v1890 = vsel %vm86, %v1836, 0
    %v1893 = vsel %vm86, %v1837, 0
    %v1896 = vsel %vm86, %v1838, 0
    %v1899 = vsel %vm86, %v1839, 0
    %v1902 = vsel %vm86, %v1840, 0
    %v1905 = vsel %vm86, %v1841, 0
    %v1908 = vsel %vm86, %v1842, 0
    %v1911 = vsel %vm86, %v1843, 0
    %v1914 = vsel %vm86, %v1844, 0
    %v1917 = vsel %vm86, %v1845, 0
    %v1920 = vsel %vm86, %v1846, 0
    %v1923 = vsel %vm86, %v1847, 0
    %v1926 = vsel %vm86, %v1848, 0
    %v1929 = vsel %vm86, %v1849, 0
    %v1932 = vsel %vm86, %v1850, 0
    %v1935 = vsel %vm86, %v1851, 0
    %v1938 = vsel %vm86, %v1852, 0
    %v1941 = vsel %vm86, %v1853, 0
    %v1944 = vsel %vm86, %v1854, 0
    %v1947 = vsel %vm86, %v1855, 0
    %v1950 = vsel %vm86, %v1856, 0
    %v1953 = vsel %vm86, %v1857, 0
    %v1956 = vsel %vm86, %v1858, 0
    %v1959 = vsel %vm86, %v1859, 0
    %v1962 = vsel %vm86, %v1860, 0
    %v1965 = vsel %vm86, %v1861, 0
    %1967 = vmatprep.subr.mxu0 %v1864
    %1968 = vmatpush1.msra.mxu0 %v1863
    %1969 = vmatprep.subr.mxu0 %v1866
    %1970 = vmatpush1.msra.mxu0 %v1865
    %1971 = vmatprep.subr.mxu0 %v1868
    %1972 = vmatpush1.msra.mxu0 %v1867
    %1973 = vmatprep.subr.mxu0 %v1870
    %1974 = vmatpush1.msra.mxu0 %v1869
    %1975 = vmatprep.subr.mxu0 0.0
    %1976 = vmatpush1.msra.mxu0 0.0
    %1977 = vmatprep.subr.mxu0 0.0
    %1978 = vmatpush1.msra.mxu0 0.0
    %1979 = vmatprep.subr.mxu0 0.0
    %1980 = vmatpush1.msra.mxu0 0.0
    %1981 = vmatprep.subr.mxu0 0.0
    %1982 = vmatpush1.msra.mxu0 0.0
    %1983 = vmatprep.subr.mxu0 0.0
    %1984 = vmatpush1.msra.mxu0 0.0
    %1985 = vmatprep.subr.mxu0 0.0
    %1986 = vmatpush1.msra.mxu0 0.0
    %1987 = vmatprep.subr.mxu0 0.0
    %1988 = vmatpush1.msra.mxu0 0.0
    %1989 = vmatprep.subr.mxu0 0.0
    %1990 = vmatpush1.msra.mxu0 0.0
    %1991 = vmatprep.subr.mxu0 0.0
    %1992 = vmatpush1.msra.mxu0 0.0
    %1993 = vmatprep.subr.mxu0 0.0
    %1994 = vmatpush1.msra.mxu0 0.0
    %1995 = vmatprep.subr.mxu0 0.0
    %1996 = vmatpush1.msra.mxu0 0.0
    %1997 = vmatprep.subr.mxu0 0.0
    %1998 = vmatpush1.msra.mxu0 0.0
    %1999 = vmatprep.subr.mxu0 0.0
    %2000 = vmatpush1.msra.mxu0 0.0
    %2001 = vmatprep.subr.mxu0 0.0
    %2002 = vmatpush1.msra.mxu0 0.0
    %2003 = vmatprep.subr.mxu0 0.0
    %2004 = vmatpush1.msra.mxu0 0.0
    %2005 = vmatprep.subr.mxu0 0.0
    %2006 = vmatpush1.msra.mxu0 0.0
    %2007 = vmatprep.subr.mxu0 0.0
    %2008 = vmatpush1.msra.mxu0 0.0
    %2009 = vmatprep.subr.mxu0 0.0
    %2010 = vmatpush1.msra.mxu0 0.0
    %2011 = vmatprep.subr.mxu0 0.0
    %2012 = vmatpush1.msra.mxu0 0.0
    %2013 = vmatprep.subr.mxu0 0.0
    %2014 = vmatpush1.msra.mxu0 0.0
    %2015 = vmatprep.subr.mxu0 0.0
    %2016 = vmatpush1.msra.mxu0 0.0
    %2017 = vmatprep.subr.mxu0 0.0
    %2018 = vmatpush1.msra.mxu0 0.0
    %2019 = vmatprep.subr.mxu0 0.0
    %2020 = vmatpush1.msra.mxu0 0.0
    %2021 = vmatprep.subr.mxu0 0.0
    %2022 = vmatpush1.msra.mxu0 0.0
    %2023 = vmatprep.subr.mxu0 0.0
    %2024 = vmatpush1.msra.mxu0 0.0
    %2025 = vmatprep.subr.mxu0 0.0
    %2026 = vmatpush1.msra.mxu0 0.0
    %2027 = vmatprep.subr.mxu0 0.0
    %2028 = vmatpush1.msra.mxu0 0.0
    %2029 = vmatprep.subr.mxu0 0.0
    %2030 = vmatpush1.msra.mxu0 0.0
    %2031 = vmatprep.mubr.f32.mxu0 0.0
    %2032 = vmatmul.mubr.f32.gmra.mrb[0].mxu0 %v1872
    %v2033 = vpop.f32.mrb[0].mxu0
    %v2034 = vadd.f32 0.0, %v2033
    %v2035 = vpop.f32.mrb[0].mxu0
    %v2036 = vadd.f32 0.0, %v2035
    %2037 = vmatprep.mubr.f32.mxu0 0.0
    %2038 = vmatmul.mubr.f32.gmra.mrb[0].mxu0 %v1875
    %v2039 = vpop.f32.mrb[0].mxu0
    %v2040 = vadd.f32 0.0, %v2039
    %v2041 = vpop.f32.mrb[0].mxu0
    %v2042 = vadd.f32 0.0, %v2041
    %2043 = vmatprep.mubr.f32.mxu0 0.0
    %2044 = vmatmul.mubr.f32.gmra.mrb[0].mxu0 %v1878
    %v2045 = vpop.f32.mrb[0].mxu0
    %v2046 = vadd.f32 0.0, %v2045
    %v2047 = vpop.f32.mrb[0].mxu0
    %v2048 = vadd.f32 0.0, %v2047
    %2049 = vmatprep.mubr.f32.mxu0 0.0
    %2050 = vmatmul.mubr.f32.gmra.mrb[0].mxu0 %v1881
    %v2051 = vpop.f32.mrb[0].mxu0
    %v2052 = vadd.f32 0.0, %v2051
    %v2053 = vpop.f32.mrb[0].mxu0
    %v2054 = vadd.f32 0.0, %v2053
    %2055 = vmatprep.mubr.f32.mxu0 0.0
    %2056 = vmatmul.mubr.f32.gmra.mrb[0].mxu0 %v1884
    %v2057 = vpop.f32.mrb[0].mxu0
    %v2058 = vadd.f32 0.0, %v2057
    %v2059 = vpop.f32.mrb[0].mxu0
    %v2060 = vadd.f32 0.0, %v2059
    %2061 = vmatprep.mubr.f32.mxu0 0.0
    %2062 = vmatmul.mubr.f32.gmra.mrb[0].mxu0 %v1887
    %v2063 = vpop.f32.mrb[0].mxu0
    %v2064 = vadd.f32 0.0, %v2063
    %v2065 = vpop.f32.mrb[0].mxu0
    %v2066 = vadd.f32 0.0, %v2065
    %2067 = vmatprep.mubr.f32.mxu0 0.0
    %2068 = vmatmul.mubr.f32.gmra.mrb[0].mxu0 %v1890
    %v2069 = vpop.f32.mrb[0].mxu0
    %v2070 = vadd.f32 0.0, %v2069
    %v2071 = vpop.f32.mrb[0].mxu0
    %v2072 = vadd.f32 0.0, %v2071
    %2073 = vmatprep.mubr.f32.mxu0 0.0
    %2074 = vmatmul.mubr.f32.gmra.mrb[0].mxu0 %v1893
    %v2075 = vpop.f32.mrb[0].mxu0
    %v2076 = vadd.f32 0.0, %v2075
    %v2077 = vpop.f32.mrb[0].mxu0
    %v2078 = vadd.f32 0.0, %v2077
    %2079 = vmatprep.mubr.f32.mxu0 0.0
    %2080 = vmatmul.mubr.f32.gmra.mrb[0].mxu0 %v1896
    %v2081 = vpop.f32.mrb[0].mxu0
    %v2082 = vadd.f32 0.0, %v2081
    %v2083 = vpop.f32.mrb[0].mxu0
    %v2084 = vadd.f32 0.0, %v2083
    %2085 = vmatprep.mubr.f32.mxu0 0.0
    %2086 = vmatmul.mubr.f32.gmra.mrb[0].mxu0 %v1899
    %v2087 = vpop.f32.mrb[0].mxu0
    %v2088 = vadd.f32 0.0, %v2087
    %v2089 = vpop.f32.mrb[0].mxu0
    %v2090 = vadd.f32 0.0, %v2089
    %2091 = vmatprep.mubr.f32.mxu0 0.0
    %2092 = vmatmul.mubr.f32.gmra.mrb[0].mxu0 %v1902
    %v2093 = vpop.f32.mrb[0].mxu0
    %v2094 = vadd.f32 0.0, %v2093
    %v2095 = vpop.f32.mrb[0].mxu0
    %v2096 = vadd.f32 0.0, %v2095
    %2097 = vmatprep.mubr.f32.mxu0 0.0
    %2098 = vmatmul.mubr.f32.gmra.mrb[0].mxu0 %v1905
    %v2099 = vpop.f32.mrb[0].mxu0
    %v2100 = vadd.f32 0.0, %v2099
    %v2101 = vpop.f32.mrb[0].mxu0
    %v2102 = vadd.f32 0.0, %v2101
    %2103 = vmatprep.mubr.f32.mxu0 0.0
    %2104 = vmatmul.mubr.f32.gmra.mrb[0].mxu0 %v1908
    %v2105 = vpop.f32.mrb[0].mxu0
    %v2106 = vadd.f32 0.0, %v2105
    %v2107 = vpop.f32.mrb[0].mxu0
    %v2108 = vadd.f32 0.0, %v2107
    %2109 = vmatprep.mubr.f32.mxu0 0.0
    %2110 = vmatmul.mubr.f32.gmra.mrb[0].mxu0 %v1911
    %v2111 = vpop.f32.mrb[0].mxu0
    %v2112 = vadd.f32 0.0, %v2111
    %v2113 = vpop.f32.mrb[0].mxu0
    %v2114 = vadd.f32 0.0, %v2113
    %2115 = vmatprep.mubr.f32.mxu0 0.0
    %2116 = vmatmul.mubr.f32.gmra.mrb[0].mxu0 %v1914
    %v2117 = vpop.f32.mrb[0].mxu0
    %v2118 = vadd.f32 0.0, %v2117
    %v2119 = vpop.f32.mrb[0].mxu0
    %v2120 = vadd.f32 0.0, %v2119
    %2121 = vmatprep.mubr.f32.mxu0 0.0
    %2122 = vmatmul.mubr.f32.gmra.mrb[0].mxu0 %v1917
    %v2123 = vpop.f32.mrb[0].mxu0
    %v2124 = vadd.f32 0.0, %v2123
    %v2125 = vpop.f32.mrb[0].mxu0
    %v2126 = vadd.f32 0.0, %v2125
    %2127 = vmatprep.mubr.f32.mxu0 0.0
    %2128 = vmatmul.mubr.f32.gmra.mrb[0].mxu0 %v1920
    %v2129 = vpop.f32.mrb[0].mxu0
    %v2130 = vadd.f32 0.0, %v2129
    %v2131 = vpop.f32.mrb[0].mxu0
    %v2132 = vadd.f32 0.0, %v2131
    %2133 = vmatprep.mubr.f32.mxu0 0.0
    %2134 = vmatmul.mubr.f32.gmra.mrb[0].mxu0 %v1923
    %v2135 = vpop.f32.mrb[0].mxu0
    %v2136 = vadd.f32 0.0, %v2135
    %v2137 = vpop.f32.mrb[0].mxu0
    %v2138 = vadd.f32 0.0, %v2137
    %2139 = vmatprep.mubr.f32.mxu0 0.0
    %2140 = vmatmul.mubr.f32.gmra.mrb[0].mxu0 %v1926
    %v2141 = vpop.f32.mrb[0].mxu0
    %v2142 = vadd.f32 0.0, %v2141
    %v2143 = vpop.f32.mrb[0].mxu0
    %v2144 = vadd.f32 0.0, %v2143
    %2145 = vmatprep.mubr.f32.mxu0 0.0
    %2146 = vmatmul.mubr.f32.gmra.mrb[0].mxu0 %v1929
    %v2147 = vpop.f32.mrb[0].mxu0
    %v2148 = vadd.f32 0.0, %v2147
    %v2149 = vpop.f32.mrb[0].mxu0
    %v2150 = vadd.f32 0.0, %v2149
    %2151 = vmatprep.mubr.f32.mxu0 0.0
    %2152 = vmatmul.mubr.f32.gmra.mrb[0].mxu0 %v1932
    %v2153 = vpop.f32.mrb[0].mxu0
    %v2154 = vadd.f32 0.0, %v2153
    %v2155 = vpop.f32.mrb[0].mxu0
    %v2156 = vadd.f32 0.0, %v2155
    %2157 = vmatprep.mubr.f32.mxu0 0.0
    %2158 = vmatmul.mubr.f32.gmra.mrb[0].mxu0 %v1935
    %v2159 = vpop.f32.mrb[0].mxu0
    %v2160 = vadd.f32 0.0, %v2159
    %v2161 = vpop.f32.mrb[0].mxu0
    %v2162 = vadd.f32 0.0, %v2161
    %2163 = vmatprep.mubr.f32.mxu0 0.0
    %2164 = vmatmul.mubr.f32.gmra.mrb[0].mxu0 %v1938
    %v2165 = vpop.f32.mrb[0].mxu0
    %v2166 = vadd.f32 0.0, %v2165
    %v2167 = vpop.f32.mrb[0].mxu0
    %v2168 = vadd.f32 0.0, %v2167
    %2169 = vmatprep.mubr.f32.mxu0 0.0
    %2170 = vmatmul.mubr.f32.gmra.mrb[0].mxu0 %v1941
    %v2171 = vpop.f32.mrb[0].mxu0
    %v2172 = vadd.f32 0.0, %v2171
    %v2173 = vpop.f32.mrb[0].mxu0
    %v2174 = vadd.f32 0.0, %v2173
    %2175 = vmatprep.mubr.f32.mxu0 0.0
    %2176 = vmatmul.mubr.f32.gmra.mrb[0].mxu0 %v1944
    %v2177 = vpop.f32.mrb[0].mxu0
    %v2178 = vadd.f32 0.0, %v2177
    %v2179 = vpop.f32.mrb[0].mxu0
    %v2180 = vadd.f32 0.0, %v2179
    %2181 = vmatprep.mubr.f32.mxu0 0.0
    %2182 = vmatmul.mubr.f32.gmra.mrb[0].mxu0 %v1947
    %v2183 = vpop.f32.mrb[0].mxu0
    %v2184 = vadd.f32 0.0, %v2183
    %v2185 = vpop.f32.mrb[0].mxu0
    %v2186 = vadd.f32 0.0, %v2185
    %2187 = vmatprep.mubr.f32.mxu0 0.0
    %2188 = vmatmul.mubr.f32.gmra.mrb[0].mxu0 %v1950
    %v2189 = vpop.f32.mrb[0].mxu0
    %v2190 = vadd.f32 0.0, %v2189
    %v2191 = vpop.f32.mrb[0].mxu0
    %v2192 = vadd.f32 0.0, %v2191
    %2193 = vmatprep.mubr.f32.mxu0 0.0
    %2194 = vmatmul.mubr.f32.gmra.mrb[0].mxu0 %v1953
    %v2195 = vpop.f32.mrb[0].mxu0
    %v2196 = vadd.f32 0.0, %v2195
    %v2197 = vpop.f32.mrb[0].mxu0
    %v2198 = vadd.f32 0.0, %v2197
    %2199 = vmatprep.mubr.f32.mxu0 0.0
    %2200 = vmatmul.mubr.f32.gmra.mrb[0].mxu0 %v1956
    %v2201 = vpop.f32.mrb[0].mxu0
    %v2202 = vadd.f32 0.0, %v2201
    %v2203 = vpop.f32.mrb[0].mxu0
    %v2204 = vadd.f32 0.0, %v2203
    %2205 = vmatprep.mubr.f32.mxu0 0.0
    %2206 = vmatmul.mubr.f32.gmra.mrb[0].mxu0 %v1959
    %v2207 = vpop.f32.mrb[0].mxu0
    %v2208 = vadd.f32 0.0, %v2207
    %v2209 = vpop.f32.mrb[0].mxu0
    %v2210 = vadd.f32 0.0, %v2209
    %2211 = vmatprep.mubr.f32.mxu0 0.0
    %2212 = vmatmul.mubr.f32.gmra.mrb[0].mxu0 %v1962
    %v2213 = vpop.f32.mrb[0].mxu0
    %v2214 = vadd.f32 0.0, %v2213
    %v2215 = vpop.f32.mrb[0].mxu0
    %v2216 = vadd.f32 0.0, %v2215
    %2217 = vmatprep.mubr.f32.mxu0 0.0
    %2218 = vmatmul.mubr.f32.gmra.mrb[0].mxu0 %v1965
    %v2219 = vpop.f32.mrb[0].mxu0
    %v2220 = vadd.f32 0.0, %v2219
    %v2221 = vpop.f32.mrb[0].mxu0
    %v2222 = vadd.f32 0.0, %v2221
    %2223 = vdwg.mxu0
    %v2224 = vadd.f32 %v1766, %v2034
    %v2225 = vadd.f32 %v1767, %v2036
    %v2226 = vadd.f32 %v1768, %v2040
    %v2227 = vadd.f32 %v1769, %v2042
    %v2228 = vadd.f32 %v1770, %v2046
    %v2229 = vadd.f32 %v1771, %v2048
    %v2230 = vadd.f32 %v1772, %v2052
    %v2231 = vadd.f32 %v1773, %v2054
    %v2232 = vadd.f32 %v1774, %v2058
    %v2233 = vadd.f32 %v1775, %v2060
    %v2234 = vadd.f32 %v1776, %v2064
    %v2235 = vadd.f32 %v1777, %v2066
    %v2236 = vadd.f32 %v1778, %v2070
    %v2237 = vadd.f32 %v1779, %v2072
    %v2238 = vadd.f32 %v1780, %v2076
    %v2239 = vadd.f32 %v1781, %v2078
    %v2240 = vadd.f32 %v1782, %v2082
    %v2241 = vadd.f32 %v1783, %v2084
    %v2242 = vadd.f32 %v1784, %v2088
    %v2243 = vadd.f32 %v1785, %v2090
    %v2244 = vadd.f32 %v1786, %v2094
    %v2245 = vadd.f32 %v1787, %v2096
    %v2246 = vadd.f32 %v1788, %v2100
    %v2247 = vadd.f32 %v1789, %v2102
    %v2248 = vadd.f32 %v1790, %v2106
    %v2249 = vadd.f32 %v1791, %v2108
    %v2250 = vadd.f32 %v1792, %v2112
    %v2251 = vadd.f32 %v1793, %v2114
    %v2252 = vadd.f32 %v1794, %v2118
    %v2253 = vadd.f32 %v1795, %v2120
    %v2254 = vadd.f32 %v1796, %v2124
    %v2255 = vadd.f32 %v1797, %v2126
    %v2256 = vadd.f32 %v1798, %v2130
    %v2257 = vadd.f32 %v1799, %v2132
    %v2258 = vadd.f32 %v1800, %v2136
    %v2259 = vadd.f32 %v1801, %v2138
    %v2260 = vadd.f32 %v1802, %v2142
    %v2261 = vadd.f32 %v1803, %v2144
    %v2262 = vadd.f32 %v1804, %v2148
    %v2263 = vadd.f32 %v1805, %v2150
    %v2264 = vadd.f32 %v1806, %v2154
    %v2265 = vadd.f32 %v1807, %v2156
    %v2266 = vadd.f32 %v1808, %v2160
    %v2267 = vadd.f32 %v1809, %v2162
    %v2268 = vadd.f32 %v1810, %v2166
    %v2269 = vadd.f32 %v1811, %v2168
    %v2270 = vadd.f32 %v1812, %v2172
    %v2271 = vadd.f32 %v1813, %v2174
    %v2272 = vadd.f32 %v1814, %v2178
    %v2273 = vadd.f32 %v1815, %v2180
    %v2274 = vadd.f32 %v1816, %v2184
    %v2275 = vadd.f32 %v1817, %v2186
    %v2276 = vadd.f32 %v1818, %v2190
    %v2277 = vadd.f32 %v1819, %v2192
    %v2278 = vadd.f32 %v1820, %v2196
    %v2279 = vadd.f32 %v1821, %v2198
    %v2280 = vadd.f32 %v1822, %v2202
    %v2281 = vadd.f32 %v1823, %v2204
    %v2282 = vadd.f32 %v1824, %v2208
    %v2283 = vadd.f32 %v1825, %v2210
    %v2284 = vadd.f32 %v1826, %v2214
    %v2285 = vadd.f32 %v1827, %v2216
    %v2286 = vadd.f32 %v1828, %v2220
    %v2287 = vadd.f32 %v1829, %v2222
    %v2288 = vld [vmem:[%s2] sm:$0x3]
    %v2290 = vlaneseq
    %v2291 = vshrl.u32 %v2290, 7
    %v2292 = vsub.s32 0, %v2291
    %v2293 = vrot.slane %v2288, %v2292
    %v2294 = vlaneseq
    %v2295 = vshrl.u32 %v2294, 7
    %v2296 = vsub.s32 1, %v2295
    %v2297 = vrot.slane %v2288, %v2296
    %v2300 = vadd.f32 %v2224, %v2293
    %v2301 = vadd.f32 %v2225, %v2297
    %v2302 = vadd.f32 %v2226, %v2293
    %v2303 = vadd.f32 %v2227, %v2297
    %v2304 = vadd.f32 %v2228, %v2293
    %v2305 = vadd.f32 %v2229, %v2297
    %v2306 = vadd.f32 %v2230, %v2293
    %v2307 = vadd.f32 %v2231, %v2297
    %v2308 = vadd.f32 %v2232, %v2293
    %v2309 = vadd.f32 %v2233, %v2297
    %v2310 = vadd.f32 %v2234, %v2293
    %v2311 = vadd.f32 %v2235, %v2297
    %v2312 = vadd.f32 %v2236, %v2293
    %v2313 = vadd.f32 %v2237, %v2297
    %v2314 = vadd.f32 %v2238, %v2293
    %v2315 = vadd.f32 %v2239, %v2297
    %v2316 = vadd.f32 %v2240, %v2293
    %v2317 = vadd.f32 %v2241, %v2297
    %v2318 = vadd.f32 %v2242, %v2293
    %v2319 = vadd.f32 %v2243, %v2297
    %v2320 = vadd.f32 %v2244, %v2293
    %v2321 = vadd.f32 %v2245, %v2297
    %v2322 = vadd.f32 %v2246, %v2293
    %v2323 = vadd.f32 %v2247, %v2297
    %v2324 = vadd.f32 %v2248, %v2293
    %v2325 = vadd.f32 %v2249, %v2297
    %v2326 = vadd.f32 %v2250, %v2293
    %v2327 = vadd.f32 %v2251, %v2297
    %v2328 = vadd.f32 %v2252, %v2293
    %v2329 = vadd.f32 %v2253, %v2297
    %v2330 = vadd.f32 %v2254, %v2293
    %v2331 = vadd.f32 %v2255, %v2297
    %v2332 = vadd.f32 %v2256, %v2293
    %v2333 = vadd.f32 %v2257, %v2297
    %v2334 = vadd.f32 %v2258, %v2293
    %v2335 = vadd.f32 %v2259, %v2297
    %v2336 = vadd.f32 %v2260, %v2293
    %v2337 = vadd.f32 %v2261, %v2297
    %v2338 = vadd.f32 %v2262, %v2293
    %v2339 = vadd.f32 %v2263, %v2297
    %v2340 = vadd.f32 %v2264, %v2293
    %v2341 = vadd.f32 %v2265, %v2297
    %v2342 = vadd.f32 %v2266, %v2293
    %v2343 = vadd.f32 %v2267, %v2297
    %v2344 = vadd.f32 %v2268, %v2293
    %v2345 = vadd.f32 %v2269, %v2297
    %v2346 = vadd.f32 %v2270, %v2293
    %v2347 = vadd.f32 %v2271, %v2297
    %v2348 = vadd.f32 %v2272, %v2293
    %v2349 = vadd.f32 %v2273, %v2297
    %v2350 = vadd.f32 %v2274, %v2293
    %v2351 = vadd.f32 %v2275, %v2297
    %v2352 = vadd.f32 %v2276, %v2293
    %v2353 = vadd.f32 %v2277, %v2297
    %v2354 = vadd.f32 %v2278, %v2293
    %v2355 = vadd.f32 %v2279, %v2297
    %v2356 = vadd.f32 %v2280, %v2293
    %v2357 = vadd.f32 %v2281, %v2297
    %v2358 = vadd.f32 %v2282, %v2293
    %v2359 = vadd.f32 %v2283, %v2297
    %v2360 = vadd.f32 %v2284, %v2293
    %v2361 = vadd.f32 %v2285, %v2297
    %v2362 = vadd.f32 %v2286, %v2293
    %v2363 = vadd.f32 %v2287, %v2297
    %v2364 = vmax.f32 %v2300, 0.0
    %v2365 = vmax.f32 %v2301, 0.0
    %v2366 = vmax.f32 %v2302, 0.0
    %v2367 = vmax.f32 %v2303, 0.0
    %v2368 = vmax.f32 %v2304, 0.0
    %v2369 = vmax.f32 %v2305, 0.0
    %v2370 = vmax.f32 %v2306, 0.0
    %v2371 = vmax.f32 %v2307, 0.0
    %v2372 = vmax.f32 %v2308, 0.0
    %v2373 = vmax.f32 %v2309, 0.0
    %v2374 = vmax.f32 %v2310, 0.0
    %v2375 = vmax.f32 %v2311, 0.0
    %v2376 = vmax.f32 %v2312, 0.0
    %v2377 = vmax.f32 %v2313, 0.0
    %v2378 = vmax.f32 %v2314, 0.0
    %v2379 = vmax.f32 %v2315, 0.0
    %v2380 = vmax.f32 %v2316, 0.0
    %v2381 = vmax.f32 %v2317, 0.0
    %v2382 = vmax.f32 %v2318, 0.0
    %v2383 = vmax.f32 %v2319, 0.0
    %v2384 = vmax.f32 %v2320, 0.0
    %v2385 = vmax.f32 %v2321, 0.0
    %v2386 = vmax.f32 %v2322, 0.0
    %v2387 = vmax.f32 %v2323, 0.0
    %v2388 = vmax.f32 %v2324, 0.0
    %v2389 = vmax.f32 %v2325, 0.0
    %v2390 = vmax.f32 %v2326, 0.0
    %v2391 = vmax.f32 %v2327, 0.0
    %v2392 = vmax.f32 %v2328, 0.0
    %v2393 = vmax.f32 %v2329, 0.0
    %v2394 = vmax.f32 %v2330, 0.0
    %v2395 = vmax.f32 %v2331, 0.0
    %v2396 = vmax.f32 %v2332, 0.0
    %v2397 = vmax.f32 %v2333, 0.0
    %v2398 = vmax.f32 %v2334, 0.0
    %v2399 = vmax.f32 %v2335, 0.0
    %v2400 = vmax.f32 %v2336, 0.0
    %v2401 = vmax.f32 %v2337, 0.0
    %v2402 = vmax.f32 %v2338, 0.0
    %v2403 = vmax.f32 %v2339, 0.0
    %v2404 = vmax.f32 %v2340, 0.0
    %v2405 = vmax.f32 %v2341, 0.0
    %v2406 = vmax.f32 %v2342, 0.0
    %v2407 = vmax.f32 %v2343, 0.0
    %v2408 = vmax.f32 %v2344, 0.0
    %v2409 = vmax.f32 %v2345, 0.0
    %v2410 = vmax.f32 %v2346, 0.0
    %v2411 = vmax.f32 %v2347, 0.0
    %v2412 = vmax.f32 %v2348, 0.0
    %v2413 = vmax.f32 %v2349, 0.0
    %v2414 = vmax.f32 %v2350, 0.0
    %v2415 = vmax.f32 %v2351, 0.0
    %v2416 = vmax.f32 %v2352, 0.0
    %v2417 = vmax.f32 %v2353, 0.0
    %v2418 = vmax.f32 %v2354, 0.0
    %v2419 = vmax.f32 %v2355, 0.0
    %v2420 = vmax.f32 %v2356, 0.0
    %v2421 = vmax.f32 %v2357, 0.0
    %v2422 = vmax.f32 %v2358, 0.0
    %v2423 = vmax.f32 %v2359, 0.0
    %v2424 = vmax.f32 %v2360, 0.0
    %v2425 = vmax.f32 %v2361, 0.0
    %v2426 = vmax.f32 %v2362, 0.0
    %v2427 = vmax.f32 %v2363, 0.0
    %v2428 = vld [vmem:[%s3] sm:$0xff]
    %v2429 = vld [vmem:[%s3 + $0x8] sm:$0xff]
    %v2430 = vld [vmem:[%s3 + $0x10] sm:$0xff]
    %v2431 = vld [vmem:[%s3 + $0x18] sm:$0xff]
    %v2432 = vld [vmem:[%s3 + $0x20] sm:$0xff]
    %v2433 = vld [vmem:[%s3 + $0x28] sm:$0xff]
    %v2434 = vld [vmem:[%s3 + $0x30] sm:$0xff]
    %v2435 = vld [vmem:[%s3 + $0x38] sm:$0xff]
    %v2436 = vld [vmem:[%s3 + $0x40] sm:$0xff]
    %v2437 = vld [vmem:[%s3 + $0x48] sm:$0xff]
    %v2438 = vld [vmem:[%s3 + $0x50] sm:$0xff]
    %v2439 = vld [vmem:[%s3 + $0x58] sm:$0xff]
    %v2440 = vld [vmem:[%s3 + $0x60] sm:$0xff]
    %v2441 = vld [vmem:[%s3 + $0x68] sm:$0xff]
    %v2442 = vld [vmem:[%s3 + $0x70] sm:$0xff]
    %v2443 = vld [vmem:[%s3 + $0x78] sm:$0xff]
    %v2444 = vld [vmem:[%s3 + $0x80] sm:$0xff]
    %v2445 = vld [vmem:[%s3 + $0x88] sm:$0xff]
    %v2446 = vld [vmem:[%s3 + $0x90] sm:$0xff]
    %v2447 = vld [vmem:[%s3 + $0x98] sm:$0xff]
    %v2448 = vld [vmem:[%s3 + $0xa0] sm:$0xff]
    %vm2449 = vcmask 326656
    %v2451 = vsel %vm2449, %v2365, 0
    %v2454 = vsel %vm2449, %v2367, 0
    %v2457 = vsel %vm2449, %v2369, 0
    %v2460 = vsel %vm2449, %v2371, 0
    %v2463 = vsel %vm2449, %v2373, 0
    %v2466 = vsel %vm2449, %v2375, 0
    %v2469 = vsel %vm2449, %v2377, 0
    %v2472 = vsel %vm2449, %v2379, 0
    %v2475 = vsel %vm2449, %v2381, 0
    %v2478 = vsel %vm2449, %v2383, 0
    %v2481 = vsel %vm2449, %v2385, 0
    %v2484 = vsel %vm2449, %v2387, 0
    %v2487 = vsel %vm2449, %v2389, 0
    %v2490 = vsel %vm2449, %v2391, 0
    %v2493 = vsel %vm2449, %v2393, 0
    %v2496 = vsel %vm2449, %v2395, 0
    %v2499 = vsel %vm2449, %v2397, 0
    %v2502 = vsel %vm2449, %v2399, 0
    %v2505 = vsel %vm2449, %v2401, 0
    %v2508 = vsel %vm2449, %v2403, 0
    %v2511 = vsel %vm2449, %v2405, 0
    %v2514 = vsel %vm2449, %v2407, 0
    %v2517 = vsel %vm2449, %v2409, 0
    %v2520 = vsel %vm2449, %v2411, 0
    %v2523 = vsel %vm2449, %v2413, 0
    %v2526 = vsel %vm2449, %v2415, 0
    %v2529 = vsel %vm2449, %v2417, 0
    %v2532 = vsel %vm2449, %v2419, 0
    %v2535 = vsel %vm2449, %v2421, 0
    %v2538 = vsel %vm2449, %v2423, 0
    %v2541 = vsel %vm2449, %v2425, 0
    %v2544 = vsel %vm2449, %v2427, 0
    %2546 = vmatprep.subr.mxu0 0.0
    %2547 = vmatpush1.msra.mxu0 %v2428
    %2548 = vmatprep.subr.mxu0 0.0
    %2549 = vmatpush1.msra.mxu0 %v2429
    %2550 = vmatprep.subr.mxu0 0.0
    %2551 = vmatpush1.msra.mxu0 %v2430
    %2552 = vmatprep.subr.mxu0 0.0
    %2553 = vmatpush1.msra.mxu0 %v2431
    %2554 = vmatprep.subr.mxu0 0.0
    %2555 = vmatpush1.msra.mxu0 %v2432
    %2556 = vmatprep.subr.mxu0 0.0
    %2557 = vmatpush1.msra.mxu0 %v2433
    %2558 = vmatprep.subr.mxu0 0.0
    %2559 = vmatpush1.msra.mxu0 %v2434
    %2560 = vmatprep.subr.mxu0 0.0
    %2561 = vmatpush1.msra.mxu0 %v2435
    %2562 = vmatprep.subr.mxu0 0.0
    %2563 = vmatpush1.msra.mxu0 %v2436
    %2564 = vmatprep.subr.mxu0 0.0
    %2565 = vmatpush1.msra.mxu0 %v2437
    %2566 = vmatprep.subr.mxu0 0.0
    %2567 = vmatpush1.msra.mxu0 %v2438
    %2568 = vmatprep.subr.mxu0 0.0
    %2569 = vmatpush1.msra.mxu0 %v2439
    %2570 = vmatprep.subr.mxu0 0.0
    %2571 = vmatpush1.msra.mxu0 %v2440
    %2572 = vmatprep.subr.mxu0 0.0
    %2573 = vmatpush1.msra.mxu0 %v2441
    %2574 = vmatprep.subr.mxu0 0.0
    %2575 = vmatpush1.msra.mxu0 %v2442
    %2576 = vmatprep.subr.mxu0 0.0
    %2577 = vmatpush1.msra.mxu0 %v2443
    %2578 = vmatprep.subr.mxu0 0.0
    %2579 = vmatpush1.msra.mxu0 %v2444
    %2580 = vmatprep.subr.mxu0 0.0
    %2581 = vmatpush1.msra.mxu0 %v2445
    %2582 = vmatprep.subr.mxu0 0.0
    %2583 = vmatpush1.msra.mxu0 %v2446
    %2584 = vmatprep.subr.mxu0 0.0
    %2585 = vmatpush1.msra.mxu0 %v2447
    %2586 = vmatprep.subr.mxu0 0.0
    %2587 = vmatpush1.msra.mxu0 %v2448
    %2588 = vmatprep.subr.mxu0 0.0
    %2589 = vmatpush1.msra.mxu0 0.0
    %2590 = vmatprep.subr.mxu0 0.0
    %2591 = vmatpush1.msra.mxu0 0.0
    %2592 = vmatprep.subr.mxu0 0.0
    %2593 = vmatpush1.msra.mxu0 0.0
    %2594 = vmatprep.subr.mxu0 0.0
    %2595 = vmatpush1.msra.mxu0 0.0
    %2596 = vmatprep.subr.mxu0 0.0
    %2597 = vmatpush1.msra.mxu0 0.0
    %2598 = vmatprep.subr.mxu0 0.0
    %2599 = vmatpush1.msra.mxu0 0.0
    %2600 = vmatprep.subr.mxu0 0.0
    %2601 = vmatpush1.msra.mxu0 0.0
    %2602 = vmatprep.subr.mxu0 0.0
    %2603 = vmatpush1.msra.mxu0 0.0
    %2604 = vmatprep.subr.mxu0 0.0
    %2605 = vmatpush1.msra.mxu0 0.0
    %2606 = vmatprep.subr.mxu0 0.0
    %2607 = vmatpush1.msra.mxu0 0.0
    %2608 = vmatprep.subr.mxu0 0.0
    %2609 = vmatpush1.msra.mxu0 0.0
    %2610 = vmatprep.mubr.f32.mxu0 %v2451
    %2611 = vmatmul.mubr.f32.gmra.mrb[0].mxu0 %v2364
    %v2612 = vpop.f32.mrb[0].mxu0
    %v2613 = vadd.f32 0.0, %v2612
    %v2614 = vpop.f32.mrb[0].mxu0
    %2615 = vmatprep.mubr.f32.mxu0 %v2454
    %2616 = vmatmul.mubr.f32.gmra.mrb[0].mxu0 %v2366
    %v2617 = vpop.f32.mrb[0].mxu0
    %v2618 = vadd.f32 0.0, %v2617
    %v2619 = vpop.f32.mrb[0].mxu0
    %2620 = vmatprep.mubr.f32.mxu0 %v2457
    %2621 = vmatmul.mubr.f32.gmra.mrb[0].mxu0 %v2368
    %v2622 = vpop.f32.mrb[0].mxu0
    %v2623 = vadd.f32 0.0, %v2622
    %v2624 = vpop.f32.mrb[0].mxu0
    %2625 = vmatprep.mubr.f32.mxu0 %v2460
    %2626 = vmatmul.mubr.f32.gmra.mrb[0].mxu0 %v2370
    %v2627 = vpop.f32.mrb[0].mxu0
    %v2628 = vadd.f32 0.0, %v2627
    %v2629 = vpop.f32.mrb[0].mxu0
    %2630 = vmatprep.mubr.f32.mxu0 %v2463
    %2631 = vmatmul.mubr.f32.gmra.mrb[0].mxu0 %v2372
    %v2632 = vpop.f32.mrb[0].mxu0
    %v2633 = vadd.f32 0.0, %v2632
    %v2634 = vpop.f32.mrb[0].mxu0
    %2635 = vmatprep.mubr.f32.mxu0 %v2466
    %2636 = vmatmul.mubr.f32.gmra.mrb[0].mxu0 %v2374
    %v2637 = vpop.f32.mrb[0].mxu0
    %v2638 = vadd.f32 0.0, %v2637
    %v2639 = vpop.f32.mrb[0].mxu0
    %2640 = vmatprep.mubr.f32.mxu0 %v2469
    %2641 = vmatmul.mubr.f32.gmra.mrb[0].mxu0 %v2376
    %v2642 = vpop.f32.mrb[0].mxu0
    %v2643 = vadd.f32 0.0, %v2642
    %v2644 = vpop.f32.mrb[0].mxu0
    %2645 = vmatprep.mubr.f32.mxu0 %v2472
    %2646 = vmatmul.mubr.f32.gmra.mrb[0].mxu0 %v2378
    %v2647 = vpop.f32.mrb[0].mxu0
    %v2648 = vadd.f32 0.0, %v2647
    %v2649 = vpop.f32.mrb[0].mxu0
    %2650 = vmatprep.mubr.f32.mxu0 %v2475
    %2651 = vmatmul.mubr.f32.gmra.mrb[0].mxu0 %v2380
    %v2652 = vpop.f32.mrb[0].mxu0
    %v2653 = vadd.f32 0.0, %v2652
    %v2654 = vpop.f32.mrb[0].mxu0
    %2655 = vmatprep.mubr.f32.mxu0 %v2478
    %2656 = vmatmul.mubr.f32.gmra.mrb[0].mxu0 %v2382
    %v2657 = vpop.f32.mrb[0].mxu0
    %v2658 = vadd.f32 0.0, %v2657
    %v2659 = vpop.f32.mrb[0].mxu0
    %2660 = vmatprep.mubr.f32.mxu0 %v2481
    %2661 = vmatmul.mubr.f32.gmra.mrb[0].mxu0 %v2384
    %v2662 = vpop.f32.mrb[0].mxu0
    %v2663 = vadd.f32 0.0, %v2662
    %v2664 = vpop.f32.mrb[0].mxu0
    %2665 = vmatprep.mubr.f32.mxu0 %v2484
    %2666 = vmatmul.mubr.f32.gmra.mrb[0].mxu0 %v2386
    %v2667 = vpop.f32.mrb[0].mxu0
    %v2668 = vadd.f32 0.0, %v2667
    %v2669 = vpop.f32.mrb[0].mxu0
    %2670 = vmatprep.mubr.f32.mxu0 %v2487
    %2671 = vmatmul.mubr.f32.gmra.mrb[0].mxu0 %v2388
    %v2672 = vpop.f32.mrb[0].mxu0
    %v2673 = vadd.f32 0.0, %v2672
    %v2674 = vpop.f32.mrb[0].mxu0
    %2675 = vmatprep.mubr.f32.mxu0 %v2490
    %2676 = vmatmul.mubr.f32.gmra.mrb[0].mxu0 %v2390
    %v2677 = vpop.f32.mrb[0].mxu0
    %v2678 = vadd.f32 0.0, %v2677
    %v2679 = vpop.f32.mrb[0].mxu0
    %2680 = vmatprep.mubr.f32.mxu0 %v2493
    %2681 = vmatmul.mubr.f32.gmra.mrb[0].mxu0 %v2392
    %v2682 = vpop.f32.mrb[0].mxu0
    %v2683 = vadd.f32 0.0, %v2682
    %v2684 = vpop.f32.mrb[0].mxu0
    %2685 = vmatprep.mubr.f32.mxu0 %v2496
    %2686 = vmatmul.mubr.f32.gmra.mrb[0].mxu0 %v2394
    %v2687 = vpop.f32.mrb[0].mxu0
    %v2688 = vadd.f32 0.0, %v2687
    %v2689 = vpop.f32.mrb[0].mxu0
    %2690 = vmatprep.mubr.f32.mxu0 %v2499
    %2691 = vmatmul.mubr.f32.gmra.mrb[0].mxu0 %v2396
    %v2692 = vpop.f32.mrb[0].mxu0
    %v2693 = vadd.f32 0.0, %v2692
    %v2694 = vpop.f32.mrb[0].mxu0
    %2695 = vmatprep.mubr.f32.mxu0 %v2502
    %2696 = vmatmul.mubr.f32.gmra.mrb[0].mxu0 %v2398
    %v2697 = vpop.f32.mrb[0].mxu0
    %v2698 = vadd.f32 0.0, %v2697
    %v2699 = vpop.f32.mrb[0].mxu0
    %2700 = vmatprep.mubr.f32.mxu0 %v2505
    %2701 = vmatmul.mubr.f32.gmra.mrb[0].mxu0 %v2400
    %v2702 = vpop.f32.mrb[0].mxu0
    %v2703 = vadd.f32 0.0, %v2702
    %v2704 = vpop.f32.mrb[0].mxu0
    %2705 = vmatprep.mubr.f32.mxu0 %v2508
    %2706 = vmatmul.mubr.f32.gmra.mrb[0].mxu0 %v2402
    %v2707 = vpop.f32.mrb[0].mxu0
    %v2708 = vadd.f32 0.0, %v2707
    %v2709 = vpop.f32.mrb[0].mxu0
    %2710 = vmatprep.mubr.f32.mxu0 %v2511
    %2711 = vmatmul.mubr.f32.gmra.mrb[0].mxu0 %v2404
    %v2712 = vpop.f32.mrb[0].mxu0
    %v2713 = vadd.f32 0.0, %v2712
    %v2714 = vpop.f32.mrb[0].mxu0
    %2715 = vmatprep.mubr.f32.mxu0 %v2514
    %2716 = vmatmul.mubr.f32.gmra.mrb[0].mxu0 %v2406
    %v2717 = vpop.f32.mrb[0].mxu0
    %v2718 = vadd.f32 0.0, %v2717
    %v2719 = vpop.f32.mrb[0].mxu0
    %2720 = vmatprep.mubr.f32.mxu0 %v2517
    %2721 = vmatmul.mubr.f32.gmra.mrb[0].mxu0 %v2408
    %v2722 = vpop.f32.mrb[0].mxu0
    %v2723 = vadd.f32 0.0, %v2722
    %v2724 = vpop.f32.mrb[0].mxu0
    %2725 = vmatprep.mubr.f32.mxu0 %v2520
    %2726 = vmatmul.mubr.f32.gmra.mrb[0].mxu0 %v2410
    %v2727 = vpop.f32.mrb[0].mxu0
    %v2728 = vadd.f32 0.0, %v2727
    %v2729 = vpop.f32.mrb[0].mxu0
    %2730 = vmatprep.mubr.f32.mxu0 %v2523
    %2731 = vmatmul.mubr.f32.gmra.mrb[0].mxu0 %v2412
    %v2732 = vpop.f32.mrb[0].mxu0
    %v2733 = vadd.f32 0.0, %v2732
    %v2734 = vpop.f32.mrb[0].mxu0
    %2735 = vmatprep.mubr.f32.mxu0 %v2526
    %2736 = vmatmul.mubr.f32.gmra.mrb[0].mxu0 %v2414
    %v2737 = vpop.f32.mrb[0].mxu0
    %v2738 = vadd.f32 0.0, %v2737
    %v2739 = vpop.f32.mrb[0].mxu0
    %2740 = vmatprep.mubr.f32.mxu0 %v2529
    %2741 = vmatmul.mubr.f32.gmra.mrb[0].mxu0 %v2416
    %v2742 = vpop.f32.mrb[0].mxu0
    %v2743 = vadd.f32 0.0, %v2742
    %v2744 = vpop.f32.mrb[0].mxu0
    %2745 = vmatprep.mubr.f32.mxu0 %v2532
    %2746 = vmatmul.mubr.f32.gmra.mrb[0].mxu0 %v2418
    %v2747 = vpop.f32.mrb[0].mxu0
    %v2748 = vadd.f32 0.0, %v2747
    %v2749 = vpop.f32.mrb[0].mxu0
    %2750 = vmatprep.mubr.f32.mxu0 %v2535
    %2751 = vmatmul.mubr.f32.gmra.mrb[0].mxu0 %v2420
    %v2752 = vpop.f32.mrb[0].mxu0
    %v2753 = vadd.f32 0.0, %v2752
    %v2754 = vpop.f32.mrb[0].mxu0
    %2755 = vmatprep.mubr.f32.mxu0 %v2538
    %2756 = vmatmul.mubr.f32.gmra.mrb[0].mxu0 %v2422
    %v2757 = vpop.f32.mrb[0].mxu0
    %v2758 = vadd.f32 0.0, %v2757
    %v2759 = vpop.f32.mrb[0].mxu0
    %2760 = vmatprep.mubr.f32.mxu0 %v2541
    %2761 = vmatmul.mubr.f32.gmra.mrb[0].mxu0 %v2424
    %v2762 = vpop.f32.mrb[0].mxu0
    %v2763 = vadd.f32 0.0, %v2762
    %v2764 = vpop.f32.mrb[0].mxu0
    %2765 = vmatprep.mubr.f32.mxu0 %v2544
    %2766 = vmatmul.mubr.f32.gmra.mrb[0].mxu0 %v2426
    %v2767 = vpop.f32.mrb[0].mxu0
    %v2768 = vadd.f32 0.0, %v2767
    %v2769 = vpop.f32.mrb[0].mxu0
    %2770 = vdwg.mxu0
    %v2771 = vld [vmem:[%s4] sm:$0xff]
    %v2772 = vld [vmem:[%s4 + $0x8] sm:$0xff]
    %v2773 = vld [vmem:[%s4 + $0x10] sm:$0xff]
    %v2774 = vld [vmem:[%s4 + $0x18] sm:$0xff]
    %v2775 = vld [vmem:[%s4 + $0x20] sm:$0xff]
    %v2776 = vld [vmem:[%s4 + $0x28] sm:$0xff]
    %v2777 = vld [vmem:[%s4 + $0x30] sm:$0xff]
    %v2778 = vld [vmem:[%s4 + $0x38] sm:$0xff]
    %v2779 = vld [vmem:[%s4 + $0x40] sm:$0xff]
    %v2780 = vld [vmem:[%s4 + $0x48] sm:$0xff]
    %v2781 = vld [vmem:[%s4 + $0x50] sm:$0xff]
    %v2782 = vld [vmem:[%s4 + $0x58] sm:$0xff]
    %v2783 = vld [vmem:[%s4 + $0x60] sm:$0xff]
    %v2784 = vld [vmem:[%s4 + $0x68] sm:$0xff]
    %v2785 = vld [vmem:[%s4 + $0x70] sm:$0xff]
    %v2786 = vld [vmem:[%s4 + $0x78] sm:$0xff]
    %v2787 = vld [vmem:[%s4 + $0x80] sm:$0xff]
    %v2788 = vld [vmem:[%s4 + $0x88] sm:$0xff]
    %v2789 = vld [vmem:[%s4 + $0x90] sm:$0xff]
    %v2790 = vld [vmem:[%s4 + $0x98] sm:$0xff]
    %v2791 = vld [vmem:[%s4 + $0xa0] sm:$0xff]
    %2792 = vmatprep.subr.mxu0 0.0
    %2793 = vmatpush1.msra.mxu0 %v2771
    %2794 = vmatprep.subr.mxu0 0.0
    %2795 = vmatpush1.msra.mxu0 %v2772
    %2796 = vmatprep.subr.mxu0 0.0
    %2797 = vmatpush1.msra.mxu0 %v2773
    %2798 = vmatprep.subr.mxu0 0.0
    %2799 = vmatpush1.msra.mxu0 %v2774
    %2800 = vmatprep.subr.mxu0 0.0
    %2801 = vmatpush1.msra.mxu0 %v2775
    %2802 = vmatprep.subr.mxu0 0.0
    %2803 = vmatpush1.msra.mxu0 %v2776
    %2804 = vmatprep.subr.mxu0 0.0
    %2805 = vmatpush1.msra.mxu0 %v2777
    %2806 = vmatprep.subr.mxu0 0.0
    %2807 = vmatpush1.msra.mxu0 %v2778
    %2808 = vmatprep.subr.mxu0 0.0
    %2809 = vmatpush1.msra.mxu0 %v2779
    %2810 = vmatprep.subr.mxu0 0.0
    %2811 = vmatpush1.msra.mxu0 %v2780
    %2812 = vmatprep.subr.mxu0 0.0
    %2813 = vmatpush1.msra.mxu0 %v2781
    %2814 = vmatprep.subr.mxu0 0.0
    %2815 = vmatpush1.msra.mxu0 %v2782
    %2816 = vmatprep.subr.mxu0 0.0
    %2817 = vmatpush1.msra.mxu0 %v2783
    %2818 = vmatprep.subr.mxu0 0.0
    %2819 = vmatpush1.msra.mxu0 %v2784
    %2820 = vmatprep.subr.mxu0 0.0
    %2821 = vmatpush1.msra.mxu0 %v2785
    %2822 = vmatprep.subr.mxu0 0.0
    %2823 = vmatpush1.msra.mxu0 %v2786
    %2824 = vmatprep.subr.mxu0 0.0
    %2825 = vmatpush1.msra.mxu0 %v2787
    %2826 = vmatprep.subr.mxu0 0.0
    %2827 = vmatpush1.msra.mxu0 %v2788
    %2828 = vmatprep.subr.mxu0 0.0
    %2829 = vmatpush1.msra.mxu0 %v2789
    %2830 = vmatprep.subr.mxu0 0.0
    %2831 = vmatpush1.msra.mxu0 %v2790
    %2832 = vmatprep.subr.mxu0 0.0
    %2833 = vmatpush1.msra.mxu0 %v2791
    %2834 = vmatprep.subr.mxu0 0.0
    %2835 = vmatpush1.msra.mxu0 0.0
    %2836 = vmatprep.subr.mxu0 0.0
    %2837 = vmatpush1.msra.mxu0 0.0
    %2838 = vmatprep.subr.mxu0 0.0
    %2839 = vmatpush1.msra.mxu0 0.0
    %2840 = vmatprep.subr.mxu0 0.0
    %2841 = vmatpush1.msra.mxu0 0.0
    %2842 = vmatprep.subr.mxu0 0.0
    %2843 = vmatpush1.msra.mxu0 0.0
    %2844 = vmatprep.subr.mxu0 0.0
    %2845 = vmatpush1.msra.mxu0 0.0
    %2846 = vmatprep.subr.mxu0 0.0
    %2847 = vmatpush1.msra.mxu0 0.0
    %2848 = vmatprep.subr.mxu0 0.0
    %2849 = vmatpush1.msra.mxu0 0.0
    %2850 = vmatprep.subr.mxu0 0.0
    %2851 = vmatpush1.msra.mxu0 0.0
    %2852 = vmatprep.subr.mxu0 0.0
    %2853 = vmatpush1.msra.mxu0 0.0
    %2854 = vmatprep.subr.mxu0 0.0
    %2855 = vmatpush1.msra.mxu0 0.0
    %2856 = vmatprep.mubr.f32.mxu0 %v2451
    %2857 = vmatmul.mubr.f32.gmra.mrb[0].mxu0 %v2364
    %v2858 = vpop.f32.mrb[0].mxu0
    %v2859 = vadd.f32 0.0, %v2858
    %v2860 = vpop.f32.mrb[0].mxu0
    %2861 = vmatprep.mubr.f32.mxu0 %v2454
    %2862 = vmatmul.mubr.f32.gmra.mrb[0].mxu0 %v2366
    %v2863 = vpop.f32.mrb[0].mxu0
    %v2864 = vadd.f32 0.0, %v2863
    %v2865 = vpop.f32.mrb[0].mxu0
    %2866 = vmatprep.mubr.f32.mxu0 %v2457
    %2867 = vmatmul.mubr.f32.gmra.mrb[0].mxu0 %v2368
    %v2868 = vpop.f32.mrb[0].mxu0
    %v2869 = vadd.f32 0.0, %v2868
    %v2870 = vpop.f32.mrb[0].mxu0
    %2871 = vmatprep.mubr.f32.mxu0 %v2460
    %2872 = vmatmul.mubr.f32.gmra.mrb[0].mxu0 %v2370
    %v2873 = vpop.f32.mrb[0].mxu0
    %v2874 = vadd.f32 0.0, %v2873
    %v2875 = vpop.f32.mrb[0].mxu0
    %2876 = vmatprep.mubr.f32.mxu0 %v2463
    %2877 = vmatmul.mubr.f32.gmra.mrb[0].mxu0 %v2372
    %v2878 = vpop.f32.mrb[0].mxu0
    %v2879 = vadd.f32 0.0, %v2878
    %v2880 = vpop.f32.mrb[0].mxu0
    %2881 = vmatprep.mubr.f32.mxu0 %v2466
    %2882 = vmatmul.mubr.f32.gmra.mrb[0].mxu0 %v2374
    %v2883 = vpop.f32.mrb[0].mxu0
    %v2884 = vadd.f32 0.0, %v2883
    %v2885 = vpop.f32.mrb[0].mxu0
    %2886 = vmatprep.mubr.f32.mxu0 %v2469
    %2887 = vmatmul.mubr.f32.gmra.mrb[0].mxu0 %v2376
    %v2888 = vpop.f32.mrb[0].mxu0
    %v2889 = vadd.f32 0.0, %v2888
    %v2890 = vpop.f32.mrb[0].mxu0
    %2891 = vmatprep.mubr.f32.mxu0 %v2472
    %2892 = vmatmul.mubr.f32.gmra.mrb[0].mxu0 %v2378
    %v2893 = vpop.f32.mrb[0].mxu0
    %v2894 = vadd.f32 0.0, %v2893
    %v2895 = vpop.f32.mrb[0].mxu0
    %2896 = vmatprep.mubr.f32.mxu0 %v2475
    %2897 = vmatmul.mubr.f32.gmra.mrb[0].mxu0 %v2380
    %v2898 = vpop.f32.mrb[0].mxu0
    %v2899 = vadd.f32 0.0, %v2898
    %v2900 = vpop.f32.mrb[0].mxu0
    %2901 = vmatprep.mubr.f32.mxu0 %v2478
    %2902 = vmatmul.mubr.f32.gmra.mrb[0].mxu0 %v2382
    %v2903 = vpop.f32.mrb[0].mxu0
    %v2904 = vadd.f32 0.0, %v2903
    %v2905 = vpop.f32.mrb[0].mxu0
    %2906 = vmatprep.mubr.f32.mxu0 %v2481
    %2907 = vmatmul.mubr.f32.gmra.mrb[0].mxu0 %v2384
    %v2908 = vpop.f32.mrb[0].mxu0
    %v2909 = vadd.f32 0.0, %v2908
    %v2910 = vpop.f32.mrb[0].mxu0
    %2911 = vmatprep.mubr.f32.mxu0 %v2484
    %2912 = vmatmul.mubr.f32.gmra.mrb[0].mxu0 %v2386
    %v2913 = vpop.f32.mrb[0].mxu0
    %v2914 = vadd.f32 0.0, %v2913
    %v2915 = vpop.f32.mrb[0].mxu0
    %2916 = vmatprep.mubr.f32.mxu0 %v2487
    %2917 = vmatmul.mubr.f32.gmra.mrb[0].mxu0 %v2388
    %v2918 = vpop.f32.mrb[0].mxu0
    %v2919 = vadd.f32 0.0, %v2918
    %v2920 = vpop.f32.mrb[0].mxu0
    %2921 = vmatprep.mubr.f32.mxu0 %v2490
    %2922 = vmatmul.mubr.f32.gmra.mrb[0].mxu0 %v2390
    %v2923 = vpop.f32.mrb[0].mxu0
    %v2924 = vadd.f32 0.0, %v2923
    %v2925 = vpop.f32.mrb[0].mxu0
    %2926 = vmatprep.mubr.f32.mxu0 %v2493
    %2927 = vmatmul.mubr.f32.gmra.mrb[0].mxu0 %v2392
    %v2928 = vpop.f32.mrb[0].mxu0
    %v2929 = vadd.f32 0.0, %v2928
    %v2930 = vpop.f32.mrb[0].mxu0
    %2931 = vmatprep.mubr.f32.mxu0 %v2496
    %2932 = vmatmul.mubr.f32.gmra.mrb[0].mxu0 %v2394
    %v2933 = vpop.f32.mrb[0].mxu0
    %v2934 = vadd.f32 0.0, %v2933
    %v2935 = vpop.f32.mrb[0].mxu0
    %2936 = vmatprep.mubr.f32.mxu0 %v2499
    %2937 = vmatmul.mubr.f32.gmra.mrb[0].mxu0 %v2396
    %v2938 = vpop.f32.mrb[0].mxu0
    %v2939 = vadd.f32 0.0, %v2938
    %v2940 = vpop.f32.mrb[0].mxu0
    %2941 = vmatprep.mubr.f32.mxu0 %v2502
    %2942 = vmatmul.mubr.f32.gmra.mrb[0].mxu0 %v2398
    %v2943 = vpop.f32.mrb[0].mxu0
    %v2944 = vadd.f32 0.0, %v2943
    %v2945 = vpop.f32.mrb[0].mxu0
    %2946 = vmatprep.mubr.f32.mxu0 %v2505
    %2947 = vmatmul.mubr.f32.gmra.mrb[0].mxu0 %v2400
    %v2948 = vpop.f32.mrb[0].mxu0
    %v2949 = vadd.f32 0.0, %v2948
    %v2950 = vpop.f32.mrb[0].mxu0
    %2951 = vmatprep.mubr.f32.mxu0 %v2508
    %2952 = vmatmul.mubr.f32.gmra.mrb[0].mxu0 %v2402
    %v2953 = vpop.f32.mrb[0].mxu0
    %v2954 = vadd.f32 0.0, %v2953
    %v2955 = vpop.f32.mrb[0].mxu0
    %2956 = vmatprep.mubr.f32.mxu0 %v2511
    %2957 = vmatmul.mubr.f32.gmra.mrb[0].mxu0 %v2404
    %v2958 = vpop.f32.mrb[0].mxu0
    %v2959 = vadd.f32 0.0, %v2958
    %v2960 = vpop.f32.mrb[0].mxu0
    %2961 = vmatprep.mubr.f32.mxu0 %v2514
    %2962 = vmatmul.mubr.f32.gmra.mrb[0].mxu0 %v2406
    %v2963 = vpop.f32.mrb[0].mxu0
    %v2964 = vadd.f32 0.0, %v2963
    %v2965 = vpop.f32.mrb[0].mxu0
    %2966 = vmatprep.mubr.f32.mxu0 %v2517
    %2967 = vmatmul.mubr.f32.gmra.mrb[0].mxu0 %v2408
    %v2968 = vpop.f32.mrb[0].mxu0
    %v2969 = vadd.f32 0.0, %v2968
    %v2970 = vpop.f32.mrb[0].mxu0
    %2971 = vmatprep.mubr.f32.mxu0 %v2520
    %2972 = vmatmul.mubr.f32.gmra.mrb[0].mxu0 %v2410
    %v2973 = vpop.f32.mrb[0].mxu0
    %v2974 = vadd.f32 0.0, %v2973
    %v2975 = vpop.f32.mrb[0].mxu0
    %2976 = vmatprep.mubr.f32.mxu0 %v2523
    %2977 = vmatmul.mubr.f32.gmra.mrb[0].mxu0 %v2412
    %v2978 = vpop.f32.mrb[0].mxu0
    %v2979 = vadd.f32 0.0, %v2978
    %v2980 = vpop.f32.mrb[0].mxu0
    %2981 = vmatprep.mubr.f32.mxu0 %v2526
    %2982 = vmatmul.mubr.f32.gmra.mrb[0].mxu0 %v2414
    %v2983 = vpop.f32.mrb[0].mxu0
    %v2984 = vadd.f32 0.0, %v2983
    %v2985 = vpop.f32.mrb[0].mxu0
    %2986 = vmatprep.mubr.f32.mxu0 %v2529
    %2987 = vmatmul.mubr.f32.gmra.mrb[0].mxu0 %v2416
    %v2988 = vpop.f32.mrb[0].mxu0
    %v2989 = vadd.f32 0.0, %v2988
    %v2990 = vpop.f32.mrb[0].mxu0
    %2991 = vmatprep.mubr.f32.mxu0 %v2532
    %2992 = vmatmul.mubr.f32.gmra.mrb[0].mxu0 %v2418
    %v2993 = vpop.f32.mrb[0].mxu0
    %v2994 = vadd.f32 0.0, %v2993
    %v2995 = vpop.f32.mrb[0].mxu0
    %2996 = vmatprep.mubr.f32.mxu0 %v2535
    %2997 = vmatmul.mubr.f32.gmra.mrb[0].mxu0 %v2420
    %v2998 = vpop.f32.mrb[0].mxu0
    %v2999 = vadd.f32 0.0, %v2998
    %v3000 = vpop.f32.mrb[0].mxu0
    %3001 = vmatprep.mubr.f32.mxu0 %v2538
    %3002 = vmatmul.mubr.f32.gmra.mrb[0].mxu0 %v2422
    %v3003 = vpop.f32.mrb[0].mxu0
    %v3004 = vadd.f32 0.0, %v3003
    %v3005 = vpop.f32.mrb[0].mxu0
    %3006 = vmatprep.mubr.f32.mxu0 %v2541
    %3007 = vmatmul.mubr.f32.gmra.mrb[0].mxu0 %v2424
    %v3008 = vpop.f32.mrb[0].mxu0
    %v3009 = vadd.f32 0.0, %v3008
    %v3010 = vpop.f32.mrb[0].mxu0
    %3011 = vmatprep.mubr.f32.mxu0 %v2544
    %3012 = vmatmul.mubr.f32.gmra.mrb[0].mxu0 %v2426
    %v3013 = vpop.f32.mrb[0].mxu0
    %v3014 = vadd.f32 0.0, %v3013
    %v3015 = vpop.f32.mrb[0].mxu0
    %3016 = vdwg.mxu0
    %v3017 = vmax.f32 %v2613, %v2859
    %v3018 = vmax.f32 %v2618, %v2864
    %v3019 = vmax.f32 %v2623, %v2869
    %v3020 = vmax.f32 %v2628, %v2874
    %v3021 = vmax.f32 %v2633, %v2879
    %v3022 = vmax.f32 %v2638, %v2884
    %v3023 = vmax.f32 %v2643, %v2889
    %v3024 = vmax.f32 %v2648, %v2894
    %v3025 = vmax.f32 %v2653, %v2899
    %v3026 = vmax.f32 %v2658, %v2904
    %v3027 = vmax.f32 %v2663, %v2909
    %v3028 = vmax.f32 %v2668, %v2914
    %v3029 = vmax.f32 %v2673, %v2919
    %v3030 = vmax.f32 %v2678, %v2924
    %v3031 = vmax.f32 %v2683, %v2929
    %v3032 = vmax.f32 %v2688, %v2934
    %v3033 = vmax.f32 %v2693, %v2939
    %v3034 = vmax.f32 %v2698, %v2944
    %v3035 = vmax.f32 %v2703, %v2949
    %v3036 = vmax.f32 %v2708, %v2954
    %v3037 = vmax.f32 %v2713, %v2959
    %v3038 = vmax.f32 %v2718, %v2964
    %v3039 = vmax.f32 %v2723, %v2969
    %v3040 = vmax.f32 %v2728, %v2974
    %v3041 = vmax.f32 %v2733, %v2979
    %v3042 = vmax.f32 %v2738, %v2984
    %v3043 = vmax.f32 %v2743, %v2989
    %v3044 = vmax.f32 %v2748, %v2994
    %v3045 = vmax.f32 %v2753, %v2999
    %v3046 = vmax.f32 %v2758, %v3004
    %v3047 = vmax.f32 %v2763, %v3009
    %v3048 = vmax.f32 %v2768, %v3014
    %3049 = vst.msk [vmem:[#allocation3] sm:$0xff] %vm121, %v3017
    %3050 = vst.msk [vmem:[#allocation3 + $0x8] sm:$0xff] %vm121, %v3018
    %3051 = vst.msk [vmem:[#allocation3 + $0x10] sm:$0xff] %vm121, %v3019
    %3052 = vst.msk [vmem:[#allocation3 + $0x18] sm:$0xff] %vm121, %v3020
    %3053 = vst.msk [vmem:[#allocation3 + $0x20] sm:$0xff] %vm121, %v3021
    %3054 = vst.msk [vmem:[#allocation3 + $0x28] sm:$0xff] %vm121, %v3022
    %3055 = vst.msk [vmem:[#allocation3 + $0x30] sm:$0xff] %vm121, %v3023
    %3056 = vst.msk [vmem:[#allocation3 + $0x38] sm:$0xff] %vm121, %v3024
    %3057 = vst.msk [vmem:[#allocation3 + $0x40] sm:$0xff] %vm121, %v3025
    %3058 = vst.msk [vmem:[#allocation3 + $0x48] sm:$0xff] %vm121, %v3026
    %3059 = vst.msk [vmem:[#allocation3 + $0x50] sm:$0xff] %vm121, %v3027
    %3060 = vst.msk [vmem:[#allocation3 + $0x58] sm:$0xff] %vm121, %v3028
    %3061 = vst.msk [vmem:[#allocation3 + $0x60] sm:$0xff] %vm121, %v3029
    %3062 = vst.msk [vmem:[#allocation3 + $0x68] sm:$0xff] %vm121, %v3030
    %3063 = vst.msk [vmem:[#allocation3 + $0x70] sm:$0xff] %vm121, %v3031
    %3064 = vst.msk [vmem:[#allocation3 + $0x78] sm:$0xff] %vm121, %v3032
    %3065 = vst.msk [vmem:[#allocation3 + $0x80] sm:$0xff] %vm121, %v3033
    %3066 = vst.msk [vmem:[#allocation3 + $0x88] sm:$0xff] %vm121, %v3034
    %3067 = vst.msk [vmem:[#allocation3 + $0x90] sm:$0xff] %vm121, %v3035
    %3068 = vst.msk [vmem:[#allocation3 + $0x98] sm:$0xff] %vm121, %v3036
    %3069 = vst.msk [vmem:[#allocation3 + $0xa0] sm:$0xff] %vm121, %v3037
    %3070 = vst.msk [vmem:[#allocation3 + $0xa8] sm:$0xff] %vm121, %v3038
    %3071 = vst.msk [vmem:[#allocation3 + $0xb0] sm:$0xff] %vm121, %v3039
    %3072 = vst.msk [vmem:[#allocation3 + $0xb8] sm:$0xff] %vm121, %v3040
    %3073 = vst.msk [vmem:[#allocation3 + $0xc0] sm:$0xff] %vm121, %v3041
    %3074 = vst.msk [vmem:[#allocation3 + $0xc8] sm:$0xff] %vm121, %v3042
    %3075 = vst.msk [vmem:[#allocation3 + $0xd0] sm:$0xff] %vm121, %v3043
    %3076 = vst.msk [vmem:[#allocation3 + $0xd8] sm:$0xff] %vm121, %v3044
    %3077 = vst.msk [vmem:[#allocation3 + $0xe0] sm:$0xff] %vm121, %v3045
    %3078 = vst.msk [vmem:[#allocation3 + $0xe8] sm:$0xff] %vm121, %v3046
    %3079 = vst.msk [vmem:[#allocation3 + $0xf0] sm:$0xff] %vm121, %v3047
    %3080 = vst.msk [vmem:[#allocation3 + $0xf8] sm:$0xff] %vm121, %v3048
    %v3081 = vld [vmem:[#allocation3] sm:$0xff]
    %v3082 = vld [vmem:[#allocation3 + $0x8] sm:$0xff]
    %v3083 = vld [vmem:[#allocation3 + $0x10] sm:$0xff]
    %v3084 = vld [vmem:[#allocation3 + $0x18] sm:$0xff]
    %v3085 = vld [vmem:[#allocation3 + $0x20] sm:$0xff]
    %v3086 = vld [vmem:[#allocation3 + $0x28] sm:$0xff]
    %v3087 = vld [vmem:[#allocation3 + $0x30] sm:$0xff]
    %v3088 = vld [vmem:[#allocation3 + $0x38] sm:$0xff]
    %v3089 = vld [vmem:[#allocation3 + $0x40] sm:$0xff]
    %v3090 = vld [vmem:[#allocation3 + $0x48] sm:$0xff]
    %v3091 = vld [vmem:[#allocation3 + $0x50] sm:$0xff]
    %v3092 = vld [vmem:[#allocation3 + $0x58] sm:$0xff]
    %v3093 = vld [vmem:[#allocation3 + $0x60] sm:$0xff]
    %v3094 = vld [vmem:[#allocation3 + $0x68] sm:$0xff]
    %v3095 = vld [vmem:[#allocation3 + $0x70] sm:$0xff]
    %v3096 = vld [vmem:[#allocation3 + $0x78] sm:$0xff]
    %v3097 = vld [vmem:[#allocation3 + $0x80] sm:$0xff]
    %v3098 = vld [vmem:[#allocation3 + $0x88] sm:$0xff]
    %v3099 = vld [vmem:[#allocation3 + $0x90] sm:$0xff]
    %v3100 = vld [vmem:[#allocation3 + $0x98] sm:$0xff]
    %v3101 = vld [vmem:[#allocation3 + $0xa0] sm:$0xff]
    %v3102 = vld [vmem:[#allocation3 + $0xa8] sm:$0xff]
    %v3103 = vld [vmem:[#allocation3 + $0xb0] sm:$0xff]
    %v3104 = vld [vmem:[#allocation3 + $0xb8] sm:$0xff]
    %v3105 = vld [vmem:[#allocation3 + $0xc0] sm:$0xff]
    %v3106 = vld [vmem:[#allocation3 + $0xc8] sm:$0xff]
    %v3107 = vld [vmem:[#allocation3 + $0xd0] sm:$0xff]
    %v3108 = vld [vmem:[#allocation3 + $0xd8] sm:$0xff]
    %v3109 = vld [vmem:[#allocation3 + $0xe0] sm:$0xff]
    %v3110 = vld [vmem:[#allocation3 + $0xe8] sm:$0xff]
    %v3111 = vld [vmem:[#allocation3 + $0xf0] sm:$0xff]
    %v3112 = vld [vmem:[#allocation3 + $0xf8] sm:$0xff]
    %v3113 = vld [vmem:[#allocation3 + $0x1] sm:$0xff]
    %v3114 = vld [vmem:[#allocation3 + $0x9] sm:$0xff]
    %v3115 = vld [vmem:[#allocation3 + $0x11] sm:$0xff]
    %v3116 = vld [vmem:[#allocation3 + $0x19] sm:$0xff]
    %v3117 = vld [vmem:[#allocation3 + $0x21] sm:$0xff]
    %v3118 = vld [vmem:[#allocation3 + $0x29] sm:$0xff]
    %v3119 = vld [vmem:[#allocation3 + $0x31] sm:$0xff]
    %v3120 = vld [vmem:[#allocation3 + $0x39] sm:$0xff]
    %v3121 = vld [vmem:[#allocation3 + $0x41] sm:$0xff]
    %v3122 = vld [vmem:[#allocation3 + $0x49] sm:$0xff]
    %v3123 = vld [vmem:[#allocation3 + $0x51] sm:$0xff]
    %v3124 = vld [vmem:[#allocation3 + $0x59] sm:$0xff]
    %v3125 = vld [vmem:[#allocation3 + $0x61] sm:$0xff]
    %v3126 = vld [vmem:[#allocation3 + $0x69] sm:$0xff]
    %v3127 = vld [vmem:[#allocation3 + $0x71] sm:$0xff]
    %v3128 = vld [vmem:[#allocation3 + $0x79] sm:$0xff]
    %v3129 = vld [vmem:[#allocation3 + $0x81] sm:$0xff]
    %v3130 = vld [vmem:[#allocation3 + $0x89] sm:$0xff]
    %v3131 = vld [vmem:[#allocation3 + $0x91] sm:$0xff]
    %v3132 = vld [vmem:[#allocation3 + $0x99] sm:$0xff]
    %v3133 = vld [vmem:[#allocation3 + $0xa1] sm:$0xff]
    %v3134 = vld [vmem:[#allocation3 + $0xa9] sm:$0xff]
    %v3135 = vld [vmem:[#allocation3 + $0xb1] sm:$0xff]
    %v3136 = vld [vmem:[#allocation3 + $0xb9] sm:$0xff]
    %v3137 = vld [vmem:[#allocation3 + $0xc1] sm:$0xff]
    %v3138 = vld [vmem:[#allocation3 + $0xc9] sm:$0xff]
    %v3139 = vld [vmem:[#allocation3 + $0xd1] sm:$0xff]
    %v3140 = vld [vmem:[#allocation3 + $0xd9] sm:$0xff]
    %v3141 = vld [vmem:[#allocation3 + $0xe1] sm:$0xff]
    %v3142 = vld [vmem:[#allocation3 + $0xe9] sm:$0xff]
    %v3143 = vld [vmem:[#allocation3 + $0xf1] sm:$0xff]
    %v3144 = vld [vmem:[#allocation3 + $0xf9] sm:$0xff]
    %v3145 = vmax.f32 %v3081, %v3113
    %v3146 = vmax.f32 %v3082, %v3114
    %v3147 = vmax.f32 %v3083, %v3115
    %v3148 = vmax.f32 %v3084, %v3116
    %v3149 = vmax.f32 %v3085, %v3117
    %v3150 = vmax.f32 %v3086, %v3118
    %v3151 = vmax.f32 %v3087, %v3119
    %v3152 = vmax.f32 %v3088, %v3120
    %v3153 = vmax.f32 %v3089, %v3121
    %v3154 = vmax.f32 %v3090, %v3122
    %v3155 = vmax.f32 %v3091, %v3123
    %v3156 = vmax.f32 %v3092, %v3124
    %v3157 = vmax.f32 %v3093, %v3125
    %v3158 = vmax.f32 %v3094, %v3126
    %v3159 = vmax.f32 %v3095, %v3127
    %v3160 = vmax.f32 %v3096, %v3128
    %v3161 = vmax.f32 %v3097, %v3129
    %v3162 = vmax.f32 %v3098, %v3130
    %v3163 = vmax.f32 %v3099, %v3131
    %v3164 = vmax.f32 %v3100, %v3132
    %v3165 = vmax.f32 %v3101, %v3133
    %v3166 = vmax.f32 %v3102, %v3134
    %v3167 = vmax.f32 %v3103, %v3135
    %v3168 = vmax.f32 %v3104, %v3136
    %v3169 = vmax.f32 %v3105, %v3137
    %v3170 = vmax.f32 %v3106, %v3138
    %v3171 = vmax.f32 %v3107, %v3139
    %v3172 = vmax.f32 %v3108, %v3140
    %v3173 = vmax.f32 %v3109, %v3141
    %v3174 = vmax.f32 %v3110, %v3142
    %v3175 = vmax.f32 %v3111, %v3143
    %v3176 = vmax.f32 %v3112, %v3144
    %3177 = vst.msk [vmem:[#allocation3] sm:$0xff] %vm121, %v3145
    %3178 = vst.msk [vmem:[#allocation3 + $0x8] sm:$0xff] %vm121, %v3146
    %3179 = vst.msk [vmem:[#allocation3 + $0x10] sm:$0xff] %vm121, %v3147
    %3180 = vst.msk [vmem:[#allocation3 + $0x18] sm:$0xff] %vm121, %v3148
    %3181 = vst.msk [vmem:[#allocation3 + $0x20] sm:$0xff] %vm121, %v3149
    %3182 = vst.msk [vmem:[#allocation3 + $0x28] sm:$0xff] %vm121, %v3150
    %3183 = vst.msk [vmem:[#allocation3 + $0x30] sm:$0xff] %vm121, %v3151
    %3184 = vst.msk [vmem:[#allocation3 + $0x38] sm:$0xff] %vm121, %v3152
    %3185 = vst.msk [vmem:[#allocation3 + $0x40] sm:$0xff] %vm121, %v3153
    %3186 = vst.msk [vmem:[#allocation3 + $0x48] sm:$0xff] %vm121, %v3154
    %3187 = vst.msk [vmem:[#allocation3 + $0x50] sm:$0xff] %vm121, %v3155
    %3188 = vst.msk [vmem:[#allocation3 + $0x58] sm:$0xff] %vm121, %v3156
    %3189 = vst.msk [vmem:[#allocation3 + $0x60] sm:$0xff] %vm121, %v3157
    %3190 = vst.msk [vmem:[#allocation3 + $0x68] sm:$0xff] %vm121, %v3158
    %3191 = vst.msk [vmem:[#allocation3 + $0x70] sm:$0xff] %vm121, %v3159
    %3192 = vst.msk [vmem:[#allocation3 + $0x78] sm:$0xff] %vm121, %v3160
    %3193 = vst.msk [vmem:[#allocation3 + $0x80] sm:$0xff] %vm121, %v3161
    %3194 = vst.msk [vmem:[#allocation3 + $0x88] sm:$0xff] %vm121, %v3162
    %3195 = vst.msk [vmem:[#allocation3 + $0x90] sm:$0xff] %vm121, %v3163
    %3196 = vst.msk [vmem:[#allocation3 + $0x98] sm:$0xff] %vm121, %v3164
    %3197 = vst.msk [vmem:[#allocation3 + $0xa0] sm:$0xff] %vm121, %v3165
    %3198 = vst.msk [vmem:[#allocation3 + $0xa8] sm:$0xff] %vm121, %v3166
    %3199 = vst.msk [vmem:[#allocation3 + $0xb0] sm:$0xff] %vm121, %v3167
    %3200 = vst.msk [vmem:[#allocation3 + $0xb8] sm:$0xff] %vm121, %v3168
    %3201 = vst.msk [vmem:[#allocation3 + $0xc0] sm:$0xff] %vm121, %v3169
    %3202 = vst.msk [vmem:[#allocation3 + $0xc8] sm:$0xff] %vm121, %v3170
    %3203 = vst.msk [vmem:[#allocation3 + $0xd0] sm:$0xff] %vm121, %v3171
    %3204 = vst.msk [vmem:[#allocation3 + $0xd8] sm:$0xff] %vm121, %v3172
    %3205 = vst.msk [vmem:[#allocation3 + $0xe0] sm:$0xff] %vm121, %v3173
    %3206 = vst.msk [vmem:[#allocation3 + $0xe8] sm:$0xff] %vm121, %v3174
    %3207 = vst.msk [vmem:[#allocation3 + $0xf0] sm:$0xff] %vm121, %v3175
    %3208 = vst.msk [vmem:[#allocation3 + $0xf8] sm:$0xff] %vm121, %v3176
    %v3209 = vld [vmem:[#allocation3] sm:$0xff]
    %v3210 = vld [vmem:[#allocation3 + $0x8] sm:$0xff]
    %v3211 = vld [vmem:[#allocation3 + $0x10] sm:$0xff]
    %v3212 = vld [vmem:[#allocation3 + $0x18] sm:$0xff]
    %v3213 = vld [vmem:[#allocation3 + $0x20] sm:$0xff]
    %v3214 = vld [vmem:[#allocation3 + $0x28] sm:$0xff]
    %v3215 = vld [vmem:[#allocation3 + $0x30] sm:$0xff]
    %v3216 = vld [vmem:[#allocation3 + $0x38] sm:$0xff]
    %v3217 = vld [vmem:[#allocation3 + $0x40] sm:$0xff]
    %v3218 = vld [vmem:[#allocation3 + $0x48] sm:$0xff]
    %v3219 = vld [vmem:[#allocation3 + $0x50] sm:$0xff]
    %v3220 = vld [vmem:[#allocation3 + $0x58] sm:$0xff]
    %v3221 = vld [vmem:[#allocation3 + $0x60] sm:$0xff]
    %v3222 = vld [vmem:[#allocation3 + $0x68] sm:$0xff]
    %v3223 = vld [vmem:[#allocation3 + $0x70] sm:$0xff]
    %v3224 = vld [vmem:[#allocation3 + $0x78] sm:$0xff]
    %v3225 = vld [vmem:[#allocation3 + $0x80] sm:$0xff]
    %v3226 = vld [vmem:[#allocation3 + $0x88] sm:$0xff]
    %v3227 = vld [vmem:[#allocation3 + $0x90] sm:$0xff]
    %v3228 = vld [vmem:[#allocation3 + $0x98] sm:$0xff]
    %v3229 = vld [vmem:[#allocation3 + $0xa0] sm:$0xff]
    %v3230 = vld [vmem:[#allocation3 + $0xa8] sm:$0xff]
    %v3231 = vld [vmem:[#allocation3 + $0xb0] sm:$0xff]
    %v3232 = vld [vmem:[#allocation3 + $0xb8] sm:$0xff]
    %v3233 = vld [vmem:[#allocation3 + $0xc0] sm:$0xff]
    %v3234 = vld [vmem:[#allocation3 + $0xc8] sm:$0xff]
    %v3235 = vld [vmem:[#allocation3 + $0xd0] sm:$0xff]
    %v3236 = vld [vmem:[#allocation3 + $0xd8] sm:$0xff]
    %v3237 = vld [vmem:[#allocation3 + $0xe0] sm:$0xff]
    %v3238 = vld [vmem:[#allocation3 + $0xe8] sm:$0xff]
    %v3239 = vld [vmem:[#allocation3 + $0xf0] sm:$0xff]
    %v3240 = vld [vmem:[#allocation3 + $0xf8] sm:$0xff]
    %v3241 = vld [vmem:[%s5] sm:$0xff]
    %v3242 = vld [vmem:[%s5 + $0x8] sm:$0xff]
    %v3243 = vld [vmem:[%s5 + $0x10] sm:$0xff]
    %v3244 = vld [vmem:[%s5 + $0x18] sm:$0xff]
    %v3245 = vld [vmem:[%s5 + $0x20] sm:$0xff]
    %v3246 = vld [vmem:[%s5 + $0x28] sm:$0xff]
    %v3247 = vld [vmem:[%s5 + $0x30] sm:$0xff]
    %v3248 = vld [vmem:[%s5 + $0x38] sm:$0xff]
    %v3249 = vld [vmem:[%s5 + $0x40] sm:$0xff]
    %v3250 = vld [vmem:[%s5 + $0x48] sm:$0xff]
    %v3251 = vld [vmem:[%s5 + $0x50] sm:$0xff]
    %v3252 = vld [vmem:[%s5 + $0x58] sm:$0xff]
    %v3253 = vld [vmem:[%s5 + $0x60] sm:$0xff]
    %v3254 = vld [vmem:[%s5 + $0x68] sm:$0xff]
    %v3255 = vld [vmem:[%s5 + $0x70] sm:$0xff]
    %v3256 = vld [vmem:[%s5 + $0x78] sm:$0xff]
    %v3257 = vld [vmem:[%s5 + $0x80] sm:$0xff]
    %v3258 = vld [vmem:[%s5 + $0x88] sm:$0xff]
    %v3259 = vld [vmem:[%s5 + $0x90] sm:$0xff]
    %v3260 = vld [vmem:[%s5 + $0x98] sm:$0xff]
    %v3261 = vld [vmem:[%s5 + $0xa0] sm:$0xf]
    %v3262 = vld [vmem:[%s5 + $0xa8] sm:$0xf]
    %v3263 = vld [vmem:[#allocation3 + $0x2] sm:$0xff]
    %v3264 = vld [vmem:[#allocation3 + $0xa] sm:$0xff]
    %v3265 = vld [vmem:[#allocation3 + $0x12] sm:$0xff]
    %v3266 = vld [vmem:[#allocation3 + $0x1a] sm:$0xff]
    %v3267 = vld [vmem:[#allocation3 + $0x22] sm:$0xff]
    %v3268 = vld [vmem:[#allocation3 + $0x2a] sm:$0xff]
    %v3269 = vld [vmem:[#allocation3 + $0x32] sm:$0xff]
    %v3270 = vld [vmem:[#allocation3 + $0x3a] sm:$0xff]
    %v3271 = vld [vmem:[#allocation3 + $0x42] sm:$0xff]
    %v3272 = vld [vmem:[#allocation3 + $0x4a] sm:$0xff]
    %v3273 = vld [vmem:[#allocation3 + $0x52] sm:$0xff]
    %v3274 = vld [vmem:[#allocation3 + $0x5a] sm:$0xff]
    %v3275 = vld [vmem:[#allocation3 + $0x62] sm:$0xff]
    %v3276 = vld [vmem:[#allocation3 + $0x6a] sm:$0xff]
    %v3277 = vld [vmem:[#allocation3 + $0x72] sm:$0xff]
    %v3278 = vld [vmem:[#allocation3 + $0x7a] sm:$0xff]
    %v3279 = vld [vmem:[#allocation3 + $0x82] sm:$0xff]
    %v3280 = vld [vmem:[#allocation3 + $0x8a] sm:$0xff]
    %v3281 = vld [vmem:[#allocation3 + $0x92] sm:$0xff]
    %v3282 = vld [vmem:[#allocation3 + $0x9a] sm:$0xff]
    %v3283 = vld [vmem:[#allocation3 + $0xa2] sm:$0xff]
    %v3284 = vld [vmem:[#allocation3 + $0xaa] sm:$0xff]
    %v3285 = vld [vmem:[#allocation3 + $0xb2] sm:$0xff]
    %v3286 = vld [vmem:[#allocation3 + $0xba] sm:$0xff]
    %v3287 = vld [vmem:[#allocation3 + $0xc2] sm:$0xff]
    %v3288 = vld [vmem:[#allocation3 + $0xca] sm:$0xff]
    %v3289 = vld [vmem:[#allocation3 + $0xd2] sm:$0xff]
    %v3290 = vld [vmem:[#allocation3 + $0xda] sm:$0xff]
    %v3291 = vld [vmem:[#allocation3 + $0xe2] sm:$0xff]
    %v3292 = vld [vmem:[#allocation3 + $0xea] sm:$0xff]
    %v3293 = vld [vmem:[#allocation3 + $0xf2] sm:$0xff]
    %v3294 = vld [vmem:[#allocation3 + $0xfa] sm:$0xff]
    %s3295 = scalar_lea.vmem %s5, 176
    %v3296 = vld [vmem:[%s3295] sm:$0xff]
    %v3297 = vld [vmem:[%s3295 + $0x8] sm:$0xff]
    %v3298 = vld [vmem:[%s3295 + $0x10] sm:$0xff]
    %v3299 = vld [vmem:[%s3295 + $0x18] sm:$0xff]
    %v3300 = vld [vmem:[%s3295 + $0x20] sm:$0xff]
    %v3301 = vld [vmem:[%s3295 + $0x28] sm:$0xff]
    %v3302 = vld [vmem:[%s3295 + $0x30] sm:$0xff]
    %v3303 = vld [vmem:[%s3295 + $0x38] sm:$0xff]
    %v3304 = vld [vmem:[%s3295 + $0x40] sm:$0xff]
    %v3305 = vld [vmem:[%s3295 + $0x48] sm:$0xff]
    %v3306 = vld [vmem:[%s3295 + $0x50] sm:$0xff]
    %v3307 = vld [vmem:[%s3295 + $0x58] sm:$0xff]
    %v3308 = vld [vmem:[%s3295 + $0x60] sm:$0xff]
    %v3309 = vld [vmem:[%s3295 + $0x68] sm:$0xff]
    %v3310 = vld [vmem:[%s3295 + $0x70] sm:$0xff]
    %v3311 = vld [vmem:[%s3295 + $0x78] sm:$0xff]
    %v3312 = vld [vmem:[%s3295 + $0x80] sm:$0xff]
    %v3313 = vld [vmem:[%s3295 + $0x88] sm:$0xff]
    %v3314 = vld [vmem:[%s3295 + $0x90] sm:$0xff]
    %v3315 = vld [vmem:[%s3295 + $0x98] sm:$0xff]
    %v3316 = vld [vmem:[%s3295 + $0xa0] sm:$0xf]
    %v3317 = vld [vmem:[%s3295 + $0xa8] sm:$0xf]
    %v3319 = vsel %vm121, %v3263, 0
    %v3322 = vsel %vm121, %v3264, 0
    %v3325 = vsel %vm121, %v3265, 0
    %v3328 = vsel %vm121, %v3266, 0
    %v3331 = vsel %vm121, %v3267, 0
    %v3334 = vsel %vm121, %v3268, 0
    %v3337 = vsel %vm121, %v3269, 0
    %v3340 = vsel %vm121, %v3270, 0
    %v3343 = vsel %vm121, %v3271, 0
    %v3346 = vsel %vm121, %v3272, 0
    %v3349 = vsel %vm121, %v3273, 0
    %v3352 = vsel %vm121, %v3274, 0
    %v3355 = vsel %vm121, %v3275, 0
    %v3358 = vsel %vm121, %v3276, 0
    %v3361 = vsel %vm121, %v3277, 0
    %v3364 = vsel %vm121, %v3278, 0
    %v3367 = vsel %vm121, %v3279, 0
    %v3370 = vsel %vm121, %v3280, 0
    %v3373 = vsel %vm121, %v3281, 0
    %v3376 = vsel %vm121, %v3282, 0
    %v3379 = vsel %vm121, %v3283, 0
    %v3382 = vsel %vm121, %v3284, 0
    %v3385 = vsel %vm121, %v3285, 0
    %v3388 = vsel %vm121, %v3286, 0
    %v3391 = vsel %vm121, %v3287, 0
    %v3394 = vsel %vm121, %v3288, 0
    %v3397 = vsel %vm121, %v3289, 0
    %v3400 = vsel %vm121, %v3290, 0
    %v3403 = vsel %vm121, %v3291, 0
    %v3406 = vsel %vm121, %v3292, 0
    %v3409 = vsel %vm121, %v3293, 0
    %v3412 = vsel %vm121, %v3294, 0
    %vm3414 = vcmask 1043456
    %v3416 = vsel %vm3414, %v3316, 0
    %v3419 = vsel %vm3414, %v3317, 0
    %3421 = vmatprep.subr.mxu0 %v3297
    %3422 = vmatpush1.msra.mxu0 %v3296
    %3423 = vmatprep.subr.mxu0 %v3299
    %3424 = vmatpush1.msra.mxu0 %v3298
    %3425 = vmatprep.subr.mxu0 %v3301
    %3426 = vmatpush1.msra.mxu0 %v3300
    %3427 = vmatprep.subr.mxu0 %v3303
    %3428 = vmatpush1.msra.mxu0 %v3302
    %3429 = vmatprep.subr.mxu0 %v3305
    %3430 = vmatpush1.msra.mxu0 %v3304
    %3431 = vmatprep.subr.mxu0 %v3307
    %3432 = vmatpush1.msra.mxu0 %v3306
    %3433 = vmatprep.subr.mxu0 %v3309
    %3434 = vmatpush1.msra.mxu0 %v3308
    %3435 = vmatprep.subr.mxu0 %v3311
    %3436 = vmatpush1.msra.mxu0 %v3310
    %3437 = vmatprep.subr.mxu0 %v3313
    %3438 = vmatpush1.msra.mxu0 %v3312
    %3439 = vmatprep.subr.mxu0 %v3315
    %3440 = vmatpush1.msra.mxu0 %v3314
    %3441 = vmatprep.subr.mxu0 %v3419
    %3442 = vmatpush1.msra.mxu0 %v3416
    %3443 = vmatprep.subr.mxu0 0.0
    %3444 = vmatpush1.msra.mxu0 0.0
    %3445 = vmatprep.subr.mxu0 0.0
    %3446 = vmatpush1.msra.mxu0 0.0
    %3447 = vmatprep.subr.mxu0 0.0
    %3448 = vmatpush1.msra.mxu0 0.0
    %3449 = vmatprep.subr.mxu0 0.0
    %3450 = vmatpush1.msra.mxu0 0.0
    %3451 = vmatprep.subr.mxu0 0.0
    %3452 = vmatpush1.msra.mxu0 0.0
    %3453 = vmatprep.subr.mxu0 0.0
    %3454 = vmatpush1.msra.mxu0 0.0
    %3455 = vmatprep.subr.mxu0 0.0
    %3456 = vmatpush1.msra.mxu0 0.0
    %3457 = vmatprep.subr.mxu0 0.0
    %3458 = vmatpush1.msra.mxu0 0.0
    %3459 = vmatprep.subr.mxu0 0.0
    %3460 = vmatpush1.msra.mxu0 0.0
    %3461 = vmatprep.subr.mxu0 0.0
    %3462 = vmatpush1.msra.mxu0 0.0
    %3463 = vmatprep.subr.mxu0 0.0
    %3464 = vmatpush1.msra.mxu0 0.0
    %3465 = vmatprep.subr.mxu0 0.0
    %3466 = vmatpush1.msra.mxu0 0.0
    %3467 = vmatprep.subr.mxu0 0.0
    %3468 = vmatpush1.msra.mxu0 0.0
    %3469 = vmatprep.subr.mxu0 0.0
    %3470 = vmatpush1.msra.mxu0 0.0
    %3471 = vmatprep.subr.mxu0 0.0
    %3472 = vmatpush1.msra.mxu0 0.0
    %3473 = vmatprep.subr.mxu0 0.0
    %3474 = vmatpush1.msra.mxu0 0.0
    %3475 = vmatprep.subr.mxu0 0.0
    %3476 = vmatpush1.msra.mxu0 0.0
    %3477 = vmatprep.subr.mxu0 0.0
    %3478 = vmatpush1.msra.mxu0 0.0
    %3479 = vmatprep.subr.mxu0 0.0
    %3480 = vmatpush1.msra.mxu0 0.0
    %3481 = vmatprep.subr.mxu0 0.0
    %3482 = vmatpush1.msra.mxu0 0.0
    %3483 = vmatprep.subr.mxu0 0.0
    %3484 = vmatpush1.msra.mxu0 0.0
    %3485 = vmatprep.mubr.f32.mxu0 0.0
    %3486 = vmatmul.mubr.f32.gmra.mrb[0].mxu0 %v3319
    %v3487 = vpop.f32.mrb[0].mxu0
    %v3488 = vadd.f32 0.0, %v3487
    %v3489 = vpop.f32.mrb[0].mxu0
    %v3490 = vadd.f32 0.0, %v3489
    %3491 = vmatprep.mubr.f32.mxu0 0.0
    %3492 = vmatmul.mubr.f32.gmra.mrb[0].mxu0 %v3322
    %v3493 = vpop.f32.mrb[0].mxu0
    %v3494 = vadd.f32 0.0, %v3493
    %v3495 = vpop.f32.mrb[0].mxu0
    %v3496 = vadd.f32 0.0, %v3495
    %3497 = vmatprep.mubr.f32.mxu0 0.0
    %3498 = vmatmul.mubr.f32.gmra.mrb[0].mxu0 %v3325
    %v3499 = vpop.f32.mrb[0].mxu0
    %v3500 = vadd.f32 0.0, %v3499
    %v3501 = vpop.f32.mrb[0].mxu0
    %v3502 = vadd.f32 0.0, %v3501
    %3503 = vmatprep.mubr.f32.mxu0 0.0
    %3504 = vmatmul.mubr.f32.gmra.mrb[0].mxu0 %v3328
    %v3505 = vpop.f32.mrb[0].mxu0
    %v3506 = vadd.f32 0.0, %v3505
    %v3507 = vpop.f32.mrb[0].mxu0
    %v3508 = vadd.f32 0.0, %v3507
    %3509 = vmatprep.mubr.f32.mxu0 0.0
    %3510 = vmatmul.mubr.f32.gmra.mrb[0].mxu0 %v3331
    %v3511 = vpop.f32.mrb[0].mxu0
    %v3512 = vadd.f32 0.0, %v3511
    %v3513 = vpop.f32.mrb[0].mxu0
    %v3514 = vadd.f32 0.0, %v3513
    %3515 = vmatprep.mubr.f32.mxu0 0.0
    %3516 = vmatmul.mubr.f32.gmra.mrb[0].mxu0 %v3334
    %v3517 = vpop.f32.mrb[0].mxu0
    %v3518 = vadd.f32 0.0, %v3517
    %v3519 = vpop.f32.mrb[0].mxu0
    %v3520 = vadd.f32 0.0, %v3519
    %3521 = vmatprep.mubr.f32.mxu0 0.0
    %3522 = vmatmul.mubr.f32.gmra.mrb[0].mxu0 %v3337
    %v3523 = vpop.f32.mrb[0].mxu0
    %v3524 = vadd.f32 0.0, %v3523
    %v3525 = vpop.f32.mrb[0].mxu0
    %v3526 = vadd.f32 0.0, %v3525
    %3527 = vmatprep.mubr.f32.mxu0 0.0
    %3528 = vmatmul.mubr.f32.gmra.mrb[0].mxu0 %v3340
    %v3529 = vpop.f32.mrb[0].mxu0
    %v3530 = vadd.f32 0.0, %v3529
    %v3531 = vpop.f32.mrb[0].mxu0
    %v3532 = vadd.f32 0.0, %v3531
    %3533 = vmatprep.mubr.f32.mxu0 0.0
    %3534 = vmatmul.mubr.f32.gmra.mrb[0].mxu0 %v3343
    %v3535 = vpop.f32.mrb[0].mxu0
    %v3536 = vadd.f32 0.0, %v3535
    %v3537 = vpop.f32.mrb[0].mxu0
    %v3538 = vadd.f32 0.0, %v3537
    %3539 = vmatprep.mubr.f32.mxu0 0.0
    %3540 = vmatmul.mubr.f32.gmra.mrb[0].mxu0 %v3346
    %v3541 = vpop.f32.mrb[0].mxu0
    %v3542 = vadd.f32 0.0, %v3541
    %v3543 = vpop.f32.mrb[0].mxu0
    %v3544 = vadd.f32 0.0, %v3543
    %3545 = vmatprep.mubr.f32.mxu0 0.0
    %3546 = vmatmul.mubr.f32.gmra.mrb[0].mxu0 %v3349
    %v3547 = vpop.f32.mrb[0].mxu0
    %v3548 = vadd.f32 0.0, %v3547
    %v3549 = vpop.f32.mrb[0].mxu0
    %v3550 = vadd.f32 0.0, %v3549
    %3551 = vmatprep.mubr.f32.mxu0 0.0
    %3552 = vmatmul.mubr.f32.gmra.mrb[0].mxu0 %v3352
    %v3553 = vpop.f32.mrb[0].mxu0
    %v3554 = vadd.f32 0.0, %v3553
    %v3555 = vpop.f32.mrb[0].mxu0
    %v3556 = vadd.f32 0.0, %v3555
    %3557 = vmatprep.mubr.f32.mxu0 0.0
    %3558 = vmatmul.mubr.f32.gmra.mrb[0].mxu0 %v3355
    %v3559 = vpop.f32.mrb[0].mxu0
    %v3560 = vadd.f32 0.0, %v3559
    %v3561 = vpop.f32.mrb[0].mxu0
    %v3562 = vadd.f32 0.0, %v3561
    %3563 = vmatprep.mubr.f32.mxu0 0.0
    %3564 = vmatmul.mubr.f32.gmra.mrb[0].mxu0 %v3358
    %v3565 = vpop.f32.mrb[0].mxu0
    %v3566 = vadd.f32 0.0, %v3565
    %v3567 = vpop.f32.mrb[0].mxu0
    %v3568 = vadd.f32 0.0, %v3567
    %3569 = vmatprep.mubr.f32.mxu0 0.0
    %3570 = vmatmul.mubr.f32.gmra.mrb[0].mxu0 %v3361
    %v3571 = vpop.f32.mrb[0].mxu0
    %v3572 = vadd.f32 0.0, %v3571
    %v3573 = vpop.f32.mrb[0].mxu0
    %v3574 = vadd.f32 0.0, %v3573
    %3575 = vmatprep.mubr.f32.mxu0 0.0
    %3576 = vmatmul.mubr.f32.gmra.mrb[0].mxu0 %v3364
    %v3577 = vpop.f32.mrb[0].mxu0
    %v3578 = vadd.f32 0.0, %v3577
    %v3579 = vpop.f32.mrb[0].mxu0
    %v3580 = vadd.f32 0.0, %v3579
    %3581 = vmatprep.mubr.f32.mxu0 0.0
    %3582 = vmatmul.mubr.f32.gmra.mrb[0].mxu0 %v3367
    %v3583 = vpop.f32.mrb[0].mxu0
    %v3584 = vadd.f32 0.0, %v3583
    %v3585 = vpop.f32.mrb[0].mxu0
    %v3586 = vadd.f32 0.0, %v3585
    %3587 = vmatprep.mubr.f32.mxu0 0.0
    %3588 = vmatmul.mubr.f32.gmra.mrb[0].mxu0 %v3370
    %v3589 = vpop.f32.mrb[0].mxu0
    %v3590 = vadd.f32 0.0, %v3589
    %v3591 = vpop.f32.mrb[0].mxu0
    %v3592 = vadd.f32 0.0, %v3591
    %3593 = vmatprep.mubr.f32.mxu0 0.0
    %3594 = vmatmul.mubr.f32.gmra.mrb[0].mxu0 %v3373
    %v3595 = vpop.f32.mrb[0].mxu0
    %v3596 = vadd.f32 0.0, %v3595
    %v3597 = vpop.f32.mrb[0].mxu0
    %v3598 = vadd.f32 0.0, %v3597
    %3599 = vmatprep.mubr.f32.mxu0 0.0
    %3600 = vmatmul.mubr.f32.gmra.mrb[0].mxu0 %v3376
    %v3601 = vpop.f32.mrb[0].mxu0
    %v3602 = vadd.f32 0.0, %v3601
    %v3603 = vpop.f32.mrb[0].mxu0
    %v3604 = vadd.f32 0.0, %v3603
    %3605 = vmatprep.mubr.f32.mxu0 0.0
    %3606 = vmatmul.mubr.f32.gmra.mrb[0].mxu0 %v3379
    %v3607 = vpop.f32.mrb[0].mxu0
    %v3608 = vadd.f32 0.0, %v3607
    %v3609 = vpop.f32.mrb[0].mxu0
    %v3610 = vadd.f32 0.0, %v3609
    %3611 = vmatprep.mubr.f32.mxu0 0.0
    %3612 = vmatmul.mubr.f32.gmra.mrb[0].mxu0 %v3382
    %v3613 = vpop.f32.mrb[0].mxu0
    %v3614 = vadd.f32 0.0, %v3613
    %v3615 = vpop.f32.mrb[0].mxu0
    %v3616 = vadd.f32 0.0, %v3615
    %3617 = vmatprep.mubr.f32.mxu0 0.0
    %3618 = vmatmul.mubr.f32.gmra.mrb[0].mxu0 %v3385
    %v3619 = vpop.f32.mrb[0].mxu0
    %v3620 = vadd.f32 0.0, %v3619
    %v3621 = vpop.f32.mrb[0].mxu0
    %v3622 = vadd.f32 0.0, %v3621
    %3623 = vmatprep.mubr.f32.mxu0 0.0
    %3624 = vmatmul.mubr.f32.gmra.mrb[0].mxu0 %v3388
    %v3625 = vpop.f32.mrb[0].mxu0
    %v3626 = vadd.f32 0.0, %v3625
    %v3627 = vpop.f32.mrb[0].mxu0
    %v3628 = vadd.f32 0.0, %v3627
    %3629 = vmatprep.mubr.f32.mxu0 0.0
    %3630 = vmatmul.mubr.f32.gmra.mrb[0].mxu0 %v3391
    %v3631 = vpop.f32.mrb[0].mxu0
    %v3632 = vadd.f32 0.0, %v3631
    %v3633 = vpop.f32.mrb[0].mxu0
    %v3634 = vadd.f32 0.0, %v3633
    %3635 = vmatprep.mubr.f32.mxu0 0.0
    %3636 = vmatmul.mubr.f32.gmra.mrb[0].mxu0 %v3394
    %v3637 = vpop.f32.mrb[0].mxu0
    %v3638 = vadd.f32 0.0, %v3637
    %v3639 = vpop.f32.mrb[0].mxu0
    %v3640 = vadd.f32 0.0, %v3639
    %3641 = vmatprep.mubr.f32.mxu0 0.0
    %3642 = vmatmul.mubr.f32.gmra.mrb[0].mxu0 %v3397
    %v3643 = vpop.f32.mrb[0].mxu0
    %v3644 = vadd.f32 0.0, %v3643
    %v3645 = vpop.f32.mrb[0].mxu0
    %v3646 = vadd.f32 0.0, %v3645
    %3647 = vmatprep.mubr.f32.mxu0 0.0
    %3648 = vmatmul.mubr.f32.gmra.mrb[0].mxu0 %v3400
    %v3649 = vpop.f32.mrb[0].mxu0
    %v3650 = vadd.f32 0.0, %v3649
    %v3651 = vpop.f32.mrb[0].mxu0
    %v3652 = vadd.f32 0.0, %v3651
    %3653 = vmatprep.mubr.f32.mxu0 0.0
    %3654 = vmatmul.mubr.f32.gmra.mrb[0].mxu0 %v3403
    %v3655 = vpop.f32.mrb[0].mxu0
    %v3656 = vadd.f32 0.0, %v3655
    %v3657 = vpop.f32.mrb[0].mxu0
    %v3658 = vadd.f32 0.0, %v3657
    %3659 = vmatprep.mubr.f32.mxu0 0.0
    %3660 = vmatmul.mubr.f32.gmra.mrb[0].mxu0 %v3406
    %v3661 = vpop.f32.mrb[0].mxu0
    %v3662 = vadd.f32 0.0, %v3661
    %v3663 = vpop.f32.mrb[0].mxu0
    %v3664 = vadd.f32 0.0, %v3663
    %3665 = vmatprep.mubr.f32.mxu0 0.0
    %3666 = vmatmul.mubr.f32.gmra.mrb[0].mxu0 %v3409
    %v3667 = vpop.f32.mrb[0].mxu0
    %v3668 = vadd.f32 0.0, %v3667
    %v3669 = vpop.f32.mrb[0].mxu0
    %v3670 = vadd.f32 0.0, %v3669
    %3671 = vmatprep.mubr.f32.mxu0 0.0
    %3672 = vmatmul.mubr.f32.gmra.mrb[0].mxu0 %v3412
    %v3673 = vpop.f32.mrb[0].mxu0
    %v3674 = vadd.f32 0.0, %v3673
    %v3675 = vpop.f32.mrb[0].mxu0
    %v3676 = vadd.f32 0.0, %v3675
    %3677 = vdwg.mxu0
    %v3679 = vsel %vm121, %v3209, 0
    %v3682 = vsel %vm121, %v3210, 0
    %v3685 = vsel %vm121, %v3211, 0
    %v3688 = vsel %vm121, %v3212, 0
    %v3691 = vsel %vm121, %v3213, 0
    %v3694 = vsel %vm121, %v3214, 0
    %v3697 = vsel %vm121, %v3215, 0
    %v3700 = vsel %vm121, %v3216, 0
    %v3703 = vsel %vm121, %v3217, 0
    %v3706 = vsel %vm121, %v3218, 0
    %v3709 = vsel %vm121, %v3219, 0
    %v3712 = vsel %vm121, %v3220, 0
    %v3715 = vsel %vm121, %v3221, 0
    %v3718 = vsel %vm121, %v3222, 0
    %v3721 = vsel %vm121, %v3223, 0
    %v3724 = vsel %vm121, %v3224, 0
    %v3727 = vsel %vm121, %v3225, 0
    %v3730 = vsel %vm121, %v3226, 0
    %v3733 = vsel %vm121, %v3227, 0
    %v3736 = vsel %vm121, %v3228, 0
    %v3739 = vsel %vm121, %v3229, 0
    %v3742 = vsel %vm121, %v3230, 0
    %v3745 = vsel %vm121, %v3231, 0
    %v3748 = vsel %vm121, %v3232, 0
    %v3751 = vsel %vm121, %v3233, 0
    %v3754 = vsel %vm121, %v3234, 0
    %v3757 = vsel %vm121, %v3235, 0
    %v3760 = vsel %vm121, %v3236, 0
    %v3763 = vsel %vm121, %v3237, 0
    %v3766 = vsel %vm121, %v3238, 0
    %v3769 = vsel %vm121, %v3239, 0
    %v3772 = vsel %vm121, %v3240, 0
    %v3775 = vsel %vm3414, %v3261, 0
    %v3778 = vsel %vm3414, %v3262, 0
    %3780 = vmatprep.subr.mxu0 %v3242
    %3781 = vmatpush1.msra.mxu0 %v3241
    %3782 = vmatprep.subr.mxu0 %v3244
    %3783 = vmatpush1.msra.mxu0 %v3243
    %3784 = vmatprep.subr.mxu0 %v3246
    %3785 = vmatpush1.msra.mxu0 %v3245
    %3786 = vmatprep.subr.mxu0 %v3248
    %3787 = vmatpush1.msra.mxu0 %v3247
    %3788 = vmatprep.subr.mxu0 %v3250
    %3789 = vmatpush1.msra.mxu0 %v3249
    %3790 = vmatprep.subr.mxu0 %v3252
    %3791 = vmatpush1.msra.mxu0 %v3251
    %3792 = vmatprep.subr.mxu0 %v3254
    %3793 = vmatpush1.msra.mxu0 %v3253
    %3794 = vmatprep.subr.mxu0 %v3256
    %3795 = vmatpush1.msra.mxu0 %v3255
    %3796 = vmatprep.subr.mxu0 %v3258
    %3797 = vmatpush1.msra.mxu0 %v3257
    %3798 = vmatprep.subr.mxu0 %v3260
    %3799 = vmatpush1.msra.mxu0 %v3259
    %3800 = vmatprep.subr.mxu0 %v3778
    %3801 = vmatpush1.msra.mxu0 %v3775
    %3802 = vmatprep.subr.mxu0 0.0
    %3803 = vmatpush1.msra.mxu0 0.0
    %3804 = vmatprep.subr.mxu0 0.0
    %3805 = vmatpush1.msra.mxu0 0.0
    %3806 = vmatprep.subr.mxu0 0.0
    %3807 = vmatpush1.msra.mxu0 0.0
    %3808 = vmatprep.subr.mxu0 0.0
    %3809 = vmatpush1.msra.mxu0 0.0
    %3810 = vmatprep.subr.mxu0 0.0
    %3811 = vmatpush1.msra.mxu0 0.0
    %3812 = vmatprep.subr.mxu0 0.0
    %3813 = vmatpush1.msra.mxu0 0.0
    %3814 = vmatprep.subr.mxu0 0.0
    %3815 = vmatpush1.msra.mxu0 0.0
    %3816 = vmatprep.subr.mxu0 0.0
    %3817 = vmatpush1.msra.mxu0 0.0
    %3818 = vmatprep.subr.mxu0 0.0
    %3819 = vmatpush1.msra.mxu0 0.0
    %3820 = vmatprep.subr.mxu0 0.0
    %3821 = vmatpush1.msra.mxu0 0.0
    %3822 = vmatprep.subr.mxu0 0.0
    %3823 = vmatpush1.msra.mxu0 0.0
    %3824 = vmatprep.subr.mxu0 0.0
    %3825 = vmatpush1.msra.mxu0 0.0
    %3826 = vmatprep.subr.mxu0 0.0
    %3827 = vmatpush1.msra.mxu0 0.0
    %3828 = vmatprep.subr.mxu0 0.0
    %3829 = vmatpush1.msra.mxu0 0.0
    %3830 = vmatprep.subr.mxu0 0.0
    %3831 = vmatpush1.msra.mxu0 0.0
    %3832 = vmatprep.subr.mxu0 0.0
    %3833 = vmatpush1.msra.mxu0 0.0
    %3834 = vmatprep.subr.mxu0 0.0
    %3835 = vmatpush1.msra.mxu0 0.0
    %3836 = vmatprep.subr.mxu0 0.0
    %3837 = vmatpush1.msra.mxu0 0.0
    %3838 = vmatprep.subr.mxu0 0.0
    %3839 = vmatpush1.msra.mxu0 0.0
    %3840 = vmatprep.subr.mxu0 0.0
    %3841 = vmatpush1.msra.mxu0 0.0
    %3842 = vmatprep.subr.mxu0 0.0
    %3843 = vmatpush1.msra.mxu0 0.0
    %3844 = vmatprep.mubr.f32.mxu0 0.0
    %3845 = vmatmul.mubr.f32.gmra.mrb[0].mxu0 %v3679
    %v3846 = vpop.f32.mrb[0].mxu0
    %v3847 = vadd.f32 %v3488, %v3846
    %v3848 = vpop.f32.mrb[0].mxu0
    %v3849 = vadd.f32 %v3490, %v3848
    %3850 = vmatprep.mubr.f32.mxu0 0.0
    %3851 = vmatmul.mubr.f32.gmra.mrb[0].mxu0 %v3682
    %v3852 = vpop.f32.mrb[0].mxu0
    %v3853 = vadd.f32 %v3494, %v3852
    %v3854 = vpop.f32.mrb[0].mxu0
    %v3855 = vadd.f32 %v3496, %v3854
    %3856 = vmatprep.mubr.f32.mxu0 0.0
    %3857 = vmatmul.mubr.f32.gmra.mrb[0].mxu0 %v3685
    %v3858 = vpop.f32.mrb[0].mxu0
    %v3859 = vadd.f32 %v3500, %v3858
    %v3860 = vpop.f32.mrb[0].mxu0
    %v3861 = vadd.f32 %v3502, %v3860
    %3862 = vmatprep.mubr.f32.mxu0 0.0
    %3863 = vmatmul.mubr.f32.gmra.mrb[0].mxu0 %v3688
    %v3864 = vpop.f32.mrb[0].mxu0
    %v3865 = vadd.f32 %v3506, %v3864
    %v3866 = vpop.f32.mrb[0].mxu0
    %v3867 = vadd.f32 %v3508, %v3866
    %3868 = vmatprep.mubr.f32.mxu0 0.0
    %3869 = vmatmul.mubr.f32.gmra.mrb[0].mxu0 %v3691
    %v3870 = vpop.f32.mrb[0].mxu0
    %v3871 = vadd.f32 %v3512, %v3870
    %v3872 = vpop.f32.mrb[0].mxu0
    %v3873 = vadd.f32 %v3514, %v3872
    %3874 = vmatprep.mubr.f32.mxu0 0.0
    %3875 = vmatmul.mubr.f32.gmra.mrb[0].mxu0 %v3694
    %v3876 = vpop.f32.mrb[0].mxu0
    %v3877 = vadd.f32 %v3518, %v3876
    %v3878 = vpop.f32.mrb[0].mxu0
    %v3879 = vadd.f32 %v3520, %v3878
    %3880 = vmatprep.mubr.f32.mxu0 0.0
    %3881 = vmatmul.mubr.f32.gmra.mrb[0].mxu0 %v3697
    %v3882 = vpop.f32.mrb[0].mxu0
    %v3883 = vadd.f32 %v3524, %v3882
    %v3884 = vpop.f32.mrb[0].mxu0
    %v3885 = vadd.f32 %v3526, %v3884
    %3886 = vmatprep.mubr.f32.mxu0 0.0
    %3887 = vmatmul.mubr.f32.gmra.mrb[0].mxu0 %v3700
    %v3888 = vpop.f32.mrb[0].mxu0
    %v3889 = vadd.f32 %v3530, %v3888
    %v3890 = vpop.f32.mrb[0].mxu0
    %v3891 = vadd.f32 %v3532, %v3890
    %3892 = vmatprep.mubr.f32.mxu0 0.0
    %3893 = vmatmul.mubr.f32.gmra.mrb[0].mxu0 %v3703
    %v3894 = vpop.f32.mrb[0].mxu0
    %v3895 = vadd.f32 %v3536, %v3894
    %v3896 = vpop.f32.mrb[0].mxu0
    %v3897 = vadd.f32 %v3538, %v3896
    %3898 = vmatprep.mubr.f32.mxu0 0.0
    %3899 = vmatmul.mubr.f32.gmra.mrb[0].mxu0 %v3706
    %v3900 = vpop.f32.mrb[0].mxu0
    %v3901 = vadd.f32 %v3542, %v3900
    %v3902 = vpop.f32.mrb[0].mxu0
    %v3903 = vadd.f32 %v3544, %v3902
    %3904 = vmatprep.mubr.f32.mxu0 0.0
    %3905 = vmatmul.mubr.f32.gmra.mrb[0].mxu0 %v3709
    %v3906 = vpop.f32.mrb[0].mxu0
    %v3907 = vadd.f32 %v3548, %v3906
    %v3908 = vpop.f32.mrb[0].mxu0
    %v3909 = vadd.f32 %v3550, %v3908
    %3910 = vmatprep.mubr.f32.mxu0 0.0
    %3911 = vmatmul.mubr.f32.gmra.mrb[0].mxu0 %v3712
    %v3912 = vpop.f32.mrb[0].mxu0
    %v3913 = vadd.f32 %v3554, %v3912
    %v3914 = vpop.f32.mrb[0].mxu0
    %v3915 = vadd.f32 %v3556, %v3914
    %3916 = vmatprep.mubr.f32.mxu0 0.0
    %3917 = vmatmul.mubr.f32.gmra.mrb[0].mxu0 %v3715
    %v3918 = vpop.f32.mrb[0].mxu0
    %v3919 = vadd.f32 %v3560, %v3918
    %v3920 = vpop.f32.mrb[0].mxu0
    %v3921 = vadd.f32 %v3562, %v3920
    %3922 = vmatprep.mubr.f32.mxu0 0.0
    %3923 = vmatmul.mubr.f32.gmra.mrb[0].mxu0 %v3718
    %v3924 = vpop.f32.mrb[0].mxu0
    %v3925 = vadd.f32 %v3566, %v3924
    %v3926 = vpop.f32.mrb[0].mxu0
    %v3927 = vadd.f32 %v3568, %v3926
    %3928 = vmatprep.mubr.f32.mxu0 0.0
    %3929 = vmatmul.mubr.f32.gmra.mrb[0].mxu0 %v3721
    %v3930 = vpop.f32.mrb[0].mxu0
    %v3931 = vadd.f32 %v3572, %v3930
    %v3932 = vpop.f32.mrb[0].mxu0
    %v3933 = vadd.f32 %v3574, %v3932
    %3934 = vmatprep.mubr.f32.mxu0 0.0
    %3935 = vmatmul.mubr.f32.gmra.mrb[0].mxu0 %v3724
    %v3936 = vpop.f32.mrb[0].mxu0
    %v3937 = vadd.f32 %v3578, %v3936
    %v3938 = vpop.f32.mrb[0].mxu0
    %v3939 = vadd.f32 %v3580, %v3938
    %3940 = vmatprep.mubr.f32.mxu0 0.0
    %3941 = vmatmul.mubr.f32.gmra.mrb[0].mxu0 %v3727
    %v3942 = vpop.f32.mrb[0].mxu0
    %v3943 = vadd.f32 %v3584, %v3942
    %v3944 = vpop.f32.mrb[0].mxu0
    %v3945 = vadd.f32 %v3586, %v3944
    %3946 = vmatprep.mubr.f32.mxu0 0.0
    %3947 = vmatmul.mubr.f32.gmra.mrb[0].mxu0 %v3730
    %v3948 = vpop.f32.mrb[0].mxu0
    %v3949 = vadd.f32 %v3590, %v3948
    %v3950 = vpop.f32.mrb[0].mxu0
    %v3951 = vadd.f32 %v3592, %v3950
    %3952 = vmatprep.mubr.f32.mxu0 0.0
    %3953 = vmatmul.mubr.f32.gmra.mrb[0].mxu0 %v3733
    %v3954 = vpop.f32.mrb[0].mxu0
    %v3955 = vadd.f32 %v3596, %v3954
    %v3956 = vpop.f32.mrb[0].mxu0
    %v3957 = vadd.f32 %v3598, %v3956
    %3958 = vmatprep.mubr.f32.mxu0 0.0
    %3959 = vmatmul.mubr.f32.gmra.mrb[0].mxu0 %v3736
    %v3960 = vpop.f32.mrb[0].mxu0
    %v3961 = vadd.f32 %v3602, %v3960
    %v3962 = vpop.f32.mrb[0].mxu0
    %v3963 = vadd.f32 %v3604, %v3962
    %3964 = vmatprep.mubr.f32.mxu0 0.0
    %3965 = vmatmul.mubr.f32.gmra.mrb[0].mxu0 %v3739
    %v3966 = vpop.f32.mrb[0].mxu0
    %v3967 = vadd.f32 %v3608, %v3966
    %v3968 = vpop.f32.mrb[0].mxu0
    %v3969 = vadd.f32 %v3610, %v3968
    %3970 = vmatprep.mubr.f32.mxu0 0.0
    %3971 = vmatmul.mubr.f32.gmra.mrb[0].mxu0 %v3742
    %v3972 = vpop.f32.mrb[0].mxu0
    %v3973 = vadd.f32 %v3614, %v3972
    %v3974 = vpop.f32.mrb[0].mxu0
    %v3975 = vadd.f32 %v3616, %v3974
    %3976 = vmatprep.mubr.f32.mxu0 0.0
    %3977 = vmatmul.mubr.f32.gmra.mrb[0].mxu0 %v3745
    %v3978 = vpop.f32.mrb[0].mxu0
    %v3979 = vadd.f32 %v3620, %v3978
    %v3980 = vpop.f32.mrb[0].mxu0
    %v3981 = vadd.f32 %v3622, %v3980
    %3982 = vmatprep.mubr.f32.mxu0 0.0
    %3983 = vmatmul.mubr.f32.gmra.mrb[0].mxu0 %v3748
    %v3984 = vpop.f32.mrb[0].mxu0
    %v3985 = vadd.f32 %v3626, %v3984
    %v3986 = vpop.f32.mrb[0].mxu0
    %v3987 = vadd.f32 %v3628, %v3986
    %3988 = vmatprep.mubr.f32.mxu0 0.0
    %3989 = vmatmul.mubr.f32.gmra.mrb[0].mxu0 %v3751
    %v3990 = vpop.f32.mrb[0].mxu0
    %v3991 = vadd.f32 %v3632, %v3990
    %v3992 = vpop.f32.mrb[0].mxu0
    %v3993 = vadd.f32 %v3634, %v3992
    %3994 = vmatprep.mubr.f32.mxu0 0.0
    %3995 = vmatmul.mubr.f32.gmra.mrb[0].mxu0 %v3754
    %v3996 = vpop.f32.mrb[0].mxu0
    %v3997 = vadd.f32 %v3638, %v3996
    %v3998 = vpop.f32.mrb[0].mxu0
    %v3999 = vadd.f32 %v3640, %v3998
    %4000 = vmatprep.mubr.f32.mxu0 0.0
    %4001 = vmatmul.mubr.f32.gmra.mrb[0].mxu0 %v3757
    %v4002 = vpop.f32.mrb[0].mxu0
    %v4003 = vadd.f32 %v3644, %v4002
    %v4004 = vpop.f32.mrb[0].mxu0
    %v4005 = vadd.f32 %v3646, %v4004
    %4006 = vmatprep.mubr.f32.mxu0 0.0
    %4007 = vmatmul.mubr.f32.gmra.mrb[0].mxu0 %v3760
    %v4008 = vpop.f32.mrb[0].mxu0
    %v4009 = vadd.f32 %v3650, %v4008
    %v4010 = vpop.f32.mrb[0].mxu0
    %v4011 = vadd.f32 %v3652, %v4010
    %4012 = vmatprep.mubr.f32.mxu0 0.0
    %4013 = vmatmul.mubr.f32.gmra.mrb[0].mxu0 %v3763
    %v4014 = vpop.f32.mrb[0].mxu0
    %v4015 = vadd.f32 %v3656, %v4014
    %v4016 = vpop.f32.mrb[0].mxu0
    %v4017 = vadd.f32 %v3658, %v4016
    %4018 = vmatprep.mubr.f32.mxu0 0.0
    %4019 = vmatmul.mubr.f32.gmra.mrb[0].mxu0 %v3766
    %v4020 = vpop.f32.mrb[0].mxu0
    %v4021 = vadd.f32 %v3662, %v4020
    %v4022 = vpop.f32.mrb[0].mxu0
    %v4023 = vadd.f32 %v3664, %v4022
    %4024 = vmatprep.mubr.f32.mxu0 0.0
    %4025 = vmatmul.mubr.f32.gmra.mrb[0].mxu0 %v3769
    %v4026 = vpop.f32.mrb[0].mxu0
    %v4027 = vadd.f32 %v3668, %v4026
    %v4028 = vpop.f32.mrb[0].mxu0
    %v4029 = vadd.f32 %v3670, %v4028
    %4030 = vmatprep.mubr.f32.mxu0 0.0
    %4031 = vmatmul.mubr.f32.gmra.mrb[0].mxu0 %v3772
    %v4032 = vpop.f32.mrb[0].mxu0
    %v4033 = vadd.f32 %v3674, %v4032
    %v4034 = vpop.f32.mrb[0].mxu0
    %v4035 = vadd.f32 %v3676, %v4034
    %4036 = vdwg.mxu0
    %v4037 = vld [vmem:[#allocation3 + $0x4] sm:$0xff]
    %v4038 = vld [vmem:[#allocation3 + $0xc] sm:$0xff]
    %v4039 = vld [vmem:[#allocation3 + $0x14] sm:$0xff]
    %v4040 = vld [vmem:[#allocation3 + $0x1c] sm:$0xff]
    %v4041 = vld [vmem:[#allocation3 + $0x24] sm:$0xff]
    %v4042 = vld [vmem:[#allocation3 + $0x2c] sm:$0xff]
    %v4043 = vld [vmem:[#allocation3 + $0x34] sm:$0xff]
    %v4044 = vld [vmem:[#allocation3 + $0x3c] sm:$0xff]
    %v4045 = vld [vmem:[#allocation3 + $0x44] sm:$0xff]
    %v4046 = vld [vmem:[#allocation3 + $0x4c] sm:$0xff]
    %v4047 = vld [vmem:[#allocation3 + $0x54] sm:$0xff]
    %v4048 = vld [vmem:[#allocation3 + $0x5c] sm:$0xff]
    %v4049 = vld [vmem:[#allocation3 + $0x64] sm:$0xff]
    %v4050 = vld [vmem:[#allocation3 + $0x6c] sm:$0xff]
    %v4051 = vld [vmem:[#allocation3 + $0x74] sm:$0xff]
    %v4052 = vld [vmem:[#allocation3 + $0x7c] sm:$0xff]
    %v4053 = vld [vmem:[#allocation3 + $0x84] sm:$0xff]
    %v4054 = vld [vmem:[#allocation3 + $0x8c] sm:$0xff]
    %v4055 = vld [vmem:[#allocation3 + $0x94] sm:$0xff]
    %v4056 = vld [vmem:[#allocation3 + $0x9c] sm:$0xff]
    %v4057 = vld [vmem:[#allocation3 + $0xa4] sm:$0xff]
    %v4058 = vld [vmem:[#allocation3 + $0xac] sm:$0xff]
    %v4059 = vld [vmem:[#allocation3 + $0xb4] sm:$0xff]
    %v4060 = vld [vmem:[#allocation3 + $0xbc] sm:$0xff]
    %v4061 = vld [vmem:[#allocation3 + $0xc4] sm:$0xff]
    %v4062 = vld [vmem:[#allocation3 + $0xcc] sm:$0xff]
    %v4063 = vld [vmem:[#allocation3 + $0xd4] sm:$0xff]
    %v4064 = vld [vmem:[#allocation3 + $0xdc] sm:$0xff]
    %v4065 = vld [vmem:[#allocation3 + $0xe4] sm:$0xff]
    %v4066 = vld [vmem:[#allocation3 + $0xec] sm:$0xff]
    %v4067 = vld [vmem:[#allocation3 + $0xf4] sm:$0xff]
    %v4068 = vld [vmem:[#allocation3 + $0xfc] sm:$0xff]
    %s4069 = scalar_lea.vmem %s5, 352
    %v4070 = vld [vmem:[%s4069] sm:$0xff]
    %v4071 = vld [vmem:[%s4069 + $0x8] sm:$0xff]
    %v4072 = vld [vmem:[%s4069 + $0x10] sm:$0xff]
    %v4073 = vld [vmem:[%s4069 + $0x18] sm:$0xff]
    %v4074 = vld [vmem:[%s4069 + $0x20] sm:$0xff]
    %v4075 = vld [vmem:[%s4069 + $0x28] sm:$0xff]
    %v4076 = vld [vmem:[%s4069 + $0x30] sm:$0xff]
    %v4077 = vld [vmem:[%s4069 + $0x38] sm:$0xff]
    %v4078 = vld [vmem:[%s4069 + $0x40] sm:$0xff]
    %v4079 = vld [vmem:[%s4069 + $0x48] sm:$0xff]
    %v4080 = vld [vmem:[%s4069 + $0x50] sm:$0xff]
    %v4081 = vld [vmem:[%s4069 + $0x58] sm:$0xff]
    %v4082 = vld [vmem:[%s4069 + $0x60] sm:$0xff]
    %v4083 = vld [vmem:[%s4069 + $0x68] sm:$0xff]
    %v4084 = vld [vmem:[%s4069 + $0x70] sm:$0xff]
    %v4085 = vld [vmem:[%s4069 + $0x78] sm:$0xff]
    %v4086 = vld [vmem:[%s4069 + $0x80] sm:$0xff]
    %v4087 = vld [vmem:[%s4069 + $0x88] sm:$0xff]
    %v4088 = vld [vmem:[%s4069 + $0x90] sm:$0xff]
    %v4089 = vld [vmem:[%s4069 + $0x98] sm:$0xff]
    %v4090 = vld [vmem:[%s4069 + $0xa0] sm:$0xf]
    %v4091 = vld [vmem:[%s4069 + $0xa8] sm:$0xf]
    %v4093 = vsel %vm121, %v4037, 0
    %v4096 = vsel %vm121, %v4038, 0
    %v4099 = vsel %vm121, %v4039, 0
    %v4102 = vsel %vm121, %v4040, 0
    %v4105 = vsel %vm121, %v4041, 0
    %v4108 = vsel %vm121, %v4042, 0
    %v4111 = vsel %vm121, %v4043, 0
    %v4114 = vsel %vm121, %v4044, 0
    %v4117 = vsel %vm121, %v4045, 0
    %v4120 = vsel %vm121, %v4046, 0
    %v4123 = vsel %vm121, %v4047, 0
    %v4126 = vsel %vm121, %v4048, 0
    %v4129 = vsel %vm121, %v4049, 0
    %v4132 = vsel %vm121, %v4050, 0
    %v4135 = vsel %vm121, %v4051, 0
    %v4138 = vsel %vm121, %v4052, 0
    %v4141 = vsel %vm121, %v4053, 0
    %v4144 = vsel %vm121, %v4054, 0
    %v4147 = vsel %vm121, %v4055, 0
    %v4150 = vsel %vm121, %v4056, 0
    %v4153 = vsel %vm121, %v4057, 0
    %v4156 = vsel %vm121, %v4058, 0
    %v4159 = vsel %vm121, %v4059, 0
    %v4162 = vsel %vm121, %v4060, 0
    %v4165 = vsel %vm121, %v4061, 0
    %v4168 = vsel %vm121, %v4062, 0
    %v4171 = vsel %vm121, %v4063, 0
    %v4174 = vsel %vm121, %v4064, 0
    %v4177 = vsel %vm121, %v4065, 0
    %v4180 = vsel %vm121, %v4066, 0
    %v4183 = vsel %vm121, %v4067, 0
    %v4186 = vsel %vm121, %v4068, 0
    %v4189 = vsel %vm3414, %v4090, 0
    %v4192 = vsel %vm3414, %v4091, 0
    %4194 = vmatprep.subr.mxu0 %v4071
    %4195 = vmatpush1.msra.mxu0 %v4070
    %4196 = vmatprep.subr.mxu0 %v4073
    %4197 = vmatpush1.msra.mxu0 %v4072
    %4198 = vmatprep.subr.mxu0 %v4075
    %4199 = vmatpush1.msra.mxu0 %v4074
    %4200 = vmatprep.subr.mxu0 %v4077
    %4201 = vmatpush1.msra.mxu0 %v4076
    %4202 = vmatprep.subr.mxu0 %v4079
    %4203 = vmatpush1.msra.mxu0 %v4078
    %4204 = vmatprep.subr.mxu0 %v4081
    %4205 = vmatpush1.msra.mxu0 %v4080
    %4206 = vmatprep.subr.mxu0 %v4083
    %4207 = vmatpush1.msra.mxu0 %v4082
    %4208 = vmatprep.subr.mxu0 %v4085
    %4209 = vmatpush1.msra.mxu0 %v4084
    %4210 = vmatprep.subr.mxu0 %v4087
    %4211 = vmatpush1.msra.mxu0 %v4086
    %4212 = vmatprep.subr.mxu0 %v4089
    %4213 = vmatpush1.msra.mxu0 %v4088
    %4214 = vmatprep.subr.mxu0 %v4192
    %4215 = vmatpush1.msra.mxu0 %v4189
    %4216 = vmatprep.subr.mxu0 0.0
    %4217 = vmatpush1.msra.mxu0 0.0
    %4218 = vmatprep.subr.mxu0 0.0
    %4219 = vmatpush1.msra.mxu0 0.0
    %4220 = vmatprep.subr.mxu0 0.0
    %4221 = vmatpush1.msra.mxu0 0.0
    %4222 = vmatprep.subr.mxu0 0.0
    %4223 = vmatpush1.msra.mxu0 0.0
    %4224 = vmatprep.subr.mxu0 0.0
    %4225 = vmatpush1.msra.mxu0 0.0
    %4226 = vmatprep.subr.mxu0 0.0
    %4227 = vmatpush1.msra.mxu0 0.0
    %4228 = vmatprep.subr.mxu0 0.0
    %4229 = vmatpush1.msra.mxu0 0.0
    %4230 = vmatprep.subr.mxu0 0.0
    %4231 = vmatpush1.msra.mxu0 0.0
    %4232 = vmatprep.subr.mxu0 0.0
    %4233 = vmatpush1.msra.mxu0 0.0
    %4234 = vmatprep.subr.mxu0 0.0
    %4235 = vmatpush1.msra.mxu0 0.0
    %4236 = vmatprep.subr.mxu0 0.0
    %4237 = vmatpush1.msra.mxu0 0.0
    %4238 = vmatprep.subr.mxu0 0.0
    %4239 = vmatpush1.msra.mxu0 0.0
    %4240 = vmatprep.subr.mxu0 0.0
    %4241 = vmatpush1.msra.mxu0 0.0
    %4242 = vmatprep.subr.mxu0 0.0
    %4243 = vmatpush1.msra.mxu0 0.0
    %4244 = vmatprep.subr.mxu0 0.0
    %4245 = vmatpush1.msra.mxu0 0.0
    %4246 = vmatprep.subr.mxu0 0.0
    %4247 = vmatpush1.msra.mxu0 0.0
    %4248 = vmatprep.subr.mxu0 0.0
    %4249 = vmatpush1.msra.mxu0 0.0
    %4250 = vmatprep.subr.mxu0 0.0
    %4251 = vmatpush1.msra.mxu0 0.0
    %4252 = vmatprep.subr.mxu0 0.0
    %4253 = vmatpush1.msra.mxu0 0.0
    %4254 = vmatprep.subr.mxu0 0.0
    %4255 = vmatpush1.msra.mxu0 0.0
    %4256 = vmatprep.subr.mxu0 0.0
    %4257 = vmatpush1.msra.mxu0 0.0
    %4258 = vmatprep.mubr.f32.mxu0 0.0
    %4259 = vmatmul.mubr.f32.gmra.mrb[0].mxu0 %v4093
    %v4260 = vpop.f32.mrb[0].mxu0
    %v4261 = vadd.f32 0.0, %v4260
    %v4262 = vpop.f32.mrb[0].mxu0
    %v4263 = vadd.f32 0.0, %v4262
    %4264 = vmatprep.mubr.f32.mxu0 0.0
    %4265 = vmatmul.mubr.f32.gmra.mrb[0].mxu0 %v4096
    %v4266 = vpop.f32.mrb[0].mxu0
    %v4267 = vadd.f32 0.0, %v4266
    %v4268 = vpop.f32.mrb[0].mxu0
    %v4269 = vadd.f32 0.0, %v4268
    %4270 = vmatprep.mubr.f32.mxu0 0.0
    %4271 = vmatmul.mubr.f32.gmra.mrb[0].mxu0 %v4099
    %v4272 = vpop.f32.mrb[0].mxu0
    %v4273 = vadd.f32 0.0, %v4272
    %v4274 = vpop.f32.mrb[0].mxu0
    %v4275 = vadd.f32 0.0, %v4274
    %4276 = vmatprep.mubr.f32.mxu0 0.0
    %4277 = vmatmul.mubr.f32.gmra.mrb[0].mxu0 %v4102
    %v4278 = vpop.f32.mrb[0].mxu0
    %v4279 = vadd.f32 0.0, %v4278
    %v4280 = vpop.f32.mrb[0].mxu0
    %v4281 = vadd.f32 0.0, %v4280
    %4282 = vmatprep.mubr.f32.mxu0 0.0
    %4283 = vmatmul.mubr.f32.gmra.mrb[0].mxu0 %v4105
    %v4284 = vpop.f32.mrb[0].mxu0
    %v4285 = vadd.f32 0.0, %v4284
    %v4286 = vpop.f32.mrb[0].mxu0
    %v4287 = vadd.f32 0.0, %v4286
    %4288 = vmatprep.mubr.f32.mxu0 0.0
    %4289 = vmatmul.mubr.f32.gmra.mrb[0].mxu0 %v4108
    %v4290 = vpop.f32.mrb[0].mxu0
    %v4291 = vadd.f32 0.0, %v4290
    %v4292 = vpop.f32.mrb[0].mxu0
    %v4293 = vadd.f32 0.0, %v4292
    %4294 = vmatprep.mubr.f32.mxu0 0.0
    %4295 = vmatmul.mubr.f32.gmra.mrb[0].mxu0 %v4111
    %v4296 = vpop.f32.mrb[0].mxu0
    %v4297 = vadd.f32 0.0, %v4296
    %v4298 = vpop.f32.mrb[0].mxu0
    %v4299 = vadd.f32 0.0, %v4298
    %4300 = vmatprep.mubr.f32.mxu0 0.0
    %4301 = vmatmul.mubr.f32.gmra.mrb[0].mxu0 %v4114
    %v4302 = vpop.f32.mrb[0].mxu0
    %v4303 = vadd.f32 0.0, %v4302
    %v4304 = vpop.f32.mrb[0].mxu0
    %v4305 = vadd.f32 0.0, %v4304
    %4306 = vmatprep.mubr.f32.mxu0 0.0
    %4307 = vmatmul.mubr.f32.gmra.mrb[0].mxu0 %v4117
    %v4308 = vpop.f32.mrb[0].mxu0
    %v4309 = vadd.f32 0.0, %v4308
    %v4310 = vpop.f32.mrb[0].mxu0
    %v4311 = vadd.f32 0.0, %v4310
    %4312 = vmatprep.mubr.f32.mxu0 0.0
    %4313 = vmatmul.mubr.f32.gmra.mrb[0].mxu0 %v4120
    %v4314 = vpop.f32.mrb[0].mxu0
    %v4315 = vadd.f32 0.0, %v4314
    %v4316 = vpop.f32.mrb[0].mxu0
    %v4317 = vadd.f32 0.0, %v4316
    %4318 = vmatprep.mubr.f32.mxu0 0.0
    %4319 = vmatmul.mubr.f32.gmra.mrb[0].mxu0 %v4123
    %v4320 = vpop.f32.mrb[0].mxu0
    %v4321 = vadd.f32 0.0, %v4320
    %v4322 = vpop.f32.mrb[0].mxu0
    %v4323 = vadd.f32 0.0, %v4322
    %4324 = vmatprep.mubr.f32.mxu0 0.0
    %4325 = vmatmul.mubr.f32.gmra.mrb[0].mxu0 %v4126
    %v4326 = vpop.f32.mrb[0].mxu0
    %v4327 = vadd.f32 0.0, %v4326
    %v4328 = vpop.f32.mrb[0].mxu0
    %v4329 = vadd.f32 0.0, %v4328
    %4330 = vmatprep.mubr.f32.mxu0 0.0
    %4331 = vmatmul.mubr.f32.gmra.mrb[0].mxu0 %v4129
    %v4332 = vpop.f32.mrb[0].mxu0
    %v4333 = vadd.f32 0.0, %v4332
    %v4334 = vpop.f32.mrb[0].mxu0
    %v4335 = vadd.f32 0.0, %v4334
    %4336 = vmatprep.mubr.f32.mxu0 0.0
    %4337 = vmatmul.mubr.f32.gmra.mrb[0].mxu0 %v4132
    %v4338 = vpop.f32.mrb[0].mxu0
    %v4339 = vadd.f32 0.0, %v4338
    %v4340 = vpop.f32.mrb[0].mxu0
    %v4341 = vadd.f32 0.0, %v4340
    %4342 = vmatprep.mubr.f32.mxu0 0.0
    %4343 = vmatmul.mubr.f32.gmra.mrb[0].mxu0 %v4135
    %v4344 = vpop.f32.mrb[0].mxu0
    %v4345 = vadd.f32 0.0, %v4344
    %v4346 = vpop.f32.mrb[0].mxu0
    %v4347 = vadd.f32 0.0, %v4346
    %4348 = vmatprep.mubr.f32.mxu0 0.0
    %4349 = vmatmul.mubr.f32.gmra.mrb[0].mxu0 %v4138
    %v4350 = vpop.f32.mrb[0].mxu0
    %v4351 = vadd.f32 0.0, %v4350
    %v4352 = vpop.f32.mrb[0].mxu0
    %v4353 = vadd.f32 0.0, %v4352
    %4354 = vmatprep.mubr.f32.mxu0 0.0
    %4355 = vmatmul.mubr.f32.gmra.mrb[0].mxu0 %v4141
    %v4356 = vpop.f32.mrb[0].mxu0
    %v4357 = vadd.f32 0.0, %v4356
    %v4358 = vpop.f32.mrb[0].mxu0
    %v4359 = vadd.f32 0.0, %v4358
    %4360 = vmatprep.mubr.f32.mxu0 0.0
    %4361 = vmatmul.mubr.f32.gmra.mrb[0].mxu0 %v4144
    %v4362 = vpop.f32.mrb[0].mxu0
    %v4363 = vadd.f32 0.0, %v4362
    %v4364 = vpop.f32.mrb[0].mxu0
    %v4365 = vadd.f32 0.0, %v4364
    %4366 = vmatprep.mubr.f32.mxu0 0.0
    %4367 = vmatmul.mubr.f32.gmra.mrb[0].mxu0 %v4147
    %v4368 = vpop.f32.mrb[0].mxu0
    %v4369 = vadd.f32 0.0, %v4368
    %v4370 = vpop.f32.mrb[0].mxu0
    %v4371 = vadd.f32 0.0, %v4370
    %4372 = vmatprep.mubr.f32.mxu0 0.0
    %4373 = vmatmul.mubr.f32.gmra.mrb[0].mxu0 %v4150
    %v4374 = vpop.f32.mrb[0].mxu0
    %v4375 = vadd.f32 0.0, %v4374
    %v4376 = vpop.f32.mrb[0].mxu0
    %v4377 = vadd.f32 0.0, %v4376
    %4378 = vmatprep.mubr.f32.mxu0 0.0
    %4379 = vmatmul.mubr.f32.gmra.mrb[0].mxu0 %v4153
    %v4380 = vpop.f32.mrb[0].mxu0
    %v4381 = vadd.f32 0.0, %v4380
    %v4382 = vpop.f32.mrb[0].mxu0
    %v4383 = vadd.f32 0.0, %v4382
    %4384 = vmatprep.mubr.f32.mxu0 0.0
    %4385 = vmatmul.mubr.f32.gmra.mrb[0].mxu0 %v4156
    %v4386 = vpop.f32.mrb[0].mxu0
    %v4387 = vadd.f32 0.0, %v4386
    %v4388 = vpop.f32.mrb[0].mxu0
    %v4389 = vadd.f32 0.0, %v4388
    %4390 = vmatprep.mubr.f32.mxu0 0.0
    %4391 = vmatmul.mubr.f32.gmra.mrb[0].mxu0 %v4159
    %v4392 = vpop.f32.mrb[0].mxu0
    %v4393 = vadd.f32 0.0, %v4392
    %v4394 = vpop.f32.mrb[0].mxu0
    %v4395 = vadd.f32 0.0, %v4394
    %4396 = vmatprep.mubr.f32.mxu0 0.0
    %4397 = vmatmul.mubr.f32.gmra.mrb[0].mxu0 %v4162
    %v4398 = vpop.f32.mrb[0].mxu0
    %v4399 = vadd.f32 0.0, %v4398
    %v4400 = vpop.f32.mrb[0].mxu0
    %v4401 = vadd.f32 0.0, %v4400
    %4402 = vmatprep.mubr.f32.mxu0 0.0
    %4403 = vmatmul.mubr.f32.gmra.mrb[0].mxu0 %v4165
    %v4404 = vpop.f32.mrb[0].mxu0
    %v4405 = vadd.f32 0.0, %v4404
    %v4406 = vpop.f32.mrb[0].mxu0
    %v4407 = vadd.f32 0.0, %v4406
    %4408 = vmatprep.mubr.f32.mxu0 0.0
    %4409 = vmatmul.mubr.f32.gmra.mrb[0].mxu0 %v4168
    %v4410 = vpop.f32.mrb[0].mxu0
    %v4411 = vadd.f32 0.0, %v4410
    %v4412 = vpop.f32.mrb[0].mxu0
    %v4413 = vadd.f32 0.0, %v4412
    %4414 = vmatprep.mubr.f32.mxu0 0.0
    %4415 = vmatmul.mubr.f32.gmra.mrb[0].mxu0 %v4171
    %v4416 = vpop.f32.mrb[0].mxu0
    %v4417 = vadd.f32 0.0, %v4416
    %v4418 = vpop.f32.mrb[0].mxu0
    %v4419 = vadd.f32 0.0, %v4418
    %4420 = vmatprep.mubr.f32.mxu0 0.0
    %4421 = vmatmul.mubr.f32.gmra.mrb[0].mxu0 %v4174
    %v4422 = vpop.f32.mrb[0].mxu0
    %v4423 = vadd.f32 0.0, %v4422
    %v4424 = vpop.f32.mrb[0].mxu0
    %v4425 = vadd.f32 0.0, %v4424
    %4426 = vmatprep.mubr.f32.mxu0 0.0
    %4427 = vmatmul.mubr.f32.gmra.mrb[0].mxu0 %v4177
    %v4428 = vpop.f32.mrb[0].mxu0
    %v4429 = vadd.f32 0.0, %v4428
    %v4430 = vpop.f32.mrb[0].mxu0
    %v4431 = vadd.f32 0.0, %v4430
    %4432 = vmatprep.mubr.f32.mxu0 0.0
    %4433 = vmatmul.mubr.f32.gmra.mrb[0].mxu0 %v4180
    %v4434 = vpop.f32.mrb[0].mxu0
    %v4435 = vadd.f32 0.0, %v4434
    %v4436 = vpop.f32.mrb[0].mxu0
    %v4437 = vadd.f32 0.0, %v4436
    %4438 = vmatprep.mubr.f32.mxu0 0.0
    %4439 = vmatmul.mubr.f32.gmra.mrb[0].mxu0 %v4183
    %v4440 = vpop.f32.mrb[0].mxu0
    %v4441 = vadd.f32 0.0, %v4440
    %v4442 = vpop.f32.mrb[0].mxu0
    %v4443 = vadd.f32 0.0, %v4442
    %4444 = vmatprep.mubr.f32.mxu0 0.0
    %4445 = vmatmul.mubr.f32.gmra.mrb[0].mxu0 %v4186
    %v4446 = vpop.f32.mrb[0].mxu0
    %v4447 = vadd.f32 0.0, %v4446
    %v4448 = vpop.f32.mrb[0].mxu0
    %v4449 = vadd.f32 0.0, %v4448
    %4450 = vdwg.mxu0
    %v4451 = vadd.f32 %v3847, %v4261
    %v4452 = vadd.f32 %v3849, %v4263
    %v4453 = vadd.f32 %v3853, %v4267
    %v4454 = vadd.f32 %v3855, %v4269
    %v4455 = vadd.f32 %v3859, %v4273
    %v4456 = vadd.f32 %v3861, %v4275
    %v4457 = vadd.f32 %v3865, %v4279
    %v4458 = vadd.f32 %v3867, %v4281
    %v4459 = vadd.f32 %v3871, %v4285
    %v4460 = vadd.f32 %v3873, %v4287
    %v4461 = vadd.f32 %v3877, %v4291
    %v4462 = vadd.f32 %v3879, %v4293
    %v4463 = vadd.f32 %v3883, %v4297
    %v4464 = vadd.f32 %v3885, %v4299
    %v4465 = vadd.f32 %v3889, %v4303
    %v4466 = vadd.f32 %v3891, %v4305
    %v4467 = vadd.f32 %v3895, %v4309
    %v4468 = vadd.f32 %v3897, %v4311
    %v4469 = vadd.f32 %v3901, %v4315
    %v4470 = vadd.f32 %v3903, %v4317
    %v4471 = vadd.f32 %v3907, %v4321
    %v4472 = vadd.f32 %v3909, %v4323
    %v4473 = vadd.f32 %v3913, %v4327
    %v4474 = vadd.f32 %v3915, %v4329
    %v4475 = vadd.f32 %v3919, %v4333
    %v4476 = vadd.f32 %v3921, %v4335
    %v4477 = vadd.f32 %v3925, %v4339
    %v4478 = vadd.f32 %v3927, %v4341
    %v4479 = vadd.f32 %v3931, %v4345
    %v4480 = vadd.f32 %v3933, %v4347
    %v4481 = vadd.f32 %v3937, %v4351
    %v4482 = vadd.f32 %v3939, %v4353
    %v4483 = vadd.f32 %v3943, %v4357
    %v4484 = vadd.f32 %v3945, %v4359
    %v4485 = vadd.f32 %v3949, %v4363
    %v4486 = vadd.f32 %v3951, %v4365
    %v4487 = vadd.f32 %v3955, %v4369
    %v4488 = vadd.f32 %v3957, %v4371
    %v4489 = vadd.f32 %v3961, %v4375
    %v4490 = vadd.f32 %v3963, %v4377
    %v4491 = vadd.f32 %v3967, %v4381
    %v4492 = vadd.f32 %v3969, %v4383
    %v4493 = vadd.f32 %v3973, %v4387
    %v4494 = vadd.f32 %v3975, %v4389
    %v4495 = vadd.f32 %v3979, %v4393
    %v4496 = vadd.f32 %v3981, %v4395
    %v4497 = vadd.f32 %v3985, %v4399
    %v4498 = vadd.f32 %v3987, %v4401
    %v4499 = vadd.f32 %v3991, %v4405
    %v4500 = vadd.f32 %v3993, %v4407
    %v4501 = vadd.f32 %v3997, %v4411
    %v4502 = vadd.f32 %v3999, %v4413
    %v4503 = vadd.f32 %v4003, %v4417
    %v4504 = vadd.f32 %v4005, %v4419
    %v4505 = vadd.f32 %v4009, %v4423
    %v4506 = vadd.f32 %v4011, %v4425
    %v4507 = vadd.f32 %v4015, %v4429
    %v4508 = vadd.f32 %v4017, %v4431
    %v4509 = vadd.f32 %v4021, %v4435
    %v4510 = vadd.f32 %v4023, %v4437
    %v4511 = vadd.f32 %v4027, %v4441
    %v4512 = vadd.f32 %v4029, %v4443
    %v4513 = vadd.f32 %v4033, %v4447
    %v4514 = vadd.f32 %v4035, %v4449
    %v4515 = vld [vmem:[#allocation3 + $0x6] sm:$0xff]
    %v4516 = vld [vmem:[#allocation3 + $0xe] sm:$0xff]
    %v4517 = vld [vmem:[#allocation3 + $0x16] sm:$0xff]
    %v4518 = vld [vmem:[#allocation3 + $0x1e] sm:$0xff]
    %v4519 = vld [vmem:[#allocation3 + $0x26] sm:$0xff]
    %v4520 = vld [vmem:[#allocation3 + $0x2e] sm:$0xff]
    %v4521 = vld [vmem:[#allocation3 + $0x36] sm:$0xff]
    %v4522 = vld [vmem:[#allocation3 + $0x3e] sm:$0xff]
    %v4523 = vld [vmem:[#allocation3 + $0x46] sm:$0xff]
    %v4524 = vld [vmem:[#allocation3 + $0x4e] sm:$0xff]
    %v4525 = vld [vmem:[#allocation3 + $0x56] sm:$0xff]
    %v4526 = vld [vmem:[#allocation3 + $0x5e] sm:$0xff]
    %v4527 = vld [vmem:[#allocation3 + $0x66] sm:$0xff]
    %v4528 = vld [vmem:[#allocation3 + $0x6e] sm:$0xff]
    %v4529 = vld [vmem:[#allocation3 + $0x76] sm:$0xff]
    %v4530 = vld [vmem:[#allocation3 + $0x7e] sm:$0xff]
    %v4531 = vld [vmem:[#allocation3 + $0x86] sm:$0xff]
    %v4532 = vld [vmem:[#allocation3 + $0x8e] sm:$0xff]
    %v4533 = vld [vmem:[#allocation3 + $0x96] sm:$0xff]
    %v4534 = vld [vmem:[#allocation3 + $0x9e] sm:$0xff]
    %v4535 = vld [vmem:[#allocation3 + $0xa6] sm:$0xff]
    %v4536 = vld [vmem:[#allocation3 + $0xae] sm:$0xff]
    %v4537 = vld [vmem:[#allocation3 + $0xb6] sm:$0xff]
    %v4538 = vld [vmem:[#allocation3 + $0xbe] sm:$0xff]
    %v4539 = vld [vmem:[#allocation3 + $0xc6] sm:$0xff]
    %v4540 = vld [vmem:[#allocation3 + $0xce] sm:$0xff]
    %v4541 = vld [vmem:[#allocation3 + $0xd6] sm:$0xff]
    %v4542 = vld [vmem:[#allocation3 + $0xde] sm:$0xff]
    %v4543 = vld [vmem:[#allocation3 + $0xe6] sm:$0xff]
    %v4544 = vld [vmem:[#allocation3 + $0xee] sm:$0xff]
    %v4545 = vld [vmem:[#allocation3 + $0xf6] sm:$0xff]
    %v4546 = vld [vmem:[#allocation3 + $0xfe] sm:$0xff]
    %s4547 = scalar_lea.vmem %s5, 528
    %v4548 = vld [vmem:[%s4547] sm:$0xff]
    %v4549 = vld [vmem:[%s4547 + $0x8] sm:$0xff]
    %v4550 = vld [vmem:[%s4547 + $0x10] sm:$0xff]
    %v4551 = vld [vmem:[%s4547 + $0x18] sm:$0xff]
    %v4552 = vld [vmem:[%s4547 + $0x20] sm:$0xff]
    %v4553 = vld [vmem:[%s4547 + $0x28] sm:$0xff]
    %v4554 = vld [vmem:[%s4547 + $0x30] sm:$0xff]
    %v4555 = vld [vmem:[%s4547 + $0x38] sm:$0xff]
    %v4556 = vld [vmem:[%s4547 + $0x40] sm:$0xff]
    %v4557 = vld [vmem:[%s4547 + $0x48] sm:$0xff]
    %v4558 = vld [vmem:[%s4547 + $0x50] sm:$0xff]
    %v4559 = vld [vmem:[%s4547 + $0x58] sm:$0xff]
    %v4560 = vld [vmem:[%s4547 + $0x60] sm:$0xff]
    %v4561 = vld [vmem:[%s4547 + $0x68] sm:$0xff]
    %v4562 = vld [vmem:[%s4547 + $0x70] sm:$0xff]
    %v4563 = vld [vmem:[%s4547 + $0x78] sm:$0xff]
    %v4564 = vld [vmem:[%s4547 + $0x80] sm:$0xff]
    %v4565 = vld [vmem:[%s4547 + $0x88] sm:$0xff]
    %v4566 = vld [vmem:[%s4547 + $0x90] sm:$0xff]
    %v4567 = vld [vmem:[%s4547 + $0x98] sm:$0xff]
    %v4568 = vld [vmem:[%s4547 + $0xa0] sm:$0xf]
    %v4569 = vld [vmem:[%s4547 + $0xa8] sm:$0xf]
    %v4571 = vsel %vm121, %v4515, 0
    %v4574 = vsel %vm121, %v4516, 0
    %v4577 = vsel %vm121, %v4517, 0
    %v4580 = vsel %vm121, %v4518, 0
    %v4583 = vsel %vm121, %v4519, 0
    %v4586 = vsel %vm121, %v4520, 0
    %v4589 = vsel %vm121, %v4521, 0
    %v4592 = vsel %vm121, %v4522, 0
    %v4595 = vsel %vm121, %v4523, 0
    %v4598 = vsel %vm121, %v4524, 0
    %v4601 = vsel %vm121, %v4525, 0
    %v4604 = vsel %vm121, %v4526, 0
    %v4607 = vsel %vm121, %v4527, 0
    %v4610 = vsel %vm121, %v4528, 0
    %v4613 = vsel %vm121, %v4529, 0
    %v4616 = vsel %vm121, %v4530, 0
    %v4619 = vsel %vm121, %v4531, 0
    %v4622 = vsel %vm121, %v4532, 0
    %v4625 = vsel %vm121, %v4533, 0
    %v4628 = vsel %vm121, %v4534, 0
    %v4631 = vsel %vm121, %v4535, 0
    %v4634 = vsel %vm121, %v4536, 0
    %v4637 = vsel %vm121, %v4537, 0
    %v4640 = vsel %vm121, %v4538, 0
    %v4643 = vsel %vm121, %v4539, 0
    %v4646 = vsel %vm121, %v4540, 0
    %v4649 = vsel %vm121, %v4541, 0
    %v4652 = vsel %vm121, %v4542, 0
    %v4655 = vsel %vm121, %v4543, 0
    %v4658 = vsel %vm121, %v4544, 0
    %v4661 = vsel %vm121, %v4545, 0
    %v4664 = vsel %vm121, %v4546, 0
    %v4667 = vsel %vm3414, %v4568, 0
    %v4670 = vsel %vm3414, %v4569, 0
    %4672 = vmatprep.subr.mxu0 %v4549
    %4673 = vmatpush1.msra.mxu0 %v4548
    %4674 = vmatprep.subr.mxu0 %v4551
    %4675 = vmatpush1.msra.mxu0 %v4550
    %4676 = vmatprep.subr.mxu0 %v4553
    %4677 = vmatpush1.msra.mxu0 %v4552
    %4678 = vmatprep.subr.mxu0 %v4555
    %4679 = vmatpush1.msra.mxu0 %v4554
    %4680 = vmatprep.subr.mxu0 %v4557
    %4681 = vmatpush1.msra.mxu0 %v4556
    %4682 = vmatprep.subr.mxu0 %v4559
    %4683 = vmatpush1.msra.mxu0 %v4558
    %4684 = vmatprep.subr.mxu0 %v4561
    %4685 = vmatpush1.msra.mxu0 %v4560
    %4686 = vmatprep.subr.mxu0 %v4563
    %4687 = vmatpush1.msra.mxu0 %v4562
    %4688 = vmatprep.subr.mxu0 %v4565
    %4689 = vmatpush1.msra.mxu0 %v4564
    %4690 = vmatprep.subr.mxu0 %v4567
    %4691 = vmatpush1.msra.mxu0 %v4566
    %4692 = vmatprep.subr.mxu0 %v4670
    %4693 = vmatpush1.msra.mxu0 %v4667
    %4694 = vmatprep.subr.mxu0 0.0
    %4695 = vmatpush1.msra.mxu0 0.0
    %4696 = vmatprep.subr.mxu0 0.0
    %4697 = vmatpush1.msra.mxu0 0.0
    %4698 = vmatprep.subr.mxu0 0.0
    %4699 = vmatpush1.msra.mxu0 0.0
    %4700 = vmatprep.subr.mxu0 0.0
    %4701 = vmatpush1.msra.mxu0 0.0
    %4702 = vmatprep.subr.mxu0 0.0
    %4703 = vmatpush1.msra.mxu0 0.0
    %4704 = vmatprep.subr.mxu0 0.0
    %4705 = vmatpush1.msra.mxu0 0.0
    %4706 = vmatprep.subr.mxu0 0.0
    %4707 = vmatpush1.msra.mxu0 0.0
    %4708 = vmatprep.subr.mxu0 0.0
    %4709 = vmatpush1.msra.mxu0 0.0
    %4710 = vmatprep.subr.mxu0 0.0
    %4711 = vmatpush1.msra.mxu0 0.0
    %4712 = vmatprep.subr.mxu0 0.0
    %4713 = vmatpush1.msra.mxu0 0.0
    %4714 = vmatprep.subr.mxu0 0.0
    %4715 = vmatpush1.msra.mxu0 0.0
    %4716 = vmatprep.subr.mxu0 0.0
    %4717 = vmatpush1.msra.mxu0 0.0
    %4718 = vmatprep.subr.mxu0 0.0
    %4719 = vmatpush1.msra.mxu0 0.0
    %4720 = vmatprep.subr.mxu0 0.0
    %4721 = vmatpush1.msra.mxu0 0.0
    %4722 = vmatprep.subr.mxu0 0.0
    %4723 = vmatpush1.msra.mxu0 0.0
    %4724 = vmatprep.subr.mxu0 0.0
    %4725 = vmatpush1.msra.mxu0 0.0
    %4726 = vmatprep.subr.mxu0 0.0
    %4727 = vmatpush1.msra.mxu0 0.0
    %4728 = vmatprep.subr.mxu0 0.0
    %4729 = vmatpush1.msra.mxu0 0.0
    %4730 = vmatprep.subr.mxu0 0.0
    %4731 = vmatpush1.msra.mxu0 0.0
    %4732 = vmatprep.subr.mxu0 0.0
    %4733 = vmatpush1.msra.mxu0 0.0
    %4734 = vmatprep.subr.mxu0 0.0
    %4735 = vmatpush1.msra.mxu0 0.0
    %4736 = vmatprep.mubr.f32.mxu0 0.0
    %4737 = vmatmul.mubr.f32.gmra.mrb[0].mxu0 %v4571
    %v4738 = vpop.f32.mrb[0].mxu0
    %v4739 = vadd.f32 0.0, %v4738
    %v4740 = vpop.f32.mrb[0].mxu0
    %v4741 = vadd.f32 0.0, %v4740
    %4742 = vmatprep.mubr.f32.mxu0 0.0
    %4743 = vmatmul.mubr.f32.gmra.mrb[0].mxu0 %v4574
    %v4744 = vpop.f32.mrb[0].mxu0
    %v4745 = vadd.f32 0.0, %v4744
    %v4746 = vpop.f32.mrb[0].mxu0
    %v4747 = vadd.f32 0.0, %v4746
    %4748 = vmatprep.mubr.f32.mxu0 0.0
    %4749 = vmatmul.mubr.f32.gmra.mrb[0].mxu0 %v4577
    %v4750 = vpop.f32.mrb[0].mxu0
    %v4751 = vadd.f32 0.0, %v4750
    %v4752 = vpop.f32.mrb[0].mxu0
    %v4753 = vadd.f32 0.0, %v4752
    %4754 = vmatprep.mubr.f32.mxu0 0.0
    %4755 = vmatmul.mubr.f32.gmra.mrb[0].mxu0 %v4580
    %v4756 = vpop.f32.mrb[0].mxu0
    %v4757 = vadd.f32 0.0, %v4756
    %v4758 = vpop.f32.mrb[0].mxu0
    %v4759 = vadd.f32 0.0, %v4758
    %4760 = vmatprep.mubr.f32.mxu0 0.0
    %4761 = vmatmul.mubr.f32.gmra.mrb[0].mxu0 %v4583
    %v4762 = vpop.f32.mrb[0].mxu0
    %v4763 = vadd.f32 0.0, %v4762
    %v4764 = vpop.f32.mrb[0].mxu0
    %v4765 = vadd.f32 0.0, %v4764
    %4766 = vmatprep.mubr.f32.mxu0 0.0
    %4767 = vmatmul.mubr.f32.gmra.mrb[0].mxu0 %v4586
    %v4768 = vpop.f32.mrb[0].mxu0
    %v4769 = vadd.f32 0.0, %v4768
    %v4770 = vpop.f32.mrb[0].mxu0
    %v4771 = vadd.f32 0.0, %v4770
    %4772 = vmatprep.mubr.f32.mxu0 0.0
    %4773 = vmatmul.mubr.f32.gmra.mrb[0].mxu0 %v4589
    %v4774 = vpop.f32.mrb[0].mxu0
    %v4775 = vadd.f32 0.0, %v4774
    %v4776 = vpop.f32.mrb[0].mxu0
    %v4777 = vadd.f32 0.0, %v4776
    %4778 = vmatprep.mubr.f32.mxu0 0.0
    %4779 = vmatmul.mubr.f32.gmra.mrb[0].mxu0 %v4592
    %v4780 = vpop.f32.mrb[0].mxu0
    %v4781 = vadd.f32 0.0, %v4780
    %v4782 = vpop.f32.mrb[0].mxu0
    %v4783 = vadd.f32 0.0, %v4782
    %4784 = vmatprep.mubr.f32.mxu0 0.0
    %4785 = vmatmul.mubr.f32.gmra.mrb[0].mxu0 %v4595
    %v4786 = vpop.f32.mrb[0].mxu0
    %v4787 = vadd.f32 0.0, %v4786
    %v4788 = vpop.f32.mrb[0].mxu0
    %v4789 = vadd.f32 0.0, %v4788
    %4790 = vmatprep.mubr.f32.mxu0 0.0
    %4791 = vmatmul.mubr.f32.gmra.mrb[0].mxu0 %v4598
    %v4792 = vpop.f32.mrb[0].mxu0
    %v4793 = vadd.f32 0.0, %v4792
    %v4794 = vpop.f32.mrb[0].mxu0
    %v4795 = vadd.f32 0.0, %v4794
    %4796 = vmatprep.mubr.f32.mxu0 0.0
    %4797 = vmatmul.mubr.f32.gmra.mrb[0].mxu0 %v4601
    %v4798 = vpop.f32.mrb[0].mxu0
    %v4799 = vadd.f32 0.0, %v4798
    %v4800 = vpop.f32.mrb[0].mxu0
    %v4801 = vadd.f32 0.0, %v4800
    %4802 = vmatprep.mubr.f32.mxu0 0.0
    %4803 = vmatmul.mubr.f32.gmra.mrb[0].mxu0 %v4604
    %v4804 = vpop.f32.mrb[0].mxu0
    %v4805 = vadd.f32 0.0, %v4804
    %v4806 = vpop.f32.mrb[0].mxu0
    %v4807 = vadd.f32 0.0, %v4806
    %4808 = vmatprep.mubr.f32.mxu0 0.0
    %4809 = vmatmul.mubr.f32.gmra.mrb[0].mxu0 %v4607
    %v4810 = vpop.f32.mrb[0].mxu0
    %v4811 = vadd.f32 0.0, %v4810
    %v4812 = vpop.f32.mrb[0].mxu0
    %v4813 = vadd.f32 0.0, %v4812
    %4814 = vmatprep.mubr.f32.mxu0 0.0
    %4815 = vmatmul.mubr.f32.gmra.mrb[0].mxu0 %v4610
    %v4816 = vpop.f32.mrb[0].mxu0
    %v4817 = vadd.f32 0.0, %v4816
    %v4818 = vpop.f32.mrb[0].mxu0
    %v4819 = vadd.f32 0.0, %v4818
    %4820 = vmatprep.mubr.f32.mxu0 0.0
    %4821 = vmatmul.mubr.f32.gmra.mrb[0].mxu0 %v4613
    %v4822 = vpop.f32.mrb[0].mxu0
    %v4823 = vadd.f32 0.0, %v4822
    %v4824 = vpop.f32.mrb[0].mxu0
    %v4825 = vadd.f32 0.0, %v4824
    %4826 = vmatprep.mubr.f32.mxu0 0.0
    %4827 = vmatmul.mubr.f32.gmra.mrb[0].mxu0 %v4616
    %v4828 = vpop.f32.mrb[0].mxu0
    %v4829 = vadd.f32 0.0, %v4828
    %v4830 = vpop.f32.mrb[0].mxu0
    %v4831 = vadd.f32 0.0, %v4830
    %4832 = vmatprep.mubr.f32.mxu0 0.0
    %4833 = vmatmul.mubr.f32.gmra.mrb[0].mxu0 %v4619
    %v4834 = vpop.f32.mrb[0].mxu0
    %v4835 = vadd.f32 0.0, %v4834
    %v4836 = vpop.f32.mrb[0].mxu0
    %v4837 = vadd.f32 0.0, %v4836
    %4838 = vmatprep.mubr.f32.mxu0 0.0
    %4839 = vmatmul.mubr.f32.gmra.mrb[0].mxu0 %v4622
    %v4840 = vpop.f32.mrb[0].mxu0
    %v4841 = vadd.f32 0.0, %v4840
    %v4842 = vpop.f32.mrb[0].mxu0
    %v4843 = vadd.f32 0.0, %v4842
    %4844 = vmatprep.mubr.f32.mxu0 0.0
    %4845 = vmatmul.mubr.f32.gmra.mrb[0].mxu0 %v4625
    %v4846 = vpop.f32.mrb[0].mxu0
    %v4847 = vadd.f32 0.0, %v4846
    %v4848 = vpop.f32.mrb[0].mxu0
    %v4849 = vadd.f32 0.0, %v4848
    %4850 = vmatprep.mubr.f32.mxu0 0.0
    %4851 = vmatmul.mubr.f32.gmra.mrb[0].mxu0 %v4628
    %v4852 = vpop.f32.mrb[0].mxu0
    %v4853 = vadd.f32 0.0, %v4852
    %v4854 = vpop.f32.mrb[0].mxu0
    %v4855 = vadd.f32 0.0, %v4854
    %4856 = vmatprep.mubr.f32.mxu0 0.0
    %4857 = vmatmul.mubr.f32.gmra.mrb[0].mxu0 %v4631
    %v4858 = vpop.f32.mrb[0].mxu0
    %v4859 = vadd.f32 0.0, %v4858
    %v4860 = vpop.f32.mrb[0].mxu0
    %v4861 = vadd.f32 0.0, %v4860
    %4862 = vmatprep.mubr.f32.mxu0 0.0
    %4863 = vmatmul.mubr.f32.gmra.mrb[0].mxu0 %v4634
    %v4864 = vpop.f32.mrb[0].mxu0
    %v4865 = vadd.f32 0.0, %v4864
    %v4866 = vpop.f32.mrb[0].mxu0
    %v4867 = vadd.f32 0.0, %v4866
    %4868 = vmatprep.mubr.f32.mxu0 0.0
    %4869 = vmatmul.mubr.f32.gmra.mrb[0].mxu0 %v4637
    %v4870 = vpop.f32.mrb[0].mxu0
    %v4871 = vadd.f32 0.0, %v4870
    %v4872 = vpop.f32.mrb[0].mxu0
    %v4873 = vadd.f32 0.0, %v4872
    %4874 = vmatprep.mubr.f32.mxu0 0.0
    %4875 = vmatmul.mubr.f32.gmra.mrb[0].mxu0 %v4640
    %v4876 = vpop.f32.mrb[0].mxu0
    %v4877 = vadd.f32 0.0, %v4876
    %v4878 = vpop.f32.mrb[0].mxu0
    %v4879 = vadd.f32 0.0, %v4878
    %4880 = vmatprep.mubr.f32.mxu0 0.0
    %4881 = vmatmul.mubr.f32.gmra.mrb[0].mxu0 %v4643
    %v4882 = vpop.f32.mrb[0].mxu0
    %v4883 = vadd.f32 0.0, %v4882
    %v4884 = vpop.f32.mrb[0].mxu0
    %v4885 = vadd.f32 0.0, %v4884
    %4886 = vmatprep.mubr.f32.mxu0 0.0
    %4887 = vmatmul.mubr.f32.gmra.mrb[0].mxu0 %v4646
    %v4888 = vpop.f32.mrb[0].mxu0
    %v4889 = vadd.f32 0.0, %v4888
    %v4890 = vpop.f32.mrb[0].mxu0
    %v4891 = vadd.f32 0.0, %v4890
    %4892 = vmatprep.mubr.f32.mxu0 0.0
    %4893 = vmatmul.mubr.f32.gmra.mrb[0].mxu0 %v4649
    %v4894 = vpop.f32.mrb[0].mxu0
    %v4895 = vadd.f32 0.0, %v4894
    %v4896 = vpop.f32.mrb[0].mxu0
    %v4897 = vadd.f32 0.0, %v4896
    %4898 = vmatprep.mubr.f32.mxu0 0.0
    %4899 = vmatmul.mubr.f32.gmra.mrb[0].mxu0 %v4652
    %v4900 = vpop.f32.mrb[0].mxu0
    %v4901 = vadd.f32 0.0, %v4900
    %v4902 = vpop.f32.mrb[0].mxu0
    %v4903 = vadd.f32 0.0, %v4902
    %4904 = vmatprep.mubr.f32.mxu0 0.0
    %4905 = vmatmul.mubr.f32.gmra.mrb[0].mxu0 %v4655
    %v4906 = vpop.f32.mrb[0].mxu0
    %v4907 = vadd.f32 0.0, %v4906
    %v4908 = vpop.f32.mrb[0].mxu0
    %v4909 = vadd.f32 0.0, %v4908
    %4910 = vmatprep.mubr.f32.mxu0 0.0
    %4911 = vmatmul.mubr.f32.gmra.mrb[0].mxu0 %v4658
    %v4912 = vpop.f32.mrb[0].mxu0
    %v4913 = vadd.f32 0.0, %v4912
    %v4914 = vpop.f32.mrb[0].mxu0
    %v4915 = vadd.f32 0.0, %v4914
    %4916 = vmatprep.mubr.f32.mxu0 0.0
    %4917 = vmatmul.mubr.f32.gmra.mrb[0].mxu0 %v4661
    %v4918 = vpop.f32.mrb[0].mxu0
    %v4919 = vadd.f32 0.0, %v4918
    %v4920 = vpop.f32.mrb[0].mxu0
    %v4921 = vadd.f32 0.0, %v4920
    %4922 = vmatprep.mubr.f32.mxu0 0.0
    %4923 = vmatmul.mubr.f32.gmra.mrb[0].mxu0 %v4664
    %v4924 = vpop.f32.mrb[0].mxu0
    %v4925 = vadd.f32 0.0, %v4924
    %v4926 = vpop.f32.mrb[0].mxu0
    %v4927 = vadd.f32 0.0, %v4926
    %4928 = vdwg.mxu0
    %v4929 = vadd.f32 %v4451, %v4739
    %v4930 = vadd.f32 %v4452, %v4741
    %v4931 = vadd.f32 %v4453, %v4745
    %v4932 = vadd.f32 %v4454, %v4747
    %v4933 = vadd.f32 %v4455, %v4751
    %v4934 = vadd.f32 %v4456, %v4753
    %v4935 = vadd.f32 %v4457, %v4757
    %v4936 = vadd.f32 %v4458, %v4759
    %v4937 = vadd.f32 %v4459, %v4763
    %v4938 = vadd.f32 %v4460, %v4765
    %v4939 = vadd.f32 %v4461, %v4769
    %v4940 = vadd.f32 %v4462, %v4771
    %v4941 = vadd.f32 %v4463, %v4775
    %v4942 = vadd.f32 %v4464, %v4777
    %v4943 = vadd.f32 %v4465, %v4781
    %v4944 = vadd.f32 %v4466, %v4783
    %v4945 = vadd.f32 %v4467, %v4787
    %v4946 = vadd.f32 %v4468, %v4789
    %v4947 = vadd.f32 %v4469, %v4793
    %v4948 = vadd.f32 %v4470, %v4795
    %v4949 = vadd.f32 %v4471, %v4799
    %v4950 = vadd.f32 %v4472, %v4801
    %v4951 = vadd.f32 %v4473, %v4805
    %v4952 = vadd.f32 %v4474, %v4807
    %v4953 = vadd.f32 %v4475, %v4811
    %v4954 = vadd.f32 %v4476, %v4813
    %v4955 = vadd.f32 %v4477, %v4817
    %v4956 = vadd.f32 %v4478, %v4819
    %v4957 = vadd.f32 %v4479, %v4823
    %v4958 = vadd.f32 %v4480, %v4825
    %v4959 = vadd.f32 %v4481, %v4829
    %v4960 = vadd.f32 %v4482, %v4831
    %v4961 = vadd.f32 %v4483, %v4835
    %v4962 = vadd.f32 %v4484, %v4837
    %v4963 = vadd.f32 %v4485, %v4841
    %v4964 = vadd.f32 %v4486, %v4843
    %v4965 = vadd.f32 %v4487, %v4847
    %v4966 = vadd.f32 %v4488, %v4849
    %v4967 = vadd.f32 %v4489, %v4853
    %v4968 = vadd.f32 %v4490, %v4855
    %v4969 = vadd.f32 %v4491, %v4859
    %v4970 = vadd.f32 %v4492, %v4861
    %v4971 = vadd.f32 %v4493, %v4865
    %v4972 = vadd.f32 %v4494, %v4867
    %v4973 = vadd.f32 %v4495, %v4871
    %v4974 = vadd.f32 %v4496, %v4873
    %v4975 = vadd.f32 %v4497, %v4877
    %v4976 = vadd.f32 %v4498, %v4879
    %v4977 = vadd.f32 %v4499, %v4883
    %v4978 = vadd.f32 %v4500, %v4885
    %v4979 = vadd.f32 %v4501, %v4889
    %v4980 = vadd.f32 %v4502, %v4891
    %v4981 = vadd.f32 %v4503, %v4895
    %v4982 = vadd.f32 %v4504, %v4897
    %v4983 = vadd.f32 %v4505, %v4901
    %v4984 = vadd.f32 %v4506, %v4903
    %v4985 = vadd.f32 %v4507, %v4907
    %v4986 = vadd.f32 %v4508, %v4909
    %v4987 = vadd.f32 %v4509, %v4913
    %v4988 = vadd.f32 %v4510, %v4915
    %v4989 = vadd.f32 %v4511, %v4919
    %v4990 = vadd.f32 %v4512, %v4921
    %v4991 = vadd.f32 %v4513, %v4925
    %v4992 = vadd.f32 %v4514, %v4927
    %v4993 = vld [vmem:[#allocation3 + $0x8] sm:$0xff]
    %v4994 = vld [vmem:[#allocation3 + $0x10] sm:$0xff]
    %v4995 = vld [vmem:[#allocation3 + $0x18] sm:$0xff]
    %v4996 = vld [vmem:[#allocation3 + $0x20] sm:$0xff]
    %v4997 = vld [vmem:[#allocation3 + $0x28] sm:$0xff]
    %v4998 = vld [vmem:[#allocation3 + $0x30] sm:$0xff]
    %v4999 = vld [vmem:[#allocation3 + $0x38] sm:$0xff]
    %v5000 = vld [vmem:[#allocation3 + $0x40] sm:$0xff]
    %v5001 = vld [vmem:[#allocation3 + $0x48] sm:$0xff]
    %v5002 = vld [vmem:[#allocation3 + $0x50] sm:$0xff]
    %v5003 = vld [vmem:[#allocation3 + $0x58] sm:$0xff]
    %v5004 = vld [vmem:[#allocation3 + $0x60] sm:$0xff]
    %v5005 = vld [vmem:[#allocation3 + $0x68] sm:$0xff]
    %v5006 = vld [vmem:[#allocation3 + $0x70] sm:$0xff]
    %v5007 = vld [vmem:[#allocation3 + $0x78] sm:$0xff]
    %v5008 = vld [vmem:[#allocation3 + $0x80] sm:$0xff]
    %v5009 = vld [vmem:[#allocation3 + $0x88] sm:$0xff]
    %v5010 = vld [vmem:[#allocation3 + $0x90] sm:$0xff]
    %v5011 = vld [vmem:[#allocation3 + $0x98] sm:$0xff]
    %v5012 = vld [vmem:[#allocation3 + $0xa0] sm:$0xff]
    %v5013 = vld [vmem:[#allocation3 + $0xa8] sm:$0xff]
    %v5014 = vld [vmem:[#allocation3 + $0xb0] sm:$0xff]
    %v5015 = vld [vmem:[#allocation3 + $0xb8] sm:$0xff]
    %v5016 = vld [vmem:[#allocation3 + $0xc0] sm:$0xff]
    %v5017 = vld [vmem:[#allocation3 + $0xc8] sm:$0xff]
    %v5018 = vld [vmem:[#allocation3 + $0xd0] sm:$0xff]
    %v5019 = vld [vmem:[#allocation3 + $0xd8] sm:$0xff]
    %v5020 = vld [vmem:[#allocation3 + $0xe0] sm:$0xff]
    %v5021 = vld [vmem:[#allocation3 + $0xe8] sm:$0xff]
    %v5022 = vld [vmem:[#allocation3 + $0xf0] sm:$0xff]
    %v5023 = vld [vmem:[#allocation3 + $0xf8] sm:$0xff]
    %v5024 = vld [vmem:[#allocation3 + $0x100] sm:$0xff]
    %s5025 = scalar_lea.vmem %s5, 704
    %v5026 = vld [vmem:[%s5025] sm:$0xff]
    %v5027 = vld [vmem:[%s5025 + $0x8] sm:$0xff]
    %v5028 = vld [vmem:[%s5025 + $0x10] sm:$0xff]
    %v5029 = vld [vmem:[%s5025 + $0x18] sm:$0xff]
    %v5030 = vld [vmem:[%s5025 + $0x20] sm:$0xff]
    %v5031 = vld [vmem:[%s5025 + $0x28] sm:$0xff]
    %v5032 = vld [vmem:[%s5025 + $0x30] sm:$0xff]
    %v5033 = vld [vmem:[%s5025 + $0x38] sm:$0xff]
    %v5034 = vld [vmem:[%s5025 + $0x40] sm:$0xff]
    %v5035 = vld [vmem:[%s5025 + $0x48] sm:$0xff]
    %v5036 = vld [vmem:[%s5025 + $0x50] sm:$0xff]
    %v5037 = vld [vmem:[%s5025 + $0x58] sm:$0xff]
    %v5038 = vld [vmem:[%s5025 + $0x60] sm:$0xff]
    %v5039 = vld [vmem:[%s5025 + $0x68] sm:$0xff]
    %v5040 = vld [vmem:[%s5025 + $0x70] sm:$0xff]
    %v5041 = vld [vmem:[%s5025 + $0x78] sm:$0xff]
    %v5042 = vld [vmem:[%s5025 + $0x80] sm:$0xff]
    %v5043 = vld [vmem:[%s5025 + $0x88] sm:$0xff]
    %v5044 = vld [vmem:[%s5025 + $0x90] sm:$0xff]
    %v5045 = vld [vmem:[%s5025 + $0x98] sm:$0xff]
    %v5046 = vld [vmem:[%s5025 + $0xa0] sm:$0xf]
    %v5047 = vld [vmem:[%s5025 + $0xa8] sm:$0xf]
    %v5049 = vsel %vm121, %v4993, 0
    %v5052 = vsel %vm121, %v4994, 0
    %v5055 = vsel %vm121, %v4995, 0
    %v5058 = vsel %vm121, %v4996, 0
    %v5061 = vsel %vm121, %v4997, 0
    %v5064 = vsel %vm121, %v4998, 0
    %v5067 = vsel %vm121, %v4999, 0
    %v5070 = vsel %vm121, %v5000, 0
    %v5073 = vsel %vm121, %v5001, 0
    %v5076 = vsel %vm121, %v5002, 0
    %v5079 = vsel %vm121, %v5003, 0
    %v5082 = vsel %vm121, %v5004, 0
    %v5085 = vsel %vm121, %v5005, 0
    %v5088 = vsel %vm121, %v5006, 0
    %v5091 = vsel %vm121, %v5007, 0
    %v5094 = vsel %vm121, %v5008, 0
    %v5097 = vsel %vm121, %v5009, 0
    %v5100 = vsel %vm121, %v5010, 0
    %v5103 = vsel %vm121, %v5011, 0
    %v5106 = vsel %vm121, %v5012, 0
    %v5109 = vsel %vm121, %v5013, 0
    %v5112 = vsel %vm121, %v5014, 0
    %v5115 = vsel %vm121, %v5015, 0
    %v5118 = vsel %vm121, %v5016, 0
    %v5121 = vsel %vm121, %v5017, 0
    %v5124 = vsel %vm121, %v5018, 0
    %v5127 = vsel %vm121, %v5019, 0
    %v5130 = vsel %vm121, %v5020, 0
    %v5133 = vsel %vm121, %v5021, 0
    %v5136 = vsel %vm121, %v5022, 0
    %v5139 = vsel %vm121, %v5023, 0
    %v5142 = vsel %vm121, %v5024, 0
    %v5145 = vsel %vm3414, %v5046, 0
    %v5148 = vsel %vm3414, %v5047, 0
    %5150 = vmatprep.subr.mxu0 %v5027
    %5151 = vmatpush1.msra.mxu0 %v5026
    %5152 = vmatprep.subr.mxu0 %v5029
    %5153 = vmatpush1.msra.mxu0 %v5028
    %5154 = vmatprep.subr.mxu0 %v5031
    %5155 = vmatpush1.msra.mxu0 %v5030
    %5156 = vmatprep.subr.mxu0 %v5033
    %5157 = vmatpush1.msra.mxu0 %v5032
    %5158 = vmatprep.subr.mxu0 %v5035
    %5159 = vmatpush1.msra.mxu0 %v5034
    %5160 = vmatprep.subr.mxu0 %v5037
    %5161 = vmatpush1.msra.mxu0 %v5036
    %5162 = vmatprep.subr.mxu0 %v5039
    %5163 = vmatpush1.msra.mxu0 %v5038
    %5164 = vmatprep.subr.mxu0 %v5041
    %5165 = vmatpush1.msra.mxu0 %v5040
    %5166 = vmatprep.subr.mxu0 %v5043
    %5167 = vmatpush1.msra.mxu0 %v5042
    %5168 = vmatprep.subr.mxu0 %v5045
    %5169 = vmatpush1.msra.mxu0 %v5044
    %5170 = vmatprep.subr.mxu0 %v5148
    %5171 = vmatpush1.msra.mxu0 %v5145
    %5172 = vmatprep.subr.mxu0 0.0
    %5173 = vmatpush1.msra.mxu0 0.0
    %5174 = vmatprep.subr.mxu0 0.0
    %5175 = vmatpush1.msra.mxu0 0.0
    %5176 = vmatprep.subr.mxu0 0.0
    %5177 = vmatpush1.msra.mxu0 0.0
    %5178 = vmatprep.subr.mxu0 0.0
    %5179 = vmatpush1.msra.mxu0 0.0
    %5180 = vmatprep.subr.mxu0 0.0
    %5181 = vmatpush1.msra.mxu0 0.0
    %5182 = vmatprep.subr.mxu0 0.0
    %5183 = vmatpush1.msra.mxu0 0.0
    %5184 = vmatprep.subr.mxu0 0.0
    %5185 = vmatpush1.msra.mxu0 0.0
    %5186 = vmatprep.subr.mxu0 0.0
    %5187 = vmatpush1.msra.mxu0 0.0
    %5188 = vmatprep.subr.mxu0 0.0
    %5189 = vmatpush1.msra.mxu0 0.0
    %5190 = vmatprep.subr.mxu0 0.0
    %5191 = vmatpush1.msra.mxu0 0.0
    %5192 = vmatprep.subr.mxu0 0.0
    %5193 = vmatpush1.msra.mxu0 0.0
    %5194 = vmatprep.subr.mxu0 0.0
    %5195 = vmatpush1.msra.mxu0 0.0
    %5196 = vmatprep.subr.mxu0 0.0
    %5197 = vmatpush1.msra.mxu0 0.0
    %5198 = vmatprep.subr.mxu0 0.0
    %5199 = vmatpush1.msra.mxu0 0.0
    %5200 = vmatprep.subr.mxu0 0.0
    %5201 = vmatpush1.msra.mxu0 0.0
    %5202 = vmatprep.subr.mxu0 0.0
    %5203 = vmatpush1.msra.mxu0 0.0
    %5204 = vmatprep.subr.mxu0 0.0
    %5205 = vmatpush1.msra.mxu0 0.0
    %5206 = vmatprep.subr.mxu0 0.0
    %5207 = vmatpush1.msra.mxu0 0.0
    %5208 = vmatprep.subr.mxu0 0.0
    %5209 = vmatpush1.msra.mxu0 0.0
    %5210 = vmatprep.subr.mxu0 0.0
    %5211 = vmatpush1.msra.mxu0 0.0
    %5212 = vmatprep.subr.mxu0 0.0
    %5213 = vmatpush1.msra.mxu0 0.0
    %5214 = vmatprep.mubr.f32.mxu0 0.0
    %5215 = vmatmul.mubr.f32.gmra.mrb[0].mxu0 %v5049
    %v5216 = vpop.f32.mrb[0].mxu0
    %v5217 = vadd.f32 0.0, %v5216
    %v5218 = vpop.f32.mrb[0].mxu0
    %v5219 = vadd.f32 0.0, %v5218
    %5220 = vmatprep.mubr.f32.mxu0 0.0
    %5221 = vmatmul.mubr.f32.gmra.mrb[0].mxu0 %v5052
    %v5222 = vpop.f32.mrb[0].mxu0
    %v5223 = vadd.f32 0.0, %v5222
    %v5224 = vpop.f32.mrb[0].mxu0
    %v5225 = vadd.f32 0.0, %v5224
    %5226 = vmatprep.mubr.f32.mxu0 0.0
    %5227 = vmatmul.mubr.f32.gmra.mrb[0].mxu0 %v5055
    %v5228 = vpop.f32.mrb[0].mxu0
    %v5229 = vadd.f32 0.0, %v5228
    %v5230 = vpop.f32.mrb[0].mxu0
    %v5231 = vadd.f32 0.0, %v5230
    %5232 = vmatprep.mubr.f32.mxu0 0.0
    %5233 = vmatmul.mubr.f32.gmra.mrb[0].mxu0 %v5058
    %v5234 = vpop.f32.mrb[0].mxu0
    %v5235 = vadd.f32 0.0, %v5234
    %v5236 = vpop.f32.mrb[0].mxu0
    %v5237 = vadd.f32 0.0, %v5236
    %5238 = vmatprep.mubr.f32.mxu0 0.0
    %5239 = vmatmul.mubr.f32.gmra.mrb[0].mxu0 %v5061
    %v5240 = vpop.f32.mrb[0].mxu0
    %v5241 = vadd.f32 0.0, %v5240
    %v5242 = vpop.f32.mrb[0].mxu0
    %v5243 = vadd.f32 0.0, %v5242
    %5244 = vmatprep.mubr.f32.mxu0 0.0
    %5245 = vmatmul.mubr.f32.gmra.mrb[0].mxu0 %v5064
    %v5246 = vpop.f32.mrb[0].mxu0
    %v5247 = vadd.f32 0.0, %v5246
    %v5248 = vpop.f32.mrb[0].mxu0
    %v5249 = vadd.f32 0.0, %v5248
    %5250 = vmatprep.mubr.f32.mxu0 0.0
    %5251 = vmatmul.mubr.f32.gmra.mrb[0].mxu0 %v5067
    %v5252 = vpop.f32.mrb[0].mxu0
    %v5253 = vadd.f32 0.0, %v5252
    %v5254 = vpop.f32.mrb[0].mxu0
    %v5255 = vadd.f32 0.0, %v5254
    %5256 = vmatprep.mubr.f32.mxu0 0.0
    %5257 = vmatmul.mubr.f32.gmra.mrb[0].mxu0 %v5070
    %v5258 = vpop.f32.mrb[0].mxu0
    %v5259 = vadd.f32 0.0, %v5258
    %v5260 = vpop.f32.mrb[0].mxu0
    %v5261 = vadd.f32 0.0, %v5260
    %5262 = vmatprep.mubr.f32.mxu0 0.0
    %5263 = vmatmul.mubr.f32.gmra.mrb[0].mxu0 %v5073
    %v5264 = vpop.f32.mrb[0].mxu0
    %v5265 = vadd.f32 0.0, %v5264
    %v5266 = vpop.f32.mrb[0].mxu0
    %v5267 = vadd.f32 0.0, %v5266
    %5268 = vmatprep.mubr.f32.mxu0 0.0
    %5269 = vmatmul.mubr.f32.gmra.mrb[0].mxu0 %v5076
    %v5270 = vpop.f32.mrb[0].mxu0
    %v5271 = vadd.f32 0.0, %v5270
    %v5272 = vpop.f32.mrb[0].mxu0
    %v5273 = vadd.f32 0.0, %v5272
    %5274 = vmatprep.mubr.f32.mxu0 0.0
    %5275 = vmatmul.mubr.f32.gmra.mrb[0].mxu0 %v5079
    %v5276 = vpop.f32.mrb[0].mxu0
    %v5277 = vadd.f32 0.0, %v5276
    %v5278 = vpop.f32.mrb[0].mxu0
    %v5279 = vadd.f32 0.0, %v5278
    %5280 = vmatprep.mubr.f32.mxu0 0.0
    %5281 = vmatmul.mubr.f32.gmra.mrb[0].mxu0 %v5082
    %v5282 = vpop.f32.mrb[0].mxu0
    %v5283 = vadd.f32 0.0, %v5282
    %v5284 = vpop.f32.mrb[0].mxu0
    %v5285 = vadd.f32 0.0, %v5284
    %5286 = vmatprep.mubr.f32.mxu0 0.0
    %5287 = vmatmul.mubr.f32.gmra.mrb[0].mxu0 %v5085
    %v5288 = vpop.f32.mrb[0].mxu0
    %v5289 = vadd.f32 0.0, %v5288
    %v5290 = vpop.f32.mrb[0].mxu0
    %v5291 = vadd.f32 0.0, %v5290
    %5292 = vmatprep.mubr.f32.mxu0 0.0
    %5293 = vmatmul.mubr.f32.gmra.mrb[0].mxu0 %v5088
    %v5294 = vpop.f32.mrb[0].mxu0
    %v5295 = vadd.f32 0.0, %v5294
    %v5296 = vpop.f32.mrb[0].mxu0
    %v5297 = vadd.f32 0.0, %v5296
    %5298 = vmatprep.mubr.f32.mxu0 0.0
    %5299 = vmatmul.mubr.f32.gmra.mrb[0].mxu0 %v5091
    %v5300 = vpop.f32.mrb[0].mxu0
    %v5301 = vadd.f32 0.0, %v5300
    %v5302 = vpop.f32.mrb[0].mxu0
    %v5303 = vadd.f32 0.0, %v5302
    %5304 = vmatprep.mubr.f32.mxu0 0.0
    %5305 = vmatmul.mubr.f32.gmra.mrb[0].mxu0 %v5094
    %v5306 = vpop.f32.mrb[0].mxu0
    %v5307 = vadd.f32 0.0, %v5306
    %v5308 = vpop.f32.mrb[0].mxu0
    %v5309 = vadd.f32 0.0, %v5308
    %5310 = vmatprep.mubr.f32.mxu0 0.0
    %5311 = vmatmul.mubr.f32.gmra.mrb[0].mxu0 %v5097
    %v5312 = vpop.f32.mrb[0].mxu0
    %v5313 = vadd.f32 0.0, %v5312
    %v5314 = vpop.f32.mrb[0].mxu0
    %v5315 = vadd.f32 0.0, %v5314
    %5316 = vmatprep.mubr.f32.mxu0 0.0
    %5317 = vmatmul.mubr.f32.gmra.mrb[0].mxu0 %v5100
    %v5318 = vpop.f32.mrb[0].mxu0
    %v5319 = vadd.f32 0.0, %v5318
    %v5320 = vpop.f32.mrb[0].mxu0
    %v5321 = vadd.f32 0.0, %v5320
    %5322 = vmatprep.mubr.f32.mxu0 0.0
    %5323 = vmatmul.mubr.f32.gmra.mrb[0].mxu0 %v5103
    %v5324 = vpop.f32.mrb[0].mxu0
    %v5325 = vadd.f32 0.0, %v5324
    %v5326 = vpop.f32.mrb[0].mxu0
    %v5327 = vadd.f32 0.0, %v5326
    %5328 = vmatprep.mubr.f32.mxu0 0.0
    %5329 = vmatmul.mubr.f32.gmra.mrb[0].mxu0 %v5106
    %v5330 = vpop.f32.mrb[0].mxu0
    %v5331 = vadd.f32 0.0, %v5330
    %v5332 = vpop.f32.mrb[0].mxu0
    %v5333 = vadd.f32 0.0, %v5332
    %5334 = vmatprep.mubr.f32.mxu0 0.0
    %5335 = vmatmul.mubr.f32.gmra.mrb[0].mxu0 %v5109
    %v5336 = vpop.f32.mrb[0].mxu0
    %v5337 = vadd.f32 0.0, %v5336
    %v5338 = vpop.f32.mrb[0].mxu0
    %v5339 = vadd.f32 0.0, %v5338
    %5340 = vmatprep.mubr.f32.mxu0 0.0
    %5341 = vmatmul.mubr.f32.gmra.mrb[0].mxu0 %v5112
    %v5342 = vpop.f32.mrb[0].mxu0
    %v5343 = vadd.f32 0.0, %v5342
    %v5344 = vpop.f32.mrb[0].mxu0
    %v5345 = vadd.f32 0.0, %v5344
    %5346 = vmatprep.mubr.f32.mxu0 0.0
    %5347 = vmatmul.mubr.f32.gmra.mrb[0].mxu0 %v5115
    %v5348 = vpop.f32.mrb[0].mxu0
    %v5349 = vadd.f32 0.0, %v5348
    %v5350 = vpop.f32.mrb[0].mxu0
    %v5351 = vadd.f32 0.0, %v5350
    %5352 = vmatprep.mubr.f32.mxu0 0.0
    %5353 = vmatmul.mubr.f32.gmra.mrb[0].mxu0 %v5118
    %v5354 = vpop.f32.mrb[0].mxu0
    %v5355 = vadd.f32 0.0, %v5354
    %v5356 = vpop.f32.mrb[0].mxu0
    %v5357 = vadd.f32 0.0, %v5356
    %5358 = vmatprep.mubr.f32.mxu0 0.0
    %5359 = vmatmul.mubr.f32.gmra.mrb[0].mxu0 %v5121
    %v5360 = vpop.f32.mrb[0].mxu0
    %v5361 = vadd.f32 0.0, %v5360
    %v5362 = vpop.f32.mrb[0].mxu0
    %v5363 = vadd.f32 0.0, %v5362
    %5364 = vmatprep.mubr.f32.mxu0 0.0
    %5365 = vmatmul.mubr.f32.gmra.mrb[0].mxu0 %v5124
    %v5366 = vpop.f32.mrb[0].mxu0
    %v5367 = vadd.f32 0.0, %v5366
    %v5368 = vpop.f32.mrb[0].mxu0
    %v5369 = vadd.f32 0.0, %v5368
    %5370 = vmatprep.mubr.f32.mxu0 0.0
    %5371 = vmatmul.mubr.f32.gmra.mrb[0].mxu0 %v5127
    %v5372 = vpop.f32.mrb[0].mxu0
    %v5373 = vadd.f32 0.0, %v5372
    %v5374 = vpop.f32.mrb[0].mxu0
    %v5375 = vadd.f32 0.0, %v5374
    %5376 = vmatprep.mubr.f32.mxu0 0.0
    %5377 = vmatmul.mubr.f32.gmra.mrb[0].mxu0 %v5130
    %v5378 = vpop.f32.mrb[0].mxu0
    %v5379 = vadd.f32 0.0, %v5378
    %v5380 = vpop.f32.mrb[0].mxu0
    %v5381 = vadd.f32 0.0, %v5380
    %5382 = vmatprep.mubr.f32.mxu0 0.0
    %5383 = vmatmul.mubr.f32.gmra.mrb[0].mxu0 %v5133
    %v5384 = vpop.f32.mrb[0].mxu0
    %v5385 = vadd.f32 0.0, %v5384
    %v5386 = vpop.f32.mrb[0].mxu0
    %v5387 = vadd.f32 0.0, %v5386
    %5388 = vmatprep.mubr.f32.mxu0 0.0
    %5389 = vmatmul.mubr.f32.gmra.mrb[0].mxu0 %v5136
    %v5390 = vpop.f32.mrb[0].mxu0
    %v5391 = vadd.f32 0.0, %v5390
    %v5392 = vpop.f32.mrb[0].mxu0
    %v5393 = vadd.f32 0.0, %v5392
    %5394 = vmatprep.mubr.f32.mxu0 0.0
    %5395 = vmatmul.mubr.f32.gmra.mrb[0].mxu0 %v5139
    %v5396 = vpop.f32.mrb[0].mxu0
    %v5397 = vadd.f32 0.0, %v5396
    %v5398 = vpop.f32.mrb[0].mxu0
    %v5399 = vadd.f32 0.0, %v5398
    %5400 = vmatprep.mubr.f32.mxu0 0.0
    %5401 = vmatmul.mubr.f32.gmra.mrb[0].mxu0 %v5142
    %v5402 = vpop.f32.mrb[0].mxu0
    %v5403 = vadd.f32 0.0, %v5402
    %v5404 = vpop.f32.mrb[0].mxu0
    %v5405 = vadd.f32 0.0, %v5404
    %5406 = vdwg.mxu0
    %v5407 = vadd.f32 %v4929, %v5217
    %v5408 = vadd.f32 %v4930, %v5219
    %v5409 = vadd.f32 %v4931, %v5223
    %v5410 = vadd.f32 %v4932, %v5225
    %v5411 = vadd.f32 %v4933, %v5229
    %v5412 = vadd.f32 %v4934, %v5231
    %v5413 = vadd.f32 %v4935, %v5235
    %v5414 = vadd.f32 %v4936, %v5237
    %v5415 = vadd.f32 %v4937, %v5241
    %v5416 = vadd.f32 %v4938, %v5243
    %v5417 = vadd.f32 %v4939, %v5247
    %v5418 = vadd.f32 %v4940, %v5249
    %v5419 = vadd.f32 %v4941, %v5253
    %v5420 = vadd.f32 %v4942, %v5255
    %v5421 = vadd.f32 %v4943, %v5259
    %v5422 = vadd.f32 %v4944, %v5261
    %v5423 = vadd.f32 %v4945, %v5265
    %v5424 = vadd.f32 %v4946, %v5267
    %v5425 = vadd.f32 %v4947, %v5271
    %v5426 = vadd.f32 %v4948, %v5273
    %v5427 = vadd.f32 %v4949, %v5277
    %v5428 = vadd.f32 %v4950, %v5279
    %v5429 = vadd.f32 %v4951, %v5283
    %v5430 = vadd.f32 %v4952, %v5285
    %v5431 = vadd.f32 %v4953, %v5289
    %v5432 = vadd.f32 %v4954, %v5291
    %v5433 = vadd.f32 %v4955, %v5295
    %v5434 = vadd.f32 %v4956, %v5297
    %v5435 = vadd.f32 %v4957, %v5301
    %v5436 = vadd.f32 %v4958, %v5303
    %v5437 = vadd.f32 %v4959, %v5307
    %v5438 = vadd.f32 %v4960, %v5309
    %v5439 = vadd.f32 %v4961, %v5313
    %v5440 = vadd.f32 %v4962, %v5315
    %v5441 = vadd.f32 %v4963, %v5319
    %v5442 = vadd.f32 %v4964, %v5321
    %v5443 = vadd.f32 %v4965, %v5325
    %v5444 = vadd.f32 %v4966, %v5327
    %v5445 = vadd.f32 %v4967, %v5331
    %v5446 = vadd.f32 %v4968, %v5333
    %v5447 = vadd.f32 %v4969, %v5337
    %v5448 = vadd.f32 %v4970, %v5339
    %v5449 = vadd.f32 %v4971, %v5343
    %v5450 = vadd.f32 %v4972, %v5345
    %v5451 = vadd.f32 %v4973, %v5349
    %v5452 = vadd.f32 %v4974, %v5351
    %v5453 = vadd.f32 %v4975, %v5355
    %v5454 = vadd.f32 %v4976, %v5357
    %v5455 = vadd.f32 %v4977, %v5361
    %v5456 = vadd.f32 %v4978, %v5363
    %v5457 = vadd.f32 %v4979, %v5367
    %v5458 = vadd.f32 %v4980, %v5369
    %v5459 = vadd.f32 %v4981, %v5373
    %v5460 = vadd.f32 %v4982, %v5375
    %v5461 = vadd.f32 %v4983, %v5379
    %v5462 = vadd.f32 %v4984, %v5381
    %v5463 = vadd.f32 %v4985, %v5385
    %v5464 = vadd.f32 %v4986, %v5387
    %v5465 = vadd.f32 %v4987, %v5391
    %v5466 = vadd.f32 %v4988, %v5393
    %v5467 = vadd.f32 %v4989, %v5397
    %v5468 = vadd.f32 %v4990, %v5399
    %v5469 = vadd.f32 %v4991, %v5403
    %v5470 = vadd.f32 %v4992, %v5405
    %v5471 = vld [vmem:[%s6] sm:$0x3]
    %v5473 = vlaneseq
    %v5474 = vshrl.u32 %v5473, 7
    %v5475 = vsub.s32 0, %v5474
    %v5476 = vrot.slane %v5471, %v5475
    %v5477 = vlaneseq
    %v5478 = vshrl.u32 %v5477, 7
    %v5479 = vsub.s32 1, %v5478
    %v5480 = vrot.slane %v5471, %v5479
    %v5483 = vadd.f32 %v5407, %v5476
    %v5484 = vadd.f32 %v5408, %v5480
    %v5485 = vadd.f32 %v5409, %v5476
    %v5486 = vadd.f32 %v5410, %v5480
    %v5487 = vadd.f32 %v5411, %v5476
    %v5488 = vadd.f32 %v5412, %v5480
    %v5489 = vadd.f32 %v5413, %v5476
    %v5490 = vadd.f32 %v5414, %v5480
    %v5491 = vadd.f32 %v5415, %v5476
    %v5492 = vadd.f32 %v5416, %v5480
    %v5493 = vadd.f32 %v5417, %v5476
    %v5494 = vadd.f32 %v5418, %v5480
    %v5495 = vadd.f32 %v5419, %v5476
    %v5496 = vadd.f32 %v5420, %v5480
    %v5497 = vadd.f32 %v5421, %v5476
    %v5498 = vadd.f32 %v5422, %v5480
    %v5499 = vadd.f32 %v5423, %v5476
    %v5500 = vadd.f32 %v5424, %v5480
    %v5501 = vadd.f32 %v5425, %v5476
    %v5502 = vadd.f32 %v5426, %v5480
    %v5503 = vadd.f32 %v5427, %v5476
    %v5504 = vadd.f32 %v5428, %v5480
    %v5505 = vadd.f32 %v5429, %v5476
    %v5506 = vadd.f32 %v5430, %v5480
    %v5507 = vadd.f32 %v5431, %v5476
    %v5508 = vadd.f32 %v5432, %v5480
    %v5509 = vadd.f32 %v5433, %v5476
    %v5510 = vadd.f32 %v5434, %v5480
    %v5511 = vadd.f32 %v5435, %v5476
    %v5512 = vadd.f32 %v5436, %v5480
    %v5513 = vadd.f32 %v5437, %v5476
    %v5514 = vadd.f32 %v5438, %v5480
    %v5515 = vadd.f32 %v5439, %v5476
    %v5516 = vadd.f32 %v5440, %v5480
    %v5517 = vadd.f32 %v5441, %v5476
    %v5518 = vadd.f32 %v5442, %v5480
    %v5519 = vadd.f32 %v5443, %v5476
    %v5520 = vadd.f32 %v5444, %v5480
    %v5521 = vadd.f32 %v5445, %v5476
    %v5522 = vadd.f32 %v5446, %v5480
    %v5523 = vadd.f32 %v5447, %v5476
    %v5524 = vadd.f32 %v5448, %v5480
    %v5525 = vadd.f32 %v5449, %v5476
    %v5526 = vadd.f32 %v5450, %v5480
    %v5527 = vadd.f32 %v5451, %v5476
    %v5528 = vadd.f32 %v5452, %v5480
    %v5529 = vadd.f32 %v5453, %v5476
    %v5530 = vadd.f32 %v5454, %v5480
    %v5531 = vadd.f32 %v5455, %v5476
    %v5532 = vadd.f32 %v5456, %v5480
    %v5533 = vadd.f32 %v5457, %v5476
    %v5534 = vadd.f32 %v5458, %v5480
    %v5535 = vadd.f32 %v5459, %v5476
    %v5536 = vadd.f32 %v5460, %v5480
    %v5537 = vadd.f32 %v5461, %v5476
    %v5538 = vadd.f32 %v5462, %v5480
    %v5539 = vadd.f32 %v5463, %v5476
    %v5540 = vadd.f32 %v5464, %v5480
    %v5541 = vadd.f32 %v5465, %v5476
    %v5542 = vadd.f32 %v5466, %v5480
    %v5543 = vadd.f32 %v5467, %v5476
    %v5544 = vadd.f32 %v5468, %v5480
    %v5545 = vadd.f32 %v5469, %v5476
    %v5546 = vadd.f32 %v5470, %v5480
    %v5547 = vmax.f32 %v5483, 0.0
    %v5548 = vmax.f32 %v5484, 0.0
    %v5549 = vmax.f32 %v5485, 0.0
    %v5550 = vmax.f32 %v5486, 0.0
    %v5551 = vmax.f32 %v5487, 0.0
    %v5552 = vmax.f32 %v5488, 0.0
    %v5553 = vmax.f32 %v5489, 0.0
    %v5554 = vmax.f32 %v5490, 0.0
    %v5555 = vmax.f32 %v5491, 0.0
    %v5556 = vmax.f32 %v5492, 0.0
    %v5557 = vmax.f32 %v5493, 0.0
    %v5558 = vmax.f32 %v5494, 0.0
    %v5559 = vmax.f32 %v5495, 0.0
    %v5560 = vmax.f32 %v5496, 0.0
    %v5561 = vmax.f32 %v5497, 0.0
    %v5562 = vmax.f32 %v5498, 0.0
    %v5563 = vmax.f32 %v5499, 0.0
    %v5564 = vmax.f32 %v5500, 0.0
    %v5565 = vmax.f32 %v5501, 0.0
    %v5566 = vmax.f32 %v5502, 0.0
    %v5567 = vmax.f32 %v5503, 0.0
    %v5568 = vmax.f32 %v5504, 0.0
    %v5569 = vmax.f32 %v5505, 0.0
    %v5570 = vmax.f32 %v5506, 0.0
    %v5571 = vmax.f32 %v5507, 0.0
    %v5572 = vmax.f32 %v5508, 0.0
    %v5573 = vmax.f32 %v5509, 0.0
    %v5574 = vmax.f32 %v5510, 0.0
    %v5575 = vmax.f32 %v5511, 0.0
    %v5576 = vmax.f32 %v5512, 0.0
    %v5577 = vmax.f32 %v5513, 0.0
    %v5578 = vmax.f32 %v5514, 0.0
    %v5579 = vmax.f32 %v5515, 0.0
    %v5580 = vmax.f32 %v5516, 0.0
    %v5581 = vmax.f32 %v5517, 0.0
    %v5582 = vmax.f32 %v5518, 0.0
    %v5583 = vmax.f32 %v5519, 0.0
    %v5584 = vmax.f32 %v5520, 0.0
    %v5585 = vmax.f32 %v5521, 0.0
    %v5586 = vmax.f32 %v5522, 0.0
    %v5587 = vmax.f32 %v5523, 0.0
    %v5588 = vmax.f32 %v5524, 0.0
    %v5589 = vmax.f32 %v5525, 0.0
    %v5590 = vmax.f32 %v5526, 0.0
    %v5591 = vmax.f32 %v5527, 0.0
    %v5592 = vmax.f32 %v5528, 0.0
    %v5593 = vmax.f32 %v5529, 0.0
    %v5594 = vmax.f32 %v5530, 0.0
    %v5595 = vmax.f32 %v5531, 0.0
    %v5596 = vmax.f32 %v5532, 0.0
    %v5597 = vmax.f32 %v5533, 0.0
    %v5598 = vmax.f32 %v5534, 0.0
    %v5599 = vmax.f32 %v5535, 0.0
    %v5600 = vmax.f32 %v5536, 0.0
    %v5601 = vmax.f32 %v5537, 0.0
    %v5602 = vmax.f32 %v5538, 0.0
    %v5603 = vmax.f32 %v5539, 0.0
    %v5604 = vmax.f32 %v5540, 0.0
    %v5605 = vmax.f32 %v5541, 0.0
    %v5606 = vmax.f32 %v5542, 0.0
    %v5607 = vmax.f32 %v5543, 0.0
    %v5608 = vmax.f32 %v5544, 0.0
    %v5609 = vmax.f32 %v5545, 0.0
    %v5610 = vmax.f32 %v5546, 0.0
    %v5611 = vld [vmem:[%s7] sm:$0xff]
    %v5612 = vld [vmem:[%s7 + $0x8] sm:$0xff]
    %v5613 = vld [vmem:[%s7 + $0x10] sm:$0xff]
    %v5614 = vld [vmem:[%s7 + $0x18] sm:$0xff]
    %v5615 = vld [vmem:[%s7 + $0x20] sm:$0xff]
    %v5616 = vld [vmem:[%s7 + $0x28] sm:$0xff]
    %v5617 = vld [vmem:[%s7 + $0x30] sm:$0xff]
    %v5618 = vld [vmem:[%s7 + $0x38] sm:$0xff]
    %v5619 = vld [vmem:[%s7 + $0x40] sm:$0xff]
    %v5620 = vld [vmem:[%s7 + $0x48] sm:$0xff]
    %v5621 = vld [vmem:[%s7 + $0x50] sm:$0xff]
    %v5622 = vld [vmem:[%s7 + $0x58] sm:$0xff]
    %v5623 = vld [vmem:[%s7 + $0x60] sm:$0xff]
    %v5624 = vld [vmem:[%s7 + $0x68] sm:$0xff]
    %v5625 = vld [vmem:[%s7 + $0x70] sm:$0xff]
    %v5626 = vld [vmem:[%s7 + $0x78] sm:$0xff]
    %v5627 = vld [vmem:[%s7 + $0x80] sm:$0xff]
    %v5628 = vld [vmem:[%s7 + $0x88] sm:$0xff]
    %v5629 = vld [vmem:[%s7 + $0x90] sm:$0xff]
    %v5630 = vld [vmem:[%s7 + $0x98] sm:$0xff]
    %v5632 = vsel %vm86, %v5548, 0
    %v5635 = vsel %vm86, %v5550, 0
    %v5638 = vsel %vm86, %v5552, 0
    %v5641 = vsel %vm86, %v5554, 0
    %v5644 = vsel %vm86, %v5556, 0
    %v5647 = vsel %vm86, %v5558, 0
    %v5650 = vsel %vm86, %v5560, 0
    %v5653 = vsel %vm86, %v5562, 0
    %v5656 = vsel %vm86, %v5564, 0
    %v5659 = vsel %vm86, %v5566, 0
    %v5662 = vsel %vm86, %v5568, 0
    %v5665 = vsel %vm86, %v5570, 0
    %v5668 = vsel %vm86, %v5572, 0
    %v5671 = vsel %vm86, %v5574, 0
    %v5674 = vsel %vm86, %v5576, 0
    %v5677 = vsel %vm86, %v5578, 0
    %v5680 = vsel %vm86, %v5580, 0
    %v5683 = vsel %vm86, %v5582, 0
    %v5686 = vsel %vm86, %v5584, 0
    %v5689 = vsel %vm86, %v5586, 0
    %v5692 = vsel %vm86, %v5588, 0
    %v5695 = vsel %vm86, %v5590, 0
    %v5698 = vsel %vm86, %v5592, 0
    %v5701 = vsel %vm86, %v5594, 0
    %v5704 = vsel %vm86, %v5596, 0
    %v5707 = vsel %vm86, %v5598, 0
    %v5710 = vsel %vm86, %v5600, 0
    %v5713 = vsel %vm86, %v5602, 0
    %v5716 = vsel %vm86, %v5604, 0
    %v5719 = vsel %vm86, %v5606, 0
    %v5722 = vsel %vm86, %v5608, 0
    %v5725 = vsel %vm86, %v5610, 0
    %5727 = vmatprep.subr.mxu0 0.0
    %5728 = vmatpush1.msra.mxu0 %v5611
    %5729 = vmatprep.subr.mxu0 0.0
    %5730 = vmatpush1.msra.mxu0 %v5612
    %5731 = vmatprep.subr.mxu0 0.0
    %5732 = vmatpush1.msra.mxu0 %v5613
    %5733 = vmatprep.subr.mxu0 0.0
    %5734 = vmatpush1.msra.mxu0 %v5614
    %5735 = vmatprep.subr.mxu0 0.0
    %5736 = vmatpush1.msra.mxu0 %v5615
    %5737 = vmatprep.subr.mxu0 0.0
    %5738 = vmatpush1.msra.mxu0 %v5616
    %5739 = vmatprep.subr.mxu0 0.0
    %5740 = vmatpush1.msra.mxu0 %v5617
    %5741 = vmatprep.subr.mxu0 0.0
    %5742 = vmatpush1.msra.mxu0 %v5618
    %5743 = vmatprep.subr.mxu0 0.0
    %5744 = vmatpush1.msra.mxu0 %v5619
    %5745 = vmatprep.subr.mxu0 0.0
    %5746 = vmatpush1.msra.mxu0 %v5620
    %5747 = vmatprep.subr.mxu0 0.0
    %5748 = vmatpush1.msra.mxu0 %v5621
    %5749 = vmatprep.subr.mxu0 0.0
    %5750 = vmatpush1.msra.mxu0 %v5622
    %5751 = vmatprep.subr.mxu0 0.0
    %5752 = vmatpush1.msra.mxu0 %v5623
    %5753 = vmatprep.subr.mxu0 0.0
    %5754 = vmatpush1.msra.mxu0 %v5624
    %5755 = vmatprep.subr.mxu0 0.0
    %5756 = vmatpush1.msra.mxu0 %v5625
    %5757 = vmatprep.subr.mxu0 0.0
    %5758 = vmatpush1.msra.mxu0 %v5626
    %5759 = vmatprep.subr.mxu0 0.0
    %5760 = vmatpush1.msra.mxu0 %v5627
    %5761 = vmatprep.subr.mxu0 0.0
    %5762 = vmatpush1.msra.mxu0 %v5628
    %5763 = vmatprep.subr.mxu0 0.0
    %5764 = vmatpush1.msra.mxu0 %v5629
    %5765 = vmatprep.subr.mxu0 0.0
    %5766 = vmatpush1.msra.mxu0 %v5630
    %5767 = vmatprep.subr.mxu0 0.0
    %5768 = vmatpush1.msra.mxu0 0.0
    %5769 = vmatprep.subr.mxu0 0.0
    %5770 = vmatpush1.msra.mxu0 0.0
    %5771 = vmatprep.subr.mxu0 0.0
    %5772 = vmatpush1.msra.mxu0 0.0
    %5773 = vmatprep.subr.mxu0 0.0
    %5774 = vmatpush1.msra.mxu0 0.0
    %5775 = vmatprep.subr.mxu0 0.0
    %5776 = vmatpush1.msra.mxu0 0.0
    %5777 = vmatprep.subr.mxu0 0.0
    %5778 = vmatpush1.msra.mxu0 0.0
    %5779 = vmatprep.subr.mxu0 0.0
    %5780 = vmatpush1.msra.mxu0 0.0
    %5781 = vmatprep.subr.mxu0 0.0
    %5782 = vmatpush1.msra.mxu0 0.0
    %5783 = vmatprep.subr.mxu0 0.0
    %5784 = vmatpush1.msra.mxu0 0.0
    %5785 = vmatprep.subr.mxu0 0.0
    %5786 = vmatpush1.msra.mxu0 0.0
    %5787 = vmatprep.subr.mxu0 0.0
    %5788 = vmatpush1.msra.mxu0 0.0
    %5789 = vmatprep.subr.mxu0 0.0
    %5790 = vmatpush1.msra.mxu0 0.0
    %5791 = vmatprep.mubr.f32.mxu0 %v5632
    %5792 = vmatmul.mubr.f32.gmra.mrb[0].mxu0 %v5547
    %v5793 = vpop.f32.mrb[0].mxu0
    %v5794 = vadd.f32 0.0, %v5793
    %v5795 = vpop.f32.mrb[0].mxu0
    %5796 = vmatprep.mubr.f32.mxu0 %v5635
    %5797 = vmatmul.mubr.f32.gmra.mrb[0].mxu0 %v5549
    %v5798 = vpop.f32.mrb[0].mxu0
    %v5799 = vadd.f32 0.0, %v5798
    %v5800 = vpop.f32.mrb[0].mxu0
    %5801 = vmatprep.mubr.f32.mxu0 %v5638
    %5802 = vmatmul.mubr.f32.gmra.mrb[0].mxu0 %v5551
    %v5803 = vpop.f32.mrb[0].mxu0
    %v5804 = vadd.f32 0.0, %v5803
    %v5805 = vpop.f32.mrb[0].mxu0
    %5806 = vmatprep.mubr.f32.mxu0 %v5641
    %5807 = vmatmul.mubr.f32.gmra.mrb[0].mxu0 %v5553
    %v5808 = vpop.f32.mrb[0].mxu0
    %v5809 = vadd.f32 0.0, %v5808
    %v5810 = vpop.f32.mrb[0].mxu0
    %5811 = vmatprep.mubr.f32.mxu0 %v5644
    %5812 = vmatmul.mubr.f32.gmra.mrb[0].mxu0 %v5555
    %v5813 = vpop.f32.mrb[0].mxu0
    %v5814 = vadd.f32 0.0, %v5813
    %v5815 = vpop.f32.mrb[0].mxu0
    %5816 = vmatprep.mubr.f32.mxu0 %v5647
    %5817 = vmatmul.mubr.f32.gmra.mrb[0].mxu0 %v5557
    %v5818 = vpop.f32.mrb[0].mxu0
    %v5819 = vadd.f32 0.0, %v5818
    %v5820 = vpop.f32.mrb[0].mxu0
    %5821 = vmatprep.mubr.f32.mxu0 %v5650
    %5822 = vmatmul.mubr.f32.gmra.mrb[0].mxu0 %v5559
    %v5823 = vpop.f32.mrb[0].mxu0
    %v5824 = vadd.f32 0.0, %v5823
    %v5825 = vpop.f32.mrb[0].mxu0
    %5826 = vmatprep.mubr.f32.mxu0 %v5653
    %5827 = vmatmul.mubr.f32.gmra.mrb[0].mxu0 %v5561
    %v5828 = vpop.f32.mrb[0].mxu0
    %v5829 = vadd.f32 0.0, %v5828
    %v5830 = vpop.f32.mrb[0].mxu0
    %5831 = vmatprep.mubr.f32.mxu0 %v5656
    %5832 = vmatmul.mubr.f32.gmra.mrb[0].mxu0 %v5563
    %v5833 = vpop.f32.mrb[0].mxu0
    %v5834 = vadd.f32 0.0, %v5833
    %v5835 = vpop.f32.mrb[0].mxu0
    %5836 = vmatprep.mubr.f32.mxu0 %v5659
    %5837 = vmatmul.mubr.f32.gmra.mrb[0].mxu0 %v5565
    %v5838 = vpop.f32.mrb[0].mxu0
    %v5839 = vadd.f32 0.0, %v5838
    %v5840 = vpop.f32.mrb[0].mxu0
    %5841 = vmatprep.mubr.f32.mxu0 %v5662
    %5842 = vmatmul.mubr.f32.gmra.mrb[0].mxu0 %v5567
    %v5843 = vpop.f32.mrb[0].mxu0
    %v5844 = vadd.f32 0.0, %v5843
    %v5845 = vpop.f32.mrb[0].mxu0
    %5846 = vmatprep.mubr.f32.mxu0 %v5665
    %5847 = vmatmul.mubr.f32.gmra.mrb[0].mxu0 %v5569
    %v5848 = vpop.f32.mrb[0].mxu0
    %v5849 = vadd.f32 0.0, %v5848
    %v5850 = vpop.f32.mrb[0].mxu0
    %5851 = vmatprep.mubr.f32.mxu0 %v5668
    %5852 = vmatmul.mubr.f32.gmra.mrb[0].mxu0 %v5571
    %v5853 = vpop.f32.mrb[0].mxu0
    %v5854 = vadd.f32 0.0, %v5853
    %v5855 = vpop.f32.mrb[0].mxu0
    %5856 = vmatprep.mubr.f32.mxu0 %v5671
    %5857 = vmatmul.mubr.f32.gmra.mrb[0].mxu0 %v5573
    %v5858 = vpop.f32.mrb[0].mxu0
    %v5859 = vadd.f32 0.0, %v5858
    %v5860 = vpop.f32.mrb[0].mxu0
    %5861 = vmatprep.mubr.f32.mxu0 %v5674
    %5862 = vmatmul.mubr.f32.gmra.mrb[0].mxu0 %v5575
    %v5863 = vpop.f32.mrb[0].mxu0
    %v5864 = vadd.f32 0.0, %v5863
    %v5865 = vpop.f32.mrb[0].mxu0
    %5866 = vmatprep.mubr.f32.mxu0 %v5677
    %5867 = vmatmul.mubr.f32.gmra.mrb[0].mxu0 %v5577
    %v5868 = vpop.f32.mrb[0].mxu0
    %v5869 = vadd.f32 0.0, %v5868
    %v5870 = vpop.f32.mrb[0].mxu0
    %5871 = vmatprep.mubr.f32.mxu0 %v5680
    %5872 = vmatmul.mubr.f32.gmra.mrb[0].mxu0 %v5579
    %v5873 = vpop.f32.mrb[0].mxu0
    %v5874 = vadd.f32 0.0, %v5873
    %v5875 = vpop.f32.mrb[0].mxu0
    %5876 = vmatprep.mubr.f32.mxu0 %v5683
    %5877 = vmatmul.mubr.f32.gmra.mrb[0].mxu0 %v5581
    %v5878 = vpop.f32.mrb[0].mxu0
    %v5879 = vadd.f32 0.0, %v5878
    %v5880 = vpop.f32.mrb[0].mxu0
    %5881 = vmatprep.mubr.f32.mxu0 %v5686
    %5882 = vmatmul.mubr.f32.gmra.mrb[0].mxu0 %v5583
    %v5883 = vpop.f32.mrb[0].mxu0
    %v5884 = vadd.f32 0.0, %v5883
    %v5885 = vpop.f32.mrb[0].mxu0
    %5886 = vmatprep.mubr.f32.mxu0 %v5689
    %5887 = vmatmul.mubr.f32.gmra.mrb[0].mxu0 %v5585
    %v5888 = vpop.f32.mrb[0].mxu0
    %v5889 = vadd.f32 0.0, %v5888
    %v5890 = vpop.f32.mrb[0].mxu0
    %5891 = vmatprep.mubr.f32.mxu0 %v5692
    %5892 = vmatmul.mubr.f32.gmra.mrb[0].mxu0 %v5587
    %v5893 = vpop.f32.mrb[0].mxu0
    %v5894 = vadd.f32 0.0, %v5893
    %v5895 = vpop.f32.mrb[0].mxu0
    %5896 = vmatprep.mubr.f32.mxu0 %v5695
    %5897 = vmatmul.mubr.f32.gmra.mrb[0].mxu0 %v5589
    %v5898 = vpop.f32.mrb[0].mxu0
    %v5899 = vadd.f32 0.0, %v5898
    %v5900 = vpop.f32.mrb[0].mxu0
    %5901 = vmatprep.mubr.f32.mxu0 %v5698
    %5902 = vmatmul.mubr.f32.gmra.mrb[0].mxu0 %v5591
    %v5903 = vpop.f32.mrb[0].mxu0
    %v5904 = vadd.f32 0.0, %v5903
    %v5905 = vpop.f32.mrb[0].mxu0
    %5906 = vmatprep.mubr.f32.mxu0 %v5701
    %5907 = vmatmul.mubr.f32.gmra.mrb[0].mxu0 %v5593
    %v5908 = vpop.f32.mrb[0].mxu0
    %v5909 = vadd.f32 0.0, %v5908
    %v5910 = vpop.f32.mrb[0].mxu0
    %5911 = vmatprep.mubr.f32.mxu0 %v5704
    %5912 = vmatmul.mubr.f32.gmra.mrb[0].mxu0 %v5595
    %v5913 = vpop.f32.mrb[0].mxu0
    %v5914 = vadd.f32 0.0, %v5913
    %v5915 = vpop.f32.mrb[0].mxu0
    %5916 = vmatprep.mubr.f32.mxu0 %v5707
    %5917 = vmatmul.mubr.f32.gmra.mrb[0].mxu0 %v5597
    %v5918 = vpop.f32.mrb[0].mxu0
    %v5919 = vadd.f32 0.0, %v5918
    %v5920 = vpop.f32.mrb[0].mxu0
    %5921 = vmatprep.mubr.f32.mxu0 %v5710
    %5922 = vmatmul.mubr.f32.gmra.mrb[0].mxu0 %v5599
    %v5923 = vpop.f32.mrb[0].mxu0
    %v5924 = vadd.f32 0.0, %v5923
    %v5925 = vpop.f32.mrb[0].mxu0
    %5926 = vmatprep.mubr.f32.mxu0 %v5713
    %5927 = vmatmul.mubr.f32.gmra.mrb[0].mxu0 %v5601
    %v5928 = vpop.f32.mrb[0].mxu0
    %v5929 = vadd.f32 0.0, %v5928
    %v5930 = vpop.f32.mrb[0].mxu0
    %5931 = vmatprep.mubr.f32.mxu0 %v5716
    %5932 = vmatmul.mubr.f32.gmra.mrb[0].mxu0 %v5603
    %v5933 = vpop.f32.mrb[0].mxu0
    %v5934 = vadd.f32 0.0, %v5933
    %v5935 = vpop.f32.mrb[0].mxu0
    %5936 = vmatprep.mubr.f32.mxu0 %v5719
    %5937 = vmatmul.mubr.f32.gmra.mrb[0].mxu0 %v5605
    %v5938 = vpop.f32.mrb[0].mxu0
    %v5939 = vadd.f32 0.0, %v5938
    %v5940 = vpop.f32.mrb[0].mxu0
    %5941 = vmatprep.mubr.f32.mxu0 %v5722
    %5942 = vmatmul.mubr.f32.gmra.mrb[0].mxu0 %v5607
    %v5943 = vpop.f32.mrb[0].mxu0
    %v5944 = vadd.f32 0.0, %v5943
    %v5945 = vpop.f32.mrb[0].mxu0
    %5946 = vmatprep.mubr.f32.mxu0 %v5725
    %5947 = vmatmul.mubr.f32.gmra.mrb[0].mxu0 %v5609
    %v5948 = vpop.f32.mrb[0].mxu0
    %v5949 = vadd.f32 0.0, %v5948
    %v5950 = vpop.f32.mrb[0].mxu0
    %5951 = vdwg.mxu0
    %v5952 = vld [vmem:[%s8] sm:$0xff]
    %v5953 = vld [vmem:[%s8 + $0x8] sm:$0xff]
    %v5954 = vld [vmem:[%s8 + $0x10] sm:$0xff]
    %v5955 = vld [vmem:[%s8 + $0x18] sm:$0xff]
    %v5956 = vld [vmem:[%s8 + $0x20] sm:$0xff]
    %v5957 = vld [vmem:[%s8 + $0x28] sm:$0xff]
    %v5958 = vld [vmem:[%s8 + $0x30] sm:$0xff]
    %v5959 = vld [vmem:[%s8 + $0x38] sm:$0xff]
    %v5960 = vld [vmem:[%s8 + $0x40] sm:$0xff]
    %v5961 = vld [vmem:[%s8 + $0x48] sm:$0xff]
    %v5962 = vld [vmem:[%s8 + $0x50] sm:$0xff]
    %v5963 = vld [vmem:[%s8 + $0x58] sm:$0xff]
    %v5964 = vld [vmem:[%s8 + $0x60] sm:$0xff]
    %v5965 = vld [vmem:[%s8 + $0x68] sm:$0xff]
    %v5966 = vld [vmem:[%s8 + $0x70] sm:$0xff]
    %v5967 = vld [vmem:[%s8 + $0x78] sm:$0xff]
    %v5968 = vld [vmem:[%s8 + $0x80] sm:$0xff]
    %v5969 = vld [vmem:[%s8 + $0x88] sm:$0xff]
    %v5970 = vld [vmem:[%s8 + $0x90] sm:$0xff]
    %v5971 = vld [vmem:[%s8 + $0x98] sm:$0xff]
    %5972 = vmatprep.subr.mxu0 0.0
    %5973 = vmatpush1.msra.mxu0 %v5952
    %5974 = vmatprep.subr.mxu0 0.0
    %5975 = vmatpush1.msra.mxu0 %v5953
    %5976 = vmatprep.subr.mxu0 0.0
    %5977 = vmatpush1.msra.mxu0 %v5954
    %5978 = vmatprep.subr.mxu0 0.0
    %5979 = vmatpush1.msra.mxu0 %v5955
    %5980 = vmatprep.subr.mxu0 0.0
    %5981 = vmatpush1.msra.mxu0 %v5956
    %5982 = vmatprep.subr.mxu0 0.0
    %5983 = vmatpush1.msra.mxu0 %v5957
    %5984 = vmatprep.subr.mxu0 0.0
    %5985 = vmatpush1.msra.mxu0 %v5958
    %5986 = vmatprep.subr.mxu0 0.0
    %5987 = vmatpush1.msra.mxu0 %v5959
    %5988 = vmatprep.subr.mxu0 0.0
    %5989 = vmatpush1.msra.mxu0 %v5960
    %5990 = vmatprep.subr.mxu0 0.0
    %5991 = vmatpush1.msra.mxu0 %v5961
    %5992 = vmatprep.subr.mxu0 0.0
    %5993 = vmatpush1.msra.mxu0 %v5962
    %5994 = vmatprep.subr.mxu0 0.0
    %5995 = vmatpush1.msra.mxu0 %v5963
    %5996 = vmatprep.subr.mxu0 0.0
    %5997 = vmatpush1.msra.mxu0 %v5964
    %5998 = vmatprep.subr.mxu0 0.0
    %5999 = vmatpush1.msra.mxu0 %v5965
    %6000 = vmatprep.subr.mxu0 0.0
    %6001 = vmatpush1.msra.mxu0 %v5966
    %6002 = vmatprep.subr.mxu0 0.0
    %6003 = vmatpush1.msra.mxu0 %v5967
    %6004 = vmatprep.subr.mxu0 0.0
    %6005 = vmatpush1.msra.mxu0 %v5968
    %6006 = vmatprep.subr.mxu0 0.0
    %6007 = vmatpush1.msra.mxu0 %v5969
    %6008 = vmatprep.subr.mxu0 0.0
    %6009 = vmatpush1.msra.mxu0 %v5970
    %6010 = vmatprep.subr.mxu0 0.0
    %6011 = vmatpush1.msra.mxu0 %v5971
    %6012 = vmatprep.subr.mxu0 0.0
    %6013 = vmatpush1.msra.mxu0 0.0
    %6014 = vmatprep.subr.mxu0 0.0
    %6015 = vmatpush1.msra.mxu0 0.0
    %6016 = vmatprep.subr.mxu0 0.0
    %6017 = vmatpush1.msra.mxu0 0.0
    %6018 = vmatprep.subr.mxu0 0.0
    %6019 = vmatpush1.msra.mxu0 0.0
    %6020 = vmatprep.subr.mxu0 0.0
    %6021 = vmatpush1.msra.mxu0 0.0
    %6022 = vmatprep.subr.mxu0 0.0
    %6023 = vmatpush1.msra.mxu0 0.0
    %6024 = vmatprep.subr.mxu0 0.0
    %6025 = vmatpush1.msra.mxu0 0.0
    %6026 = vmatprep.subr.mxu0 0.0
    %6027 = vmatpush1.msra.mxu0 0.0
    %6028 = vmatprep.subr.mxu0 0.0
    %6029 = vmatpush1.msra.mxu0 0.0
    %6030 = vmatprep.subr.mxu0 0.0
    %6031 = vmatpush1.msra.mxu0 0.0
    %6032 = vmatprep.subr.mxu0 0.0
    %6033 = vmatpush1.msra.mxu0 0.0
    %6034 = vmatprep.subr.mxu0 0.0
    %6035 = vmatpush1.msra.mxu0 0.0
    %6036 = vmatprep.mubr.f32.mxu0 %v5632
    %6037 = vmatmul.mubr.f32.gmra.mrb[0].mxu0 %v5547
    %v6038 = vpop.f32.mrb[0].mxu0
    %v6039 = vadd.f32 0.0, %v6038
    %v6040 = vpop.f32.mrb[0].mxu0
    %6041 = vmatprep.mubr.f32.mxu0 %v5635
    %6042 = vmatmul.mubr.f32.gmra.mrb[0].mxu0 %v5549
    %v6043 = vpop.f32.mrb[0].mxu0
    %v6044 = vadd.f32 0.0, %v6043
    %v6045 = vpop.f32.mrb[0].mxu0
    %6046 = vmatprep.mubr.f32.mxu0 %v5638
    %6047 = vmatmul.mubr.f32.gmra.mrb[0].mxu0 %v5551
    %v6048 = vpop.f32.mrb[0].mxu0
    %v6049 = vadd.f32 0.0, %v6048
    %v6050 = vpop.f32.mrb[0].mxu0
    %6051 = vmatprep.mubr.f32.mxu0 %v5641
    %6052 = vmatmul.mubr.f32.gmra.mrb[0].mxu0 %v5553
    %v6053 = vpop.f32.mrb[0].mxu0
    %v6054 = vadd.f32 0.0, %v6053
    %v6055 = vpop.f32.mrb[0].mxu0
    %6056 = vmatprep.mubr.f32.mxu0 %v5644
    %6057 = vmatmul.mubr.f32.gmra.mrb[0].mxu0 %v5555
    %v6058 = vpop.f32.mrb[0].mxu0
    %v6059 = vadd.f32 0.0, %v6058
    %v6060 = vpop.f32.mrb[0].mxu0
    %6061 = vmatprep.mubr.f32.mxu0 %v5647
    %6062 = vmatmul.mubr.f32.gmra.mrb[0].mxu0 %v5557
    %v6063 = vpop.f32.mrb[0].mxu0
    %v6064 = vadd.f32 0.0, %v6063
    %v6065 = vpop.f32.mrb[0].mxu0
    %6066 = vmatprep.mubr.f32.mxu0 %v5650
    %6067 = vmatmul.mubr.f32.gmra.mrb[0].mxu0 %v5559
    %v6068 = vpop.f32.mrb[0].mxu0
    %v6069 = vadd.f32 0.0, %v6068
    %v6070 = vpop.f32.mrb[0].mxu0
    %6071 = vmatprep.mubr.f32.mxu0 %v5653
    %6072 = vmatmul.mubr.f32.gmra.mrb[0].mxu0 %v5561
    %v6073 = vpop.f32.mrb[0].mxu0
    %v6074 = vadd.f32 0.0, %v6073
    %v6075 = vpop.f32.mrb[0].mxu0
    %6076 = vmatprep.mubr.f32.mxu0 %v5656
    %6077 = vmatmul.mubr.f32.gmra.mrb[0].mxu0 %v5563
    %v6078 = vpop.f32.mrb[0].mxu0
    %v6079 = vadd.f32 0.0, %v6078
    %v6080 = vpop.f32.mrb[0].mxu0
    %6081 = vmatprep.mubr.f32.mxu0 %v5659
    %6082 = vmatmul.mubr.f32.gmra.mrb[0].mxu0 %v5565
    %v6083 = vpop.f32.mrb[0].mxu0
    %v6084 = vadd.f32 0.0, %v6083
    %v6085 = vpop.f32.mrb[0].mxu0
    %6086 = vmatprep.mubr.f32.mxu0 %v5662
    %6087 = vmatmul.mubr.f32.gmra.mrb[0].mxu0 %v5567
    %v6088 = vpop.f32.mrb[0].mxu0
    %v6089 = vadd.f32 0.0, %v6088
    %v6090 = vpop.f32.mrb[0].mxu0
    %6091 = vmatprep.mubr.f32.mxu0 %v5665
    %6092 = vmatmul.mubr.f32.gmra.mrb[0].mxu0 %v5569
    %v6093 = vpop.f32.mrb[0].mxu0
    %v6094 = vadd.f32 0.0, %v6093
    %v6095 = vpop.f32.mrb[0].mxu0
    %6096 = vmatprep.mubr.f32.mxu0 %v5668
    %6097 = vmatmul.mubr.f32.gmra.mrb[0].mxu0 %v5571
    %v6098 = vpop.f32.mrb[0].mxu0
    %v6099 = vadd.f32 0.0, %v6098
    %v6100 = vpop.f32.mrb[0].mxu0
    %6101 = vmatprep.mubr.f32.mxu0 %v5671
    %6102 = vmatmul.mubr.f32.gmra.mrb[0].mxu0 %v5573
    %v6103 = vpop.f32.mrb[0].mxu0
    %v6104 = vadd.f32 0.0, %v6103
    %v6105 = vpop.f32.mrb[0].mxu0
    %6106 = vmatprep.mubr.f32.mxu0 %v5674
    %6107 = vmatmul.mubr.f32.gmra.mrb[0].mxu0 %v5575
    %v6108 = vpop.f32.mrb[0].mxu0
    %v6109 = vadd.f32 0.0, %v6108
    %v6110 = vpop.f32.mrb[0].mxu0
    %6111 = vmatprep.mubr.f32.mxu0 %v5677
    %6112 = vmatmul.mubr.f32.gmra.mrb[0].mxu0 %v5577
    %v6113 = vpop.f32.mrb[0].mxu0
    %v6114 = vadd.f32 0.0, %v6113
    %v6115 = vpop.f32.mrb[0].mxu0
    %6116 = vmatprep.mubr.f32.mxu0 %v5680
    %6117 = vmatmul.mubr.f32.gmra.mrb[0].mxu0 %v5579
    %v6118 = vpop.f32.mrb[0].mxu0
    %v6119 = vadd.f32 0.0, %v6118
    %v6120 = vpop.f32.mrb[0].mxu0
    %6121 = vmatprep.mubr.f32.mxu0 %v5683
    %6122 = vmatmul.mubr.f32.gmra.mrb[0].mxu0 %v5581
    %v6123 = vpop.f32.mrb[0].mxu0
    %v6124 = vadd.f32 0.0, %v6123
    %v6125 = vpop.f32.mrb[0].mxu0
    %6126 = vmatprep.mubr.f32.mxu0 %v5686
    %6127 = vmatmul.mubr.f32.gmra.mrb[0].mxu0 %v5583
    %v6128 = vpop.f32.mrb[0].mxu0
    %v6129 = vadd.f32 0.0, %v6128
    %v6130 = vpop.f32.mrb[0].mxu0
    %6131 = vmatprep.mubr.f32.mxu0 %v5689
    %6132 = vmatmul.mubr.f32.gmra.mrb[0].mxu0 %v5585
    %v6133 = vpop.f32.mrb[0].mxu0
    %v6134 = vadd.f32 0.0, %v6133
    %v6135 = vpop.f32.mrb[0].mxu0
    %6136 = vmatprep.mubr.f32.mxu0 %v5692
    %6137 = vmatmul.mubr.f32.gmra.mrb[0].mxu0 %v5587
    %v6138 = vpop.f32.mrb[0].mxu0
    %v6139 = vadd.f32 0.0, %v6138
    %v6140 = vpop.f32.mrb[0].mxu0
    %6141 = vmatprep.mubr.f32.mxu0 %v5695
    %6142 = vmatmul.mubr.f32.gmra.mrb[0].mxu0 %v5589
    %v6143 = vpop.f32.mrb[0].mxu0
    %v6144 = vadd.f32 0.0, %v6143
    %v6145 = vpop.f32.mrb[0].mxu0
    %6146 = vmatprep.mubr.f32.mxu0 %v5698
    %6147 = vmatmul.mubr.f32.gmra.mrb[0].mxu0 %v5591
    %v6148 = vpop.f32.mrb[0].mxu0
    %v6149 = vadd.f32 0.0, %v6148
    %v6150 = vpop.f32.mrb[0].mxu0
    %6151 = vmatprep.mubr.f32.mxu0 %v5701
    %6152 = vmatmul.mubr.f32.gmra.mrb[0].mxu0 %v5593
    %v6153 = vpop.f32.mrb[0].mxu0
    %v6154 = vadd.f32 0.0, %v6153
    %v6155 = vpop.f32.mrb[0].mxu0
    %6156 = vmatprep.mubr.f32.mxu0 %v5704
    %6157 = vmatmul.mubr.f32.gmra.mrb[0].mxu0 %v5595
    %v6158 = vpop.f32.mrb[0].mxu0
    %v6159 = vadd.f32 0.0, %v6158
    %v6160 = vpop.f32.mrb[0].mxu0
    %6161 = vmatprep.mubr.f32.mxu0 %v5707
    %6162 = vmatmul.mubr.f32.gmra.mrb[0].mxu0 %v5597
    %v6163 = vpop.f32.mrb[0].mxu0
    %v6164 = vadd.f32 0.0, %v6163
    %v6165 = vpop.f32.mrb[0].mxu0
    %6166 = vmatprep.mubr.f32.mxu0 %v5710
    %6167 = vmatmul.mubr.f32.gmra.mrb[0].mxu0 %v5599
    %v6168 = vpop.f32.mrb[0].mxu0
    %v6169 = vadd.f32 0.0, %v6168
    %v6170 = vpop.f32.mrb[0].mxu0
    %6171 = vmatprep.mubr.f32.mxu0 %v5713
    %6172 = vmatmul.mubr.f32.gmra.mrb[0].mxu0 %v5601
    %v6173 = vpop.f32.mrb[0].mxu0
    %v6174 = vadd.f32 0.0, %v6173
    %v6175 = vpop.f32.mrb[0].mxu0
    %6176 = vmatprep.mubr.f32.mxu0 %v5716
    %6177 = vmatmul.mubr.f32.gmra.mrb[0].mxu0 %v5603
    %v6178 = vpop.f32.mrb[0].mxu0
    %v6179 = vadd.f32 0.0, %v6178
    %v6180 = vpop.f32.mrb[0].mxu0
    %6181 = vmatprep.mubr.f32.mxu0 %v5719
    %6182 = vmatmul.mubr.f32.gmra.mrb[0].mxu0 %v5605
    %v6183 = vpop.f32.mrb[0].mxu0
    %v6184 = vadd.f32 0.0, %v6183
    %v6185 = vpop.f32.mrb[0].mxu0
    %6186 = vmatprep.mubr.f32.mxu0 %v5722
    %6187 = vmatmul.mubr.f32.gmra.mrb[0].mxu0 %v5607
    %v6188 = vpop.f32.mrb[0].mxu0
    %v6189 = vadd.f32 0.0, %v6188
    %v6190 = vpop.f32.mrb[0].mxu0
    %6191 = vmatprep.mubr.f32.mxu0 %v5725
    %6192 = vmatmul.mubr.f32.gmra.mrb[0].mxu0 %v5609
    %v6193 = vpop.f32.mrb[0].mxu0
    %v6194 = vadd.f32 0.0, %v6193
    %v6195 = vpop.f32.mrb[0].mxu0
    %6196 = vdwg.mxu0
    %v6197 = vmax.f32 %v5794, %v6039
    %v6198 = vmax.f32 %v5799, %v6044
    %v6199 = vmax.f32 %v5804, %v6049
    %v6200 = vmax.f32 %v5809, %v6054
    %v6201 = vmax.f32 %v5814, %v6059
    %v6202 = vmax.f32 %v5819, %v6064
    %v6203 = vmax.f32 %v5824, %v6069
    %v6204 = vmax.f32 %v5829, %v6074
    %v6205 = vmax.f32 %v5834, %v6079
    %v6206 = vmax.f32 %v5839, %v6084
    %v6207 = vmax.f32 %v5844, %v6089
    %v6208 = vmax.f32 %v5849, %v6094
    %v6209 = vmax.f32 %v5854, %v6099
    %v6210 = vmax.f32 %v5859, %v6104
    %v6211 = vmax.f32 %v5864, %v6109
    %v6212 = vmax.f32 %v5869, %v6114
    %v6213 = vmax.f32 %v5874, %v6119
    %v6214 = vmax.f32 %v5879, %v6124
    %v6215 = vmax.f32 %v5884, %v6129
    %v6216 = vmax.f32 %v5889, %v6134
    %v6217 = vmax.f32 %v5894, %v6139
    %v6218 = vmax.f32 %v5899, %v6144
    %v6219 = vmax.f32 %v5904, %v6149
    %v6220 = vmax.f32 %v5909, %v6154
    %v6221 = vmax.f32 %v5914, %v6159
    %v6222 = vmax.f32 %v5919, %v6164
    %v6223 = vmax.f32 %v5924, %v6169
    %v6224 = vmax.f32 %v5929, %v6174
    %v6225 = vmax.f32 %v5934, %v6179
    %v6226 = vmax.f32 %v5939, %v6184
    %v6227 = vmax.f32 %v5944, %v6189
    %v6228 = vmax.f32 %v5949, %v6194
    %6229 = vst.msk [vmem:[#allocation4] sm:$0xff] %vm124, %v6197
    %6230 = vst.msk [vmem:[#allocation4 + $0x8] sm:$0xff] %vm124, %v6198
    %6231 = vst.msk [vmem:[#allocation4 + $0x10] sm:$0xff] %vm124, %v6199
    %6232 = vst.msk [vmem:[#allocation4 + $0x18] sm:$0xff] %vm124, %v6200
    %6233 = vst.msk [vmem:[#allocation4 + $0x20] sm:$0xff] %vm124, %v6201
    %6234 = vst.msk [vmem:[#allocation4 + $0x28] sm:$0xff] %vm124, %v6202
    %6235 = vst.msk [vmem:[#allocation4 + $0x30] sm:$0xff] %vm124, %v6203
    %6236 = vst.msk [vmem:[#allocation4 + $0x38] sm:$0xff] %vm124, %v6204
    %6237 = vst.msk [vmem:[#allocation4 + $0x40] sm:$0xff] %vm124, %v6205
    %6238 = vst.msk [vmem:[#allocation4 + $0x48] sm:$0xff] %vm124, %v6206
    %6239 = vst.msk [vmem:[#allocation4 + $0x50] sm:$0xff] %vm124, %v6207
    %6240 = vst.msk [vmem:[#allocation4 + $0x58] sm:$0xff] %vm124, %v6208
    %6241 = vst.msk [vmem:[#allocation4 + $0x60] sm:$0xff] %vm124, %v6209
    %6242 = vst.msk [vmem:[#allocation4 + $0x68] sm:$0xff] %vm124, %v6210
    %6243 = vst.msk [vmem:[#allocation4 + $0x70] sm:$0xff] %vm124, %v6211
    %6244 = vst.msk [vmem:[#allocation4 + $0x78] sm:$0xff] %vm124, %v6212
    %6245 = vst.msk [vmem:[#allocation4 + $0x80] sm:$0xff] %vm124, %v6213
    %6246 = vst.msk [vmem:[#allocation4 + $0x88] sm:$0xff] %vm124, %v6214
    %6247 = vst.msk [vmem:[#allocation4 + $0x90] sm:$0xff] %vm124, %v6215
    %6248 = vst.msk [vmem:[#allocation4 + $0x98] sm:$0xff] %vm124, %v6216
    %6249 = vst.msk [vmem:[#allocation4 + $0xa0] sm:$0xff] %vm124, %v6217
    %6250 = vst.msk [vmem:[#allocation4 + $0xa8] sm:$0xff] %vm124, %v6218
    %6251 = vst.msk [vmem:[#allocation4 + $0xb0] sm:$0xff] %vm124, %v6219
    %6252 = vst.msk [vmem:[#allocation4 + $0xb8] sm:$0xff] %vm124, %v6220
    %6253 = vst.msk [vmem:[#allocation4 + $0xc0] sm:$0xff] %vm124, %v6221
    %6254 = vst.msk [vmem:[#allocation4 + $0xc8] sm:$0xff] %vm124, %v6222
    %6255 = vst.msk [vmem:[#allocation4 + $0xd0] sm:$0xff] %vm124, %v6223
    %6256 = vst.msk [vmem:[#allocation4 + $0xd8] sm:$0xff] %vm124, %v6224
    %6257 = vst.msk [vmem:[#allocation4 + $0xe0] sm:$0xff] %vm124, %v6225
    %6258 = vst.msk [vmem:[#allocation4 + $0xe8] sm:$0xff] %vm124, %v6226
    %6259 = vst.msk [vmem:[#allocation4 + $0xf0] sm:$0xff] %vm124, %v6227
    %6260 = vst.msk [vmem:[#allocation4 + $0xf8] sm:$0xff] %vm124, %v6228
    %v6261 = vld [vmem:[#allocation4] sm:$0xff]
    %v6262 = vld [vmem:[#allocation4 + $0x8] sm:$0xff]
    %v6263 = vld [vmem:[#allocation4 + $0x10] sm:$0xff]
    %v6264 = vld [vmem:[#allocation4 + $0x18] sm:$0xff]
    %v6265 = vld [vmem:[#allocation4 + $0x20] sm:$0xff]
    %v6266 = vld [vmem:[#allocation4 + $0x28] sm:$0xff]
    %v6267 = vld [vmem:[#allocation4 + $0x30] sm:$0xff]
    %v6268 = vld [vmem:[#allocation4 + $0x38] sm:$0xff]
    %v6269 = vld [vmem:[#allocation4 + $0x40] sm:$0xff]
    %v6270 = vld [vmem:[#allocation4 + $0x48] sm:$0xff]
    %v6271 = vld [vmem:[#allocation4 + $0x50] sm:$0xff]
    %v6272 = vld [vmem:[#allocation4 + $0x58] sm:$0xff]
    %v6273 = vld [vmem:[#allocation4 + $0x60] sm:$0xff]
    %v6274 = vld [vmem:[#allocation4 + $0x68] sm:$0xff]
    %v6275 = vld [vmem:[#allocation4 + $0x70] sm:$0xff]
    %v6276 = vld [vmem:[#allocation4 + $0x78] sm:$0xff]
    %v6277 = vld [vmem:[#allocation4 + $0x80] sm:$0xff]
    %v6278 = vld [vmem:[#allocation4 + $0x88] sm:$0xff]
    %v6279 = vld [vmem:[#allocation4 + $0x90] sm:$0xff]
    %v6280 = vld [vmem:[#allocation4 + $0x98] sm:$0xff]
    %v6281 = vld [vmem:[#allocation4 + $0xa0] sm:$0xff]
    %v6282 = vld [vmem:[#allocation4 + $0xa8] sm:$0xff]
    %v6283 = vld [vmem:[#allocation4 + $0xb0] sm:$0xff]
    %v6284 = vld [vmem:[#allocation4 + $0xb8] sm:$0xff]
    %v6285 = vld [vmem:[#allocation4 + $0xc0] sm:$0xff]
    %v6286 = vld [vmem:[#allocation4 + $0xc8] sm:$0xff]
    %v6287 = vld [vmem:[#allocation4 + $0xd0] sm:$0xff]
    %v6288 = vld [vmem:[#allocation4 + $0xd8] sm:$0xff]
    %v6289 = vld [vmem:[#allocation4 + $0xe0] sm:$0xff]
    %v6290 = vld [vmem:[#allocation4 + $0xe8] sm:$0xff]
    %v6291 = vld [vmem:[#allocation4 + $0xf0] sm:$0xff]
    %v6292 = vld [vmem:[#allocation4 + $0xf8] sm:$0xff]
    %v6293 = vld [vmem:[#allocation4 + $0x2] sm:$0xff]
    %v6294 = vld [vmem:[#allocation4 + $0xa] sm:$0xff]
    %v6295 = vld [vmem:[#allocation4 + $0x12] sm:$0xff]
    %v6296 = vld [vmem:[#allocation4 + $0x1a] sm:$0xff]
    %v6297 = vld [vmem:[#allocation4 + $0x22] sm:$0xff]
    %v6298 = vld [vmem:[#allocation4 + $0x2a] sm:$0xff]
    %v6299 = vld [vmem:[#allocation4 + $0x32] sm:$0xff]
    %v6300 = vld [vmem:[#allocation4 + $0x3a] sm:$0xff]
    %v6301 = vld [vmem:[#allocation4 + $0x42] sm:$0xff]
    %v6302 = vld [vmem:[#allocation4 + $0x4a] sm:$0xff]
    %v6303 = vld [vmem:[#allocation4 + $0x52] sm:$0xff]
    %v6304 = vld [vmem:[#allocation4 + $0x5a] sm:$0xff]
    %v6305 = vld [vmem:[#allocation4 + $0x62] sm:$0xff]
    %v6306 = vld [vmem:[#allocation4 + $0x6a] sm:$0xff]
    %v6307 = vld [vmem:[#allocation4 + $0x72] sm:$0xff]
    %v6308 = vld [vmem:[#allocation4 + $0x7a] sm:$0xff]
    %v6309 = vld [vmem:[#allocation4 + $0x82] sm:$0xff]
    %v6310 = vld [vmem:[#allocation4 + $0x8a] sm:$0xff]
    %v6311 = vld [vmem:[#allocation4 + $0x92] sm:$0xff]
    %v6312 = vld [vmem:[#allocation4 + $0x9a] sm:$0xff]
    %v6313 = vld [vmem:[#allocation4 + $0xa2] sm:$0xff]
    %v6314 = vld [vmem:[#allocation4 + $0xaa] sm:$0xff]
    %v6315 = vld [vmem:[#allocation4 + $0xb2] sm:$0xff]
    %v6316 = vld [vmem:[#allocation4 + $0xba] sm:$0xff]
    %v6317 = vld [vmem:[#allocation4 + $0xc2] sm:$0xff]
    %v6318 = vld [vmem:[#allocation4 + $0xca] sm:$0xff]
    %v6319 = vld [vmem:[#allocation4 + $0xd2] sm:$0xff]
    %v6320 = vld [vmem:[#allocation4 + $0xda] sm:$0xff]
    %v6321 = vld [vmem:[#allocation4 + $0xe2] sm:$0xff]
    %v6322 = vld [vmem:[#allocation4 + $0xea] sm:$0xff]
    %v6323 = vld [vmem:[#allocation4 + $0xf2] sm:$0xff]
    %v6324 = vld [vmem:[#allocation4 + $0xfa] sm:$0xff]
    %v6325 = vmax.f32 %v6261, %v6293
    %v6326 = vmax.f32 %v6262, %v6294
    %v6327 = vmax.f32 %v6263, %v6295
    %v6328 = vmax.f32 %v6264, %v6296
    %v6329 = vmax.f32 %v6265, %v6297
    %v6330 = vmax.f32 %v6266, %v6298
    %v6331 = vmax.f32 %v6267, %v6299
    %v6332 = vmax.f32 %v6268, %v6300
    %v6333 = vmax.f32 %v6269, %v6301
    %v6334 = vmax.f32 %v6270, %v6302
    %v6335 = vmax.f32 %v6271, %v6303
    %v6336 = vmax.f32 %v6272, %v6304
    %v6337 = vmax.f32 %v6273, %v6305
    %v6338 = vmax.f32 %v6274, %v6306
    %v6339 = vmax.f32 %v6275, %v6307
    %v6340 = vmax.f32 %v6276, %v6308
    %v6341 = vmax.f32 %v6277, %v6309
    %v6342 = vmax.f32 %v6278, %v6310
    %v6343 = vmax.f32 %v6279, %v6311
    %v6344 = vmax.f32 %v6280, %v6312
    %v6345 = vmax.f32 %v6281, %v6313
    %v6346 = vmax.f32 %v6282, %v6314
    %v6347 = vmax.f32 %v6283, %v6315
    %v6348 = vmax.f32 %v6284, %v6316
    %v6349 = vmax.f32 %v6285, %v6317
    %v6350 = vmax.f32 %v6286, %v6318
    %v6351 = vmax.f32 %v6287, %v6319
    %v6352 = vmax.f32 %v6288, %v6320
    %v6353 = vmax.f32 %v6289, %v6321
    %v6354 = vmax.f32 %v6290, %v6322
    %v6355 = vmax.f32 %v6291, %v6323
    %v6356 = vmax.f32 %v6292, %v6324
    %6357 = vst.msk [vmem:[#allocation4] sm:$0xff] %vm124, %v6325
    %6358 = vst.msk [vmem:[#allocation4 + $0x8] sm:$0xff] %vm124, %v6326
    %6359 = vst.msk [vmem:[#allocation4 + $0x10] sm:$0xff] %vm124, %v6327
    %6360 = vst.msk [vmem:[#allocation4 + $0x18] sm:$0xff] %vm124, %v6328
    %6361 = vst.msk [vmem:[#allocation4 + $0x20] sm:$0xff] %vm124, %v6329
    %6362 = vst.msk [vmem:[#allocation4 + $0x28] sm:$0xff] %vm124, %v6330
    %6363 = vst.msk [vmem:[#allocation4 + $0x30] sm:$0xff] %vm124, %v6331
    %6364 = vst.msk [vmem:[#allocation4 + $0x38] sm:$0xff] %vm124, %v6332
    %6365 = vst.msk [vmem:[#allocation4 + $0x40] sm:$0xff] %vm124, %v6333
    %6366 = vst.msk [vmem:[#allocation4 + $0x48] sm:$0xff] %vm124, %v6334
    %6367 = vst.msk [vmem:[#allocation4 + $0x50] sm:$0xff] %vm124, %v6335
    %6368 = vst.msk [vmem:[#allocation4 + $0x58] sm:$0xff] %vm124, %v6336
    %6369 = vst.msk [vmem:[#allocation4 + $0x60] sm:$0xff] %vm124, %v6337
    %6370 = vst.msk [vmem:[#allocation4 + $0x68] sm:$0xff] %vm124, %v6338
    %6371 = vst.msk [vmem:[#allocation4 + $0x70] sm:$0xff] %vm124, %v6339
    %6372 = vst.msk [vmem:[#allocation4 + $0x78] sm:$0xff] %vm124, %v6340
    %6373 = vst.msk [vmem:[#allocation4 + $0x80] sm:$0xff] %vm124, %v6341
    %6374 = vst.msk [vmem:[#allocation4 + $0x88] sm:$0xff] %vm124, %v6342
    %6375 = vst.msk [vmem:[#allocation4 + $0x90] sm:$0xff] %vm124, %v6343
    %6376 = vst.msk [vmem:[#allocation4 + $0x98] sm:$0xff] %vm124, %v6344
    %6377 = vst.msk [vmem:[#allocation4 + $0xa0] sm:$0xff] %vm124, %v6345
    %6378 = vst.msk [vmem:[#allocation4 + $0xa8] sm:$0xff] %vm124, %v6346
    %6379 = vst.msk [vmem:[#allocation4 + $0xb0] sm:$0xff] %vm124, %v6347
    %6380 = vst.msk [vmem:[#allocation4 + $0xb8] sm:$0xff] %vm124, %v6348
    %6381 = vst.msk [vmem:[#allocation4 + $0xc0] sm:$0xff] %vm124, %v6349
    %6382 = vst.msk [vmem:[#allocation4 + $0xc8] sm:$0xff] %vm124, %v6350
    %6383 = vst.msk [vmem:[#allocation4 + $0xd0] sm:$0xff] %vm124, %v6351
    %6384 = vst.msk [vmem:[#allocation4 + $0xd8] sm:$0xff] %vm124, %v6352
    %6385 = vst.msk [vmem:[#allocation4 + $0xe0] sm:$0xff] %vm124, %v6353
    %6386 = vst.msk [vmem:[#allocation4 + $0xe8] sm:$0xff] %vm124, %v6354
    %6387 = vst.msk [vmem:[#allocation4 + $0xf0] sm:$0xff] %vm124, %v6355
    %6388 = vst.msk [vmem:[#allocation4 + $0xf8] sm:$0xff] %vm124, %v6356
    %v6389 = vld [vmem:[%s10] sm:$0x1]
    %v6390 = vld [vmem:[%s15] sm:$0xff]
    %v6391 = vld [vmem:[%s15 + $0x8] sm:$0xff]
    %v6392 = vld [vmem:[#allocation4] sm:$0xff]
    %v6393 = vld [vmem:[#allocation4 + $0x8] sm:$0xff]
    %v6394 = vld [vmem:[#allocation4 + $0x10] sm:$0xff]
    %v6395 = vld [vmem:[#allocation4 + $0x18] sm:$0xff]
    %v6396 = vld [vmem:[#allocation4 + $0x20] sm:$0xff]
    %v6397 = vld [vmem:[#allocation4 + $0x28] sm:$0xff]
    %v6398 = vld [vmem:[#allocation4 + $0x30] sm:$0xff]
    %v6399 = vld [vmem:[#allocation4 + $0x38] sm:$0xff]
    %v6400 = vld [vmem:[#allocation4 + $0x40] sm:$0xff]
    %v6401 = vld [vmem:[#allocation4 + $0x48] sm:$0xff]
    %v6402 = vld [vmem:[#allocation4 + $0x50] sm:$0xff]
    %v6403 = vld [vmem:[#allocation4 + $0x58] sm:$0xff]
    %v6404 = vld [vmem:[#allocation4 + $0x60] sm:$0xff]
    %v6405 = vld [vmem:[#allocation4 + $0x68] sm:$0xff]
    %v6406 = vld [vmem:[#allocation4 + $0x70] sm:$0xff]
    %v6407 = vld [vmem:[#allocation4 + $0x78] sm:$0xff]
    %v6408 = vld [vmem:[#allocation4 + $0x80] sm:$0xff]
    %v6409 = vld [vmem:[#allocation4 + $0x88] sm:$0xff]
    %v6410 = vld [vmem:[#allocation4 + $0x90] sm:$0xff]
    %v6411 = vld [vmem:[#allocation4 + $0x98] sm:$0xff]
    %v6412 = vld [vmem:[#allocation4 + $0xa0] sm:$0xff]
    %v6413 = vld [vmem:[#allocation4 + $0xa8] sm:$0xff]
    %v6414 = vld [vmem:[#allocation4 + $0xb0] sm:$0xff]
    %v6415 = vld [vmem:[#allocation4 + $0xb8] sm:$0xff]
    %v6416 = vld [vmem:[#allocation4 + $0xc0] sm:$0xff]
    %v6417 = vld [vmem:[#allocation4 + $0xc8] sm:$0xff]
    %v6418 = vld [vmem:[#allocation4 + $0xd0] sm:$0xff]
    %v6419 = vld [vmem:[#allocation4 + $0xd8] sm:$0xff]
    %v6420 = vld [vmem:[#allocation4 + $0xe0] sm:$0xff]
    %v6421 = vld [vmem:[#allocation4 + $0xe8] sm:$0xff]
    %v6422 = vld [vmem:[#allocation4 + $0xf0] sm:$0xff]
    %v6423 = vld [vmem:[#allocation4 + $0xf8] sm:$0xff]
    %6424 = vmatprep.subr.mxu0 0.0
    %6425 = vmatpush1.msra.mxu0 %v6392
    %6426 = vmatprep.subr.mxu0 0.0
    %6427 = vmatpush1.msra.mxu0 %v6393
    %6428 = vmatprep.subr.mxu0 0.0
    %6429 = vmatpush1.msra.mxu0 %v6394
    %6430 = vmatprep.subr.mxu0 0.0
    %6431 = vmatpush1.msra.mxu0 %v6395
    %6432 = vmatprep.subr.mxu0 0.0
    %6433 = vmatpush1.msra.mxu0 %v6396
    %6434 = vmatprep.subr.mxu0 0.0
    %6435 = vmatpush1.msra.mxu0 %v6397
    %6436 = vmatprep.subr.mxu0 0.0
    %6437 = vmatpush1.msra.mxu0 %v6398
    %6438 = vmatprep.subr.mxu0 0.0
    %6439 = vmatpush1.msra.mxu0 %v6399
    %6440 = vmatprep.subr.mxu0 0.0
    %6441 = vmatpush1.msra.mxu0 %v6400
    %6442 = vmatprep.subr.mxu0 0.0
    %6443 = vmatpush1.msra.mxu0 %v6401
    %6444 = vmatprep.subr.mxu0 0.0
    %6445 = vmatpush1.msra.mxu0 %v6402
    %6446 = vmatprep.subr.mxu0 0.0
    %6447 = vmatpush1.msra.mxu0 %v6403
    %6448 = vmatprep.subr.mxu0 0.0
    %6449 = vmatpush1.msra.mxu0 %v6404
    %6450 = vmatprep.subr.mxu0 0.0
    %6451 = vmatpush1.msra.mxu0 %v6405
    %6452 = vmatprep.subr.mxu0 0.0
    %6453 = vmatpush1.msra.mxu0 %v6406
    %6454 = vmatprep.subr.mxu0 0.0
    %6455 = vmatpush1.msra.mxu0 %v6407
    %6456 = vmatprep.subr.mxu0 0.0
    %6457 = vmatpush1.msra.mxu0 %v6408
    %6458 = vmatprep.subr.mxu0 0.0
    %6459 = vmatpush1.msra.mxu0 %v6409
    %6460 = vmatprep.subr.mxu0 0.0
    %6461 = vmatpush1.msra.mxu0 %v6410
    %6462 = vmatprep.subr.mxu0 0.0
    %6463 = vmatpush1.msra.mxu0 %v6411
    %6464 = vmatprep.subr.mxu0 0.0
    %6465 = vmatpush1.msra.mxu0 %v6412
    %6466 = vmatprep.subr.mxu0 0.0
    %6467 = vmatpush1.msra.mxu0 %v6413
    %6468 = vmatprep.subr.mxu0 0.0
    %6469 = vmatpush1.msra.mxu0 %v6414
    %6470 = vmatprep.subr.mxu0 0.0
    %6471 = vmatpush1.msra.mxu0 %v6415
    %6472 = vmatprep.subr.mxu0 0.0
    %6473 = vmatpush1.msra.mxu0 %v6416
    %6474 = vmatprep.subr.mxu0 0.0
    %6475 = vmatpush1.msra.mxu0 %v6417
    %6476 = vmatprep.subr.mxu0 0.0
    %6477 = vmatpush1.msra.mxu0 %v6418
    %6478 = vmatprep.subr.mxu0 0.0
    %6479 = vmatpush1.msra.mxu0 %v6419
    %6480 = vmatprep.subr.mxu0 0.0
    %6481 = vmatpush1.msra.mxu0 %v6420
    %6482 = vmatprep.subr.mxu0 0.0
    %6483 = vmatpush1.msra.mxu0 %v6421
    %6484 = vmatprep.subr.mxu0 0.0
    %6485 = vmatpush1.msra.mxu0 %v6422
    %6486 = vmatprep.subr.mxu0 0.0
    %6487 = vmatpush1.msra.mxu0 %v6423
    %6488 = vmatprep.mubr.f32.mxu0 %v6391
    %6489 = vmatmul.mubr.f32.gmra.mrb[0].mxu0 %v6390
    %v6490 = vpop.f32.mrb[0].mxu0
    %v6491 = vadd.f32 0.0, %v6490
    %v6492 = vpop.f32.mrb[0].mxu0
    %6493 = vdwg.mxu0
    %v6494 = vld [vmem:[%s9] sm:$0xff]
    %v6495 = vld [vmem:[%s9 + $0x8] sm:$0xff]
    %v6496 = vld [vmem:[%s9 + $0x10] sm:$0xff]
    %v6497 = vld [vmem:[%s9 + $0x18] sm:$0xff]
    %v6498 = vld [vmem:[%s9 + $0x20] sm:$0xff]
    %v6499 = vld [vmem:[%s9 + $0x28] sm:$0xff]
    %v6500 = vld [vmem:[%s9 + $0x30] sm:$0xff]
    %v6501 = vld [vmem:[%s9 + $0x38] sm:$0xff]
    %v6502 = vld [vmem:[%s9 + $0x40] sm:$0xff]
    %v6503 = vld [vmem:[%s9 + $0x48] sm:$0xff]
    %v6505 = vsel %vm124, %v6491, 0
    %6507 = vmatprep.subr.mxu0 0.0
    %6508 = vmatpush1.msra.mxu0 %v6494
    %6509 = vmatprep.subr.mxu0 0.0
    %6510 = vmatpush1.msra.mxu0 %v6495
    %6511 = vmatprep.subr.mxu0 0.0
    %6512 = vmatpush1.msra.mxu0 %v6496
    %6513 = vmatprep.subr.mxu0 0.0
    %6514 = vmatpush1.msra.mxu0 %v6497
    %6515 = vmatprep.subr.mxu0 0.0
    %6516 = vmatpush1.msra.mxu0 %v6498
    %6517 = vmatprep.subr.mxu0 0.0
    %6518 = vmatpush1.msra.mxu0 %v6499
    %6519 = vmatprep.subr.mxu0 0.0
    %6520 = vmatpush1.msra.mxu0 %v6500
    %6521 = vmatprep.subr.mxu0 0.0
    %6522 = vmatpush1.msra.mxu0 %v6501
    %6523 = vmatprep.subr.mxu0 0.0
    %6524 = vmatpush1.msra.mxu0 %v6502
    %6525 = vmatprep.subr.mxu0 0.0
    %6526 = vmatpush1.msra.mxu0 %v6503
    %6527 = vmatprep.subr.mxu0 0.0
    %6528 = vmatpush1.msra.mxu0 0.0
    %6529 = vmatprep.subr.mxu0 0.0
    %6530 = vmatpush1.msra.mxu0 0.0
    %6531 = vmatprep.subr.mxu0 0.0
    %6532 = vmatpush1.msra.mxu0 0.0
    %6533 = vmatprep.subr.mxu0 0.0
    %6534 = vmatpush1.msra.mxu0 0.0
    %6535 = vmatprep.subr.mxu0 0.0
    %6536 = vmatpush1.msra.mxu0 0.0
    %6537 = vmatprep.subr.mxu0 0.0
    %6538 = vmatpush1.msra.mxu0 0.0
    %6539 = vmatprep.subr.mxu0 0.0
    %6540 = vmatpush1.msra.mxu0 0.0
    %6541 = vmatprep.subr.mxu0 0.0
    %6542 = vmatpush1.msra.mxu0 0.0
    %6543 = vmatprep.subr.mxu0 0.0
    %6544 = vmatpush1.msra.mxu0 0.0
    %6545 = vmatprep.subr.mxu0 0.0
    %6546 = vmatpush1.msra.mxu0 0.0
    %6547 = vmatprep.subr.mxu0 0.0
    %6548 = vmatpush1.msra.mxu0 0.0
    %6549 = vmatprep.subr.mxu0 0.0
    %6550 = vmatpush1.msra.mxu0 0.0
    %6551 = vmatprep.subr.mxu0 0.0
    %6552 = vmatpush1.msra.mxu0 0.0
    %6553 = vmatprep.subr.mxu0 0.0
    %6554 = vmatpush1.msra.mxu0 0.0
    %6555 = vmatprep.subr.mxu0 0.0
    %6556 = vmatpush1.msra.mxu0 0.0
    %6557 = vmatprep.subr.mxu0 0.0
    %6558 = vmatpush1.msra.mxu0 0.0
    %6559 = vmatprep.subr.mxu0 0.0
    %6560 = vmatpush1.msra.mxu0 0.0
    %6561 = vmatprep.subr.mxu0 0.0
    %6562 = vmatpush1.msra.mxu0 0.0
    %6563 = vmatprep.subr.mxu0 0.0
    %6564 = vmatpush1.msra.mxu0 0.0
    %6565 = vmatprep.subr.mxu0 0.0
    %6566 = vmatpush1.msra.mxu0 0.0
    %6567 = vmatprep.subr.mxu0 0.0
    %6568 = vmatpush1.msra.mxu0 0.0
    %6569 = vmatprep.subr.mxu0 0.0
    %6570 = vmatpush1.msra.mxu0 0.0
    %6571 = vmatprep.mubr.f32.mxu0 0.0
    %6572 = vmatmul.mubr.f32.gmra.mrb[0].mxu0 %v6505
    %v6573 = vpop.f32.mrb[0].mxu0
    %v6574 = vadd.f32 0.0, %v6573
    %v6575 = vpop.f32.mrb[0].mxu0
    %6576 = vdwg.mxu0
    %v6578 = vlaneseq
    %v6579 = vshrl.u32 %v6578, 7
    %v6580 = vsub.s32 0, %v6579
    %v6581 = vrot.slane %v6389, %v6580
    %v6583 = vadd.f32 %v6581, %v6574
    %v6584 = vld [vmem:[#allocation4 + $0x4] sm:$0xff]
    %v6585 = vld [vmem:[#allocation4 + $0xc] sm:$0xff]
    %v6586 = vld [vmem:[#allocation4 + $0x14] sm:$0xff]
    %v6587 = vld [vmem:[#allocation4 + $0x1c] sm:$0xff]
    %v6588 = vld [vmem:[#allocation4 + $0x24] sm:$0xff]
    %v6589 = vld [vmem:[#allocation4 + $0x2c] sm:$0xff]
    %v6590 = vld [vmem:[#allocation4 + $0x34] sm:$0xff]
    %v6591 = vld [vmem:[#allocation4 + $0x3c] sm:$0xff]
    %v6592 = vld [vmem:[#allocation4 + $0x44] sm:$0xff]
    %v6593 = vld [vmem:[#allocation4 + $0x4c] sm:$0xff]
    %v6594 = vld [vmem:[#allocation4 + $0x54] sm:$0xff]
    %v6595 = vld [vmem:[#allocation4 + $0x5c] sm:$0xff]
    %v6596 = vld [vmem:[#allocation4 + $0x64] sm:$0xff]
    %v6597 = vld [vmem:[#allocation4 + $0x6c] sm:$0xff]
    %v6598 = vld [vmem:[#allocation4 + $0x74] sm:$0xff]
    %v6599 = vld [vmem:[#allocation4 + $0x7c] sm:$0xff]
    %v6600 = vld [vmem:[#allocation4 + $0x84] sm:$0xff]
    %v6601 = vld [vmem:[#allocation4 + $0x8c] sm:$0xff]
    %v6602 = vld [vmem:[#allocation4 + $0x94] sm:$0xff]
    %v6603 = vld [vmem:[#allocation4 + $0x9c] sm:$0xff]
    %v6604 = vld [vmem:[#allocation4 + $0xa4] sm:$0xff]
    %v6605 = vld [vmem:[#allocation4 + $0xac] sm:$0xff]
    %v6606 = vld [vmem:[#allocation4 + $0xb4] sm:$0xff]
    %v6607 = vld [vmem:[#allocation4 + $0xbc] sm:$0xff]
    %v6608 = vld [vmem:[#allocation4 + $0xc4] sm:$0xff]
    %v6609 = vld [vmem:[#allocation4 + $0xcc] sm:$0xff]
    %v6610 = vld [vmem:[#allocation4 + $0xd4] sm:$0xff]
    %v6611 = vld [vmem:[#allocation4 + $0xdc] sm:$0xff]
    %v6612 = vld [vmem:[#allocation4 + $0xe4] sm:$0xff]
    %v6613 = vld [vmem:[#allocation4 + $0xec] sm:$0xff]
    %v6614 = vld [vmem:[#allocation4 + $0xf4] sm:$0xff]
    %v6615 = vld [vmem:[#allocation4 + $0xfc] sm:$0xff]
    %6616 = vmatprep.subr.mxu0 0.0
    %6617 = vmatpush1.msra.mxu0 %v6584
    %6618 = vmatprep.subr.mxu0 0.0
    %6619 = vmatpush1.msra.mxu0 %v6585
    %6620 = vmatprep.subr.mxu0 0.0
    %6621 = vmatpush1.msra.mxu0 %v6586
    %6622 = vmatprep.subr.mxu0 0.0
    %6623 = vmatpush1.msra.mxu0 %v6587
    %6624 = vmatprep.subr.mxu0 0.0
    %6625 = vmatpush1.msra.mxu0 %v6588
    %6626 = vmatprep.subr.mxu0 0.0
    %6627 = vmatpush1.msra.mxu0 %v6589
    %6628 = vmatprep.subr.mxu0 0.0
    %6629 = vmatpush1.msra.mxu0 %v6590
    %6630 = vmatprep.subr.mxu0 0.0
    %6631 = vmatpush1.msra.mxu0 %v6591
    %6632 = vmatprep.subr.mxu0 0.0
    %6633 = vmatpush1.msra.mxu0 %v6592
    %6634 = vmatprep.subr.mxu0 0.0
    %6635 = vmatpush1.msra.mxu0 %v6593
    %6636 = vmatprep.subr.mxu0 0.0
    %6637 = vmatpush1.msra.mxu0 %v6594
    %6638 = vmatprep.subr.mxu0 0.0
    %6639 = vmatpush1.msra.mxu0 %v6595
    %6640 = vmatprep.subr.mxu0 0.0
    %6641 = vmatpush1.msra.mxu0 %v6596
    %6642 = vmatprep.subr.mxu0 0.0
    %6643 = vmatpush1.msra.mxu0 %v6597
    %6644 = vmatprep.subr.mxu0 0.0
    %6645 = vmatpush1.msra.mxu0 %v6598
    %6646 = vmatprep.subr.mxu0 0.0
    %6647 = vmatpush1.msra.mxu0 %v6599
    %6648 = vmatprep.subr.mxu0 0.0
    %6649 = vmatpush1.msra.mxu0 %v6600
    %6650 = vmatprep.subr.mxu0 0.0
    %6651 = vmatpush1.msra.mxu0 %v6601
    %6652 = vmatprep.subr.mxu0 0.0
    %6653 = vmatpush1.msra.mxu0 %v6602
    %6654 = vmatprep.subr.mxu0 0.0
    %6655 = vmatpush1.msra.mxu0 %v6603
    %6656 = vmatprep.subr.mxu0 0.0
    %6657 = vmatpush1.msra.mxu0 %v6604
    %6658 = vmatprep.subr.mxu0 0.0
    %6659 = vmatpush1.msra.mxu0 %v6605
    %6660 = vmatprep.subr.mxu0 0.0
    %6661 = vmatpush1.msra.mxu0 %v6606
    %6662 = vmatprep.subr.mxu0 0.0
    %6663 = vmatpush1.msra.mxu0 %v6607
    %6664 = vmatprep.subr.mxu0 0.0
    %6665 = vmatpush1.msra.mxu0 %v6608
    %6666 = vmatprep.subr.mxu0 0.0
    %6667 = vmatpush1.msra.mxu0 %v6609
    %6668 = vmatprep.subr.mxu0 0.0
    %6669 = vmatpush1.msra.mxu0 %v6610
    %6670 = vmatprep.subr.mxu0 0.0
    %6671 = vmatpush1.msra.mxu0 %v6611
    %6672 = vmatprep.subr.mxu0 0.0
    %6673 = vmatpush1.msra.mxu0 %v6612
    %6674 = vmatprep.subr.mxu0 0.0
    %6675 = vmatpush1.msra.mxu0 %v6613
    %6676 = vmatprep.subr.mxu0 0.0
    %6677 = vmatpush1.msra.mxu0 %v6614
    %6678 = vmatprep.subr.mxu0 0.0
    %6679 = vmatpush1.msra.mxu0 %v6615
    %6680 = vmatprep.mubr.f32.mxu0 %v6391
    %6681 = vmatmul.mubr.f32.gmra.mrb[0].mxu0 %v6390
    %v6682 = vpop.f32.mrb[0].mxu0
    %v6683 = vadd.f32 0.0, %v6682
    %v6684 = vpop.f32.mrb[0].mxu0
    %6685 = vdwg.mxu0
    %s6686 = scalar_lea.vmem %s9, 80
    %v6687 = vld [vmem:[%s6686] sm:$0xff]
    %v6688 = vld [vmem:[%s6686 + $0x8] sm:$0xff]
    %v6689 = vld [vmem:[%s6686 + $0x10] sm:$0xff]
    %v6690 = vld [vmem:[%s6686 + $0x18] sm:$0xff]
    %v6691 = vld [vmem:[%s6686 + $0x20] sm:$0xff]
    %v6692 = vld [vmem:[%s6686 + $0x28] sm:$0xff]
    %v6693 = vld [vmem:[%s6686 + $0x30] sm:$0xff]
    %v6694 = vld [vmem:[%s6686 + $0x38] sm:$0xff]
    %v6695 = vld [vmem:[%s6686 + $0x40] sm:$0xff]
    %v6696 = vld [vmem:[%s6686 + $0x48] sm:$0xff]
    %v6698 = vsel %vm124, %v6683, 0
    %6700 = vmatprep.subr.mxu0 0.0
    %6701 = vmatpush1.msra.mxu0 %v6687
    %6702 = vmatprep.subr.mxu0 0.0
    %6703 = vmatpush1.msra.mxu0 %v6688
    %6704 = vmatprep.subr.mxu0 0.0
    %6705 = vmatpush1.msra.mxu0 %v6689
    %6706 = vmatprep.subr.mxu0 0.0
    %6707 = vmatpush1.msra.mxu0 %v6690
    %6708 = vmatprep.subr.mxu0 0.0
    %6709 = vmatpush1.msra.mxu0 %v6691
    %6710 = vmatprep.subr.mxu0 0.0
    %6711 = vmatpush1.msra.mxu0 %v6692
    %6712 = vmatprep.subr.mxu0 0.0
    %6713 = vmatpush1.msra.mxu0 %v6693
    %6714 = vmatprep.subr.mxu0 0.0
    %6715 = vmatpush1.msra.mxu0 %v6694
    %6716 = vmatprep.subr.mxu0 0.0
    %6717 = vmatpush1.msra.mxu0 %v6695
    %6718 = vmatprep.subr.mxu0 0.0
    %6719 = vmatpush1.msra.mxu0 %v6696
    %6720 = vmatprep.subr.mxu0 0.0
    %6721 = vmatpush1.msra.mxu0 0.0
    %6722 = vmatprep.subr.mxu0 0.0
    %6723 = vmatpush1.msra.mxu0 0.0
    %6724 = vmatprep.subr.mxu0 0.0
    %6725 = vmatpush1.msra.mxu0 0.0
    %6726 = vmatprep.subr.mxu0 0.0
    %6727 = vmatpush1.msra.mxu0 0.0
    %6728 = vmatprep.subr.mxu0 0.0
    %6729 = vmatpush1.msra.mxu0 0.0
    %6730 = vmatprep.subr.mxu0 0.0
    %6731 = vmatpush1.msra.mxu0 0.0
    %6732 = vmatprep.subr.mxu0 0.0
    %6733 = vmatpush1.msra.mxu0 0.0
    %6734 = vmatprep.subr.mxu0 0.0
    %6735 = vmatpush1.msra.mxu0 0.0
    %6736 = vmatprep.subr.mxu0 0.0
    %6737 = vmatpush1.msra.mxu0 0.0
    %6738 = vmatprep.subr.mxu0 0.0
    %6739 = vmatpush1.msra.mxu0 0.0
    %6740 = vmatprep.subr.mxu0 0.0
    %6741 = vmatpush1.msra.mxu0 0.0
    %6742 = vmatprep.subr.mxu0 0.0
    %6743 = vmatpush1.msra.mxu0 0.0
    %6744 = vmatprep.subr.mxu0 0.0
    %6745 = vmatpush1.msra.mxu0 0.0
    %6746 = vmatprep.subr.mxu0 0.0
    %6747 = vmatpush1.msra.mxu0 0.0
    %6748 = vmatprep.subr.mxu0 0.0
    %6749 = vmatpush1.msra.mxu0 0.0
    %6750 = vmatprep.subr.mxu0 0.0
    %6751 = vmatpush1.msra.mxu0 0.0
    %6752 = vmatprep.subr.mxu0 0.0
    %6753 = vmatpush1.msra.mxu0 0.0
    %6754 = vmatprep.subr.mxu0 0.0
    %6755 = vmatpush1.msra.mxu0 0.0
    %6756 = vmatprep.subr.mxu0 0.0
    %6757 = vmatpush1.msra.mxu0 0.0
    %6758 = vmatprep.subr.mxu0 0.0
    %6759 = vmatpush1.msra.mxu0 0.0
    %6760 = vmatprep.subr.mxu0 0.0
    %6761 = vmatpush1.msra.mxu0 0.0
    %6762 = vmatprep.subr.mxu0 0.0
    %6763 = vmatpush1.msra.mxu0 0.0
    %6764 = vmatprep.mubr.f32.mxu0 0.0
    %6765 = vmatmul.mubr.f32.gmra.mrb[0].mxu0 %v6698
    %v6766 = vpop.f32.mrb[0].mxu0
    %v6767 = vadd.f32 0.0, %v6766
    %v6768 = vpop.f32.mrb[0].mxu0
    %6769 = vdwg.mxu0
    %v6770 = vadd.f32 %v6583, %v6767
    %v6771 = vld [vmem:[#allocation4 + $0x8] sm:$0xff]
    %v6772 = vld [vmem:[#allocation4 + $0x10] sm:$0xff]
    %v6773 = vld [vmem:[#allocation4 + $0x18] sm:$0xff]
    %v6774 = vld [vmem:[#allocation4 + $0x20] sm:$0xff]
    %v6775 = vld [vmem:[#allocation4 + $0x28] sm:$0xff]
    %v6776 = vld [vmem:[#allocation4 + $0x30] sm:$0xff]
    %v6777 = vld [vmem:[#allocation4 + $0x38] sm:$0xff]
    %v6778 = vld [vmem:[#allocation4 + $0x40] sm:$0xff]
    %v6779 = vld [vmem:[#allocation4 + $0x48] sm:$0xff]
    %v6780 = vld [vmem:[#allocation4 + $0x50] sm:$0xff]
    %v6781 = vld [vmem:[#allocation4 + $0x58] sm:$0xff]
    %v6782 = vld [vmem:[#allocation4 + $0x60] sm:$0xff]
    %v6783 = vld [vmem:[#allocation4 + $0x68] sm:$0xff]
    %v6784 = vld [vmem:[#allocation4 + $0x70] sm:$0xff]
    %v6785 = vld [vmem:[#allocation4 + $0x78] sm:$0xff]
    %v6786 = vld [vmem:[#allocation4 + $0x80] sm:$0xff]
    %v6787 = vld [vmem:[#allocation4 + $0x88] sm:$0xff]
    %v6788 = vld [vmem:[#allocation4 + $0x90] sm:$0xff]
    %v6789 = vld [vmem:[#allocation4 + $0x98] sm:$0xff]
    %v6790 = vld [vmem:[#allocation4 + $0xa0] sm:$0xff]
    %v6791 = vld [vmem:[#allocation4 + $0xa8] sm:$0xff]
    %v6792 = vld [vmem:[#allocation4 + $0xb0] sm:$0xff]
    %v6793 = vld [vmem:[#allocation4 + $0xb8] sm:$0xff]
    %v6794 = vld [vmem:[#allocation4 + $0xc0] sm:$0xff]
    %v6795 = vld [vmem:[#allocation4 + $0xc8] sm:$0xff]
    %v6796 = vld [vmem:[#allocation4 + $0xd0] sm:$0xff]
    %v6797 = vld [vmem:[#allocation4 + $0xd8] sm:$0xff]
    %v6798 = vld [vmem:[#allocation4 + $0xe0] sm:$0xff]
    %v6799 = vld [vmem:[#allocation4 + $0xe8] sm:$0xff]
    %v6800 = vld [vmem:[#allocation4 + $0xf0] sm:$0xff]
    %v6801 = vld [vmem:[#allocation4 + $0xf8] sm:$0xff]
    %v6802 = vld [vmem:[#allocation4 + $0x100] sm:$0xff]
    %6803 = vmatprep.subr.mxu0 0.0
    %6804 = vmatpush1.msra.mxu0 %v6771
    %6805 = vmatprep.subr.mxu0 0.0
    %6806 = vmatpush1.msra.mxu0 %v6772
    %6807 = vmatprep.subr.mxu0 0.0
    %6808 = vmatpush1.msra.mxu0 %v6773
    %6809 = vmatprep.subr.mxu0 0.0
    %6810 = vmatpush1.msra.mxu0 %v6774
    %6811 = vmatprep.subr.mxu0 0.0
    %6812 = vmatpush1.msra.mxu0 %v6775
    %6813 = vmatprep.subr.mxu0 0.0
    %6814 = vmatpush1.msra.mxu0 %v6776
    %6815 = vmatprep.subr.mxu0 0.0
    %6816 = vmatpush1.msra.mxu0 %v6777
    %6817 = vmatprep.subr.mxu0 0.0
    %6818 = vmatpush1.msra.mxu0 %v6778
    %6819 = vmatprep.subr.mxu0 0.0
    %6820 = vmatpush1.msra.mxu0 %v6779
    %6821 = vmatprep.subr.mxu0 0.0
    %6822 = vmatpush1.msra.mxu0 %v6780
    %6823 = vmatprep.subr.mxu0 0.0
    %6824 = vmatpush1.msra.mxu0 %v6781
    %6825 = vmatprep.subr.mxu0 0.0
    %6826 = vmatpush1.msra.mxu0 %v6782
    %6827 = vmatprep.subr.mxu0 0.0
    %6828 = vmatpush1.msra.mxu0 %v6783
    %6829 = vmatprep.subr.mxu0 0.0
    %6830 = vmatpush1.msra.mxu0 %v6784
    %6831 = vmatprep.subr.mxu0 0.0
    %6832 = vmatpush1.msra.mxu0 %v6785
    %6833 = vmatprep.subr.mxu0 0.0
    %6834 = vmatpush1.msra.mxu0 %v6786
    %6835 = vmatprep.subr.mxu0 0.0
    %6836 = vmatpush1.msra.mxu0 %v6787
    %6837 = vmatprep.subr.mxu0 0.0
    %6838 = vmatpush1.msra.mxu0 %v6788
    %6839 = vmatprep.subr.mxu0 0.0
    %6840 = vmatpush1.msra.mxu0 %v6789
    %6841 = vmatprep.subr.mxu0 0.0
    %6842 = vmatpush1.msra.mxu0 %v6790
    %6843 = vmatprep.subr.mxu0 0.0
    %6844 = vmatpush1.msra.mxu0 %v6791
    %6845 = vmatprep.subr.mxu0 0.0
    %6846 = vmatpush1.msra.mxu0 %v6792
    %6847 = vmatprep.subr.mxu0 0.0
    %6848 = vmatpush1.msra.mxu0 %v6793
    %6849 = vmatprep.subr.mxu0 0.0
    %6850 = vmatpush1.msra.mxu0 %v6794
    %6851 = vmatprep.subr.mxu0 0.0
    %6852 = vmatpush1.msra.mxu0 %v6795
    %6853 = vmatprep.subr.mxu0 0.0
    %6854 = vmatpush1.msra.mxu0 %v6796
    %6855 = vmatprep.subr.mxu0 0.0
    %6856 = vmatpush1.msra.mxu0 %v6797
    %6857 = vmatprep.subr.mxu0 0.0
    %6858 = vmatpush1.msra.mxu0 %v6798
    %6859 = vmatprep.subr.mxu0 0.0
    %6860 = vmatpush1.msra.mxu0 %v6799
    %6861 = vmatprep.subr.mxu0 0.0
    %6862 = vmatpush1.msra.mxu0 %v6800
    %6863 = vmatprep.subr.mxu0 0.0
    %6864 = vmatpush1.msra.mxu0 %v6801
    %6865 = vmatprep.subr.mxu0 0.0
    %6866 = vmatpush1.msra.mxu0 %v6802
    %6867 = vmatprep.mubr.f32.mxu0 %v6391
    %6868 = vmatmul.mubr.f32.gmra.mrb[0].mxu0 %v6390
    %v6869 = vpop.f32.mrb[0].mxu0
    %v6870 = vadd.f32 0.0, %v6869
    %v6871 = vpop.f32.mrb[0].mxu0
    %6872 = vdwg.mxu0
    %s6873 = scalar_lea.vmem %s9, 160
    %v6874 = vld [vmem:[%s6873] sm:$0xff]
    %v6875 = vld [vmem:[%s6873 + $0x8] sm:$0xff]
    %v6876 = vld [vmem:[%s6873 + $0x10] sm:$0xff]
    %v6877 = vld [vmem:[%s6873 + $0x18] sm:$0xff]
    %v6878 = vld [vmem:[%s6873 + $0x20] sm:$0xff]
    %v6879 = vld [vmem:[%s6873 + $0x28] sm:$0xff]
    %v6880 = vld [vmem:[%s6873 + $0x30] sm:$0xff]
    %v6881 = vld [vmem:[%s6873 + $0x38] sm:$0xff]
    %v6882 = vld [vmem:[%s6873 + $0x40] sm:$0xff]
    %v6883 = vld [vmem:[%s6873 + $0x48] sm:$0xff]
    %v6885 = vsel %vm124, %v6870, 0
    %6887 = vmatprep.subr.mxu0 0.0
    %6888 = vmatpush1.msra.mxu0 %v6874
    %6889 = vmatprep.subr.mxu0 0.0
    %6890 = vmatpush1.msra.mxu0 %v6875
    %6891 = vmatprep.subr.mxu0 0.0
    %6892 = vmatpush1.msra.mxu0 %v6876
    %6893 = vmatprep.subr.mxu0 0.0
    %6894 = vmatpush1.msra.mxu0 %v6877
    %6895 = vmatprep.subr.mxu0 0.0
    %6896 = vmatpush1.msra.mxu0 %v6878
    %6897 = vmatprep.subr.mxu0 0.0
    %6898 = vmatpush1.msra.mxu0 %v6879
    %6899 = vmatprep.subr.mxu0 0.0
    %6900 = vmatpush1.msra.mxu0 %v6880
    %6901 = vmatprep.subr.mxu0 0.0
    %6902 = vmatpush1.msra.mxu0 %v6881
    %6903 = vmatprep.subr.mxu0 0.0
    %6904 = vmatpush1.msra.mxu0 %v6882
    %6905 = vmatprep.subr.mxu0 0.0
    %6906 = vmatpush1.msra.mxu0 %v6883
    %6907 = vmatprep.subr.mxu0 0.0
    %6908 = vmatpush1.msra.mxu0 0.0
    %6909 = vmatprep.subr.mxu0 0.0
    %6910 = vmatpush1.msra.mxu0 0.0
    %6911 = vmatprep.subr.mxu0 0.0
    %6912 = vmatpush1.msra.mxu0 0.0
    %6913 = vmatprep.subr.mxu0 0.0
    %6914 = vmatpush1.msra.mxu0 0.0
    %6915 = vmatprep.subr.mxu0 0.0
    %6916 = vmatpush1.msra.mxu0 0.0
    %6917 = vmatprep.subr.mxu0 0.0
    %6918 = vmatpush1.msra.mxu0 0.0
    %6919 = vmatprep.subr.mxu0 0.0
    %6920 = vmatpush1.msra.mxu0 0.0
    %6921 = vmatprep.subr.mxu0 0.0
    %6922 = vmatpush1.msra.mxu0 0.0
    %6923 = vmatprep.subr.mxu0 0.0
    %6924 = vmatpush1.msra.mxu0 0.0
    %6925 = vmatprep.subr.mxu0 0.0
    %6926 = vmatpush1.msra.mxu0 0.0
    %6927 = vmatprep.subr.mxu0 0.0
    %6928 = vmatpush1.msra.mxu0 0.0
    %6929 = vmatprep.subr.mxu0 0.0
    %6930 = vmatpush1.msra.mxu0 0.0
    %6931 = vmatprep.subr.mxu0 0.0
    %6932 = vmatpush1.msra.mxu0 0.0
    %6933 = vmatprep.subr.mxu0 0.0
    %6934 = vmatpush1.msra.mxu0 0.0
    %6935 = vmatprep.subr.mxu0 0.0
    %6936 = vmatpush1.msra.mxu0 0.0
    %6937 = vmatprep.subr.mxu0 0.0
    %6938 = vmatpush1.msra.mxu0 0.0
    %6939 = vmatprep.subr.mxu0 0.0
    %6940 = vmatpush1.msra.mxu0 0.0
    %6941 = vmatprep.subr.mxu0 0.0
    %6942 = vmatpush1.msra.mxu0 0.0
    %6943 = vmatprep.subr.mxu0 0.0
    %6944 = vmatpush1.msra.mxu0 0.0
    %6945 = vmatprep.subr.mxu0 0.0
    %6946 = vmatpush1.msra.mxu0 0.0
    %6947 = vmatprep.subr.mxu0 0.0
    %6948 = vmatpush1.msra.mxu0 0.0
    %6949 = vmatprep.subr.mxu0 0.0
    %6950 = vmatpush1.msra.mxu0 0.0
    %6951 = vmatprep.mubr.f32.mxu0 0.0
    %6952 = vmatmul.mubr.f32.gmra.mrb[0].mxu0 %v6885
    %v6953 = vpop.f32.mrb[0].mxu0
    %v6954 = vadd.f32 0.0, %v6953
    %v6955 = vpop.f32.mrb[0].mxu0
    %6956 = vdwg.mxu0
    %v6957 = vadd.f32 %v6770, %v6954
    %v6958 = vld [vmem:[#allocation4 + $0xc] sm:$0xff]
    %v6959 = vld [vmem:[#allocation4 + $0x14] sm:$0xff]
    %v6960 = vld [vmem:[#allocation4 + $0x1c] sm:$0xff]
    %v6961 = vld [vmem:[#allocation4 + $0x24] sm:$0xff]
    %v6962 = vld [vmem:[#allocation4 + $0x2c] sm:$0xff]
    %v6963 = vld [vmem:[#allocation4 + $0x34] sm:$0xff]
    %v6964 = vld [vmem:[#allocation4 + $0x3c] sm:$0xff]
    %v6965 = vld [vmem:[#allocation4 + $0x44] sm:$0xff]
    %v6966 = vld [vmem:[#allocation4 + $0x4c] sm:$0xff]
    %v6967 = vld [vmem:[#allocation4 + $0x54] sm:$0xff]
    %v6968 = vld [vmem:[#allocation4 + $0x5c] sm:$0xff]
    %v6969 = vld [vmem:[#allocation4 + $0x64] sm:$0xff]
    %v6970 = vld [vmem:[#allocation4 + $0x6c] sm:$0xff]
    %v6971 = vld [vmem:[#allocation4 + $0x74] sm:$0xff]
    %v6972 = vld [vmem:[#allocation4 + $0x7c] sm:$0xff]
    %v6973 = vld [vmem:[#allocation4 + $0x84] sm:$0xff]
    %v6974 = vld [vmem:[#allocation4 + $0x8c] sm:$0xff]
    %v6975 = vld [vmem:[#allocation4 + $0x94] sm:$0xff]
    %v6976 = vld [vmem:[#allocation4 + $0x9c] sm:$0xff]
    %v6977 = vld [vmem:[#allocation4 + $0xa4] sm:$0xff]
    %v6978 = vld [vmem:[#allocation4 + $0xac] sm:$0xff]
    %v6979 = vld [vmem:[#allocation4 + $0xb4] sm:$0xff]
    %v6980 = vld [vmem:[#allocation4 + $0xbc] sm:$0xff]
    %v6981 = vld [vmem:[#allocation4 + $0xc4] sm:$0xff]
    %v6982 = vld [vmem:[#allocation4 + $0xcc] sm:$0xff]
    %v6983 = vld [vmem:[#allocation4 + $0xd4] sm:$0xff]
    %v6984 = vld [vmem:[#allocation4 + $0xdc] sm:$0xff]
    %v6985 = vld [vmem:[#allocation4 + $0xe4] sm:$0xff]
    %v6986 = vld [vmem:[#allocation4 + $0xec] sm:$0xff]
    %v6987 = vld [vmem:[#allocation4 + $0xf4] sm:$0xff]
    %v6988 = vld [vmem:[#allocation4 + $0xfc] sm:$0xff]
    %v6989 = vld [vmem:[#allocation4 + $0x104] sm:$0xff]
    %6990 = vmatprep.subr.mxu0 0.0
    %6991 = vmatpush1.msra.mxu0 %v6958
    %6992 = vmatprep.subr.mxu0 0.0
    %6993 = vmatpush1.msra.mxu0 %v6959
    %6994 = vmatprep.subr.mxu0 0.0
    %6995 = vmatpush1.msra.mxu0 %v6960
    %6996 = vmatprep.subr.mxu0 0.0
    %6997 = vmatpush1.msra.mxu0 %v6961
    %6998 = vmatprep.subr.mxu0 0.0
    %6999 = vmatpush1.msra.mxu0 %v6962
    %7000 = vmatprep.subr.mxu0 0.0
    %7001 = vmatpush1.msra.mxu0 %v6963
    %7002 = vmatprep.subr.mxu0 0.0
    %7003 = vmatpush1.msra.mxu0 %v6964
    %7004 = vmatprep.subr.mxu0 0.0
    %7005 = vmatpush1.msra.mxu0 %v6965
    %7006 = vmatprep.subr.mxu0 0.0
    %7007 = vmatpush1.msra.mxu0 %v6966
    %7008 = vmatprep.subr.mxu0 0.0
    %7009 = vmatpush1.msra.mxu0 %v6967
    %7010 = vmatprep.subr.mxu0 0.0
    %7011 = vmatpush1.msra.mxu0 %v6968
    %7012 = vmatprep.subr.mxu0 0.0
    %7013 = vmatpush1.msra.mxu0 %v6969
    %7014 = vmatprep.subr.mxu0 0.0
    %7015 = vmatpush1.msra.mxu0 %v6970
    %7016 = vmatprep.subr.mxu0 0.0
    %7017 = vmatpush1.msra.mxu0 %v6971
    %7018 = vmatprep.subr.mxu0 0.0
    %7019 = vmatpush1.msra.mxu0 %v6972
    %7020 = vmatprep.subr.mxu0 0.0
    %7021 = vmatpush1.msra.mxu0 %v6973
    %7022 = vmatprep.subr.mxu0 0.0
    %7023 = vmatpush1.msra.mxu0 %v6974
    %7024 = vmatprep.subr.mxu0 0.0
    %7025 = vmatpush1.msra.mxu0 %v6975
    %7026 = vmatprep.subr.mxu0 0.0
    %7027 = vmatpush1.msra.mxu0 %v6976
    %7028 = vmatprep.subr.mxu0 0.0
    %7029 = vmatpush1.msra.mxu0 %v6977
    %7030 = vmatprep.subr.mxu0 0.0
    %7031 = vmatpush1.msra.mxu0 %v6978
    %7032 = vmatprep.subr.mxu0 0.0
    %7033 = vmatpush1.msra.mxu0 %v6979
    %7034 = vmatprep.subr.mxu0 0.0
    %7035 = vmatpush1.msra.mxu0 %v6980
    %7036 = vmatprep.subr.mxu0 0.0
    %7037 = vmatpush1.msra.mxu0 %v6981
    %7038 = vmatprep.subr.mxu0 0.0
    %7039 = vmatpush1.msra.mxu0 %v6982
    %7040 = vmatprep.subr.mxu0 0.0
    %7041 = vmatpush1.msra.mxu0 %v6983
    %7042 = vmatprep.subr.mxu0 0.0
    %7043 = vmatpush1.msra.mxu0 %v6984
    %7044 = vmatprep.subr.mxu0 0.0
    %7045 = vmatpush1.msra.mxu0 %v6985
    %7046 = vmatprep.subr.mxu0 0.0
    %7047 = vmatpush1.msra.mxu0 %v6986
    %7048 = vmatprep.subr.mxu0 0.0
    %7049 = vmatpush1.msra.mxu0 %v6987
    %7050 = vmatprep.subr.mxu0 0.0
    %7051 = vmatpush1.msra.mxu0 %v6988
    %7052 = vmatprep.subr.mxu0 0.0
    %7053 = vmatpush1.msra.mxu0 %v6989
    %7054 = vmatprep.mubr.f32.mxu0 %v6391
    %7055 = vmatmul.mubr.f32.gmra.mrb[0].mxu0 %v6390
    %v7056 = vpop.f32.mrb[0].mxu0
    %v7057 = vadd.f32 0.0, %v7056
    %v7058 = vpop.f32.mrb[0].mxu0
    %7059 = vdwg.mxu0
    %s7060 = scalar_lea.vmem %s9, 240
    %v7061 = vld [vmem:[%s7060] sm:$0xff]
    %v7062 = vld [vmem:[%s7060 + $0x8] sm:$0xff]
    %v7063 = vld [vmem:[%s7060 + $0x10] sm:$0xff]
    %v7064 = vld [vmem:[%s7060 + $0x18] sm:$0xff]
    %v7065 = vld [vmem:[%s7060 + $0x20] sm:$0xff]
    %v7066 = vld [vmem:[%s7060 + $0x28] sm:$0xff]
    %v7067 = vld [vmem:[%s7060 + $0x30] sm:$0xff]
    %v7068 = vld [vmem:[%s7060 + $0x38] sm:$0xff]
    %v7069 = vld [vmem:[%s7060 + $0x40] sm:$0xff]
    %v7070 = vld [vmem:[%s7060 + $0x48] sm:$0xff]
    %v7072 = vsel %vm124, %v7057, 0
    %7074 = vmatprep.subr.mxu0 0.0
    %7075 = vmatpush1.msra.mxu0 %v7061
    %7076 = vmatprep.subr.mxu0 0.0
    %7077 = vmatpush1.msra.mxu0 %v7062
    %7078 = vmatprep.subr.mxu0 0.0
    %7079 = vmatpush1.msra.mxu0 %v7063
    %7080 = vmatprep.subr.mxu0 0.0
    %7081 = vmatpush1.msra.mxu0 %v7064
    %7082 = vmatprep.subr.mxu0 0.0
    %7083 = vmatpush1.msra.mxu0 %v7065
    %7084 = vmatprep.subr.mxu0 0.0
    %7085 = vmatpush1.msra.mxu0 %v7066
    %7086 = vmatprep.subr.mxu0 0.0
    %7087 = vmatpush1.msra.mxu0 %v7067
    %7088 = vmatprep.subr.mxu0 0.0
    %7089 = vmatpush1.msra.mxu0 %v7068
    %7090 = vmatprep.subr.mxu0 0.0
    %7091 = vmatpush1.msra.mxu0 %v7069
    %7092 = vmatprep.subr.mxu0 0.0
    %7093 = vmatpush1.msra.mxu0 %v7070
    %7094 = vmatprep.subr.mxu0 0.0
    %7095 = vmatpush1.msra.mxu0 0.0
    %7096 = vmatprep.subr.mxu0 0.0
    %7097 = vmatpush1.msra.mxu0 0.0
    %7098 = vmatprep.subr.mxu0 0.0
    %7099 = vmatpush1.msra.mxu0 0.0
    %7100 = vmatprep.subr.mxu0 0.0
    %7101 = vmatpush1.msra.mxu0 0.0
    %7102 = vmatprep.subr.mxu0 0.0
    %7103 = vmatpush1.msra.mxu0 0.0
    %7104 = vmatprep.subr.mxu0 0.0
    %7105 = vmatpush1.msra.mxu0 0.0
    %7106 = vmatprep.subr.mxu0 0.0
    %7107 = vmatpush1.msra.mxu0 0.0
    %7108 = vmatprep.subr.mxu0 0.0
    %7109 = vmatpush1.msra.mxu0 0.0
    %7110 = vmatprep.subr.mxu0 0.0
    %7111 = vmatpush1.msra.mxu0 0.0
    %7112 = vmatprep.subr.mxu0 0.0
    %7113 = vmatpush1.msra.mxu0 0.0
    %7114 = vmatprep.subr.mxu0 0.0
    %7115 = vmatpush1.msra.mxu0 0.0
    %7116 = vmatprep.subr.mxu0 0.0
    %7117 = vmatpush1.msra.mxu0 0.0
    %7118 = vmatprep.subr.mxu0 0.0
    %7119 = vmatpush1.msra.mxu0 0.0
    %7120 = vmatprep.subr.mxu0 0.0
    %7121 = vmatpush1.msra.mxu0 0.0
    %7122 = vmatprep.subr.mxu0 0.0
    %7123 = vmatpush1.msra.mxu0 0.0
    %7124 = vmatprep.subr.mxu0 0.0
    %7125 = vmatpush1.msra.mxu0 0.0
    %7126 = vmatprep.subr.mxu0 0.0
    %7127 = vmatpush1.msra.mxu0 0.0
    %7128 = vmatprep.subr.mxu0 0.0
    %7129 = vmatpush1.msra.mxu0 0.0
    %7130 = vmatprep.subr.mxu0 0.0
    %7131 = vmatpush1.msra.mxu0 0.0
    %7132 = vmatprep.subr.mxu0 0.0
    %7133 = vmatpush1.msra.mxu0 0.0
    %7134 = vmatprep.subr.mxu0 0.0
    %7135 = vmatpush1.msra.mxu0 0.0
    %7136 = vmatprep.subr.mxu0 0.0
    %7137 = vmatpush1.msra.mxu0 0.0
    %7138 = vmatprep.mubr.f32.mxu0 0.0
    %7139 = vmatmul.mubr.f32.gmra.mrb[0].mxu0 %v7072
    %v7140 = vpop.f32.mrb[0].mxu0
    %v7141 = vadd.f32 0.0, %v7140
    %v7142 = vpop.f32.mrb[0].mxu0
    %7143 = vdwg.mxu0
    %v7144 = vadd.f32 %v6957, %v7141
    %v7145 = vld [vmem:[#allocation4 + $0x10] sm:$0xff]
    %v7146 = vld [vmem:[#allocation4 + $0x18] sm:$0xff]
    %v7147 = vld [vmem:[#allocation4 + $0x20] sm:$0xff]
    %v7148 = vld [vmem:[#allocation4 + $0x28] sm:$0xff]
    %v7149 = vld [vmem:[#allocation4 + $0x30] sm:$0xff]
    %v7150 = vld [vmem:[#allocation4 + $0x38] sm:$0xff]
    %v7151 = vld [vmem:[#allocation4 + $0x40] sm:$0xff]
    %v7152 = vld [vmem:[#allocation4 + $0x48] sm:$0xff]
    %v7153 = vld [vmem:[#allocation4 + $0x50] sm:$0xff]
    %v7154 = vld [vmem:[#allocation4 + $0x58] sm:$0xff]
    %v7155 = vld [vmem:[#allocation4 + $0x60] sm:$0xff]
    %v7156 = vld [vmem:[#allocation4 + $0x68] sm:$0xff]
    %v7157 = vld [vmem:[#allocation4 + $0x70] sm:$0xff]
    %v7158 = vld [vmem:[#allocation4 + $0x78] sm:$0xff]
    %v7159 = vld [vmem:[#allocation4 + $0x80] sm:$0xff]
    %v7160 = vld [vmem:[#allocation4 + $0x88] sm:$0xff]
    %v7161 = vld [vmem:[#allocation4 + $0x90] sm:$0xff]
    %v7162 = vld [vmem:[#allocation4 + $0x98] sm:$0xff]
    %v7163 = vld [vmem:[#allocation4 + $0xa0] sm:$0xff]
    %v7164 = vld [vmem:[#allocation4 + $0xa8] sm:$0xff]
    %v7165 = vld [vmem:[#allocation4 + $0xb0] sm:$0xff]
    %v7166 = vld [vmem:[#allocation4 + $0xb8] sm:$0xff]
    %v7167 = vld [vmem:[#allocation4 + $0xc0] sm:$0xff]
    %v7168 = vld [vmem:[#allocation4 + $0xc8] sm:$0xff]
    %v7169 = vld [vmem:[#allocation4 + $0xd0] sm:$0xff]
    %v7170 = vld [vmem:[#allocation4 + $0xd8] sm:$0xff]
    %v7171 = vld [vmem:[#allocation4 + $0xe0] sm:$0xff]
    %v7172 = vld [vmem:[#allocation4 + $0xe8] sm:$0xff]
    %v7173 = vld [vmem:[#allocation4 + $0xf0] sm:$0xff]
    %v7174 = vld [vmem:[#allocation4 + $0xf8] sm:$0xff]
    %v7175 = vld [vmem:[#allocation4 + $0x100] sm:$0xff]
    %v7176 = vld [vmem:[#allocation4 + $0x108] sm:$0xff]
    %7177 = vmatprep.subr.mxu0 0.0
    %7178 = vmatpush1.msra.mxu0 %v7145
    %7179 = vmatprep.subr.mxu0 0.0
    %7180 = vmatpush1.msra.mxu0 %v7146
    %7181 = vmatprep.subr.mxu0 0.0
    %7182 = vmatpush1.msra.mxu0 %v7147
    %7183 = vmatprep.subr.mxu0 0.0
    %7184 = vmatpush1.msra.mxu0 %v7148
    %7185 = vmatprep.subr.mxu0 0.0
    %7186 = vmatpush1.msra.mxu0 %v7149
    %7187 = vmatprep.subr.mxu0 0.0
    %7188 = vmatpush1.msra.mxu0 %v7150
    %7189 = vmatprep.subr.mxu0 0.0
    %7190 = vmatpush1.msra.mxu0 %v7151
    %7191 = vmatprep.subr.mxu0 0.0
    %7192 = vmatpush1.msra.mxu0 %v7152
    %7193 = vmatprep.subr.mxu0 0.0
    %7194 = vmatpush1.msra.mxu0 %v7153
    %7195 = vmatprep.subr.mxu0 0.0
    %7196 = vmatpush1.msra.mxu0 %v7154
    %7197 = vmatprep.subr.mxu0 0.0
    %7198 = vmatpush1.msra.mxu0 %v7155
    %7199 = vmatprep.subr.mxu0 0.0
    %7200 = vmatpush1.msra.mxu0 %v7156
    %7201 = vmatprep.subr.mxu0 0.0
    %7202 = vmatpush1.msra.mxu0 %v7157
    %7203 = vmatprep.subr.mxu0 0.0
    %7204 = vmatpush1.msra.mxu0 %v7158
    %7205 = vmatprep.subr.mxu0 0.0
    %7206 = vmatpush1.msra.mxu0 %v7159
    %7207 = vmatprep.subr.mxu0 0.0
    %7208 = vmatpush1.msra.mxu0 %v7160
    %7209 = vmatprep.subr.mxu0 0.0
    %7210 = vmatpush1.msra.mxu0 %v7161
    %7211 = vmatprep.subr.mxu0 0.0
    %7212 = vmatpush1.msra.mxu0 %v7162
    %7213 = vmatprep.subr.mxu0 0.0
    %7214 = vmatpush1.msra.mxu0 %v7163
    %7215 = vmatprep.subr.mxu0 0.0
    %7216 = vmatpush1.msra.mxu0 %v7164
    %7217 = vmatprep.subr.mxu0 0.0
    %7218 = vmatpush1.msra.mxu0 %v7165
    %7219 = vmatprep.subr.mxu0 0.0
    %7220 = vmatpush1.msra.mxu0 %v7166
    %7221 = vmatprep.subr.mxu0 0.0
    %7222 = vmatpush1.msra.mxu0 %v7167
    %7223 = vmatprep.subr.mxu0 0.0
    %7224 = vmatpush1.msra.mxu0 %v7168
    %7225 = vmatprep.subr.mxu0 0.0
    %7226 = vmatpush1.msra.mxu0 %v7169
    %7227 = vmatprep.subr.mxu0 0.0
    %7228 = vmatpush1.msra.mxu0 %v7170
    %7229 = vmatprep.subr.mxu0 0.0
    %7230 = vmatpush1.msra.mxu0 %v7171
    %7231 = vmatprep.subr.mxu0 0.0
    %7232 = vmatpush1.msra.mxu0 %v7172
    %7233 = vmatprep.subr.mxu0 0.0
    %7234 = vmatpush1.msra.mxu0 %v7173
    %7235 = vmatprep.subr.mxu0 0.0
    %7236 = vmatpush1.msra.mxu0 %v7174
    %7237 = vmatprep.subr.mxu0 0.0
    %7238 = vmatpush1.msra.mxu0 %v7175
    %7239 = vmatprep.subr.mxu0 0.0
    %7240 = vmatpush1.msra.mxu0 %v7176
    %7241 = vmatprep.mubr.f32.mxu0 %v6391
    %7242 = vmatmul.mubr.f32.gmra.mrb[0].mxu0 %v6390
    %v7243 = vpop.f32.mrb[0].mxu0
    %v7244 = vadd.f32 0.0, %v7243
    %v7245 = vpop.f32.mrb[0].mxu0
    %7246 = vdwg.mxu0
    %s7247 = scalar_lea.vmem %s9, 320
    %v7248 = vld [vmem:[%s7247] sm:$0xff]
    %v7249 = vld [vmem:[%s7247 + $0x8] sm:$0xff]
    %v7250 = vld [vmem:[%s7247 + $0x10] sm:$0xff]
    %v7251 = vld [vmem:[%s7247 + $0x18] sm:$0xff]
    %v7252 = vld [vmem:[%s7247 + $0x20] sm:$0xff]
    %v7253 = vld [vmem:[%s7247 + $0x28] sm:$0xff]
    %v7254 = vld [vmem:[%s7247 + $0x30] sm:$0xff]
    %v7255 = vld [vmem:[%s7247 + $0x38] sm:$0xff]
    %v7256 = vld [vmem:[%s7247 + $0x40] sm:$0xff]
    %v7257 = vld [vmem:[%s7247 + $0x48] sm:$0xff]
    %v7259 = vsel %vm124, %v7244, 0
    %7261 = vmatprep.subr.mxu0 0.0
    %7262 = vmatpush1.msra.mxu0 %v7248
    %7263 = vmatprep.subr.mxu0 0.0
    %7264 = vmatpush1.msra.mxu0 %v7249
    %7265 = vmatprep.subr.mxu0 0.0
    %7266 = vmatpush1.msra.mxu0 %v7250
    %7267 = vmatprep.subr.mxu0 0.0
    %7268 = vmatpush1.msra.mxu0 %v7251
    %7269 = vmatprep.subr.mxu0 0.0
    %7270 = vmatpush1.msra.mxu0 %v7252
    %7271 = vmatprep.subr.mxu0 0.0
    %7272 = vmatpush1.msra.mxu0 %v7253
    %7273 = vmatprep.subr.mxu0 0.0
    %7274 = vmatpush1.msra.mxu0 %v7254
    %7275 = vmatprep.subr.mxu0 0.0
    %7276 = vmatpush1.msra.mxu0 %v7255
    %7277 = vmatprep.subr.mxu0 0.0
    %7278 = vmatpush1.msra.mxu0 %v7256
    %7279 = vmatprep.subr.mxu0 0.0
    %7280 = vmatpush1.msra.mxu0 %v7257
    %7281 = vmatprep.subr.mxu0 0.0
    %7282 = vmatpush1.msra.mxu0 0.0
    %7283 = vmatprep.subr.mxu0 0.0
    %7284 = vmatpush1.msra.mxu0 0.0
    %7285 = vmatprep.subr.mxu0 0.0
    %7286 = vmatpush1.msra.mxu0 0.0
    %7287 = vmatprep.subr.mxu0 0.0
    %7288 = vmatpush1.msra.mxu0 0.0
    %7289 = vmatprep.subr.mxu0 0.0
    %7290 = vmatpush1.msra.mxu0 0.0
    %7291 = vmatprep.subr.mxu0 0.0
    %7292 = vmatpush1.msra.mxu0 0.0
    %7293 = vmatprep.subr.mxu0 0.0
    %7294 = vmatpush1.msra.mxu0 0.0
    %7295 = vmatprep.subr.mxu0 0.0
    %7296 = vmatpush1.msra.mxu0 0.0
    %7297 = vmatprep.subr.mxu0 0.0
    %7298 = vmatpush1.msra.mxu0 0.0
    %7299 = vmatprep.subr.mxu0 0.0
    %7300 = vmatpush1.msra.mxu0 0.0
    %7301 = vmatprep.subr.mxu0 0.0
    %7302 = vmatpush1.msra.mxu0 0.0
    %7303 = vmatprep.subr.mxu0 0.0
    %7304 = vmatpush1.msra.mxu0 0.0
    %7305 = vmatprep.subr.mxu0 0.0
    %7306 = vmatpush1.msra.mxu0 0.0
    %7307 = vmatprep.subr.mxu0 0.0
    %7308 = vmatpush1.msra.mxu0 0.0
    %7309 = vmatprep.subr.mxu0 0.0
    %7310 = vmatpush1.msra.mxu0 0.0
    %7311 = vmatprep.subr.mxu0 0.0
    %7312 = vmatpush1.msra.mxu0 0.0
    %7313 = vmatprep.subr.mxu0 0.0
    %7314 = vmatpush1.msra.mxu0 0.0
    %7315 = vmatprep.subr.mxu0 0.0
    %7316 = vmatpush1.msra.mxu0 0.0
    %7317 = vmatprep.subr.mxu0 0.0
    %7318 = vmatpush1.msra.mxu0 0.0
    %7319 = vmatprep.subr.mxu0 0.0
    %7320 = vmatpush1.msra.mxu0 0.0
    %7321 = vmatprep.subr.mxu0 0.0
    %7322 = vmatpush1.msra.mxu0 0.0
    %7323 = vmatprep.subr.mxu0 0.0
    %7324 = vmatpush1.msra.mxu0 0.0
    %7325 = vmatprep.mubr.f32.mxu0 0.0
    %7326 = vmatmul.mubr.f32.gmra.mrb[0].mxu0 %v7259
    %v7327 = vpop.f32.mrb[0].mxu0
    %v7328 = vadd.f32 0.0, %v7327
    %v7329 = vpop.f32.mrb[0].mxu0
    %7330 = vdwg.mxu0
    %v7331 = vadd.f32 %v7144, %v7328
    %v7332 = vmax.f32 %v7331, 0.0
    %v7333 = vld [vmem:[%s11] sm:$0xff]
    %v7334 = vld [vmem:[%s11 + $0x8] sm:$0xff]
    %v7335 = vld [vmem:[%s11 + $0x10] sm:$0xff]
    %v7336 = vld [vmem:[%s11 + $0x18] sm:$0xff]
    %v7337 = vld [vmem:[%s11 + $0x20] sm:$0xff]
    %v7338 = vld [vmem:[%s11 + $0x28] sm:$0xff]
    %v7339 = vld [vmem:[%s11 + $0x30] sm:$0xff]
    %v7340 = vld [vmem:[%s11 + $0x38] sm:$0xff]
    %v7341 = vld [vmem:[%s11 + $0x40] sm:$0xff]
    %v7342 = vld [vmem:[%s11 + $0x48] sm:$0xff]
    %v7343 = vld [vmem:[%s11 + $0x50] sm:$0xff]
    %v7344 = vld [vmem:[%s11 + $0x58] sm:$0xff]
    %v7345 = vld [vmem:[%s11 + $0x60] sm:$0xff]
    %v7346 = vld [vmem:[%s11 + $0x68] sm:$0xff]
    %v7347 = vld [vmem:[%s11 + $0x70] sm:$0xff]
    %v7348 = vld [vmem:[%s12] sm:$0x1]
    %v7350 = vlaneseq
    %v7351 = vshrl.u32 %v7350, 7
    %v7352 = vsub.s32 0, %v7351
    %v7353 = vrot.slane %v7348, %v7352
    %vm7355 = vcmask 982016
    %v7357 = vsel %vm7355, %v7332, 0
    %7359 = vmatprep.subr.mxu0 0.0
    %7360 = vmatpush1.msra.mxu0 %v7333
    %7361 = vmatprep.subr.mxu0 0.0
    %7362 = vmatpush1.msra.mxu0 %v7334
    %7363 = vmatprep.subr.mxu0 0.0
    %7364 = vmatpush1.msra.mxu0 %v7335
    %7365 = vmatprep.subr.mxu0 0.0
    %7366 = vmatpush1.msra.mxu0 %v7336
    %7367 = vmatprep.subr.mxu0 0.0
    %7368 = vmatpush1.msra.mxu0 %v7337
    %7369 = vmatprep.subr.mxu0 0.0
    %7370 = vmatpush1.msra.mxu0 %v7338
    %7371 = vmatprep.subr.mxu0 0.0
    %7372 = vmatpush1.msra.mxu0 %v7339
    %7373 = vmatprep.subr.mxu0 0.0
    %7374 = vmatpush1.msra.mxu0 %v7340
    %7375 = vmatprep.subr.mxu0 0.0
    %7376 = vmatpush1.msra.mxu0 %v7341
    %7377 = vmatprep.subr.mxu0 0.0
    %7378 = vmatpush1.msra.mxu0 %v7342
    %7379 = vmatprep.subr.mxu0 0.0
    %7380 = vmatpush1.msra.mxu0 %v7343
    %7381 = vmatprep.subr.mxu0 0.0
    %7382 = vmatpush1.msra.mxu0 %v7344
    %7383 = vmatprep.subr.mxu0 0.0
    %7384 = vmatpush1.msra.mxu0 %v7345
    %7385 = vmatprep.subr.mxu0 0.0
    %7386 = vmatpush1.msra.mxu0 %v7346
    %7387 = vmatprep.subr.mxu0 0.0
    %7388 = vmatpush1.msra.mxu0 %v7347
    %7389 = vmatprep.subr.mxu0 0.0
    %7390 = vmatpush1.msra.mxu0 0.0
    %7391 = vmatprep.subr.mxu0 0.0
    %7392 = vmatpush1.msra.mxu0 0.0
    %7393 = vmatprep.subr.mxu0 0.0
    %7394 = vmatpush1.msra.mxu0 0.0
    %7395 = vmatprep.subr.mxu0 0.0
    %7396 = vmatpush1.msra.mxu0 0.0
    %7397 = vmatprep.subr.mxu0 0.0
    %7398 = vmatpush1.msra.mxu0 0.0
    %7399 = vmatprep.subr.mxu0 0.0
    %7400 = vmatpush1.msra.mxu0 0.0
    %7401 = vmatprep.subr.mxu0 0.0
    %7402 = vmatpush1.msra.mxu0 0.0
    %7403 = vmatprep.subr.mxu0 0.0
    %7404 = vmatpush1.msra.mxu0 0.0
    %7405 = vmatprep.subr.mxu0 0.0
    %7406 = vmatpush1.msra.mxu0 0.0
    %7407 = vmatprep.subr.mxu0 0.0
    %7408 = vmatpush1.msra.mxu0 0.0
    %7409 = vmatprep.subr.mxu0 0.0
    %7410 = vmatpush1.msra.mxu0 0.0
    %7411 = vmatprep.subr.mxu0 0.0
    %7412 = vmatpush1.msra.mxu0 0.0
    %7413 = vmatprep.subr.mxu0 0.0
    %7414 = vmatpush1.msra.mxu0 0.0
    %7415 = vmatprep.subr.mxu0 0.0
    %7416 = vmatpush1.msra.mxu0 0.0
    %7417 = vmatprep.subr.mxu0 0.0
    %7418 = vmatpush1.msra.mxu0 0.0
    %7419 = vmatprep.subr.mxu0 0.0
    %7420 = vmatpush1.msra.mxu0 0.0
    %7421 = vmatprep.subr.mxu0 0.0
    %7422 = vmatpush1.msra.mxu0 0.0
    %7423 = vmatprep.mubr.f32.mxu0 0.0
    %7424 = vmatmul.mubr.f32.gmra.mrb[0].mxu0 %v7357
    %v7425 = vpop.f32.mrb[0].mxu0
    %v7426 = vadd.f32 %v7353, %v7425
    %v7427 = vpop.f32.mrb[0].mxu0
    %7428 = vdwg.mxu0
    %v7429 = vmax.f32 %v7426, 0.0
    %v7430 = vld [vmem:[%s13] sm:$0xff]
    %v7431 = vld [vmem:[%s13 + $0x8] sm:$0xff]
    %v7432 = vld [vmem:[%s13 + $0x10] sm:$0xff]
    %v7433 = vld [vmem:[%s13 + $0x18] sm:$0xff]
    %v7434 = vld [vmem:[%s13 + $0x20] sm:$0xff]
    %v7435 = vld [vmem:[%s13 + $0x28] sm:$0xff]
    %v7436 = vld [vmem:[%s13 + $0x30] sm:$0xff]
    %v7437 = vld [vmem:[%s13 + $0x38] sm:$0xf]
    %v7438 = vld [vmem:[%s14] sm:$0x1]
    %v7440 = vlaneseq
    %v7441 = vshrl.u32 %v7440, 7
    %v7442 = vsub.s32 0, %v7441
    %v7443 = vrot.slane %v7438, %v7442
    %vm7445 = vcmask 490496
    %v7447 = vsel %vm7445, %v7429, 0
    %v7450 = vsel %vm3414, %v7437, 0
    %7452 = vmatprep.subr.mxu0 0.0
    %7453 = vmatpush1.msra.mxu0 %v7430
    %7454 = vmatprep.subr.mxu0 0.0
    %7455 = vmatpush1.msra.mxu0 %v7431
    %7456 = vmatprep.subr.mxu0 0.0
    %7457 = vmatpush1.msra.mxu0 %v7432
    %7458 = vmatprep.subr.mxu0 0.0
    %7459 = vmatpush1.msra.mxu0 %v7433
    %7460 = vmatprep.subr.mxu0 0.0
    %7461 = vmatpush1.msra.mxu0 %v7434
    %7462 = vmatprep.subr.mxu0 0.0
    %7463 = vmatpush1.msra.mxu0 %v7435
    %7464 = vmatprep.subr.mxu0 0.0
    %7465 = vmatpush1.msra.mxu0 %v7436
    %7466 = vmatprep.subr.mxu0 0.0
    %7467 = vmatpush1.msra.mxu0 %v7450
    %7468 = vmatprep.subr.mxu0 0.0
    %7469 = vmatpush1.msra.mxu0 0.0
    %7470 = vmatprep.subr.mxu0 0.0
    %7471 = vmatpush1.msra.mxu0 0.0
    %7472 = vmatprep.subr.mxu0 0.0
    %7473 = vmatpush1.msra.mxu0 0.0
    %7474 = vmatprep.subr.mxu0 0.0
    %7475 = vmatpush1.msra.mxu0 0.0
    %7476 = vmatprep.subr.mxu0 0.0
    %7477 = vmatpush1.msra.mxu0 0.0
    %7478 = vmatprep.subr.mxu0 0.0
    %7479 = vmatpush1.msra.mxu0 0.0
    %7480 = vmatprep.subr.mxu0 0.0
    %7481 = vmatpush1.msra.mxu0 0.0
    %7482 = vmatprep.subr.mxu0 0.0
    %7483 = vmatpush1.msra.mxu0 0.0
    %7484 = vmatprep.subr.mxu0 0.0
    %7485 = vmatpush1.msra.mxu0 0.0
    %7486 = vmatprep.subr.mxu0 0.0
    %7487 = vmatpush1.msra.mxu0 0.0
    %7488 = vmatprep.subr.mxu0 0.0
    %7489 = vmatpush1.msra.mxu0 0.0
    %7490 = vmatprep.subr.mxu0 0.0
    %7491 = vmatpush1.msra.mxu0 0.0
    %7492 = vmatprep.subr.mxu0 0.0
    %7493 = vmatpush1.msra.mxu0 0.0
    %7494 = vmatprep.subr.mxu0 0.0
    %7495 = vmatpush1.msra.mxu0 0.0
    %7496 = vmatprep.subr.mxu0 0.0
    %7497 = vmatpush1.msra.mxu0 0.0
    %7498 = vmatprep.subr.mxu0 0.0
    %7499 = vmatpush1.msra.mxu0 0.0
    %7500 = vmatprep.subr.mxu0 0.0
    %7501 = vmatpush1.msra.mxu0 0.0
    %7502 = vmatprep.subr.mxu0 0.0
    %7503 = vmatpush1.msra.mxu0 0.0
    %7504 = vmatprep.subr.mxu0 0.0
    %7505 = vmatpush1.msra.mxu0 0.0
    %7506 = vmatprep.subr.mxu0 0.0
    %7507 = vmatpush1.msra.mxu0 0.0
    %7508 = vmatprep.subr.mxu0 0.0
    %7509 = vmatpush1.msra.mxu0 0.0
    %7510 = vmatprep.subr.mxu0 0.0
    %7511 = vmatpush1.msra.mxu0 0.0
    %7512 = vmatprep.subr.mxu0 0.0
    %7513 = vmatpush1.msra.mxu0 0.0
    %7514 = vmatprep.subr.mxu0 0.0
    %7515 = vmatpush1.msra.mxu0 0.0
    %7516 = vmatprep.mubr.f32.mxu0 0.0
    %7517 = vmatmul.mubr.f32.gmra.mrb[0].mxu0 %v7447
    %v7518 = vpop.f32.mrb[0].mxu0
    %v7519 = vadd.f32 %v7443, %v7518
    %v7520 = vpop.f32.mrb[0].mxu0
    %7521 = vdwg.mxu0
    %7522 = vst [vmem:[#allocation5] sm:$0xff] %v7519
    // Predicated region
    $region66: #{tpu_custom_call.1} parent=1 // pred_check
      _
    $region67: #{tpu_custom_call.1} parent=1 // pred_check_branch
      %7524 = sbr.rel (0) target = $region69
    $region68: #{tpu_custom_call.1} parent=1 // pred_region
      %s7526 = ssub.s32 128, 128
      %7527 = vsyncadd [#allocation6], %s7526
      %s7529 = sshll.u32 [#allocation5], 4
      %s7530 = int_to_ptr.vmem [resolvable:$true] %s7529
      %7532 = dma.vmem_to_hbm [thread:$0]  %s7530, 128, %s16, [#allocation6]
    $region69: #{tpu_custom_call.1} parent=1 // pred_fallthru
      _
    // Predicated region
    $region70: #{tpu_custom_call.1} parent=1 // pred_check
      _
    $region71: #{tpu_custom_call.1} parent=1 // pred_check_branch
      %7534 = sbr.rel (0) target = $region73
    $region72: #{tpu_custom_call.1} parent=1 // pred_region
      %7535 = dma.done [#allocation6], 128
    $region73: #{tpu_custom_call.1} parent=1 // pred_fallthru
      _
    %7536 = vsyncpa [#allocation6], 1

</llo_original>
